<compile_context>
chip_gen: v7x
topology: tpu7x:2x2x1
jax: 0.10.0
libtpu: 0.0.40
codegen_flags: <defaults>
</compile_context>

<pallas_src>
import math

import jax
import jax.numpy as jnp
from jax.experimental import pallas as pl
from jax.experimental.pallas import tpu as pltpu

NEG_SLOPE = 0.2


# ----------------------------------------------------------------------------
# Pallas kernel (closure over static geometry)
# ----------------------------------------------------------------------------
def _make_resblock_kernel(H, W, C, Wc):
    """Canvas layout: the image, zero-padded by 2 on every side (+2 spare zero
    rows at the bottom), is flattened row-major to (Hc*Wc, C).  A 3x3 conv tap
    (i, j) then reads the row-slice starting at i*Wc + j."""
    P1 = (H + 3) * Wc          # rows of the enlarged first-conv activation
    P2 = H * Wc                # rows of the output (columns >= W are junk)

    def kernel(x_ref, w1_ref, b1_ref, w2_ref, b2_ref, ws_ref, bs_ref,
               mask_ref, o_ref):
        # ---- conv1 (3x3, pad 1): 9 shifted matmuls, f32 accumulation -------
        acc1 = jnp.dot(x_ref[0, pl.ds(0, P1), :].astype(jnp.bfloat16),
                       w1_ref[0], preferred_element_type=jnp.float32)
        for t in range(1, 9):
            i, j = divmod(t, 3)
            a = x_ref[0, pl.ds(i * Wc + j, P1), :].astype(jnp.bfloat16)
            acc1 = acc1 + jnp.dot(a, w1_ref[t],
                                  preferred_element_type=jnp.float32)
        h1 = acc1 + b1_ref[...]
        h1 = jnp.where(h1 > 0.0, h1, NEG_SLOPE * h1)
        # Zero the 1-px border and flat-wrap junk -> exact zero padding for conv2.
        h1 = h1 * mask_ref[...]

        # ---- conv2 (3x3, pad 1): intermediate stays in VMEM ----------------
        acc2 = jnp.dot(h1[0:P2, :].astype(jnp.bfloat16), w2_ref[0],
                       preferred_element_type=jnp.float32)
        for t in range(1, 9):
            i, j = divmod(t, 3)
            d = i * Wc + j
            acc2 = acc2 + jnp.dot(h1[d:d + P2, :].astype(jnp.bfloat16),
                                  w2_ref[t], preferred_element_type=jnp.float32)
        out = acc2 + b2_ref[...]
        out = jnp.where(out > 0.0, out, NEG_SLOPE * out)

        # ---- 1x1 shortcut on the resident x tile + fused residual add ------
        sc = jnp.dot(x_ref[0, pl.ds(2 * Wc + 2, P2), :].astype(jnp.bfloat16),
                     ws_ref[...], preferred_element_type=jnp.float32)
        o_ref[0] = out + sc + bs_ref[...]

    return kernel


# ----------------------------------------------------------------------------
# Parameter init (PyTorch-like fan-in uniform) and one-time kernel-side prep
# ----------------------------------------------------------------------------
def init_resblock_params(channel, key):
    C = channel
    ks = jax.random.split(key, 6)

    def w_init(k, cout, cin, ksz):
        bound = 1.0 / math.sqrt(cin * ksz * ksz)
        return jax.random.uniform(k, (cout, cin, ksz, ksz), jnp.float32, -bound, bound)

    def b_init(k, cout, cin, ksz):
        bound = 1.0 / math.sqrt(cin * ksz * ksz)
        return jax.random.uniform(k, (cout,), jnp.float32, -bound, bound)

    return {
        "w1": w_init(ks[0], C, C, 3), "b1": b_init(ks[1], C, C, 3),
        "w2": w_init(ks[2], C, C, 3), "b2": b_init(ks[3], C, C, 3),
        "ws": w_init(ks[4], C, C, 1), "bs": b_init(ks[5], C, C, 1),
    }


def prep_resblock_params(raw):
    """Hoist weight reshaping / bf16 casting out of the forward pass."""
    C = raw["w1"].shape[0]

    def tap_mat(w):  # (Cout, Cin, 3, 3) -> (9, Cin, Cout), tap-major
        return jnp.transpose(w, (2, 3, 1, 0)).reshape(9, C, C).astype(jnp.bfloat16)

    return {
        "w1": tap_mat(raw["w1"]), "b1": raw["b1"].reshape(1, C).astype(jnp.float32),
        "w2": tap_mat(raw["w2"]), "b2": raw["b2"].reshape(1, C).astype(jnp.float32),
        "ws": raw["ws"][:, :, 0, 0].T.astype(jnp.bfloat16),
        "bs": raw["bs"].reshape(1, C).astype(jnp.float32),
    }


# ----------------------------------------------------------------------------
# Forward
# ----------------------------------------------------------------------------
def _resblock_forward(params, x):
    """x: (N, C, H, W) float32 (PyTorch layout) -> (N, C, H, W) float32."""
    n, c, h, w = x.shape
    wc = w + 4                 # canvas width  (2-px zero border each side)
    hc = h + 6                 # canvas height (2-px border + 2 spare zero rows)
    lc = hc * wc
    p1 = (h + 3) * wc
    p2 = h * wc

    # NHWC canvas, flattened row-major so a conv tap (i, j) is a row shift.
    x_nhwc = jnp.transpose(x, (0, 2, 3, 1))
    xp = jnp.pad(x_nhwc, ((0, 0), (2, 4), (2, 2), (0, 0)))
    xflat = xp.reshape(n, lc, c)

    # Interior mask of the enlarged first-conv activation (constant-folded).
    idx = jnp.arange(p1)
    rr, cc = idx // wc, idx % wc
    mask = (((rr >= 1) & (rr <= h) & (cc >= 1) & (cc <= w))
            .astype(jnp.float32)[:, None])

    kernel = _make_resblock_kernel(h, w, c, wc)
    out_flat = pl.pallas_call(
        kernel,
        out_shape=jax.ShapeDtypeStruct((n, p2, c), jnp.float32),
        grid=(n,),
        in_specs=[
            pl.BlockSpec((1, lc, c), lambda b: (b, 0, 0)),   # x canvas (per image)
            pl.BlockSpec((9, c, c), lambda b: (0, 0, 0)),    # conv1 tap weights
            pl.BlockSpec((1, c), lambda b: (0, 0)),          # bias1
            pl.BlockSpec((9, c, c), lambda b: (0, 0, 0)),    # conv2 tap weights
            pl.BlockSpec((1, c), lambda b: (0, 0)),          # bias2
            pl.BlockSpec((c, c), lambda b: (0, 0)),          # 1x1 shortcut weight
            pl.BlockSpec((1, c), lambda b: (0, 0)),          # shortcut bias
            pl.BlockSpec((p1, 1), lambda b: (0, 0)),         # border mask
        ],
        out_specs=pl.BlockSpec((1, p2, c), lambda b: (b, 0, 0)),
        compiler_params=pltpu.CompilerParams(
            dimension_semantics=("parallel",)),
    )(xflat, params["w1"], params["b1"], params["w2"], params["b2"],
      params["ws"], params["bs"], mask)

    out = out_flat.reshape(n, h, wc, c)[:, :, :w, :]
    return jnp.transpose(out, (0, 3, 1, 2))


resblock_forward = jax.jit(_resblock_forward)


# ----------------------------------------------------------------------------
# Pure-JAX reference (f32) for correctness checking
# ----------------------------------------------------------------------------
def _resblock_reference(raw, x):
    def conv(v, wt, bias, pad):
        y = jax.lax.conv_general_dilated(
            v, wt, window_strides=(1, 1), padding=[(pad, pad), (pad, pad)],
            dimension_numbers=("NCHW", "OIHW", "NCHW"))
        return y + bias[None, :, None, None]

    def lrelu(v):
        return jnp.where(v > 0, v, NEG_SLOPE * v)

    out = lrelu(conv(x, raw["w1"], raw["b1"], 1))
    out = lrelu(conv(out, raw["w2"], raw["b2"], 1))
    short = conv(x, raw["ws"], raw["bs"], 0)
    return out + short


# ----------------------------------------------------------------------------
if __name__ == "__main__":
    channel = 4
    key = jax.random.PRNGKey(0)
    k_params, k_x = jax.random.split(key)

    raw = init_resblock_params(channel, k_params)
    params = prep_resblock_params(raw)
    x = jax.random.uniform(k_x, (2, channel, 16, 16), jnp.float32)

    out = jax.block_until_ready(resblock_forward(params, x))
    assert out.shape == (2, channel, 16, 16)
    assert bool(jnp.all(jnp.isfinite(out)))

    ref = jax.block_until_ready(_resblock_reference(raw, x))
    rel_err = float(jnp.linalg.norm(out - ref) / (jnp.linalg.norm(ref) + 1e-12))
    # bf16 MXU operands with f32 accumulation -> sub-percent relative error expected.
    assert rel_err < 3e-2, f"relative error too large: {rel_err}"

    print("KERNEL_OK")
</pallas_src>

<mosaic_0001>
module attributes {stable_mosaic.version = 11 : i64} {
  func.func @kernel(%arg0: i32, %arg1: memref<1x440x4xf32, #tpu.memory_space<vmem>>, %arg2: memref<9x4x4xbf16, #tpu.memory_space<vmem>>, %arg3: memref<1x4xf32, #tpu.memory_space<vmem>>, %arg4: memref<9x4x4xbf16, #tpu.memory_space<vmem>>, %arg5: memref<1x4xf32, #tpu.memory_space<vmem>>, %arg6: memref<4x4xbf16, #tpu.memory_space<vmem>>, %arg7: memref<1x4xf32, #tpu.memory_space<vmem>>, %arg8: memref<380x1xf32, #tpu.memory_space<vmem>>, %arg9: memref<1x320x4xf32, #tpu.memory_space<vmem>>) attributes {dimension_semantics = [#tpu.dimension_semantics<parallel>], iteration_bounds = array<i64: 2>, scalar_prefetch = 0 : i64, scratch_operands = 0 : i64, tpu.core_type = #tpu.core_type<tc>, window_params = [{transform_indices = @transform_0, window_bounds = array<i64: 1, 440, 4>}, {pipeline_mode = #tpu.pipeline_mode<synchronous>, transform_indices = @transform_1, window_bounds = array<i64: 9, 4, 4>}, {pipeline_mode = #tpu.pipeline_mode<synchronous>, transform_indices = @transform_2, window_bounds = array<i64: 1, 4>}, {pipeline_mode = #tpu.pipeline_mode<synchronous>, transform_indices = @transform_3, window_bounds = array<i64: 9, 4, 4>}, {pipeline_mode = #tpu.pipeline_mode<synchronous>, transform_indices = @transform_4, window_bounds = array<i64: 1, 4>}, {pipeline_mode = #tpu.pipeline_mode<synchronous>, transform_indices = @transform_5, window_bounds = array<i64: 4, 4>}, {pipeline_mode = #tpu.pipeline_mode<synchronous>, transform_indices = @transform_6, window_bounds = array<i64: 1, 4>}, {pipeline_mode = #tpu.pipeline_mode<synchronous>, transform_indices = @transform_7, window_bounds = array<i64: 380, 1>}, {transform_indices = @transform_8, window_bounds = array<i64: 1, 320, 4>}]} {
    %c0 = arith.constant 0 : index
    %c0_0 = arith.constant 0 : index
    %c0_1 = arith.constant 0 : index
    %0 = vector.load %arg1[%c0, %c0_0, %c0_1] : memref<1x440x4xf32, #tpu.memory_space<vmem>>, vector<1x380x4xf32>
    %1 = vector.shape_cast %0 : vector<1x380x4xf32> to vector<380x4xf32>
    %2 = arith.truncf %1 : vector<380x4xf32> to vector<380x4xbf16>
    %c0_2 = arith.constant 0 : index
    %c0_3 = arith.constant 0 : index
    %c0_4 = arith.constant 0 : index
    %3 = vector.load %arg2[%c0_2, %c0_3, %c0_4] : memref<9x4x4xbf16, #tpu.memory_space<vmem>>, vector<1x4x4xbf16>
    %4 = vector.shape_cast %3 : vector<1x4x4xbf16> to vector<4x4xbf16>
    %cst = arith.constant dense<0.000000e+00> : vector<380x4xf32>
    %5 = tpu.matmul %2, %4, %cst {dimension_numbers = #tpu.dot_dimension_numbers<[1], [0], [0], [1], [0, 0, 1, 1], [], []>} : vector<380x4xbf16>, vector<4x4xbf16>, vector<380x4xf32> -> vector<380x4xf32>
    %c0_5 = arith.constant 0 : index
    %c1 = arith.constant 1 : index
    %c0_6 = arith.constant 0 : index
    %6 = vector.load %arg1[%c0_5, %c1, %c0_6] : memref<1x440x4xf32, #tpu.memory_space<vmem>>, vector<1x380x4xf32>
    %7 = vector.shape_cast %6 : vector<1x380x4xf32> to vector<380x4xf32>
    %8 = arith.truncf %7 : vector<380x4xf32> to vector<380x4xbf16>
    %c1_7 = arith.constant 1 : index
    %c0_8 = arith.constant 0 : index
    %c0_9 = arith.constant 0 : index
    %9 = vector.load %arg2[%c1_7, %c0_8, %c0_9] : memref<9x4x4xbf16, #tpu.memory_space<vmem>>, vector<1x4x4xbf16>
    %10 = vector.shape_cast %9 : vector<1x4x4xbf16> to vector<4x4xbf16>
    %cst_10 = arith.constant dense<0.000000e+00> : vector<380x4xf32>
    %11 = tpu.matmul %8, %10, %cst_10 {dimension_numbers = #tpu.dot_dimension_numbers<[1], [0], [0], [1], [0, 0, 1, 1], [], []>} : vector<380x4xbf16>, vector<4x4xbf16>, vector<380x4xf32> -> vector<380x4xf32>
    %12 = arith.addf %5, %11 : vector<380x4xf32>
    %c0_11 = arith.constant 0 : index
    %c2 = arith.constant 2 : index
    %c0_12 = arith.constant 0 : index
    %13 = vector.load %arg1[%c0_11, %c2, %c0_12] : memref<1x440x4xf32, #tpu.memory_space<vmem>>, vector<1x380x4xf32>
    %14 = vector.shape_cast %13 : vector<1x380x4xf32> to vector<380x4xf32>
    %15 = arith.truncf %14 : vector<380x4xf32> to vector<380x4xbf16>
    %c2_13 = arith.constant 2 : index
    %c0_14 = arith.constant 0 : index
    %c0_15 = arith.constant 0 : index
    %16 = vector.load %arg2[%c2_13, %c0_14, %c0_15] : memref<9x4x4xbf16, #tpu.memory_space<vmem>>, vector<1x4x4xbf16>
    %17 = vector.shape_cast %16 : vector<1x4x4xbf16> to vector<4x4xbf16>
    %cst_16 = arith.constant dense<0.000000e+00> : vector<380x4xf32>
    %18 = tpu.matmul %15, %17, %cst_16 {dimension_numbers = #tpu.dot_dimension_numbers<[1], [0], [0], [1], [0, 0, 1, 1], [], []>} : vector<380x4xbf16>, vector<4x4xbf16>, vector<380x4xf32> -> vector<380x4xf32>
    %19 = arith.addf %12, %18 : vector<380x4xf32>
    %c0_17 = arith.constant 0 : index
    %c20 = arith.constant 20 : index
    %c0_18 = arith.constant 0 : index
    %20 = vector.load %arg1[%c0_17, %c20, %c0_18] : memref<1x440x4xf32, #tpu.memory_space<vmem>>, vector<1x380x4xf32>
    %21 = vector.shape_cast %20 : vector<1x380x4xf32> to vector<380x4xf32>
    %22 = arith.truncf %21 : vector<380x4xf32> to vector<380x4xbf16>
    %c3 = arith.constant 3 : index
    %c0_19 = arith.constant 0 : index
    %c0_20 = arith.constant 0 : index
    %23 = vector.load %arg2[%c3, %c0_19, %c0_20] : memref<9x4x4xbf16, #tpu.memory_space<vmem>>, vector<1x4x4xbf16>
    %24 = vector.shape_cast %23 : vector<1x4x4xbf16> to vector<4x4xbf16>
    %cst_21 = arith.constant dense<0.000000e+00> : vector<380x4xf32>
    %25 = tpu.matmul %22, %24, %cst_21 {dimension_numbers = #tpu.dot_dimension_numbers<[1], [0], [0], [1], [0, 0, 1, 1], [], []>} : vector<380x4xbf16>, vector<4x4xbf16>, vector<380x4xf32> -> vector<380x4xf32>
    %26 = arith.addf %19, %25 : vector<380x4xf32>
    %c0_22 = arith.constant 0 : index
    %c21 = arith.constant 21 : index
    %c0_23 = arith.constant 0 : index
    %27 = vector.load %arg1[%c0_22, %c21, %c0_23] : memref<1x440x4xf32, #tpu.memory_space<vmem>>, vector<1x380x4xf32>
    %28 = vector.shape_cast %27 : vector<1x380x4xf32> to vector<380x4xf32>
    %29 = arith.truncf %28 : vector<380x4xf32> to vector<380x4xbf16>
    %c4 = arith.constant 4 : index
    %c0_24 = arith.constant 0 : index
    %c0_25 = arith.constant 0 : index
    %30 = vector.load %arg2[%c4, %c0_24, %c0_25] : memref<9x4x4xbf16, #tpu.memory_space<vmem>>, vector<1x4x4xbf16>
    %31 = vector.shape_cast %30 : vector<1x4x4xbf16> to vector<4x4xbf16>
    %cst_26 = arith.constant dense<0.000000e+00> : vector<380x4xf32>
    %32 = tpu.matmul %29, %31, %cst_26 {dimension_numbers = #tpu.dot_dimension_numbers<[1], [0], [0], [1], [0, 0, 1, 1], [], []>} : vector<380x4xbf16>, vector<4x4xbf16>, vector<380x4xf32> -> vector<380x4xf32>
    %33 = arith.addf %26, %32 : vector<380x4xf32>
    %c0_27 = arith.constant 0 : index
    %c22 = arith.constant 22 : index
    %c0_28 = arith.constant 0 : index
    %34 = vector.load %arg1[%c0_27, %c22, %c0_28] : memref<1x440x4xf32, #tpu.memory_space<vmem>>, vector<1x380x4xf32>
    %35 = vector.shape_cast %34 : vector<1x380x4xf32> to vector<380x4xf32>
    %36 = arith.truncf %35 : vector<380x4xf32> to vector<380x4xbf16>
    %c5 = arith.constant 5 : index
    %c0_29 = arith.constant 0 : index
    %c0_30 = arith.constant 0 : index
    %37 = vector.load %arg2[%c5, %c0_29, %c0_30] : memref<9x4x4xbf16, #tpu.memory_space<vmem>>, vector<1x4x4xbf16>
    %38 = vector.shape_cast %37 : vector<1x4x4xbf16> to vector<4x4xbf16>
    %cst_31 = arith.constant dense<0.000000e+00> : vector<380x4xf32>
    %39 = tpu.matmul %36, %38, %cst_31 {dimension_numbers = #tpu.dot_dimension_numbers<[1], [0], [0], [1], [0, 0, 1, 1], [], []>} : vector<380x4xbf16>, vector<4x4xbf16>, vector<380x4xf32> -> vector<380x4xf32>
    %40 = arith.addf %33, %39 : vector<380x4xf32>
    %c0_32 = arith.constant 0 : index
    %c40 = arith.constant 40 : index
    %c0_33 = arith.constant 0 : index
    %41 = vector.load %arg1[%c0_32, %c40, %c0_33] : memref<1x440x4xf32, #tpu.memory_space<vmem>>, vector<1x380x4xf32>
    %42 = vector.shape_cast %41 : vector<1x380x4xf32> to vector<380x4xf32>
    %43 = arith.truncf %42 : vector<380x4xf32> to vector<380x4xbf16>
    %c6 = arith.constant 6 : index
    %c0_34 = arith.constant 0 : index
    %c0_35 = arith.constant 0 : index
    %44 = vector.load %arg2[%c6, %c0_34, %c0_35] : memref<9x4x4xbf16, #tpu.memory_space<vmem>>, vector<1x4x4xbf16>
    %45 = vector.shape_cast %44 : vector<1x4x4xbf16> to vector<4x4xbf16>
    %cst_36 = arith.constant dense<0.000000e+00> : vector<380x4xf32>
    %46 = tpu.matmul %43, %45, %cst_36 {dimension_numbers = #tpu.dot_dimension_numbers<[1], [0], [0], [1], [0, 0, 1, 1], [], []>} : vector<380x4xbf16>, vector<4x4xbf16>, vector<380x4xf32> -> vector<380x4xf32>
    %47 = arith.addf %40, %46 : vector<380x4xf32>
    %c0_37 = arith.constant 0 : index
    %c41 = arith.constant 41 : index
    %c0_38 = arith.constant 0 : index
    %48 = vector.load %arg1[%c0_37, %c41, %c0_38] : memref<1x440x4xf32, #tpu.memory_space<vmem>>, vector<1x380x4xf32>
    %49 = vector.shape_cast %48 : vector<1x380x4xf32> to vector<380x4xf32>
    %50 = arith.truncf %49 : vector<380x4xf32> to vector<380x4xbf16>
    %c7 = arith.constant 7 : index
    %c0_39 = arith.constant 0 : index
    %c0_40 = arith.constant 0 : index
    %51 = vector.load %arg2[%c7, %c0_39, %c0_40] : memref<9x4x4xbf16, #tpu.memory_space<vmem>>, vector<1x4x4xbf16>
    %52 = vector.shape_cast %51 : vector<1x4x4xbf16> to vector<4x4xbf16>
    %cst_41 = arith.constant dense<0.000000e+00> : vector<380x4xf32>
    %53 = tpu.matmul %50, %52, %cst_41 {dimension_numbers = #tpu.dot_dimension_numbers<[1], [0], [0], [1], [0, 0, 1, 1], [], []>} : vector<380x4xbf16>, vector<4x4xbf16>, vector<380x4xf32> -> vector<380x4xf32>
    %54 = arith.addf %47, %53 : vector<380x4xf32>
    %c0_42 = arith.constant 0 : index
    %c42 = arith.constant 42 : index
    %c0_43 = arith.constant 0 : index
    %55 = vector.load %arg1[%c0_42, %c42, %c0_43] : memref<1x440x4xf32, #tpu.memory_space<vmem>>, vector<1x380x4xf32>
    %56 = vector.shape_cast %55 : vector<1x380x4xf32> to vector<380x4xf32>
    %57 = arith.truncf %56 : vector<380x4xf32> to vector<380x4xbf16>
    %c8 = arith.constant 8 : index
    %c0_44 = arith.constant 0 : index
    %c0_45 = arith.constant 0 : index
    %58 = vector.load %arg2[%c8, %c0_44, %c0_45] : memref<9x4x4xbf16, #tpu.memory_space<vmem>>, vector<1x4x4xbf16>
    %59 = vector.shape_cast %58 : vector<1x4x4xbf16> to vector<4x4xbf16>
    %cst_46 = arith.constant dense<0.000000e+00> : vector<380x4xf32>
    %60 = tpu.matmul %57, %59, %cst_46 {dimension_numbers = #tpu.dot_dimension_numbers<[1], [0], [0], [1], [0, 0, 1, 1], [], []>} : vector<380x4xbf16>, vector<4x4xbf16>, vector<380x4xf32> -> vector<380x4xf32>
    %61 = arith.addf %54, %60 : vector<380x4xf32>
    %c0_47 = arith.constant 0 : index
    %c0_48 = arith.constant 0 : index
    %62 = vector.load %arg3[%c0_47, %c0_48] : memref<1x4xf32, #tpu.memory_space<vmem>>, vector<1x4xf32>
    %63 = vector.broadcast %62 : vector<1x4xf32> to vector<380x4xf32>
    %64 = arith.addf %61, %63 : vector<380x4xf32>
    %cst_49 = arith.constant 0.000000e+00 : f32
    %65 = vector.broadcast %cst_49 : f32 to vector<380x4xf32>
    %66 = arith.cmpf ogt, %64, %65 : vector<380x4xf32>
    %cst_50 = arith.constant 2.000000e-01 : f32
    %67 = vector.broadcast %cst_50 : f32 to vector<380x4xf32>
    %68 = arith.mulf %67, %64 : vector<380x4xf32>
    %69 = arith.select %66, %64, %68 : vector<380x4xi1>, vector<380x4xf32>
    %c0_51 = arith.constant 0 : index
    %c0_52 = arith.constant 0 : index
    %70 = vector.load %arg8[%c0_51, %c0_52] : memref<380x1xf32, #tpu.memory_space<vmem>>, vector<380x1xf32>
    %71 = vector.broadcast %70 : vector<380x1xf32> to vector<380x4xf32>
    %72 = arith.mulf %69, %71 : vector<380x4xf32>
    %73 = vector.extract_strided_slice %72 {offsets = [0, 0], sizes = [320, 4], strides = [1, 1]} : vector<380x4xf32> to vector<320x4xf32>
    %74 = arith.truncf %73 : vector<320x4xf32> to vector<320x4xbf16>
    %c0_53 = arith.constant 0 : index
    %c0_54 = arith.constant 0 : index
    %c0_55 = arith.constant 0 : index
    %75 = vector.load %arg4[%c0_53, %c0_54, %c0_55] : memref<9x4x4xbf16, #tpu.memory_space<vmem>>, vector<1x4x4xbf16>
    %76 = vector.shape_cast %75 : vector<1x4x4xbf16> to vector<4x4xbf16>
    %cst_56 = arith.constant dense<0.000000e+00> : vector<320x4xf32>
    %77 = tpu.matmul %74, %76, %cst_56 {dimension_numbers = #tpu.dot_dimension_numbers<[1], [0], [0], [1], [0, 0, 1, 1], [], []>} : vector<320x4xbf16>, vector<4x4xbf16>, vector<320x4xf32> -> vector<320x4xf32>
    %78 = vector.extract_strided_slice %72 {offsets = [1, 0], sizes = [320, 4], strides = [1, 1]} : vector<380x4xf32> to vector<320x4xf32>
    %79 = arith.truncf %78 : vector<320x4xf32> to vector<320x4xbf16>
    %c1_57 = arith.constant 1 : index
    %c0_58 = arith.constant 0 : index
    %c0_59 = arith.constant 0 : index
    %80 = vector.load %arg4[%c1_57, %c0_58, %c0_59] : memref<9x4x4xbf16, #tpu.memory_space<vmem>>, vector<1x4x4xbf16>
    %81 = vector.shape_cast %80 : vector<1x4x4xbf16> to vector<4x4xbf16>
    %cst_60 = arith.constant dense<0.000000e+00> : vector<320x4xf32>
    %82 = tpu.matmul %79, %81, %cst_60 {dimension_numbers = #tpu.dot_dimension_numbers<[1], [0], [0], [1], [0, 0, 1, 1], [], []>} : vector<320x4xbf16>, vector<4x4xbf16>, vector<320x4xf32> -> vector<320x4xf32>
    %83 = arith.addf %77, %82 : vector<320x4xf32>
    %84 = vector.extract_strided_slice %72 {offsets = [2, 0], sizes = [320, 4], strides = [1, 1]} : vector<380x4xf32> to vector<320x4xf32>
    %85 = arith.truncf %84 : vector<320x4xf32> to vector<320x4xbf16>
    %c2_61 = arith.constant 2 : index
    %c0_62 = arith.constant 0 : index
    %c0_63 = arith.constant 0 : index
    %86 = vector.load %arg4[%c2_61, %c0_62, %c0_63] : memref<9x4x4xbf16, #tpu.memory_space<vmem>>, vector<1x4x4xbf16>
    %87 = vector.shape_cast %86 : vector<1x4x4xbf16> to vector<4x4xbf16>
    %cst_64 = arith.constant dense<0.000000e+00> : vector<320x4xf32>
    %88 = tpu.matmul %85, %87, %cst_64 {dimension_numbers = #tpu.dot_dimension_numbers<[1], [0], [0], [1], [0, 0, 1, 1], [], []>} : vector<320x4xbf16>, vector<4x4xbf16>, vector<320x4xf32> -> vector<320x4xf32>
    %89 = arith.addf %83, %88 : vector<320x4xf32>
    %90 = vector.extract_strided_slice %72 {offsets = [20, 0], sizes = [320, 4], strides = [1, 1]} : vector<380x4xf32> to vector<320x4xf32>
    %91 = arith.truncf %90 : vector<320x4xf32> to vector<320x4xbf16>
    %c3_65 = arith.constant 3 : index
    %c0_66 = arith.constant 0 : index
    %c0_67 = arith.constant 0 : index
    %92 = vector.load %arg4[%c3_65, %c0_66, %c0_67] : memref<9x4x4xbf16, #tpu.memory_space<vmem>>, vector<1x4x4xbf16>
    %93 = vector.shape_cast %92 : vector<1x4x4xbf16> to vector<4x4xbf16>
    %cst_68 = arith.constant dense<0.000000e+00> : vector<320x4xf32>
    %94 = tpu.matmul %91, %93, %cst_68 {dimension_numbers = #tpu.dot_dimension_numbers<[1], [0], [0], [1], [0, 0, 1, 1], [], []>} : vector<320x4xbf16>, vector<4x4xbf16>, vector<320x4xf32> -> vector<320x4xf32>
    %95 = arith.addf %89, %94 : vector<320x4xf32>
    %96 = vector.extract_strided_slice %72 {offsets = [21, 0], sizes = [320, 4], strides = [1, 1]} : vector<380x4xf32> to vector<320x4xf32>
    %97 = arith.truncf %96 : vector<320x4xf32> to vector<320x4xbf16>
    %c4_69 = arith.constant 4 : index
    %c0_70 = arith.constant 0 : index
    %c0_71 = arith.constant 0 : index
    %98 = vector.load %arg4[%c4_69, %c0_70, %c0_71] : memref<9x4x4xbf16, #tpu.memory_space<vmem>>, vector<1x4x4xbf16>
    %99 = vector.shape_cast %98 : vector<1x4x4xbf16> to vector<4x4xbf16>
    %cst_72 = arith.constant dense<0.000000e+00> : vector<320x4xf32>
    %100 = tpu.matmul %97, %99, %cst_72 {dimension_numbers = #tpu.dot_dimension_numbers<[1], [0], [0], [1], [0, 0, 1, 1], [], []>} : vector<320x4xbf16>, vector<4x4xbf16>, vector<320x4xf32> -> vector<320x4xf32>
    %101 = arith.addf %95, %100 : vector<320x4xf32>
    %102 = vector.extract_strided_slice %72 {offsets = [22, 0], sizes = [320, 4], strides = [1, 1]} : vector<380x4xf32> to vector<320x4xf32>
    %103 = arith.truncf %102 : vector<320x4xf32> to vector<320x4xbf16>
    %c5_73 = arith.constant 5 : index
    %c0_74 = arith.constant 0 : index
    %c0_75 = arith.constant 0 : index
    %104 = vector.load %arg4[%c5_73, %c0_74, %c0_75] : memref<9x4x4xbf16, #tpu.memory_space<vmem>>, vector<1x4x4xbf16>
    %105 = vector.shape_cast %104 : vector<1x4x4xbf16> to vector<4x4xbf16>
    %cst_76 = arith.constant dense<0.000000e+00> : vector<320x4xf32>
    %106 = tpu.matmul %103, %105, %cst_76 {dimension_numbers = #tpu.dot_dimension_numbers<[1], [0], [0], [1], [0, 0, 1, 1], [], []>} : vector<320x4xbf16>, vector<4x4xbf16>, vector<320x4xf32> -> vector<320x4xf32>
    %107 = arith.addf %101, %106 : vector<320x4xf32>
    %108 = vector.extract_strided_slice %72 {offsets = [40, 0], sizes = [320, 4], strides = [1, 1]} : vector<380x4xf32> to vector<320x4xf32>
    %109 = arith.truncf %108 : vector<320x4xf32> to vector<320x4xbf16>
    %c6_77 = arith.constant 6 : index
    %c0_78 = arith.constant 0 : index
    %c0_79 = arith.constant 0 : index
    %110 = vector.load %arg4[%c6_77, %c0_78, %c0_79] : memref<9x4x4xbf16, #tpu.memory_space<vmem>>, vector<1x4x4xbf16>
    %111 = vector.shape_cast %110 : vector<1x4x4xbf16> to vector<4x4xbf16>
    %cst_80 = arith.constant dense<0.000000e+00> : vector<320x4xf32>
    %112 = tpu.matmul %109, %111, %cst_80 {dimension_numbers = #tpu.dot_dimension_numbers<[1], [0], [0], [1], [0, 0, 1, 1], [], []>} : vector<320x4xbf16>, vector<4x4xbf16>, vector<320x4xf32> -> vector<320x4xf32>
    %113 = arith.addf %107, %112 : vector<320x4xf32>
    %114 = vector.extract_strided_slice %72 {offsets = [41, 0], sizes = [320, 4], strides = [1, 1]} : vector<380x4xf32> to vector<320x4xf32>
    %115 = arith.truncf %114 : vector<320x4xf32> to vector<320x4xbf16>
    %c7_81 = arith.constant 7 : index
    %c0_82 = arith.constant 0 : index
    %c0_83 = arith.constant 0 : index
    %116 = vector.load %arg4[%c7_81, %c0_82, %c0_83] : memref<9x4x4xbf16, #tpu.memory_space<vmem>>, vector<1x4x4xbf16>
    %117 = vector.shape_cast %116 : vector<1x4x4xbf16> to vector<4x4xbf16>
    %cst_84 = arith.constant dense<0.000000e+00> : vector<320x4xf32>
    %118 = tpu.matmul %115, %117, %cst_84 {dimension_numbers = #tpu.dot_dimension_numbers<[1], [0], [0], [1], [0, 0, 1, 1], [], []>} : vector<320x4xbf16>, vector<4x4xbf16>, vector<320x4xf32> -> vector<320x4xf32>
    %119 = arith.addf %113, %118 : vector<320x4xf32>
    %120 = vector.extract_strided_slice %72 {offsets = [42, 0], sizes = [320, 4], strides = [1, 1]} : vector<380x4xf32> to vector<320x4xf32>
    %121 = arith.truncf %120 : vector<320x4xf32> to vector<320x4xbf16>
    %c8_85 = arith.constant 8 : index
    %c0_86 = arith.constant 0 : index
    %c0_87 = arith.constant 0 : index
    %122 = vector.load %arg4[%c8_85, %c0_86, %c0_87] : memref<9x4x4xbf16, #tpu.memory_space<vmem>>, vector<1x4x4xbf16>
    %123 = vector.shape_cast %122 : vector<1x4x4xbf16> to vector<4x4xbf16>
    %cst_88 = arith.constant dense<0.000000e+00> : vector<320x4xf32>
    %124 = tpu.matmul %121, %123, %cst_88 {dimension_numbers = #tpu.dot_dimension_numbers<[1], [0], [0], [1], [0, 0, 1, 1], [], []>} : vector<320x4xbf16>, vector<4x4xbf16>, vector<320x4xf32> -> vector<320x4xf32>
    %125 = arith.addf %119, %124 : vector<320x4xf32>
    %c0_89 = arith.constant 0 : index
    %c0_90 = arith.constant 0 : index
    %126 = vector.load %arg5[%c0_89, %c0_90] : memref<1x4xf32, #tpu.memory_space<vmem>>, vector<1x4xf32>
    %127 = vector.broadcast %126 : vector<1x4xf32> to vector<320x4xf32>
    %128 = arith.addf %125, %127 : vector<320x4xf32>
    %cst_91 = arith.constant 0.000000e+00 : f32
    %129 = vector.broadcast %cst_91 : f32 to vector<320x4xf32>
    %130 = arith.cmpf ogt, %128, %129 : vector<320x4xf32>
    %cst_92 = arith.constant 2.000000e-01 : f32
    %131 = vector.broadcast %cst_92 : f32 to vector<320x4xf32>
    %132 = arith.mulf %131, %128 : vector<320x4xf32>
    %133 = arith.select %130, %128, %132 : vector<320x4xi1>, vector<320x4xf32>
    %c0_93 = arith.constant 0 : index
    %c42_94 = arith.constant 42 : index
    %c0_95 = arith.constant 0 : index
    %134 = vector.load %arg1[%c0_93, %c42_94, %c0_95] : memref<1x440x4xf32, #tpu.memory_space<vmem>>, vector<1x320x4xf32>
    %135 = vector.shape_cast %134 : vector<1x320x4xf32> to vector<320x4xf32>
    %136 = arith.truncf %135 : vector<320x4xf32> to vector<320x4xbf16>
    %c0_96 = arith.constant 0 : index
    %c0_97 = arith.constant 0 : index
    %137 = vector.load %arg6[%c0_96, %c0_97] : memref<4x4xbf16, #tpu.memory_space<vmem>>, vector<4x4xbf16>
    %cst_98 = arith.constant dense<0.000000e+00> : vector<320x4xf32>
    %138 = tpu.matmul %136, %137, %cst_98 {dimension_numbers = #tpu.dot_dimension_numbers<[1], [0], [0], [1], [0, 0, 1, 1], [], []>} : vector<320x4xbf16>, vector<4x4xbf16>, vector<320x4xf32> -> vector<320x4xf32>
    %139 = arith.addf %133, %138 : vector<320x4xf32>
    %c0_99 = arith.constant 0 : index
    %c0_100 = arith.constant 0 : index
    %140 = vector.load %arg7[%c0_99, %c0_100] : memref<1x4xf32, #tpu.memory_space<vmem>>, vector<1x4xf32>
    %141 = vector.broadcast %140 : vector<1x4xf32> to vector<320x4xf32>
    %142 = arith.addf %139, %141 : vector<320x4xf32>
    %c0_101 = arith.constant 0 : index
    %c0_102 = arith.constant 0 : index
    %c0_103 = arith.constant 0 : index
    %143 = vector.load %arg9[%c0_101, %c0_102, %c0_103] : memref<1x320x4xf32, #tpu.memory_space<vmem>>, vector<1x320x4xf32>
    %144 = vector.shape_cast %143 : vector<1x320x4xf32> to vector<320x4xf32>
    %145 = vector.shape_cast %142 : vector<320x4xf32> to vector<1x320x4xf32>
    tpu.vector_store %arg9[%c0_101, %c0_102, %c0_103], %145 {strides = array<i32>} : memref<1x320x4xf32, #tpu.memory_space<vmem>>, vector<1x320x4xf32>,
    return
  }
  func.func @transform_0(%arg0: i32) -> (i32, i32, i32) {
    %c0_i32 = arith.constant 0 : i32
    %c0_i32_0 = arith.constant 0 : i32
    %c0_i32_1 = arith.constant 0 : i32
    return %arg0, %c0_i32, %c0_i32_0 : i32, i32, i32
  }
  func.func @transform_1(%arg0: i32) -> (i32, i32, i32) {
    %c0_i32 = arith.constant 0 : i32
    %c0_i32_0 = arith.constant 0 : i32
    %c0_i32_1 = arith.constant 0 : i32
    %c0_i32_2 = arith.constant 0 : i32
    return %c0_i32, %c0_i32_0, %c0_i32_1 : i32, i32, i32
  }
  func.func @transform_2(%arg0: i32) -> (i32, i32) {
    %c0_i32 = arith.constant 0 : i32
    %c0_i32_0 = arith.constant 0 : i32
    %c0_i32_1 = arith.constant 0 : i32
    return %c0_i32, %c0_i32_0 : i32, i32
  }
  func.func @transform_3(%arg0: i32) -> (i32, i32, i32) {
    %c0_i32 = arith.constant 0 : i32
    %c0_i32_0 = arith.constant 0 : i32
    %c0_i32_1 = arith.constant 0 : i32
    %c0_i32_2 = arith.constant 0 : i32
    return %c0_i32, %c0_i32_0, %c0_i32_1 : i32, i32, i32
  }
  func.func @transform_4(%arg0: i32) -> (i32, i32) {
    %c0_i32 = arith.constant 0 : i32
    %c0_i32_0 = arith.constant 0 : i32
    %c0_i32_1 = arith.constant 0 : i32
    return %c0_i32, %c0_i32_0 : i32, i32
  }
  func.func @transform_5(%arg0: i32) -> (i32, i32) {
    %c0_i32 = arith.constant 0 : i32
    %c0_i32_0 = arith.constant 0 : i32
    %c0_i32_1 = arith.constant 0 : i32
    return %c0_i32, %c0_i32_0 : i32, i32
  }
  func.func @transform_6(%arg0: i32) -> (i32, i32) {
    %c0_i32 = arith.constant 0 : i32
    %c0_i32_0 = arith.constant 0 : i32
    %c0_i32_1 = arith.constant 0 : i32
    return %c0_i32, %c0_i32_0 : i32, i32
  }
  func.func @transform_7(%arg0: i32) -> (i32, i32) {
    %c0_i32 = arith.constant 0 : i32
    %c0_i32_0 = arith.constant 0 : i32
    %c0_i32_1 = arith.constant 0 : i32
    return %c0_i32, %c0_i32_0 : i32, i32
  }
  func.func @transform_8(%arg0: i32) -> (i32, i32, i32) {
    %c0_i32 = arith.constant 0 : i32
    %c0_i32_0 = arith.constant 0 : i32
    %c0_i32_1 = arith.constant 0 : i32
    return %arg0, %c0_i32, %c0_i32_0 : i32, i32, i32
  }
}

</mosaic_0001>

<llo_original>
// kernel: _resblock_forward.1
$region0: #{_resblock_forward.1}
  #allocation0 [shape = 'u32[]', space=smem, size = 0x4, offset = 0x4, fixed_abs, tag = 'smem constant byte address 0x4 - core index']
  #allocation1 [shape = 'u32[144,128]{1,0:T(1,128)}', space=vmem, size = 0x12000, scoped, tag = 'internal scratch']
  %s0 = inlined_call_operand.vmem [shape: f32[2,440,4], index: 0, kind: input, shape index: {}]
  %s1 = inlined_call_operand.vmem [shape: bf16[9,4,4], index: 1, kind: input, shape index: {}]
  %s2 = inlined_call_operand.vmem [shape: f32[1,4], index: 2, kind: input, shape index: {}]
  %s3 = inlined_call_operand.vmem [shape: bf16[9,4,4], index: 3, kind: input, shape index: {}]
  %s4 = inlined_call_operand.vmem [shape: f32[1,4], index: 4, kind: input, shape index: {}]
  %s5 = inlined_call_operand.vmem [shape: bf16[4,4], index: 5, kind: input, shape index: {}]
  %s6 = inlined_call_operand.vmem [shape: f32[1,4], index: 6, kind: input, shape index: {}]
  %s7 = inlined_call_operand.vmem [shape: f32[380,1], index: 7, kind: input, shape index: {}]
  %s8 = inlined_call_operand.vmem [shape: f32[2,320,4], index: 8, kind: output, shape index: {}]
  %s9 = sld [smem:[#allocation0]]
  $region65: #{_resblock_forward.1} parent=0
    _
  %s11 = ssub.s32 1, %s9
  %s12 = scalar_select 0, %s11, %s9
  loop: start=0, step=1, limit=4
  $region2: #{_resblock_forward.1} parent=0 // loop_pre_header
    _
  $region3: #{_resblock_forward.1} parent=0 // loop_header
    %s14 = sphi 0, %s18
    %p15 = scmp.ge.s32.totalorder %s14, 4
    %s24 = sphi 0, %s26
    %s27 = sphi 0, %s24
    %s28 = sphi 0, %s27
    %s44 = sphi 0, %s28
    %s48 = sphi 0, %s48
    %s50 = sphi 0, %s48
    %s51 = sphi 0, %s50
    %s65 = sphi 0, %s51
    %s69 = sphi 0, %s69
    %s71 = sphi 0, %s69
    %s72 = sphi 0, %s71
    %s86 = sphi 0, %s72
    %s90 = sphi 0, %s90
    %s92 = sphi 0, %s90
    %s93 = sphi 0, %s92
    %s107 = sphi 0, %s93
    %s111 = sphi 0, %s111
    %s113 = sphi 0, %s111
    %s114 = sphi 0, %s113
    %s128 = sphi 0, %s114
    %s132 = sphi 0, %s132
    %s134 = sphi 0, %s132
    %s135 = sphi 0, %s134
    %s149 = sphi 0, %s135
    %s153 = sphi 0, %s153
    %s155 = sphi 0, %s153
    %s156 = sphi 0, %s155
    %s170 = sphi 0, %s156
    %s174 = sphi 0, %s174
    %s176 = sphi 0, %s174
    %s177 = sphi 0, %s176
    %s191 = sphi 0, %s177
    %s197 = sphi 0, %s199
    %s200 = sphi 0, %s197
    %s201 = sphi 0, %s200
    %s217 = sphi 0, %s201
  $region4: #{_resblock_forward.1} parent=0 // loop_header_branch
    %17 = sbr.rel (%p15) target = $region8
  $region5: #{_resblock_forward.1} parent=0 // loop_body
    %s19 = ssub.s32 %s14, 1
    %s20 = ssub.s32 %s14, 2
    %s21 = sadd.s32 %s14, 1
    %s22 = ssub.s32 %s14, %s21
    %p23 = scmp.eq.s32.totalorder %s22, 0
    %s25 = sadd.s32 %s24, 1
    %s26 = scalar_select %p23, %s24, %s25
    %p29 = pneg %p23
    %p30 = scmp.eq.s32.totalorder %s14, 1
    %p31 = por %p29, %p30
    %p32 = scmp.ne.s32.totalorder %s24, %s27
    %p33 = scmp.eq.s32.totalorder %s14, 0
    %p34 = por %p32, %p33
    %p35 = scmp.ne.s32.totalorder %s24, %s27
    %p36 = scmp.eq.s32.totalorder %s19, 1
    %p37 = por %p35, %p36
    %p38 = scmp.ne.s32.totalorder %s27, %s28
    %p39 = scmp.eq.s32.totalorder %s19, 0
    %p40 = por %p38, %p39
    %p41 = scmp.ne.s32.totalorder %s27, %s28
    %p42 = scmp.eq.s32.totalorder %s20, 1
    %p43 = por %p41, %p42
    %p45 = scmp.ne.s32.totalorder %s28, %s44
    %p46 = scmp.eq.s32.totalorder %s20, 0
    %p47 = por %p45, %p46
    %s49 = sadd.s32 %s48, 1
    %p52 = scmp.eq.s32.totalorder %s14, 1
    %p53 = scmp.ne.s32.totalorder %s48, %s50
    %p54 = scmp.eq.s32.totalorder %s14, 0
    %p55 = por %p53, %p54
    %p56 = scmp.ne.s32.totalorder %s48, %s50
    %p57 = scmp.eq.s32.totalorder %s19, 1
    %p58 = por %p56, %p57
    %p59 = scmp.ne.s32.totalorder %s50, %s51
    %p60 = scmp.eq.s32.totalorder %s19, 0
    %p61 = por %p59, %p60
    %p62 = scmp.ne.s32.totalorder %s50, %s51
    %p63 = scmp.eq.s32.totalorder %s20, 1
    %p64 = por %p62, %p63
    %p66 = scmp.ne.s32.totalorder %s51, %s65
    %p67 = scmp.eq.s32.totalorder %s20, 0
    %p68 = por %p66, %p67
    %s70 = sadd.s32 %s69, 1
    %p73 = scmp.eq.s32.totalorder %s14, 1
    %p74 = scmp.ne.s32.totalorder %s69, %s71
    %p75 = scmp.eq.s32.totalorder %s14, 0
    %p76 = por %p74, %p75
    %p77 = scmp.ne.s32.totalorder %s69, %s71
    %p78 = scmp.eq.s32.totalorder %s19, 1
    %p79 = por %p77, %p78
    %p80 = scmp.ne.s32.totalorder %s71, %s72
    %p81 = scmp.eq.s32.totalorder %s19, 0
    %p82 = por %p80, %p81
    %p83 = scmp.ne.s32.totalorder %s71, %s72
    %p84 = scmp.eq.s32.totalorder %s20, 1
    %p85 = por %p83, %p84
    %p87 = scmp.ne.s32.totalorder %s72, %s86
    %p88 = scmp.eq.s32.totalorder %s20, 0
    %p89 = por %p87, %p88
    %s91 = sadd.s32 %s90, 1
    %p94 = scmp.eq.s32.totalorder %s14, 1
    %p95 = scmp.ne.s32.totalorder %s90, %s92
    %p96 = scmp.eq.s32.totalorder %s14, 0
    %p97 = por %p95, %p96
    %p98 = scmp.ne.s32.totalorder %s90, %s92
    %p99 = scmp.eq.s32.totalorder %s19, 1
    %p100 = por %p98, %p99
    %p101 = scmp.ne.s32.totalorder %s92, %s93
    %p102 = scmp.eq.s32.totalorder %s19, 0
    %p103 = por %p101, %p102
    %p104 = scmp.ne.s32.totalorder %s92, %s93
    %p105 = scmp.eq.s32.totalorder %s20, 1
    %p106 = por %p104, %p105
    %p108 = scmp.ne.s32.totalorder %s93, %s107
    %p109 = scmp.eq.s32.totalorder %s20, 0
    %p110 = por %p108, %p109
    %s112 = sadd.s32 %s111, 1
    %p115 = scmp.eq.s32.totalorder %s14, 1
    %p116 = scmp.ne.s32.totalorder %s111, %s113
    %p117 = scmp.eq.s32.totalorder %s14, 0
    %p118 = por %p116, %p117
    %p119 = scmp.ne.s32.totalorder %s111, %s113
    %p120 = scmp.eq.s32.totalorder %s19, 1
    %p121 = por %p119, %p120
    %p122 = scmp.ne.s32.totalorder %s113, %s114
    %p123 = scmp.eq.s32.totalorder %s19, 0
    %p124 = por %p122, %p123
    %p125 = scmp.ne.s32.totalorder %s113, %s114
    %p126 = scmp.eq.s32.totalorder %s20, 1
    %p127 = por %p125, %p126
    %p129 = scmp.ne.s32.totalorder %s114, %s128
    %p130 = scmp.eq.s32.totalorder %s20, 0
    %p131 = por %p129, %p130
    %s133 = sadd.s32 %s132, 1
    %p136 = scmp.eq.s32.totalorder %s14, 1
    %p137 = scmp.ne.s32.totalorder %s132, %s134
    %p138 = scmp.eq.s32.totalorder %s14, 0
    %p139 = por %p137, %p138
    %p140 = scmp.ne.s32.totalorder %s132, %s134
    %p141 = scmp.eq.s32.totalorder %s19, 1
    %p142 = por %p140, %p141
    %p143 = scmp.ne.s32.totalorder %s134, %s135
    %p144 = scmp.eq.s32.totalorder %s19, 0
    %p145 = por %p143, %p144
    %p146 = scmp.ne.s32.totalorder %s134, %s135
    %p147 = scmp.eq.s32.totalorder %s20, 1
    %p148 = por %p146, %p147
    %p150 = scmp.ne.s32.totalorder %s135, %s149
    %p151 = scmp.eq.s32.totalorder %s20, 0
    %p152 = por %p150, %p151
    %s154 = sadd.s32 %s153, 1
    %p157 = scmp.eq.s32.totalorder %s14, 1
    %p158 = scmp.ne.s32.totalorder %s153, %s155
    %p159 = scmp.eq.s32.totalorder %s14, 0
    %p160 = por %p158, %p159
    %p161 = scmp.ne.s32.totalorder %s153, %s155
    %p162 = scmp.eq.s32.totalorder %s19, 1
    %p163 = por %p161, %p162
    %p164 = scmp.ne.s32.totalorder %s155, %s156
    %p165 = scmp.eq.s32.totalorder %s19, 0
    %p166 = por %p164, %p165
    %p167 = scmp.ne.s32.totalorder %s155, %s156
    %p168 = scmp.eq.s32.totalorder %s20, 1
    %p169 = por %p167, %p168
    %p171 = scmp.ne.s32.totalorder %s156, %s170
    %p172 = scmp.eq.s32.totalorder %s20, 0
    %p173 = por %p171, %p172
    %s175 = sadd.s32 %s174, 1
    %p178 = scmp.eq.s32.totalorder %s14, 1
    %p179 = scmp.ne.s32.totalorder %s174, %s176
    %p180 = scmp.eq.s32.totalorder %s14, 0
    %p181 = por %p179, %p180
    %p182 = scmp.ne.s32.totalorder %s174, %s176
    %p183 = scmp.eq.s32.totalorder %s19, 1
    %p184 = por %p182, %p183
    %p185 = scmp.ne.s32.totalorder %s176, %s177
    %p186 = scmp.eq.s32.totalorder %s19, 0
    %p187 = por %p185, %p186
    %p188 = scmp.ne.s32.totalorder %s176, %s177
    %p189 = scmp.eq.s32.totalorder %s20, 1
    %p190 = por %p188, %p189
    %p192 = scmp.ne.s32.totalorder %s177, %s191
    %p193 = scmp.eq.s32.totalorder %s20, 0
    %p194 = por %p192, %p193
    %s195 = ssub.s32 %s14, %s21
    %p196 = scmp.eq.s32.totalorder %s195, 0
    %s198 = sadd.s32 %s197, 1
    %s199 = scalar_select %p196, %s197, %s198
    %p202 = pneg %p196
    %p203 = scmp.eq.s32.totalorder %s14, 1
    %p204 = por %p202, %p203
    %p205 = scmp.ne.s32.totalorder %s197, %s200
    %p206 = scmp.eq.s32.totalorder %s14, 0
    %p207 = por %p205, %p206
    %p208 = scmp.ne.s32.totalorder %s197, %s200
    %p209 = scmp.eq.s32.totalorder %s19, 1
    %p210 = por %p208, %p209
    %p211 = scmp.ne.s32.totalorder %s200, %s201
    %p212 = scmp.eq.s32.totalorder %s19, 0
    %p213 = por %p211, %p212
    %p214 = scmp.ne.s32.totalorder %s200, %s201
    %p215 = scmp.eq.s32.totalorder %s20, 1
    %p216 = por %p214, %p215
    %p218 = scmp.ne.s32.totalorder %s201, %s217
    %p219 = scmp.eq.s32.totalorder %s20, 0
    %p220 = por %p218, %p219
    %p221 = scmp.le.s32.totalorder 1, %s14
    %p222 = scmp.lt.s32.totalorder %s14, 3
    %p223 = pnand %p221, %p222
    %p224 = pneg %p223
    // Predicated region
    $region9: #{_resblock_forward.1} parent=5 // pred_check
      _
    $region10: #{_resblock_forward.1} parent=5 // pred_check_branch
      %226 = sbr.rel (%p223) target = $region12
    $region11: #{_resblock_forward.1} parent=5 // pred_region
      %s227 = ssub.s32 %s14, 1
      // Predicated region
      $region13: #{_resblock_forward.1} parent=11 // pred_check
        %p228 = pneg %p61
      $region14: #{_resblock_forward.1} parent=11 // pred_check_branch
        %230 = sbr.rel (%p228) target = $region16
      $region15: #{_resblock_forward.1} parent=11 // pred_region
        _
      $region16: #{_resblock_forward.1} parent=11 // pred_fallthru
        _
      // Predicated region
      $region17: #{_resblock_forward.1} parent=11 // pred_check
        %p231 = pneg %p82
      $region18: #{_resblock_forward.1} parent=11 // pred_check_branch
        %233 = sbr.rel (%p231) target = $region20
      $region19: #{_resblock_forward.1} parent=11 // pred_region
        _
      $region20: #{_resblock_forward.1} parent=11 // pred_fallthru
        _
      // Predicated region
      $region21: #{_resblock_forward.1} parent=11 // pred_check
        %p234 = pneg %p103
      $region22: #{_resblock_forward.1} parent=11 // pred_check_branch
        %236 = sbr.rel (%p234) target = $region24
      $region23: #{_resblock_forward.1} parent=11 // pred_region
        _
      $region24: #{_resblock_forward.1} parent=11 // pred_fallthru
        _
      // Predicated region
      $region25: #{_resblock_forward.1} parent=11 // pred_check
        %p237 = pneg %p124
      $region26: #{_resblock_forward.1} parent=11 // pred_check_branch
        %239 = sbr.rel (%p237) target = $region28
      $region27: #{_resblock_forward.1} parent=11 // pred_region
        _
      $region28: #{_resblock_forward.1} parent=11 // pred_fallthru
        _
      // Predicated region
      $region29: #{_resblock_forward.1} parent=11 // pred_check
        %p240 = pneg %p145
      $region30: #{_resblock_forward.1} parent=11 // pred_check_branch
        %242 = sbr.rel (%p240) target = $region32
      $region31: #{_resblock_forward.1} parent=11 // pred_region
        _
      $region32: #{_resblock_forward.1} parent=11 // pred_fallthru
        _
      // Predicated region
      $region33: #{_resblock_forward.1} parent=11 // pred_check
        %p243 = pneg %p166
      $region34: #{_resblock_forward.1} parent=11 // pred_check_branch
        %245 = sbr.rel (%p243) target = $region36
      $region35: #{_resblock_forward.1} parent=11 // pred_region
        _
      $region36: #{_resblock_forward.1} parent=11 // pred_fallthru
        _
      // Predicated region
      $region37: #{_resblock_forward.1} parent=11 // pred_check
        %p246 = pneg %p187
      $region38: #{_resblock_forward.1} parent=11 // pred_check_branch
        %248 = sbr.rel (%p246) target = $region40
      $region39: #{_resblock_forward.1} parent=11 // pred_region
        _
      $region40: #{_resblock_forward.1} parent=11 // pred_fallthru
        _
    $region12: #{_resblock_forward.1} parent=5 // pred_fallthru
      _
    %p249 = scmp.lt.s32.totalorder %s14, 2
    // Predicated region
    $region41: #{_resblock_forward.1} parent=5 // pred_check
      %p250 = pneg %p249
    $region42: #{_resblock_forward.1} parent=5 // pred_check_branch
      %252 = sbr.rel (%p250) target = $region44
    $region43: #{_resblock_forward.1} parent=5 // pred_region
      // Predicated region
      $region45: #{_resblock_forward.1} parent=43 // pred_check
        %p253 = pneg %p34
      $region46: #{_resblock_forward.1} parent=43 // pred_check_branch
        %255 = sbr.rel (%p253) target = $region48
      $region47: #{_resblock_forward.1} parent=43 // pred_region
        %p256 = scmp.lt.s32.totalorder %s14, 1
        %s257 = scalar_select %p256, %s14, 1
        %s258 = smul.addr %s257, 55
        %s259 = smul.addr %s258, 8
        %s260 = scalar_lea.vmem %s0, %s259
      $region48: #{_resblock_forward.1} parent=43 // pred_fallthru
        _
    $region44: #{_resblock_forward.1} parent=5 // pred_fallthru
      _
    %p261 = scmp.le.s32.totalorder 1, %s14
    %p262 = scmp.lt.s32.totalorder %s14, 3
    %p263 = pnand %p261, %p262
    %p264 = pneg %p263
    // Predicated region
    $region49: #{_resblock_forward.1} parent=5 // pred_check
      _
    $region50: #{_resblock_forward.1} parent=5 // pred_check_branch
      %266 = sbr.rel (%p263) target = $region52
    $region51: #{_resblock_forward.1} parent=5 // pred_region
      %s267 = ssub.s32 %s14, 1
      %p268 = scmp.lt.s32.totalorder %s19, 1
      %s269 = scalar_select %p268, %s19, 1
      %s270 = smul.addr %s269, 55
      %s271 = smul.addr %s270, 8
      %s272 = scalar_lea.vmem %s0, %s271
      %p273 = pneg %p40
      %p274 = pneg %p37
      %p275 = pneg %p61
      %p276 = pneg %p58
      %p277 = pneg %p82
      %p278 = pneg %p79
      %p279 = pneg %p103
      %p280 = pneg %p100
      %p281 = pneg %p124
      %p282 = pneg %p121
      %p283 = pneg %p145
      %p284 = pneg %p142
      %p285 = pneg %p166
      %p286 = pneg %p163
      %p287 = pneg %p187
      %p288 = pneg %p184
      %p289 = pneg %p213
      %p290 = pneg %p210
      %p291 = scmp.lt.s32.totalorder %s19, 1
      %s292 = scalar_select %p291, %s19, 1
      %s293 = smul.addr %s292, 40
      %s294 = smul.addr %s293, 8
      %s295 = scalar_lea.vmem %s8, %s294
      %p296 = scmp.lt.s32.totalorder %s19, 1
      %s297 = scalar_select %p296, %s19, 1
      %s298 = smul.addr %s297, 55
      %s299 = smul.addr %s298, 8
      %s300 = scalar_lea.vmem %s0, %s299
      %p301 = scmp.lt.s32.totalorder %s19, 1
      %s302 = scalar_select %p301, %s19, 1
      %s303 = smul.addr %s302, 40
      %s304 = smul.addr %s303, 8
      %s305 = scalar_lea.vmem %s8, %s304
      %v307 = vld [vmem:[%s300] sm:$0xff]
      %v308 = vld [vmem:[%s300 + $0x8] sm:$0xff]
      %v309 = vld [vmem:[%s300 + $0x10] sm:$0xff]
      %v310 = vld [vmem:[%s300 + $0x18] sm:$0xff]
      %v311 = vld [vmem:[%s300 + $0x20] sm:$0xff]
      %v312 = vld [vmem:[%s300 + $0x28] sm:$0xff]
      %v313 = vld [vmem:[%s300 + $0x30] sm:$0xff]
      %v314 = vld [vmem:[%s300 + $0x38] sm:$0xff]
      %v315 = vld [vmem:[%s300 + $0x40] sm:$0xff]
      %v316 = vld [vmem:[%s300 + $0x48] sm:$0xff]
      %v317 = vld [vmem:[%s300 + $0x50] sm:$0xff]
      %v318 = vld [vmem:[%s300 + $0x58] sm:$0xff]
      %v319 = vld [vmem:[%s300 + $0x60] sm:$0xff]
      %v320 = vld [vmem:[%s300 + $0x68] sm:$0xff]
      %v321 = vld [vmem:[%s300 + $0x70] sm:$0xff]
      %v322 = vld [vmem:[%s300 + $0x78] sm:$0xff]
      %v323 = vld [vmem:[%s300 + $0x80] sm:$0xff]
      %v324 = vld [vmem:[%s300 + $0x88] sm:$0xff]
      %v325 = vld [vmem:[%s300 + $0x90] sm:$0xff]
      %v326 = vld [vmem:[%s300 + $0x98] sm:$0xff]
      %v327 = vld [vmem:[%s300 + $0xa0] sm:$0xff]
      %v328 = vld [vmem:[%s300 + $0xa8] sm:$0xff]
      %v329 = vld [vmem:[%s300 + $0xb0] sm:$0xff]
      %v330 = vld [vmem:[%s300 + $0xb8] sm:$0xff]
      %v331 = vld [vmem:[%s300 + $0xc0] sm:$0xff]
      %v332 = vld [vmem:[%s300 + $0xc8] sm:$0xff]
      %v333 = vld [vmem:[%s300 + $0xd0] sm:$0xff]
      %v334 = vld [vmem:[%s300 + $0xd8] sm:$0xff]
      %v335 = vld [vmem:[%s300 + $0xe0] sm:$0xff]
      %v336 = vld [vmem:[%s300 + $0xe8] sm:$0xff]
      %v337 = vld [vmem:[%s300 + $0xf0] sm:$0xff]
      %v338 = vld [vmem:[%s300 + $0xf8] sm:$0xff]
      %v339 = vld [vmem:[%s300 + $0x100] sm:$0xff]
      %v340 = vld [vmem:[%s300 + $0x108] sm:$0xff]
      %v341 = vld [vmem:[%s300 + $0x110] sm:$0xff]
      %v342 = vld [vmem:[%s300 + $0x118] sm:$0xff]
      %v343 = vld [vmem:[%s300 + $0x120] sm:$0xff]
      %v344 = vld [vmem:[%s300 + $0x128] sm:$0xff]
      %v345 = vld [vmem:[%s300 + $0x130] sm:$0xff]
      %v346 = vld [vmem:[%s300 + $0x138] sm:$0xff]
      %v347 = vld [vmem:[%s300 + $0x140] sm:$0xff]
      %v348 = vld [vmem:[%s300 + $0x148] sm:$0xff]
      %v349 = vld [vmem:[%s300 + $0x150] sm:$0xff]
      %v350 = vld [vmem:[%s300 + $0x158] sm:$0xff]
      %v351 = vld [vmem:[%s300 + $0x160] sm:$0xff]
      %v352 = vld [vmem:[%s300 + $0x168] sm:$0xff]
      %v353 = vld [vmem:[%s300 + $0x170] sm:$0xff]
      %v354 = vld [vmem:[%s300 + $0x178] sm:$0xf]
      %v355 = vpack.c.bf16 %v308, %v307
      %v356 = vpack.c.bf16 %v310, %v309
      %v357 = vpack.c.bf16 %v312, %v311
      %v358 = vpack.c.bf16 %v314, %v313
      %v359 = vpack.c.bf16 %v316, %v315
      %v360 = vpack.c.bf16 %v318, %v317
      %v361 = vpack.c.bf16 %v320, %v319
      %v362 = vpack.c.bf16 %v322, %v321
      %v363 = vpack.c.bf16 %v324, %v323
      %v364 = vpack.c.bf16 %v326, %v325
      %v365 = vpack.c.bf16 %v328, %v327
      %v366 = vpack.c.bf16 %v330, %v329
      %v367 = vpack.c.bf16 %v332, %v331
      %v368 = vpack.c.bf16 %v334, %v333
      %v369 = vpack.c.bf16 %v336, %v335
      %v370 = vpack.c.bf16 %v338, %v337
      %v371 = vpack.c.bf16 %v340, %v339
      %v372 = vpack.c.bf16 %v342, %v341
      %v373 = vpack.c.bf16 %v344, %v343
      %v374 = vpack.c.bf16 %v346, %v345
      %v375 = vpack.c.bf16 %v348, %v347
      %v376 = vpack.c.bf16 %v350, %v349
      %v377 = vpack.c.bf16 %v352, %v351
      %v378 = vpack.c.bf16 %v354, %v353
      %v379 = vld [vmem:[%s1] sm:$0x3]
      %v380 = vld [vmem:[%s300 + $0x1] sm:$0xff]
      %v381 = vld [vmem:[%s300 + $0x9] sm:$0xff]
      %v382 = vld [vmem:[%s300 + $0x11] sm:$0xff]
      %v383 = vld [vmem:[%s300 + $0x19] sm:$0xff]
      %v384 = vld [vmem:[%s300 + $0x21] sm:$0xff]
      %v385 = vld [vmem:[%s300 + $0x29] sm:$0xff]
      %v386 = vld [vmem:[%s300 + $0x31] sm:$0xff]
      %v387 = vld [vmem:[%s300 + $0x39] sm:$0xff]
      %v388 = vld [vmem:[%s300 + $0x41] sm:$0xff]
      %v389 = vld [vmem:[%s300 + $0x49] sm:$0xff]
      %v390 = vld [vmem:[%s300 + $0x51] sm:$0xff]
      %v391 = vld [vmem:[%s300 + $0x59] sm:$0xff]
      %v392 = vld [vmem:[%s300 + $0x61] sm:$0xff]
      %v393 = vld [vmem:[%s300 + $0x69] sm:$0xff]
      %v394 = vld [vmem:[%s300 + $0x71] sm:$0xff]
      %v395 = vld [vmem:[%s300 + $0x79] sm:$0xff]
      %v396 = vld [vmem:[%s300 + $0x81] sm:$0xff]
      %v397 = vld [vmem:[%s300 + $0x89] sm:$0xff]
      %v398 = vld [vmem:[%s300 + $0x91] sm:$0xff]
      %v399 = vld [vmem:[%s300 + $0x99] sm:$0xff]
      %v400 = vld [vmem:[%s300 + $0xa1] sm:$0xff]
      %v401 = vld [vmem:[%s300 + $0xa9] sm:$0xff]
      %v402 = vld [vmem:[%s300 + $0xb1] sm:$0xff]
      %v403 = vld [vmem:[%s300 + $0xb9] sm:$0xff]
      %v404 = vld [vmem:[%s300 + $0xc1] sm:$0xff]
      %v405 = vld [vmem:[%s300 + $0xc9] sm:$0xff]
      %v406 = vld [vmem:[%s300 + $0xd1] sm:$0xff]
      %v407 = vld [vmem:[%s300 + $0xd9] sm:$0xff]
      %v408 = vld [vmem:[%s300 + $0xe1] sm:$0xff]
      %v409 = vld [vmem:[%s300 + $0xe9] sm:$0xff]
      %v410 = vld [vmem:[%s300 + $0xf1] sm:$0xff]
      %v411 = vld [vmem:[%s300 + $0xf9] sm:$0xff]
      %v412 = vld [vmem:[%s300 + $0x101] sm:$0xff]
      %v413 = vld [vmem:[%s300 + $0x109] sm:$0xff]
      %v414 = vld [vmem:[%s300 + $0x111] sm:$0xff]
      %v415 = vld [vmem:[%s300 + $0x119] sm:$0xff]
      %v416 = vld [vmem:[%s300 + $0x121] sm:$0xff]
      %v417 = vld [vmem:[%s300 + $0x129] sm:$0xff]
      %v418 = vld [vmem:[%s300 + $0x131] sm:$0xff]
      %v419 = vld [vmem:[%s300 + $0x139] sm:$0xff]
      %v420 = vld [vmem:[%s300 + $0x141] sm:$0xff]
      %v421 = vld [vmem:[%s300 + $0x149] sm:$0xff]
      %v422 = vld [vmem:[%s300 + $0x151] sm:$0xff]
      %v423 = vld [vmem:[%s300 + $0x159] sm:$0xff]
      %v424 = vld [vmem:[%s300 + $0x161] sm:$0xff]
      %v425 = vld [vmem:[%s300 + $0x169] sm:$0xff]
      %v426 = vld [vmem:[%s300 + $0x171] sm:$0xff]
      %v427 = vld [vmem:[%s300 + $0x179] sm:$0xf]
      %v428 = vpack.c.bf16 %v381, %v380
      %v429 = vpack.c.bf16 %v383, %v382
      %v430 = vpack.c.bf16 %v385, %v384
      %v431 = vpack.c.bf16 %v387, %v386
      %v432 = vpack.c.bf16 %v389, %v388
      %v433 = vpack.c.bf16 %v391, %v390
      %v434 = vpack.c.bf16 %v393, %v392
      %v435 = vpack.c.bf16 %v395, %v394
      %v436 = vpack.c.bf16 %v397, %v396
      %v437 = vpack.c.bf16 %v399, %v398
      %v438 = vpack.c.bf16 %v401, %v400
      %v439 = vpack.c.bf16 %v403, %v402
      %v440 = vpack.c.bf16 %v405, %v404
      %v441 = vpack.c.bf16 %v407, %v406
      %v442 = vpack.c.bf16 %v409, %v408
      %v443 = vpack.c.bf16 %v411, %v410
      %v444 = vpack.c.bf16 %v413, %v412
      %v445 = vpack.c.bf16 %v415, %v414
      %v446 = vpack.c.bf16 %v417, %v416
      %v447 = vpack.c.bf16 %v419, %v418
      %v448 = vpack.c.bf16 %v421, %v420
      %v449 = vpack.c.bf16 %v423, %v422
      %v450 = vpack.c.bf16 %v425, %v424
      %v451 = vpack.c.bf16 %v427, %v426
      %s452 = scalar_lea.vmem %s1, 2
      %v453 = vld [vmem:[%s452] sm:$0x3]
      %vm454 = vcmask 31744
      %v456 = vsel %vm454, %v428, 0
      %v459 = vsel %vm454, %v429, 0
      %v462 = vsel %vm454, %v430, 0
      %v465 = vsel %vm454, %v431, 0
      %v468 = vsel %vm454, %v432, 0
      %v471 = vsel %vm454, %v433, 0
      %v474 = vsel %vm454, %v434, 0
      %v477 = vsel %vm454, %v435, 0
      %v480 = vsel %vm454, %v436, 0
      %v483 = vsel %vm454, %v437, 0
      %v486 = vsel %vm454, %v438, 0
      %v489 = vsel %vm454, %v439, 0
      %v492 = vsel %vm454, %v440, 0
      %v495 = vsel %vm454, %v441, 0
      %v498 = vsel %vm454, %v442, 0
      %v501 = vsel %vm454, %v443, 0
      %v504 = vsel %vm454, %v444, 0
      %v507 = vsel %vm454, %v445, 0
      %v510 = vsel %vm454, %v446, 0
      %v513 = vsel %vm454, %v447, 0
      %v516 = vsel %vm454, %v448, 0
      %v519 = vsel %vm454, %v449, 0
      %v522 = vsel %vm454, %v450, 0
      %v525 = vsel %vm454, %v451, 0
      %vm527 = vcmask 1041408
      %v529 = vsel %vm527, %v453, 0
      %531 = vmatprep.subr.bf16.mxu0 0
      %532 = vmatpush1.bf16.msra.mxu0 %v529
      %533 = vmatprep.subr.bf16.mxu0 0
      %534 = vmatpush1.bf16.msra.mxu0 0
      %535 = vmatprep.subr.bf16.mxu0 0
      %536 = vmatpush1.bf16.msra.mxu0 0
      %537 = vmatprep.subr.bf16.mxu0 0
      %538 = vmatpush1.bf16.msra.mxu0 0
      %539 = vmatprep.subr.bf16.mxu0 0
      %540 = vmatpush1.bf16.msra.mxu0 0
      %541 = vmatprep.subr.bf16.mxu0 0
      %542 = vmatpush1.bf16.msra.mxu0 0
      %543 = vmatprep.subr.bf16.mxu0 0
      %544 = vmatpush1.bf16.msra.mxu0 0
      %545 = vmatprep.subr.bf16.mxu0 0
      %546 = vmatpush1.bf16.msra.mxu0 0
      %547 = vmatprep.subr.bf16.mxu0 0
      %548 = vmatpush1.bf16.msra.mxu0 0
      %549 = vmatprep.subr.bf16.mxu0 0
      %550 = vmatpush1.bf16.msra.mxu0 0
      %551 = vmatprep.subr.bf16.mxu0 0
      %552 = vmatpush1.bf16.msra.mxu0 0
      %553 = vmatprep.subr.bf16.mxu0 0
      %554 = vmatpush1.bf16.msra.mxu0 0
      %555 = vmatprep.subr.bf16.mxu0 0
      %556 = vmatpush1.bf16.msra.mxu0 0
      %557 = vmatprep.subr.bf16.mxu0 0
      %558 = vmatpush1.bf16.msra.mxu0 0
      %559 = vmatprep.subr.bf16.mxu0 0
      %560 = vmatpush1.bf16.msra.mxu0 0
      %561 = vmatprep.subr.bf16.mxu0 0
      %562 = vmatpush1.bf16.msra.mxu0 0
      %563 = vmatprep.mubr.bf16.mxu0 0
      %564 = vmatmul.mubr.bf16.gmra.mrb[0].mxu0 %v456
      %v565 = vpop.f32.mrb[0].mxu0
      %v566 = vadd.f32 0.0, %v565
      %v567 = vpop.f32.mrb[0].mxu0
      %v568 = vpop.f32.mrb[0].mxu0
      %v569 = vadd.f32 0.0, %v568
      %v570 = vpop.f32.mrb[0].mxu0
      %571 = vmatprep.mubr.bf16.mxu0 0
      %572 = vmatmul.mubr.bf16.gmra.mrb[0].mxu0 %v459
      %v573 = vpop.f32.mrb[0].mxu0
      %v574 = vadd.f32 0.0, %v573
      %v575 = vpop.f32.mrb[0].mxu0
      %v576 = vpop.f32.mrb[0].mxu0
      %v577 = vadd.f32 0.0, %v576
      %v578 = vpop.f32.mrb[0].mxu0
      %579 = vmatprep.mubr.bf16.mxu0 0
      %580 = vmatmul.mubr.bf16.gmra.mrb[0].mxu0 %v462
      %v581 = vpop.f32.mrb[0].mxu0
      %v582 = vadd.f32 0.0, %v581
      %v583 = vpop.f32.mrb[0].mxu0
      %v584 = vpop.f32.mrb[0].mxu0
      %v585 = vadd.f32 0.0, %v584
      %v586 = vpop.f32.mrb[0].mxu0
      %587 = vmatprep.mubr.bf16.mxu0 0
      %588 = vmatmul.mubr.bf16.gmra.mrb[0].mxu0 %v465
      %v589 = vpop.f32.mrb[0].mxu0
      %v590 = vadd.f32 0.0, %v589
      %v591 = vpop.f32.mrb[0].mxu0
      %v592 = vpop.f32.mrb[0].mxu0
      %v593 = vadd.f32 0.0, %v592
      %v594 = vpop.f32.mrb[0].mxu0
      %595 = vmatprep.mubr.bf16.mxu0 0
      %596 = vmatmul.mubr.bf16.gmra.mrb[0].mxu0 %v468
      %v597 = vpop.f32.mrb[0].mxu0
      %v598 = vadd.f32 0.0, %v597
      %v599 = vpop.f32.mrb[0].mxu0
      %v600 = vpop.f32.mrb[0].mxu0
      %v601 = vadd.f32 0.0, %v600
      %v602 = vpop.f32.mrb[0].mxu0
      %603 = vmatprep.mubr.bf16.mxu0 0
      %604 = vmatmul.mubr.bf16.gmra.mrb[0].mxu0 %v471
      %v605 = vpop.f32.mrb[0].mxu0
      %v606 = vadd.f32 0.0, %v605
      %v607 = vpop.f32.mrb[0].mxu0
      %v608 = vpop.f32.mrb[0].mxu0
      %v609 = vadd.f32 0.0, %v608
      %v610 = vpop.f32.mrb[0].mxu0
      %611 = vmatprep.mubr.bf16.mxu0 0
      %612 = vmatmul.mubr.bf16.gmra.mrb[0].mxu0 %v474
      %v613 = vpop.f32.mrb[0].mxu0
      %v614 = vadd.f32 0.0, %v613
      %v615 = vpop.f32.mrb[0].mxu0
      %v616 = vpop.f32.mrb[0].mxu0
      %v617 = vadd.f32 0.0, %v616
      %v618 = vpop.f32.mrb[0].mxu0
      %619 = vmatprep.mubr.bf16.mxu0 0
      %620 = vmatmul.mubr.bf16.gmra.mrb[0].mxu0 %v477
      %v621 = vpop.f32.mrb[0].mxu0
      %v622 = vadd.f32 0.0, %v621
      %v623 = vpop.f32.mrb[0].mxu0
      %v624 = vpop.f32.mrb[0].mxu0
      %v625 = vadd.f32 0.0, %v624
      %v626 = vpop.f32.mrb[0].mxu0
      %627 = vmatprep.mubr.bf16.mxu0 0
      %628 = vmatmul.mubr.bf16.gmra.mrb[0].mxu0 %v480
      %v629 = vpop.f32.mrb[0].mxu0
      %v630 = vadd.f32 0.0, %v629
      %v631 = vpop.f32.mrb[0].mxu0
      %v632 = vpop.f32.mrb[0].mxu0
      %v633 = vadd.f32 0.0, %v632
      %v634 = vpop.f32.mrb[0].mxu0
      %635 = vmatprep.mubr.bf16.mxu0 0
      %636 = vmatmul.mubr.bf16.gmra.mrb[0].mxu0 %v483
      %v637 = vpop.f32.mrb[0].mxu0
      %v638 = vadd.f32 0.0, %v637
      %v639 = vpop.f32.mrb[0].mxu0
      %v640 = vpop.f32.mrb[0].mxu0
      %v641 = vadd.f32 0.0, %v640
      %v642 = vpop.f32.mrb[0].mxu0
      %643 = vmatprep.mubr.bf16.mxu0 0
      %644 = vmatmul.mubr.bf16.gmra.mrb[0].mxu0 %v486
      %v645 = vpop.f32.mrb[0].mxu0
      %v646 = vadd.f32 0.0, %v645
      %v647 = vpop.f32.mrb[0].mxu0
      %v648 = vpop.f32.mrb[0].mxu0
      %v649 = vadd.f32 0.0, %v648
      %v650 = vpop.f32.mrb[0].mxu0
      %651 = vmatprep.mubr.bf16.mxu0 0
      %652 = vmatmul.mubr.bf16.gmra.mrb[0].mxu0 %v489
      %v653 = vpop.f32.mrb[0].mxu0
      %v654 = vadd.f32 0.0, %v653
      %v655 = vpop.f32.mrb[0].mxu0
      %v656 = vpop.f32.mrb[0].mxu0
      %v657 = vadd.f32 0.0, %v656
      %v658 = vpop.f32.mrb[0].mxu0
      %659 = vmatprep.mubr.bf16.mxu0 0
      %660 = vmatmul.mubr.bf16.gmra.mrb[0].mxu0 %v492
      %v661 = vpop.f32.mrb[0].mxu0
      %v662 = vadd.f32 0.0, %v661
      %v663 = vpop.f32.mrb[0].mxu0
      %v664 = vpop.f32.mrb[0].mxu0
      %v665 = vadd.f32 0.0, %v664
      %v666 = vpop.f32.mrb[0].mxu0
      %667 = vmatprep.mubr.bf16.mxu0 0
      %668 = vmatmul.mubr.bf16.gmra.mrb[0].mxu0 %v495
      %v669 = vpop.f32.mrb[0].mxu0
      %v670 = vadd.f32 0.0, %v669
      %v671 = vpop.f32.mrb[0].mxu0
      %v672 = vpop.f32.mrb[0].mxu0
      %v673 = vadd.f32 0.0, %v672
      %v674 = vpop.f32.mrb[0].mxu0
      %675 = vmatprep.mubr.bf16.mxu0 0
      %676 = vmatmul.mubr.bf16.gmra.mrb[0].mxu0 %v498
      %v677 = vpop.f32.mrb[0].mxu0
      %v678 = vadd.f32 0.0, %v677
      %v679 = vpop.f32.mrb[0].mxu0
      %v680 = vpop.f32.mrb[0].mxu0
      %v681 = vadd.f32 0.0, %v680
      %v682 = vpop.f32.mrb[0].mxu0
      %683 = vmatprep.mubr.bf16.mxu0 0
      %684 = vmatmul.mubr.bf16.gmra.mrb[0].mxu0 %v501
      %v685 = vpop.f32.mrb[0].mxu0
      %v686 = vadd.f32 0.0, %v685
      %v687 = vpop.f32.mrb[0].mxu0
      %v688 = vpop.f32.mrb[0].mxu0
      %v689 = vadd.f32 0.0, %v688
      %v690 = vpop.f32.mrb[0].mxu0
      %691 = vmatprep.mubr.bf16.mxu0 0
      %692 = vmatmul.mubr.bf16.gmra.mrb[0].mxu0 %v504
      %v693 = vpop.f32.mrb[0].mxu0
      %v694 = vadd.f32 0.0, %v693
      %v695 = vpop.f32.mrb[0].mxu0
      %v696 = vpop.f32.mrb[0].mxu0
      %v697 = vadd.f32 0.0, %v696
      %v698 = vpop.f32.mrb[0].mxu0
      %699 = vmatprep.mubr.bf16.mxu0 0
      %700 = vmatmul.mubr.bf16.gmra.mrb[0].mxu0 %v507
      %v701 = vpop.f32.mrb[0].mxu0
      %v702 = vadd.f32 0.0, %v701
      %v703 = vpop.f32.mrb[0].mxu0
      %v704 = vpop.f32.mrb[0].mxu0
      %v705 = vadd.f32 0.0, %v704
      %v706 = vpop.f32.mrb[0].mxu0
      %707 = vmatprep.mubr.bf16.mxu0 0
      %708 = vmatmul.mubr.bf16.gmra.mrb[0].mxu0 %v510
      %v709 = vpop.f32.mrb[0].mxu0
      %v710 = vadd.f32 0.0, %v709
      %v711 = vpop.f32.mrb[0].mxu0
      %v712 = vpop.f32.mrb[0].mxu0
      %v713 = vadd.f32 0.0, %v712
      %v714 = vpop.f32.mrb[0].mxu0
      %715 = vmatprep.mubr.bf16.mxu0 0
      %716 = vmatmul.mubr.bf16.gmra.mrb[0].mxu0 %v513
      %v717 = vpop.f32.mrb[0].mxu0
      %v718 = vadd.f32 0.0, %v717
      %v719 = vpop.f32.mrb[0].mxu0
      %v720 = vpop.f32.mrb[0].mxu0
      %v721 = vadd.f32 0.0, %v720
      %v722 = vpop.f32.mrb[0].mxu0
      %723 = vmatprep.mubr.bf16.mxu0 0
      %724 = vmatmul.mubr.bf16.gmra.mrb[0].mxu0 %v516
      %v725 = vpop.f32.mrb[0].mxu0
      %v726 = vadd.f32 0.0, %v725
      %v727 = vpop.f32.mrb[0].mxu0
      %v728 = vpop.f32.mrb[0].mxu0
      %v729 = vadd.f32 0.0, %v728
      %v730 = vpop.f32.mrb[0].mxu0
      %731 = vmatprep.mubr.bf16.mxu0 0
      %732 = vmatmul.mubr.bf16.gmra.mrb[0].mxu0 %v519
      %v733 = vpop.f32.mrb[0].mxu0
      %v734 = vadd.f32 0.0, %v733
      %v735 = vpop.f32.mrb[0].mxu0
      %v736 = vpop.f32.mrb[0].mxu0
      %v737 = vadd.f32 0.0, %v736
      %v738 = vpop.f32.mrb[0].mxu0
      %739 = vmatprep.mubr.bf16.mxu0 0
      %740 = vmatmul.mubr.bf16.gmra.mrb[0].mxu0 %v522
      %v741 = vpop.f32.mrb[0].mxu0
      %v742 = vadd.f32 0.0, %v741
      %v743 = vpop.f32.mrb[0].mxu0
      %v744 = vpop.f32.mrb[0].mxu0
      %v745 = vadd.f32 0.0, %v744
      %v746 = vpop.f32.mrb[0].mxu0
      %747 = vmatprep.mubr.bf16.mxu0 0
      %748 = vmatmul.mubr.bf16.gmra.mrb[0].mxu0 %v525
      %v749 = vpop.f32.mrb[0].mxu0
      %v750 = vpop.f32.mrb[0].mxu0
      %v751 = vpop.f32.mrb[0].mxu0
      %v752 = vpop.f32.mrb[0].mxu0
      %753 = vdwg.mxu0
      %v755 = vsel %vm454, %v355, 0
      %v758 = vsel %vm454, %v356, 0
      %v761 = vsel %vm454, %v357, 0
      %v764 = vsel %vm454, %v358, 0
      %v767 = vsel %vm454, %v359, 0
      %v770 = vsel %vm454, %v360, 0
      %v773 = vsel %vm454, %v361, 0
      %v776 = vsel %vm454, %v362, 0
      %v779 = vsel %vm454, %v363, 0
      %v782 = vsel %vm454, %v364, 0
      %v785 = vsel %vm454, %v365, 0
      %v788 = vsel %vm454, %v366, 0
      %v791 = vsel %vm454, %v367, 0
      %v794 = vsel %vm454, %v368, 0
      %v797 = vsel %vm454, %v369, 0
      %v800 = vsel %vm454, %v370, 0
      %v803 = vsel %vm454, %v371, 0
      %v806 = vsel %vm454, %v372, 0
      %v809 = vsel %vm454, %v373, 0
      %v812 = vsel %vm454, %v374, 0
      %v815 = vsel %vm454, %v375, 0
      %v818 = vsel %vm454, %v376, 0
      %v821 = vsel %vm454, %v377, 0
      %v824 = vsel %vm454, %v378, 0
      %v827 = vsel %vm527, %v379, 0
      %829 = vmatprep.subr.bf16.mxu0 0
      %830 = vmatpush1.bf16.msra.mxu0 %v827
      %831 = vmatprep.subr.bf16.mxu0 0
      %832 = vmatpush1.bf16.msra.mxu0 0
      %833 = vmatprep.subr.bf16.mxu0 0
      %834 = vmatpush1.bf16.msra.mxu0 0
      %835 = vmatprep.subr.bf16.mxu0 0
      %836 = vmatpush1.bf16.msra.mxu0 0
      %837 = vmatprep.subr.bf16.mxu0 0
      %838 = vmatpush1.bf16.msra.mxu0 0
      %839 = vmatprep.subr.bf16.mxu0 0
      %840 = vmatpush1.bf16.msra.mxu0 0
      %841 = vmatprep.subr.bf16.mxu0 0
      %842 = vmatpush1.bf16.msra.mxu0 0
      %843 = vmatprep.subr.bf16.mxu0 0
      %844 = vmatpush1.bf16.msra.mxu0 0
      %845 = vmatprep.subr.bf16.mxu0 0
      %846 = vmatpush1.bf16.msra.mxu0 0
      %847 = vmatprep.subr.bf16.mxu0 0
      %848 = vmatpush1.bf16.msra.mxu0 0
      %849 = vmatprep.subr.bf16.mxu0 0
      %850 = vmatpush1.bf16.msra.mxu0 0
      %851 = vmatprep.subr.bf16.mxu0 0
      %852 = vmatpush1.bf16.msra.mxu0 0
      %853 = vmatprep.subr.bf16.mxu0 0
      %854 = vmatpush1.bf16.msra.mxu0 0
      %855 = vmatprep.subr.bf16.mxu0 0
      %856 = vmatpush1.bf16.msra.mxu0 0
      %857 = vmatprep.subr.bf16.mxu0 0
      %858 = vmatpush1.bf16.msra.mxu0 0
      %859 = vmatprep.subr.bf16.mxu0 0
      %860 = vmatpush1.bf16.msra.mxu0 0
      %861 = vmatprep.mubr.bf16.mxu0 0
      %862 = vmatmul.mubr.bf16.gmra.mrb[0].mxu0 %v755
      %v863 = vpop.f32.mrb[0].mxu0
      %v864 = vadd.f32 %v566, %v863
      %v865 = vpop.f32.mrb[0].mxu0
      %v866 = vpop.f32.mrb[0].mxu0
      %v867 = vadd.f32 %v569, %v866
      %v868 = vpop.f32.mrb[0].mxu0
      %869 = vmatprep.mubr.bf16.mxu0 0
      %870 = vmatmul.mubr.bf16.gmra.mrb[0].mxu0 %v758
      %v871 = vpop.f32.mrb[0].mxu0
      %v872 = vadd.f32 %v574, %v871
      %v873 = vpop.f32.mrb[0].mxu0
      %v874 = vpop.f32.mrb[0].mxu0
      %v875 = vadd.f32 %v577, %v874
      %v876 = vpop.f32.mrb[0].mxu0
      %877 = vmatprep.mubr.bf16.mxu0 0
      %878 = vmatmul.mubr.bf16.gmra.mrb[0].mxu0 %v761
      %v879 = vpop.f32.mrb[0].mxu0
      %v880 = vadd.f32 %v582, %v879
      %v881 = vpop.f32.mrb[0].mxu0
      %v882 = vpop.f32.mrb[0].mxu0
      %v883 = vadd.f32 %v585, %v882
      %v884 = vpop.f32.mrb[0].mxu0
      %885 = vmatprep.mubr.bf16.mxu0 0
      %886 = vmatmul.mubr.bf16.gmra.mrb[0].mxu0 %v764
      %v887 = vpop.f32.mrb[0].mxu0
      %v888 = vadd.f32 %v590, %v887
      %v889 = vpop.f32.mrb[0].mxu0
      %v890 = vpop.f32.mrb[0].mxu0
      %v891 = vadd.f32 %v593, %v890
      %v892 = vpop.f32.mrb[0].mxu0
      %893 = vmatprep.mubr.bf16.mxu0 0
      %894 = vmatmul.mubr.bf16.gmra.mrb[0].mxu0 %v767
      %v895 = vpop.f32.mrb[0].mxu0
      %v896 = vadd.f32 %v598, %v895
      %v897 = vpop.f32.mrb[0].mxu0
      %v898 = vpop.f32.mrb[0].mxu0
      %v899 = vadd.f32 %v601, %v898
      %v900 = vpop.f32.mrb[0].mxu0
      %901 = vmatprep.mubr.bf16.mxu0 0
      %902 = vmatmul.mubr.bf16.gmra.mrb[0].mxu0 %v770
      %v903 = vpop.f32.mrb[0].mxu0
      %v904 = vadd.f32 %v606, %v903
      %v905 = vpop.f32.mrb[0].mxu0
      %v906 = vpop.f32.mrb[0].mxu0
      %v907 = vadd.f32 %v609, %v906
      %v908 = vpop.f32.mrb[0].mxu0
      %909 = vmatprep.mubr.bf16.mxu0 0
      %910 = vmatmul.mubr.bf16.gmra.mrb[0].mxu0 %v773
      %v911 = vpop.f32.mrb[0].mxu0
      %v912 = vadd.f32 %v614, %v911
      %v913 = vpop.f32.mrb[0].mxu0
      %v914 = vpop.f32.mrb[0].mxu0
      %v915 = vadd.f32 %v617, %v914
      %v916 = vpop.f32.mrb[0].mxu0
      %917 = vmatprep.mubr.bf16.mxu0 0
      %918 = vmatmul.mubr.bf16.gmra.mrb[0].mxu0 %v776
      %v919 = vpop.f32.mrb[0].mxu0
      %v920 = vadd.f32 %v622, %v919
      %v921 = vpop.f32.mrb[0].mxu0
      %v922 = vpop.f32.mrb[0].mxu0
      %v923 = vadd.f32 %v625, %v922
      %v924 = vpop.f32.mrb[0].mxu0
      %925 = vmatprep.mubr.bf16.mxu0 0
      %926 = vmatmul.mubr.bf16.gmra.mrb[0].mxu0 %v779
      %v927 = vpop.f32.mrb[0].mxu0
      %v928 = vadd.f32 %v630, %v927
      %v929 = vpop.f32.mrb[0].mxu0
      %v930 = vpop.f32.mrb[0].mxu0
      %v931 = vadd.f32 %v633, %v930
      %v932 = vpop.f32.mrb[0].mxu0
      %933 = vmatprep.mubr.bf16.mxu0 0
      %934 = vmatmul.mubr.bf16.gmra.mrb[0].mxu0 %v782
      %v935 = vpop.f32.mrb[0].mxu0
      %v936 = vadd.f32 %v638, %v935
      %v937 = vpop.f32.mrb[0].mxu0
      %v938 = vpop.f32.mrb[0].mxu0
      %v939 = vadd.f32 %v641, %v938
      %v940 = vpop.f32.mrb[0].mxu0
      %941 = vmatprep.mubr.bf16.mxu0 0
      %942 = vmatmul.mubr.bf16.gmra.mrb[0].mxu0 %v785
      %v943 = vpop.f32.mrb[0].mxu0
      %v944 = vadd.f32 %v646, %v943
      %v945 = vpop.f32.mrb[0].mxu0
      %v946 = vpop.f32.mrb[0].mxu0
      %v947 = vadd.f32 %v649, %v946
      %v948 = vpop.f32.mrb[0].mxu0
      %949 = vmatprep.mubr.bf16.mxu0 0
      %950 = vmatmul.mubr.bf16.gmra.mrb[0].mxu0 %v788
      %v951 = vpop.f32.mrb[0].mxu0
      %v952 = vadd.f32 %v654, %v951
      %v953 = vpop.f32.mrb[0].mxu0
      %v954 = vpop.f32.mrb[0].mxu0
      %v955 = vadd.f32 %v657, %v954
      %v956 = vpop.f32.mrb[0].mxu0
      %957 = vmatprep.mubr.bf16.mxu0 0
      %958 = vmatmul.mubr.bf16.gmra.mrb[0].mxu0 %v791
      %v959 = vpop.f32.mrb[0].mxu0
      %v960 = vadd.f32 %v662, %v959
      %v961 = vpop.f32.mrb[0].mxu0
      %v962 = vpop.f32.mrb[0].mxu0
      %v963 = vadd.f32 %v665, %v962
      %v964 = vpop.f32.mrb[0].mxu0
      %965 = vmatprep.mubr.bf16.mxu0 0
      %966 = vmatmul.mubr.bf16.gmra.mrb[0].mxu0 %v794
      %v967 = vpop.f32.mrb[0].mxu0
      %v968 = vadd.f32 %v670, %v967
      %v969 = vpop.f32.mrb[0].mxu0
      %v970 = vpop.f32.mrb[0].mxu0
      %v971 = vadd.f32 %v673, %v970
      %v972 = vpop.f32.mrb[0].mxu0
      %973 = vmatprep.mubr.bf16.mxu0 0
      %974 = vmatmul.mubr.bf16.gmra.mrb[0].mxu0 %v797
      %v975 = vpop.f32.mrb[0].mxu0
      %v976 = vadd.f32 %v678, %v975
      %v977 = vpop.f32.mrb[0].mxu0
      %v978 = vpop.f32.mrb[0].mxu0
      %v979 = vadd.f32 %v681, %v978
      %v980 = vpop.f32.mrb[0].mxu0
      %981 = vmatprep.mubr.bf16.mxu0 0
      %982 = vmatmul.mubr.bf16.gmra.mrb[0].mxu0 %v800
      %v983 = vpop.f32.mrb[0].mxu0
      %v984 = vadd.f32 %v686, %v983
      %v985 = vpop.f32.mrb[0].mxu0
      %v986 = vpop.f32.mrb[0].mxu0
      %v987 = vadd.f32 %v689, %v986
      %v988 = vpop.f32.mrb[0].mxu0
      %989 = vmatprep.mubr.bf16.mxu0 0
      %990 = vmatmul.mubr.bf16.gmra.mrb[0].mxu0 %v803
      %v991 = vpop.f32.mrb[0].mxu0
      %v992 = vadd.f32 %v694, %v991
      %v993 = vpop.f32.mrb[0].mxu0
      %v994 = vpop.f32.mrb[0].mxu0
      %v995 = vadd.f32 %v697, %v994
      %v996 = vpop.f32.mrb[0].mxu0
      %997 = vmatprep.mubr.bf16.mxu0 0
      %998 = vmatmul.mubr.bf16.gmra.mrb[0].mxu0 %v806
      %v999 = vpop.f32.mrb[0].mxu0
      %v1000 = vadd.f32 %v702, %v999
      %v1001 = vpop.f32.mrb[0].mxu0
      %v1002 = vpop.f32.mrb[0].mxu0
      %v1003 = vadd.f32 %v705, %v1002
      %v1004 = vpop.f32.mrb[0].mxu0
      %1005 = vmatprep.mubr.bf16.mxu0 0
      %1006 = vmatmul.mubr.bf16.gmra.mrb[0].mxu0 %v809
      %v1007 = vpop.f32.mrb[0].mxu0
      %v1008 = vadd.f32 %v710, %v1007
      %v1009 = vpop.f32.mrb[0].mxu0
      %v1010 = vpop.f32.mrb[0].mxu0
      %v1011 = vadd.f32 %v713, %v1010
      %v1012 = vpop.f32.mrb[0].mxu0
      %1013 = vmatprep.mubr.bf16.mxu0 0
      %1014 = vmatmul.mubr.bf16.gmra.mrb[0].mxu0 %v812
      %v1015 = vpop.f32.mrb[0].mxu0
      %v1016 = vadd.f32 %v718, %v1015
      %v1017 = vpop.f32.mrb[0].mxu0
      %v1018 = vpop.f32.mrb[0].mxu0
      %v1019 = vadd.f32 %v721, %v1018
      %v1020 = vpop.f32.mrb[0].mxu0
      %1021 = vmatprep.mubr.bf16.mxu0 0
      %1022 = vmatmul.mubr.bf16.gmra.mrb[0].mxu0 %v815
      %v1023 = vpop.f32.mrb[0].mxu0
      %v1024 = vadd.f32 %v726, %v1023
      %v1025 = vpop.f32.mrb[0].mxu0
      %v1026 = vpop.f32.mrb[0].mxu0
      %v1027 = vadd.f32 %v729, %v1026
      %v1028 = vpop.f32.mrb[0].mxu0
      %1029 = vmatprep.mubr.bf16.mxu0 0
      %1030 = vmatmul.mubr.bf16.gmra.mrb[0].mxu0 %v818
      %v1031 = vpop.f32.mrb[0].mxu0
      %v1032 = vadd.f32 %v734, %v1031
      %v1033 = vpop.f32.mrb[0].mxu0
      %v1034 = vpop.f32.mrb[0].mxu0
      %v1035 = vadd.f32 %v737, %v1034
      %v1036 = vpop.f32.mrb[0].mxu0
      %1037 = vmatprep.mubr.bf16.mxu0 0
      %1038 = vmatmul.mubr.bf16.gmra.mrb[0].mxu0 %v821
      %v1039 = vpop.f32.mrb[0].mxu0
      %v1040 = vadd.f32 %v742, %v1039
      %v1041 = vpop.f32.mrb[0].mxu0
      %v1042 = vpop.f32.mrb[0].mxu0
      %v1043 = vadd.f32 %v745, %v1042
      %v1044 = vpop.f32.mrb[0].mxu0
      %1045 = vmatprep.mubr.bf16.mxu0 0
      %1046 = vmatmul.mubr.bf16.gmra.mrb[0].mxu0 %v824
      %v1047 = vpop.f32.mrb[0].mxu0
      %v1048 = vpop.f32.mrb[0].mxu0
      %v1049 = vpop.f32.mrb[0].mxu0
      %v1050 = vpop.f32.mrb[0].mxu0
      %1051 = vdwg.mxu0
      %v1052 = vld [vmem:[%s300 + $0x2] sm:$0xff]
      %v1053 = vld [vmem:[%s300 + $0xa] sm:$0xff]
      %v1054 = vld [vmem:[%s300 + $0x12] sm:$0xff]
      %v1055 = vld [vmem:[%s300 + $0x1a] sm:$0xff]
      %v1056 = vld [vmem:[%s300 + $0x22] sm:$0xff]
      %v1057 = vld [vmem:[%s300 + $0x2a] sm:$0xff]
      %v1058 = vld [vmem:[%s300 + $0x32] sm:$0xff]
      %v1059 = vld [vmem:[%s300 + $0x3a] sm:$0xff]
      %v1060 = vld [vmem:[%s300 + $0x42] sm:$0xff]
      %v1061 = vld [vmem:[%s300 + $0x4a] sm:$0xff]
      %v1062 = vld [vmem:[%s300 + $0x52] sm:$0xff]
      %v1063 = vld [vmem:[%s300 + $0x5a] sm:$0xff]
      %v1064 = vld [vmem:[%s300 + $0x62] sm:$0xff]
      %v1065 = vld [vmem:[%s300 + $0x6a] sm:$0xff]
      %v1066 = vld [vmem:[%s300 + $0x72] sm:$0xff]
      %v1067 = vld [vmem:[%s300 + $0x7a] sm:$0xff]
      %v1068 = vld [vmem:[%s300 + $0x82] sm:$0xff]
      %v1069 = vld [vmem:[%s300 + $0x8a] sm:$0xff]
      %v1070 = vld [vmem:[%s300 + $0x92] sm:$0xff]
      %v1071 = vld [vmem:[%s300 + $0x9a] sm:$0xff]
      %v1072 = vld [vmem:[%s300 + $0xa2] sm:$0xff]
      %v1073 = vld [vmem:[%s300 + $0xaa] sm:$0xff]
      %v1074 = vld [vmem:[%s300 + $0xb2] sm:$0xff]
      %v1075 = vld [vmem:[%s300 + $0xba] sm:$0xff]
      %v1076 = vld [vmem:[%s300 + $0xc2] sm:$0xff]
      %v1077 = vld [vmem:[%s300 + $0xca] sm:$0xff]
      %v1078 = vld [vmem:[%s300 + $0xd2] sm:$0xff]
      %v1079 = vld [vmem:[%s300 + $0xda] sm:$0xff]
      %v1080 = vld [vmem:[%s300 + $0xe2] sm:$0xff]
      %v1081 = vld [vmem:[%s300 + $0xea] sm:$0xff]
      %v1082 = vld [vmem:[%s300 + $0xf2] sm:$0xff]
      %v1083 = vld [vmem:[%s300 + $0xfa] sm:$0xff]
      %v1084 = vld [vmem:[%s300 + $0x102] sm:$0xff]
      %v1085 = vld [vmem:[%s300 + $0x10a] sm:$0xff]
      %v1086 = vld [vmem:[%s300 + $0x112] sm:$0xff]
      %v1087 = vld [vmem:[%s300 + $0x11a] sm:$0xff]
      %v1088 = vld [vmem:[%s300 + $0x122] sm:$0xff]
      %v1089 = vld [vmem:[%s300 + $0x12a] sm:$0xff]
      %v1090 = vld [vmem:[%s300 + $0x132] sm:$0xff]
      %v1091 = vld [vmem:[%s300 + $0x13a] sm:$0xff]
      %v1092 = vld [vmem:[%s300 + $0x142] sm:$0xff]
      %v1093 = vld [vmem:[%s300 + $0x14a] sm:$0xff]
      %v1094 = vld [vmem:[%s300 + $0x152] sm:$0xff]
      %v1095 = vld [vmem:[%s300 + $0x15a] sm:$0xff]
      %v1096 = vld [vmem:[%s300 + $0x162] sm:$0xff]
      %v1097 = vld [vmem:[%s300 + $0x16a] sm:$0xff]
      %v1098 = vld [vmem:[%s300 + $0x172] sm:$0xff]
      %v1099 = vld [vmem:[%s300 + $0x17a] sm:$0xf]
      %v1100 = vpack.c.bf16 %v1053, %v1052
      %v1101 = vpack.c.bf16 %v1055, %v1054
      %v1102 = vpack.c.bf16 %v1057, %v1056
      %v1103 = vpack.c.bf16 %v1059, %v1058
      %v1104 = vpack.c.bf16 %v1061, %v1060
      %v1105 = vpack.c.bf16 %v1063, %v1062
      %v1106 = vpack.c.bf16 %v1065, %v1064
      %v1107 = vpack.c.bf16 %v1067, %v1066
      %v1108 = vpack.c.bf16 %v1069, %v1068
      %v1109 = vpack.c.bf16 %v1071, %v1070
      %v1110 = vpack.c.bf16 %v1073, %v1072
      %v1111 = vpack.c.bf16 %v1075, %v1074
      %v1112 = vpack.c.bf16 %v1077, %v1076
      %v1113 = vpack.c.bf16 %v1079, %v1078
      %v1114 = vpack.c.bf16 %v1081, %v1080
      %v1115 = vpack.c.bf16 %v1083, %v1082
      %v1116 = vpack.c.bf16 %v1085, %v1084
      %v1117 = vpack.c.bf16 %v1087, %v1086
      %v1118 = vpack.c.bf16 %v1089, %v1088
      %v1119 = vpack.c.bf16 %v1091, %v1090
      %v1120 = vpack.c.bf16 %v1093, %v1092
      %v1121 = vpack.c.bf16 %v1095, %v1094
      %v1122 = vpack.c.bf16 %v1097, %v1096
      %v1123 = vpack.c.bf16 %v1099, %v1098
      %s1124 = scalar_lea.vmem %s1, 4
      %v1125 = vld [vmem:[%s1124] sm:$0x3]
      %v1127 = vsel %vm454, %v1100, 0
      %v1130 = vsel %vm454, %v1101, 0
      %v1133 = vsel %vm454, %v1102, 0
      %v1136 = vsel %vm454, %v1103, 0
      %v1139 = vsel %vm454, %v1104, 0
      %v1142 = vsel %vm454, %v1105, 0
      %v1145 = vsel %vm454, %v1106, 0
      %v1148 = vsel %vm454, %v1107, 0
      %v1151 = vsel %vm454, %v1108, 0
      %v1154 = vsel %vm454, %v1109, 0
      %v1157 = vsel %vm454, %v1110, 0
      %v1160 = vsel %vm454, %v1111, 0
      %v1163 = vsel %vm454, %v1112, 0
      %v1166 = vsel %vm454, %v1113, 0
      %v1169 = vsel %vm454, %v1114, 0
      %v1172 = vsel %vm454, %v1115, 0
      %v1175 = vsel %vm454, %v1116, 0
      %v1178 = vsel %vm454, %v1117, 0
      %v1181 = vsel %vm454, %v1118, 0
      %v1184 = vsel %vm454, %v1119, 0
      %v1187 = vsel %vm454, %v1120, 0
      %v1190 = vsel %vm454, %v1121, 0
      %v1193 = vsel %vm454, %v1122, 0
      %v1196 = vsel %vm454, %v1123, 0
      %v1199 = vsel %vm527, %v1125, 0
      %1201 = vmatprep.subr.bf16.mxu0 0
      %1202 = vmatpush1.bf16.msra.mxu0 %v1199
      %1203 = vmatprep.subr.bf16.mxu0 0
      %1204 = vmatpush1.bf16.msra.mxu0 0
      %1205 = vmatprep.subr.bf16.mxu0 0
      %1206 = vmatpush1.bf16.msra.mxu0 0
      %1207 = vmatprep.subr.bf16.mxu0 0
      %1208 = vmatpush1.bf16.msra.mxu0 0
      %1209 = vmatprep.subr.bf16.mxu0 0
      %1210 = vmatpush1.bf16.msra.mxu0 0
      %1211 = vmatprep.subr.bf16.mxu0 0
      %1212 = vmatpush1.bf16.msra.mxu0 0
      %1213 = vmatprep.subr.bf16.mxu0 0
      %1214 = vmatpush1.bf16.msra.mxu0 0
      %1215 = vmatprep.subr.bf16.mxu0 0
      %1216 = vmatpush1.bf16.msra.mxu0 0
      %1217 = vmatprep.subr.bf16.mxu0 0
      %1218 = vmatpush1.bf16.msra.mxu0 0
      %1219 = vmatprep.subr.bf16.mxu0 0
      %1220 = vmatpush1.bf16.msra.mxu0 0
      %1221 = vmatprep.subr.bf16.mxu0 0
      %1222 = vmatpush1.bf16.msra.mxu0 0
      %1223 = vmatprep.subr.bf16.mxu0 0
      %1224 = vmatpush1.bf16.msra.mxu0 0
      %1225 = vmatprep.subr.bf16.mxu0 0
      %1226 = vmatpush1.bf16.msra.mxu0 0
      %1227 = vmatprep.subr.bf16.mxu0 0
      %1228 = vmatpush1.bf16.msra.mxu0 0
      %1229 = vmatprep.subr.bf16.mxu0 0
      %1230 = vmatpush1.bf16.msra.mxu0 0
      %1231 = vmatprep.subr.bf16.mxu0 0
      %1232 = vmatpush1.bf16.msra.mxu0 0
      %1233 = vmatprep.mubr.bf16.mxu0 0
      %1234 = vmatmul.mubr.bf16.gmra.mrb[0].mxu0 %v1127
      %v1235 = vpop.f32.mrb[0].mxu0
      %v1236 = vadd.f32 0.0, %v1235
      %v1237 = vpop.f32.mrb[0].mxu0
      %v1238 = vpop.f32.mrb[0].mxu0
      %v1239 = vadd.f32 0.0, %v1238
      %v1240 = vpop.f32.mrb[0].mxu0
      %1241 = vmatprep.mubr.bf16.mxu0 0
      %1242 = vmatmul.mubr.bf16.gmra.mrb[0].mxu0 %v1130
      %v1243 = vpop.f32.mrb[0].mxu0
      %v1244 = vadd.f32 0.0, %v1243
      %v1245 = vpop.f32.mrb[0].mxu0
      %v1246 = vpop.f32.mrb[0].mxu0
      %v1247 = vadd.f32 0.0, %v1246
      %v1248 = vpop.f32.mrb[0].mxu0
      %1249 = vmatprep.mubr.bf16.mxu0 0
      %1250 = vmatmul.mubr.bf16.gmra.mrb[0].mxu0 %v1133
      %v1251 = vpop.f32.mrb[0].mxu0
      %v1252 = vadd.f32 0.0, %v1251
      %v1253 = vpop.f32.mrb[0].mxu0
      %v1254 = vpop.f32.mrb[0].mxu0
      %v1255 = vadd.f32 0.0, %v1254
      %v1256 = vpop.f32.mrb[0].mxu0
      %1257 = vmatprep.mubr.bf16.mxu0 0
      %1258 = vmatmul.mubr.bf16.gmra.mrb[0].mxu0 %v1136
      %v1259 = vpop.f32.mrb[0].mxu0
      %v1260 = vadd.f32 0.0, %v1259
      %v1261 = vpop.f32.mrb[0].mxu0
      %v1262 = vpop.f32.mrb[0].mxu0
      %v1263 = vadd.f32 0.0, %v1262
      %v1264 = vpop.f32.mrb[0].mxu0
      %1265 = vmatprep.mubr.bf16.mxu0 0
      %1266 = vmatmul.mubr.bf16.gmra.mrb[0].mxu0 %v1139
      %v1267 = vpop.f32.mrb[0].mxu0
      %v1268 = vadd.f32 0.0, %v1267
      %v1269 = vpop.f32.mrb[0].mxu0
      %v1270 = vpop.f32.mrb[0].mxu0
      %v1271 = vadd.f32 0.0, %v1270
      %v1272 = vpop.f32.mrb[0].mxu0
      %1273 = vmatprep.mubr.bf16.mxu0 0
      %1274 = vmatmul.mubr.bf16.gmra.mrb[0].mxu0 %v1142
      %v1275 = vpop.f32.mrb[0].mxu0
      %v1276 = vadd.f32 0.0, %v1275
      %v1277 = vpop.f32.mrb[0].mxu0
      %v1278 = vpop.f32.mrb[0].mxu0
      %v1279 = vadd.f32 0.0, %v1278
      %v1280 = vpop.f32.mrb[0].mxu0
      %1281 = vmatprep.mubr.bf16.mxu0 0
      %1282 = vmatmul.mubr.bf16.gmra.mrb[0].mxu0 %v1145
      %v1283 = vpop.f32.mrb[0].mxu0
      %v1284 = vadd.f32 0.0, %v1283
      %v1285 = vpop.f32.mrb[0].mxu0
      %v1286 = vpop.f32.mrb[0].mxu0
      %v1287 = vadd.f32 0.0, %v1286
      %v1288 = vpop.f32.mrb[0].mxu0
      %1289 = vmatprep.mubr.bf16.mxu0 0
      %1290 = vmatmul.mubr.bf16.gmra.mrb[0].mxu0 %v1148
      %v1291 = vpop.f32.mrb[0].mxu0
      %v1292 = vadd.f32 0.0, %v1291
      %v1293 = vpop.f32.mrb[0].mxu0
      %v1294 = vpop.f32.mrb[0].mxu0
      %v1295 = vadd.f32 0.0, %v1294
      %v1296 = vpop.f32.mrb[0].mxu0
      %1297 = vmatprep.mubr.bf16.mxu0 0
      %1298 = vmatmul.mubr.bf16.gmra.mrb[0].mxu0 %v1151
      %v1299 = vpop.f32.mrb[0].mxu0
      %v1300 = vadd.f32 0.0, %v1299
      %v1301 = vpop.f32.mrb[0].mxu0
      %v1302 = vpop.f32.mrb[0].mxu0
      %v1303 = vadd.f32 0.0, %v1302
      %v1304 = vpop.f32.mrb[0].mxu0
      %1305 = vmatprep.mubr.bf16.mxu0 0
      %1306 = vmatmul.mubr.bf16.gmra.mrb[0].mxu0 %v1154
      %v1307 = vpop.f32.mrb[0].mxu0
      %v1308 = vadd.f32 0.0, %v1307
      %v1309 = vpop.f32.mrb[0].mxu0
      %v1310 = vpop.f32.mrb[0].mxu0
      %v1311 = vadd.f32 0.0, %v1310
      %v1312 = vpop.f32.mrb[0].mxu0
      %1313 = vmatprep.mubr.bf16.mxu0 0
      %1314 = vmatmul.mubr.bf16.gmra.mrb[0].mxu0 %v1157
      %v1315 = vpop.f32.mrb[0].mxu0
      %v1316 = vadd.f32 0.0, %v1315
      %v1317 = vpop.f32.mrb[0].mxu0
      %v1318 = vpop.f32.mrb[0].mxu0
      %v1319 = vadd.f32 0.0, %v1318
      %v1320 = vpop.f32.mrb[0].mxu0
      %1321 = vmatprep.mubr.bf16.mxu0 0
      %1322 = vmatmul.mubr.bf16.gmra.mrb[0].mxu0 %v1160
      %v1323 = vpop.f32.mrb[0].mxu0
      %v1324 = vadd.f32 0.0, %v1323
      %v1325 = vpop.f32.mrb[0].mxu0
      %v1326 = vpop.f32.mrb[0].mxu0
      %v1327 = vadd.f32 0.0, %v1326
      %v1328 = vpop.f32.mrb[0].mxu0
      %1329 = vmatprep.mubr.bf16.mxu0 0
      %1330 = vmatmul.mubr.bf16.gmra.mrb[0].mxu0 %v1163
      %v1331 = vpop.f32.mrb[0].mxu0
      %v1332 = vadd.f32 0.0, %v1331
      %v1333 = vpop.f32.mrb[0].mxu0
      %v1334 = vpop.f32.mrb[0].mxu0
      %v1335 = vadd.f32 0.0, %v1334
      %v1336 = vpop.f32.mrb[0].mxu0
      %1337 = vmatprep.mubr.bf16.mxu0 0
      %1338 = vmatmul.mubr.bf16.gmra.mrb[0].mxu0 %v1166
      %v1339 = vpop.f32.mrb[0].mxu0
      %v1340 = vadd.f32 0.0, %v1339
      %v1341 = vpop.f32.mrb[0].mxu0
      %v1342 = vpop.f32.mrb[0].mxu0
      %v1343 = vadd.f32 0.0, %v1342
      %v1344 = vpop.f32.mrb[0].mxu0
      %1345 = vmatprep.mubr.bf16.mxu0 0
      %1346 = vmatmul.mubr.bf16.gmra.mrb[0].mxu0 %v1169
      %v1347 = vpop.f32.mrb[0].mxu0
      %v1348 = vadd.f32 0.0, %v1347
      %v1349 = vpop.f32.mrb[0].mxu0
      %v1350 = vpop.f32.mrb[0].mxu0
      %v1351 = vadd.f32 0.0, %v1350
      %v1352 = vpop.f32.mrb[0].mxu0
      %1353 = vmatprep.mubr.bf16.mxu0 0
      %1354 = vmatmul.mubr.bf16.gmra.mrb[0].mxu0 %v1172
      %v1355 = vpop.f32.mrb[0].mxu0
      %v1356 = vadd.f32 0.0, %v1355
      %v1357 = vpop.f32.mrb[0].mxu0
      %v1358 = vpop.f32.mrb[0].mxu0
      %v1359 = vadd.f32 0.0, %v1358
      %v1360 = vpop.f32.mrb[0].mxu0
      %1361 = vmatprep.mubr.bf16.mxu0 0
      %1362 = vmatmul.mubr.bf16.gmra.mrb[0].mxu0 %v1175
      %v1363 = vpop.f32.mrb[0].mxu0
      %v1364 = vadd.f32 0.0, %v1363
      %v1365 = vpop.f32.mrb[0].mxu0
      %v1366 = vpop.f32.mrb[0].mxu0
      %v1367 = vadd.f32 0.0, %v1366
      %v1368 = vpop.f32.mrb[0].mxu0
      %1369 = vmatprep.mubr.bf16.mxu0 0
      %1370 = vmatmul.mubr.bf16.gmra.mrb[0].mxu0 %v1178
      %v1371 = vpop.f32.mrb[0].mxu0
      %v1372 = vadd.f32 0.0, %v1371
      %v1373 = vpop.f32.mrb[0].mxu0
      %v1374 = vpop.f32.mrb[0].mxu0
      %v1375 = vadd.f32 0.0, %v1374
      %v1376 = vpop.f32.mrb[0].mxu0
      %1377 = vmatprep.mubr.bf16.mxu0 0
      %1378 = vmatmul.mubr.bf16.gmra.mrb[0].mxu0 %v1181
      %v1379 = vpop.f32.mrb[0].mxu0
      %v1380 = vadd.f32 0.0, %v1379
      %v1381 = vpop.f32.mrb[0].mxu0
      %v1382 = vpop.f32.mrb[0].mxu0
      %v1383 = vadd.f32 0.0, %v1382
      %v1384 = vpop.f32.mrb[0].mxu0
      %1385 = vmatprep.mubr.bf16.mxu0 0
      %1386 = vmatmul.mubr.bf16.gmra.mrb[0].mxu0 %v1184
      %v1387 = vpop.f32.mrb[0].mxu0
      %v1388 = vadd.f32 0.0, %v1387
      %v1389 = vpop.f32.mrb[0].mxu0
      %v1390 = vpop.f32.mrb[0].mxu0
      %v1391 = vadd.f32 0.0, %v1390
      %v1392 = vpop.f32.mrb[0].mxu0
      %1393 = vmatprep.mubr.bf16.mxu0 0
      %1394 = vmatmul.mubr.bf16.gmra.mrb[0].mxu0 %v1187
      %v1395 = vpop.f32.mrb[0].mxu0
      %v1396 = vadd.f32 0.0, %v1395
      %v1397 = vpop.f32.mrb[0].mxu0
      %v1398 = vpop.f32.mrb[0].mxu0
      %v1399 = vadd.f32 0.0, %v1398
      %v1400 = vpop.f32.mrb[0].mxu0
      %1401 = vmatprep.mubr.bf16.mxu0 0
      %1402 = vmatmul.mubr.bf16.gmra.mrb[0].mxu0 %v1190
      %v1403 = vpop.f32.mrb[0].mxu0
      %v1404 = vadd.f32 0.0, %v1403
      %v1405 = vpop.f32.mrb[0].mxu0
      %v1406 = vpop.f32.mrb[0].mxu0
      %v1407 = vadd.f32 0.0, %v1406
      %v1408 = vpop.f32.mrb[0].mxu0
      %1409 = vmatprep.mubr.bf16.mxu0 0
      %1410 = vmatmul.mubr.bf16.gmra.mrb[0].mxu0 %v1193
      %v1411 = vpop.f32.mrb[0].mxu0
      %v1412 = vadd.f32 0.0, %v1411
      %v1413 = vpop.f32.mrb[0].mxu0
      %v1414 = vpop.f32.mrb[0].mxu0
      %v1415 = vadd.f32 0.0, %v1414
      %v1416 = vpop.f32.mrb[0].mxu0
      %1417 = vmatprep.mubr.bf16.mxu0 0
      %1418 = vmatmul.mubr.bf16.gmra.mrb[0].mxu0 %v1196
      %v1419 = vpop.f32.mrb[0].mxu0
      %v1420 = vpop.f32.mrb[0].mxu0
      %v1421 = vpop.f32.mrb[0].mxu0
      %v1422 = vpop.f32.mrb[0].mxu0
      %1423 = vdwg.mxu0
      %v1424 = vadd.f32 %v864, %v1236
      %v1425 = vadd.f32 %v867, %v1239
      %v1426 = vadd.f32 %v872, %v1244
      %v1427 = vadd.f32 %v875, %v1247
      %v1428 = vadd.f32 %v880, %v1252
      %v1429 = vadd.f32 %v883, %v1255
      %v1430 = vadd.f32 %v888, %v1260
      %v1431 = vadd.f32 %v891, %v1263
      %v1432 = vadd.f32 %v896, %v1268
      %v1433 = vadd.f32 %v899, %v1271
      %v1434 = vadd.f32 %v904, %v1276
      %v1435 = vadd.f32 %v907, %v1279
      %v1436 = vadd.f32 %v912, %v1284
      %v1437 = vadd.f32 %v915, %v1287
      %v1438 = vadd.f32 %v920, %v1292
      %v1439 = vadd.f32 %v923, %v1295
      %v1440 = vadd.f32 %v928, %v1300
      %v1441 = vadd.f32 %v931, %v1303
      %v1442 = vadd.f32 %v936, %v1308
      %v1443 = vadd.f32 %v939, %v1311
      %v1444 = vadd.f32 %v944, %v1316
      %v1445 = vadd.f32 %v947, %v1319
      %v1446 = vadd.f32 %v952, %v1324
      %v1447 = vadd.f32 %v955, %v1327
      %v1448 = vadd.f32 %v960, %v1332
      %v1449 = vadd.f32 %v963, %v1335
      %v1450 = vadd.f32 %v968, %v1340
      %v1451 = vadd.f32 %v971, %v1343
      %v1452 = vadd.f32 %v976, %v1348
      %v1453 = vadd.f32 %v979, %v1351
      %v1454 = vadd.f32 %v984, %v1356
      %v1455 = vadd.f32 %v987, %v1359
      %v1456 = vadd.f32 %v992, %v1364
      %v1457 = vadd.f32 %v995, %v1367
      %v1458 = vadd.f32 %v1000, %v1372
      %v1459 = vadd.f32 %v1003, %v1375
      %v1460 = vadd.f32 %v1008, %v1380
      %v1461 = vadd.f32 %v1011, %v1383
      %v1462 = vadd.f32 %v1016, %v1388
      %v1463 = vadd.f32 %v1019, %v1391
      %v1464 = vadd.f32 %v1024, %v1396
      %v1465 = vadd.f32 %v1027, %v1399
      %v1466 = vadd.f32 %v1032, %v1404
      %v1467 = vadd.f32 %v1035, %v1407
      %v1468 = vadd.f32 %v1040, %v1412
      %v1469 = vadd.f32 %v1043, %v1415
      %v1470 = vld [vmem:[%s300 + $0x14] sm:$0xff]
      %v1471 = vld [vmem:[%s300 + $0x1c] sm:$0xff]
      %v1472 = vld [vmem:[%s300 + $0x24] sm:$0xff]
      %v1473 = vld [vmem:[%s300 + $0x2c] sm:$0xff]
      %v1474 = vld [vmem:[%s300 + $0x34] sm:$0xff]
      %v1475 = vld [vmem:[%s300 + $0x3c] sm:$0xff]
      %v1476 = vld [vmem:[%s300 + $0x44] sm:$0xff]
      %v1477 = vld [vmem:[%s300 + $0x4c] sm:$0xff]
      %v1478 = vld [vmem:[%s300 + $0x54] sm:$0xff]
      %v1479 = vld [vmem:[%s300 + $0x5c] sm:$0xff]
      %v1480 = vld [vmem:[%s300 + $0x64] sm:$0xff]
      %v1481 = vld [vmem:[%s300 + $0x6c] sm:$0xff]
      %v1482 = vld [vmem:[%s300 + $0x74] sm:$0xff]
      %v1483 = vld [vmem:[%s300 + $0x7c] sm:$0xff]
      %v1484 = vld [vmem:[%s300 + $0x84] sm:$0xff]
      %v1485 = vld [vmem:[%s300 + $0x8c] sm:$0xff]
      %v1486 = vld [vmem:[%s300 + $0x94] sm:$0xff]
      %v1487 = vld [vmem:[%s300 + $0x9c] sm:$0xff]
      %v1488 = vld [vmem:[%s300 + $0xa4] sm:$0xff]
      %v1489 = vld [vmem:[%s300 + $0xac] sm:$0xff]
      %v1490 = vld [vmem:[%s300 + $0xb4] sm:$0xff]
      %v1491 = vld [vmem:[%s300 + $0xbc] sm:$0xff]
      %v1492 = vld [vmem:[%s300 + $0xc4] sm:$0xff]
      %v1493 = vld [vmem:[%s300 + $0xcc] sm:$0xff]
      %v1494 = vld [vmem:[%s300 + $0xd4] sm:$0xff]
      %v1495 = vld [vmem:[%s300 + $0xdc] sm:$0xff]
      %v1496 = vld [vmem:[%s300 + $0xe4] sm:$0xff]
      %v1497 = vld [vmem:[%s300 + $0xec] sm:$0xff]
      %v1498 = vld [vmem:[%s300 + $0xf4] sm:$0xff]
      %v1499 = vld [vmem:[%s300 + $0xfc] sm:$0xff]
      %v1500 = vld [vmem:[%s300 + $0x104] sm:$0xff]
      %v1501 = vld [vmem:[%s300 + $0x10c] sm:$0xff]
      %v1502 = vld [vmem:[%s300 + $0x114] sm:$0xff]
      %v1503 = vld [vmem:[%s300 + $0x11c] sm:$0xff]
      %v1504 = vld [vmem:[%s300 + $0x124] sm:$0xff]
      %v1505 = vld [vmem:[%s300 + $0x12c] sm:$0xff]
      %v1506 = vld [vmem:[%s300 + $0x134] sm:$0xff]
      %v1507 = vld [vmem:[%s300 + $0x13c] sm:$0xff]
      %v1508 = vld [vmem:[%s300 + $0x144] sm:$0xff]
      %v1509 = vld [vmem:[%s300 + $0x14c] sm:$0xff]
      %v1510 = vld [vmem:[%s300 + $0x154] sm:$0xff]
      %v1511 = vld [vmem:[%s300 + $0x15c] sm:$0xff]
      %v1512 = vld [vmem:[%s300 + $0x164] sm:$0xff]
      %v1513 = vld [vmem:[%s300 + $0x16c] sm:$0xff]
      %v1514 = vld [vmem:[%s300 + $0x174] sm:$0xff]
      %v1515 = vld [vmem:[%s300 + $0x17c] sm:$0xff]
      %v1516 = vld [vmem:[%s300 + $0x184] sm:$0xff]
      %v1517 = vld [vmem:[%s300 + $0x18c] sm:$0xf]
      %v1518 = vpack.c.bf16 %v1471, %v1470
      %v1519 = vpack.c.bf16 %v1473, %v1472
      %v1520 = vpack.c.bf16 %v1475, %v1474
      %v1521 = vpack.c.bf16 %v1477, %v1476
      %v1522 = vpack.c.bf16 %v1479, %v1478
      %v1523 = vpack.c.bf16 %v1481, %v1480
      %v1524 = vpack.c.bf16 %v1483, %v1482
      %v1525 = vpack.c.bf16 %v1485, %v1484
      %v1526 = vpack.c.bf16 %v1487, %v1486
      %v1527 = vpack.c.bf16 %v1489, %v1488
      %v1528 = vpack.c.bf16 %v1491, %v1490
      %v1529 = vpack.c.bf16 %v1493, %v1492
      %v1530 = vpack.c.bf16 %v1495, %v1494
      %v1531 = vpack.c.bf16 %v1497, %v1496
      %v1532 = vpack.c.bf16 %v1499, %v1498
      %v1533 = vpack.c.bf16 %v1501, %v1500
      %v1534 = vpack.c.bf16 %v1503, %v1502
      %v1535 = vpack.c.bf16 %v1505, %v1504
      %v1536 = vpack.c.bf16 %v1507, %v1506
      %v1537 = vpack.c.bf16 %v1509, %v1508
      %v1538 = vpack.c.bf16 %v1511, %v1510
      %v1539 = vpack.c.bf16 %v1513, %v1512
      %v1540 = vpack.c.bf16 %v1515, %v1514
      %v1541 = vpack.c.bf16 %v1517, %v1516
      %s1542 = scalar_lea.vmem %s1, 6
      %v1543 = vld [vmem:[%s1542] sm:$0x3]
      %v1545 = vsel %vm454, %v1518, 0
      %v1548 = vsel %vm454, %v1519, 0
      %v1551 = vsel %vm454, %v1520, 0
      %v1554 = vsel %vm454, %v1521, 0
      %v1557 = vsel %vm454, %v1522, 0
      %v1560 = vsel %vm454, %v1523, 0
      %v1563 = vsel %vm454, %v1524, 0
      %v1566 = vsel %vm454, %v1525, 0
      %v1569 = vsel %vm454, %v1526, 0
      %v1572 = vsel %vm454, %v1527, 0
      %v1575 = vsel %vm454, %v1528, 0
      %v1578 = vsel %vm454, %v1529, 0
      %v1581 = vsel %vm454, %v1530, 0
      %v1584 = vsel %vm454, %v1531, 0
      %v1587 = vsel %vm454, %v1532, 0
      %v1590 = vsel %vm454, %v1533, 0
      %v1593 = vsel %vm454, %v1534, 0
      %v1596 = vsel %vm454, %v1535, 0
      %v1599 = vsel %vm454, %v1536, 0
      %v1602 = vsel %vm454, %v1537, 0
      %v1605 = vsel %vm454, %v1538, 0
      %v1608 = vsel %vm454, %v1539, 0
      %v1611 = vsel %vm454, %v1540, 0
      %v1614 = vsel %vm454, %v1541, 0
      %v1617 = vsel %vm527, %v1543, 0
      %1619 = vmatprep.subr.bf16.mxu0 0
      %1620 = vmatpush1.bf16.msra.mxu0 %v1617
      %1621 = vmatprep.subr.bf16.mxu0 0
      %1622 = vmatpush1.bf16.msra.mxu0 0
      %1623 = vmatprep.subr.bf16.mxu0 0
      %1624 = vmatpush1.bf16.msra.mxu0 0
      %1625 = vmatprep.subr.bf16.mxu0 0
      %1626 = vmatpush1.bf16.msra.mxu0 0
      %1627 = vmatprep.subr.bf16.mxu0 0
      %1628 = vmatpush1.bf16.msra.mxu0 0
      %1629 = vmatprep.subr.bf16.mxu0 0
      %1630 = vmatpush1.bf16.msra.mxu0 0
      %1631 = vmatprep.subr.bf16.mxu0 0
      %1632 = vmatpush1.bf16.msra.mxu0 0
      %1633 = vmatprep.subr.bf16.mxu0 0
      %1634 = vmatpush1.bf16.msra.mxu0 0
      %1635 = vmatprep.subr.bf16.mxu0 0
      %1636 = vmatpush1.bf16.msra.mxu0 0
      %1637 = vmatprep.subr.bf16.mxu0 0
      %1638 = vmatpush1.bf16.msra.mxu0 0
      %1639 = vmatprep.subr.bf16.mxu0 0
      %1640 = vmatpush1.bf16.msra.mxu0 0
      %1641 = vmatprep.subr.bf16.mxu0 0
      %1642 = vmatpush1.bf16.msra.mxu0 0
      %1643 = vmatprep.subr.bf16.mxu0 0
      %1644 = vmatpush1.bf16.msra.mxu0 0
      %1645 = vmatprep.subr.bf16.mxu0 0
      %1646 = vmatpush1.bf16.msra.mxu0 0
      %1647 = vmatprep.subr.bf16.mxu0 0
      %1648 = vmatpush1.bf16.msra.mxu0 0
      %1649 = vmatprep.subr.bf16.mxu0 0
      %1650 = vmatpush1.bf16.msra.mxu0 0
      %1651 = vmatprep.mubr.bf16.mxu0 0
      %1652 = vmatmul.mubr.bf16.gmra.mrb[0].mxu0 %v1545
      %v1653 = vpop.f32.mrb[0].mxu0
      %v1654 = vadd.f32 0.0, %v1653
      %v1655 = vpop.f32.mrb[0].mxu0
      %v1656 = vpop.f32.mrb[0].mxu0
      %v1657 = vadd.f32 0.0, %v1656
      %v1658 = vpop.f32.mrb[0].mxu0
      %1659 = vmatprep.mubr.bf16.mxu0 0
      %1660 = vmatmul.mubr.bf16.gmra.mrb[0].mxu0 %v1548
      %v1661 = vpop.f32.mrb[0].mxu0
      %v1662 = vadd.f32 0.0, %v1661
      %v1663 = vpop.f32.mrb[0].mxu0
      %v1664 = vpop.f32.mrb[0].mxu0
      %v1665 = vadd.f32 0.0, %v1664
      %v1666 = vpop.f32.mrb[0].mxu0
      %1667 = vmatprep.mubr.bf16.mxu0 0
      %1668 = vmatmul.mubr.bf16.gmra.mrb[0].mxu0 %v1551
      %v1669 = vpop.f32.mrb[0].mxu0
      %v1670 = vadd.f32 0.0, %v1669
      %v1671 = vpop.f32.mrb[0].mxu0
      %v1672 = vpop.f32.mrb[0].mxu0
      %v1673 = vadd.f32 0.0, %v1672
      %v1674 = vpop.f32.mrb[0].mxu0
      %1675 = vmatprep.mubr.bf16.mxu0 0
      %1676 = vmatmul.mubr.bf16.gmra.mrb[0].mxu0 %v1554
      %v1677 = vpop.f32.mrb[0].mxu0
      %v1678 = vadd.f32 0.0, %v1677
      %v1679 = vpop.f32.mrb[0].mxu0
      %v1680 = vpop.f32.mrb[0].mxu0
      %v1681 = vadd.f32 0.0, %v1680
      %v1682 = vpop.f32.mrb[0].mxu0
      %1683 = vmatprep.mubr.bf16.mxu0 0
      %1684 = vmatmul.mubr.bf16.gmra.mrb[0].mxu0 %v1557
      %v1685 = vpop.f32.mrb[0].mxu0
      %v1686 = vadd.f32 0.0, %v1685
      %v1687 = vpop.f32.mrb[0].mxu0
      %v1688 = vpop.f32.mrb[0].mxu0
      %v1689 = vadd.f32 0.0, %v1688
      %v1690 = vpop.f32.mrb[0].mxu0
      %1691 = vmatprep.mubr.bf16.mxu0 0
      %1692 = vmatmul.mubr.bf16.gmra.mrb[0].mxu0 %v1560
      %v1693 = vpop.f32.mrb[0].mxu0
      %v1694 = vadd.f32 0.0, %v1693
      %v1695 = vpop.f32.mrb[0].mxu0
      %v1696 = vpop.f32.mrb[0].mxu0
      %v1697 = vadd.f32 0.0, %v1696
      %v1698 = vpop.f32.mrb[0].mxu0
      %1699 = vmatprep.mubr.bf16.mxu0 0
      %1700 = vmatmul.mubr.bf16.gmra.mrb[0].mxu0 %v1563
      %v1701 = vpop.f32.mrb[0].mxu0
      %v1702 = vadd.f32 0.0, %v1701
      %v1703 = vpop.f32.mrb[0].mxu0
      %v1704 = vpop.f32.mrb[0].mxu0
      %v1705 = vadd.f32 0.0, %v1704
      %v1706 = vpop.f32.mrb[0].mxu0
      %1707 = vmatprep.mubr.bf16.mxu0 0
      %1708 = vmatmul.mubr.bf16.gmra.mrb[0].mxu0 %v1566
      %v1709 = vpop.f32.mrb[0].mxu0
      %v1710 = vadd.f32 0.0, %v1709
      %v1711 = vpop.f32.mrb[0].mxu0
      %v1712 = vpop.f32.mrb[0].mxu0
      %v1713 = vadd.f32 0.0, %v1712
      %v1714 = vpop.f32.mrb[0].mxu0
      %1715 = vmatprep.mubr.bf16.mxu0 0
      %1716 = vmatmul.mubr.bf16.gmra.mrb[0].mxu0 %v1569
      %v1717 = vpop.f32.mrb[0].mxu0
      %v1718 = vadd.f32 0.0, %v1717
      %v1719 = vpop.f32.mrb[0].mxu0
      %v1720 = vpop.f32.mrb[0].mxu0
      %v1721 = vadd.f32 0.0, %v1720
      %v1722 = vpop.f32.mrb[0].mxu0
      %1723 = vmatprep.mubr.bf16.mxu0 0
      %1724 = vmatmul.mubr.bf16.gmra.mrb[0].mxu0 %v1572
      %v1725 = vpop.f32.mrb[0].mxu0
      %v1726 = vadd.f32 0.0, %v1725
      %v1727 = vpop.f32.mrb[0].mxu0
      %v1728 = vpop.f32.mrb[0].mxu0
      %v1729 = vadd.f32 0.0, %v1728
      %v1730 = vpop.f32.mrb[0].mxu0
      %1731 = vmatprep.mubr.bf16.mxu0 0
      %1732 = vmatmul.mubr.bf16.gmra.mrb[0].mxu0 %v1575
      %v1733 = vpop.f32.mrb[0].mxu0
      %v1734 = vadd.f32 0.0, %v1733
      %v1735 = vpop.f32.mrb[0].mxu0
      %v1736 = vpop.f32.mrb[0].mxu0
      %v1737 = vadd.f32 0.0, %v1736
      %v1738 = vpop.f32.mrb[0].mxu0
      %1739 = vmatprep.mubr.bf16.mxu0 0
      %1740 = vmatmul.mubr.bf16.gmra.mrb[0].mxu0 %v1578
      %v1741 = vpop.f32.mrb[0].mxu0
      %v1742 = vadd.f32 0.0, %v1741
      %v1743 = vpop.f32.mrb[0].mxu0
      %v1744 = vpop.f32.mrb[0].mxu0
      %v1745 = vadd.f32 0.0, %v1744
      %v1746 = vpop.f32.mrb[0].mxu0
      %1747 = vmatprep.mubr.bf16.mxu0 0
      %1748 = vmatmul.mubr.bf16.gmra.mrb[0].mxu0 %v1581
      %v1749 = vpop.f32.mrb[0].mxu0
      %v1750 = vadd.f32 0.0, %v1749
      %v1751 = vpop.f32.mrb[0].mxu0
      %v1752 = vpop.f32.mrb[0].mxu0
      %v1753 = vadd.f32 0.0, %v1752
      %v1754 = vpop.f32.mrb[0].mxu0
      %1755 = vmatprep.mubr.bf16.mxu0 0
      %1756 = vmatmul.mubr.bf16.gmra.mrb[0].mxu0 %v1584
      %v1757 = vpop.f32.mrb[0].mxu0
      %v1758 = vadd.f32 0.0, %v1757
      %v1759 = vpop.f32.mrb[0].mxu0
      %v1760 = vpop.f32.mrb[0].mxu0
      %v1761 = vadd.f32 0.0, %v1760
      %v1762 = vpop.f32.mrb[0].mxu0
      %1763 = vmatprep.mubr.bf16.mxu0 0
      %1764 = vmatmul.mubr.bf16.gmra.mrb[0].mxu0 %v1587
      %v1765 = vpop.f32.mrb[0].mxu0
      %v1766 = vadd.f32 0.0, %v1765
      %v1767 = vpop.f32.mrb[0].mxu0
      %v1768 = vpop.f32.mrb[0].mxu0
      %v1769 = vadd.f32 0.0, %v1768
      %v1770 = vpop.f32.mrb[0].mxu0
      %1771 = vmatprep.mubr.bf16.mxu0 0
      %1772 = vmatmul.mubr.bf16.gmra.mrb[0].mxu0 %v1590
      %v1773 = vpop.f32.mrb[0].mxu0
      %v1774 = vadd.f32 0.0, %v1773
      %v1775 = vpop.f32.mrb[0].mxu0
      %v1776 = vpop.f32.mrb[0].mxu0
      %v1777 = vadd.f32 0.0, %v1776
      %v1778 = vpop.f32.mrb[0].mxu0
      %1779 = vmatprep.mubr.bf16.mxu0 0
      %1780 = vmatmul.mubr.bf16.gmra.mrb[0].mxu0 %v1593
      %v1781 = vpop.f32.mrb[0].mxu0
      %v1782 = vadd.f32 0.0, %v1781
      %v1783 = vpop.f32.mrb[0].mxu0
      %v1784 = vpop.f32.mrb[0].mxu0
      %v1785 = vadd.f32 0.0, %v1784
      %v1786 = vpop.f32.mrb[0].mxu0
      %1787 = vmatprep.mubr.bf16.mxu0 0
      %1788 = vmatmul.mubr.bf16.gmra.mrb[0].mxu0 %v1596
      %v1789 = vpop.f32.mrb[0].mxu0
      %v1790 = vadd.f32 0.0, %v1789
      %v1791 = vpop.f32.mrb[0].mxu0
      %v1792 = vpop.f32.mrb[0].mxu0
      %v1793 = vadd.f32 0.0, %v1792
      %v1794 = vpop.f32.mrb[0].mxu0
      %1795 = vmatprep.mubr.bf16.mxu0 0
      %1796 = vmatmul.mubr.bf16.gmra.mrb[0].mxu0 %v1599
      %v1797 = vpop.f32.mrb[0].mxu0
      %v1798 = vadd.f32 0.0, %v1797
      %v1799 = vpop.f32.mrb[0].mxu0
      %v1800 = vpop.f32.mrb[0].mxu0
      %v1801 = vadd.f32 0.0, %v1800
      %v1802 = vpop.f32.mrb[0].mxu0
      %1803 = vmatprep.mubr.bf16.mxu0 0
      %1804 = vmatmul.mubr.bf16.gmra.mrb[0].mxu0 %v1602
      %v1805 = vpop.f32.mrb[0].mxu0
      %v1806 = vadd.f32 0.0, %v1805
      %v1807 = vpop.f32.mrb[0].mxu0
      %v1808 = vpop.f32.mrb[0].mxu0
      %v1809 = vadd.f32 0.0, %v1808
      %v1810 = vpop.f32.mrb[0].mxu0
      %1811 = vmatprep.mubr.bf16.mxu0 0
      %1812 = vmatmul.mubr.bf16.gmra.mrb[0].mxu0 %v1605
      %v1813 = vpop.f32.mrb[0].mxu0
      %v1814 = vadd.f32 0.0, %v1813
      %v1815 = vpop.f32.mrb[0].mxu0
      %v1816 = vpop.f32.mrb[0].mxu0
      %v1817 = vadd.f32 0.0, %v1816
      %v1818 = vpop.f32.mrb[0].mxu0
      %1819 = vmatprep.mubr.bf16.mxu0 0
      %1820 = vmatmul.mubr.bf16.gmra.mrb[0].mxu0 %v1608
      %v1821 = vpop.f32.mrb[0].mxu0
      %v1822 = vadd.f32 0.0, %v1821
      %v1823 = vpop.f32.mrb[0].mxu0
      %v1824 = vpop.f32.mrb[0].mxu0
      %v1825 = vadd.f32 0.0, %v1824
      %v1826 = vpop.f32.mrb[0].mxu0
      %1827 = vmatprep.mubr.bf16.mxu0 0
      %1828 = vmatmul.mubr.bf16.gmra.mrb[0].mxu0 %v1611
      %v1829 = vpop.f32.mrb[0].mxu0
      %v1830 = vadd.f32 0.0, %v1829
      %v1831 = vpop.f32.mrb[0].mxu0
      %v1832 = vpop.f32.mrb[0].mxu0
      %v1833 = vadd.f32 0.0, %v1832
      %v1834 = vpop.f32.mrb[0].mxu0
      %1835 = vmatprep.mubr.bf16.mxu0 0
      %1836 = vmatmul.mubr.bf16.gmra.mrb[0].mxu0 %v1614
      %v1837 = vpop.f32.mrb[0].mxu0
      %v1838 = vpop.f32.mrb[0].mxu0
      %v1839 = vpop.f32.mrb[0].mxu0
      %v1840 = vpop.f32.mrb[0].mxu0
      %1841 = vdwg.mxu0
      %v1842 = vadd.f32 %v1424, %v1654
      %v1843 = vadd.f32 %v1425, %v1657
      %v1844 = vadd.f32 %v1426, %v1662
      %v1845 = vadd.f32 %v1427, %v1665
      %v1846 = vadd.f32 %v1428, %v1670
      %v1847 = vadd.f32 %v1429, %v1673
      %v1848 = vadd.f32 %v1430, %v1678
      %v1849 = vadd.f32 %v1431, %v1681
      %v1850 = vadd.f32 %v1432, %v1686
      %v1851 = vadd.f32 %v1433, %v1689
      %v1852 = vadd.f32 %v1434, %v1694
      %v1853 = vadd.f32 %v1435, %v1697
      %v1854 = vadd.f32 %v1436, %v1702
      %v1855 = vadd.f32 %v1437, %v1705
      %v1856 = vadd.f32 %v1438, %v1710
      %v1857 = vadd.f32 %v1439, %v1713
      %v1858 = vadd.f32 %v1440, %v1718
      %v1859 = vadd.f32 %v1441, %v1721
      %v1860 = vadd.f32 %v1442, %v1726
      %v1861 = vadd.f32 %v1443, %v1729
      %v1862 = vadd.f32 %v1444, %v1734
      %v1863 = vadd.f32 %v1445, %v1737
      %v1864 = vadd.f32 %v1446, %v1742
      %v1865 = vadd.f32 %v1447, %v1745
      %v1866 = vadd.f32 %v1448, %v1750
      %v1867 = vadd.f32 %v1449, %v1753
      %v1868 = vadd.f32 %v1450, %v1758
      %v1869 = vadd.f32 %v1451, %v1761
      %v1870 = vadd.f32 %v1452, %v1766
      %v1871 = vadd.f32 %v1453, %v1769
      %v1872 = vadd.f32 %v1454, %v1774
      %v1873 = vadd.f32 %v1455, %v1777
      %v1874 = vadd.f32 %v1456, %v1782
      %v1875 = vadd.f32 %v1457, %v1785
      %v1876 = vadd.f32 %v1458, %v1790
      %v1877 = vadd.f32 %v1459, %v1793
      %v1878 = vadd.f32 %v1460, %v1798
      %v1879 = vadd.f32 %v1461, %v1801
      %v1880 = vadd.f32 %v1462, %v1806
      %v1881 = vadd.f32 %v1463, %v1809
      %v1882 = vadd.f32 %v1464, %v1814
      %v1883 = vadd.f32 %v1465, %v1817
      %v1884 = vadd.f32 %v1466, %v1822
      %v1885 = vadd.f32 %v1467, %v1825
      %v1886 = vadd.f32 %v1468, %v1830
      %v1887 = vadd.f32 %v1469, %v1833
      %v1888 = vld [vmem:[%s300 + $0x15] sm:$0xff]
      %v1889 = vld [vmem:[%s300 + $0x1d] sm:$0xff]
      %v1890 = vld [vmem:[%s300 + $0x25] sm:$0xff]
      %v1891 = vld [vmem:[%s300 + $0x2d] sm:$0xff]
      %v1892 = vld [vmem:[%s300 + $0x35] sm:$0xff]
      %v1893 = vld [vmem:[%s300 + $0x3d] sm:$0xff]
      %v1894 = vld [vmem:[%s300 + $0x45] sm:$0xff]
      %v1895 = vld [vmem:[%s300 + $0x4d] sm:$0xff]
      %v1896 = vld [vmem:[%s300 + $0x55] sm:$0xff]
      %v1897 = vld [vmem:[%s300 + $0x5d] sm:$0xff]
      %v1898 = vld [vmem:[%s300 + $0x65] sm:$0xff]
      %v1899 = vld [vmem:[%s300 + $0x6d] sm:$0xff]
      %v1900 = vld [vmem:[%s300 + $0x75] sm:$0xff]
      %v1901 = vld [vmem:[%s300 + $0x7d] sm:$0xff]
      %v1902 = vld [vmem:[%s300 + $0x85] sm:$0xff]
      %v1903 = vld [vmem:[%s300 + $0x8d] sm:$0xff]
      %v1904 = vld [vmem:[%s300 + $0x95] sm:$0xff]
      %v1905 = vld [vmem:[%s300 + $0x9d] sm:$0xff]
      %v1906 = vld [vmem:[%s300 + $0xa5] sm:$0xff]
      %v1907 = vld [vmem:[%s300 + $0xad] sm:$0xff]
      %v1908 = vld [vmem:[%s300 + $0xb5] sm:$0xff]
      %v1909 = vld [vmem:[%s300 + $0xbd] sm:$0xff]
      %v1910 = vld [vmem:[%s300 + $0xc5] sm:$0xff]
      %v1911 = vld [vmem:[%s300 + $0xcd] sm:$0xff]
      %v1912 = vld [vmem:[%s300 + $0xd5] sm:$0xff]
      %v1913 = vld [vmem:[%s300 + $0xdd] sm:$0xff]
      %v1914 = vld [vmem:[%s300 + $0xe5] sm:$0xff]
      %v1915 = vld [vmem:[%s300 + $0xed] sm:$0xff]
      %v1916 = vld [vmem:[%s300 + $0xf5] sm:$0xff]
      %v1917 = vld [vmem:[%s300 + $0xfd] sm:$0xff]
      %v1918 = vld [vmem:[%s300 + $0x105] sm:$0xff]
      %v1919 = vld [vmem:[%s300 + $0x10d] sm:$0xff]
      %v1920 = vld [vmem:[%s300 + $0x115] sm:$0xff]
      %v1921 = vld [vmem:[%s300 + $0x11d] sm:$0xff]
      %v1922 = vld [vmem:[%s300 + $0x125] sm:$0xff]
      %v1923 = vld [vmem:[%s300 + $0x12d] sm:$0xff]
      %v1924 = vld [vmem:[%s300 + $0x135] sm:$0xff]
      %v1925 = vld [vmem:[%s300 + $0x13d] sm:$0xff]
      %v1926 = vld [vmem:[%s300 + $0x145] sm:$0xff]
      %v1927 = vld [vmem:[%s300 + $0x14d] sm:$0xff]
      %v1928 = vld [vmem:[%s300 + $0x155] sm:$0xff]
      %v1929 = vld [vmem:[%s300 + $0x15d] sm:$0xff]
      %v1930 = vld [vmem:[%s300 + $0x165] sm:$0xff]
      %v1931 = vld [vmem:[%s300 + $0x16d] sm:$0xff]
      %v1932 = vld [vmem:[%s300 + $0x175] sm:$0xff]
      %v1933 = vld [vmem:[%s300 + $0x17d] sm:$0xff]
      %v1934 = vld [vmem:[%s300 + $0x185] sm:$0xff]
      %v1935 = vld [vmem:[%s300 + $0x18d] sm:$0xf]
      %v1936 = vpack.c.bf16 %v1889, %v1888
      %v1937 = vpack.c.bf16 %v1891, %v1890
      %v1938 = vpack.c.bf16 %v1893, %v1892
      %v1939 = vpack.c.bf16 %v1895, %v1894
      %v1940 = vpack.c.bf16 %v1897, %v1896
      %v1941 = vpack.c.bf16 %v1899, %v1898
      %v1942 = vpack.c.bf16 %v1901, %v1900
      %v1943 = vpack.c.bf16 %v1903, %v1902
      %v1944 = vpack.c.bf16 %v1905, %v1904
      %v1945 = vpack.c.bf16 %v1907, %v1906
      %v1946 = vpack.c.bf16 %v1909, %v1908
      %v1947 = vpack.c.bf16 %v1911, %v1910
      %v1948 = vpack.c.bf16 %v1913, %v1912
      %v1949 = vpack.c.bf16 %v1915, %v1914
      %v1950 = vpack.c.bf16 %v1917, %v1916
      %v1951 = vpack.c.bf16 %v1919, %v1918
      %v1952 = vpack.c.bf16 %v1921, %v1920
      %v1953 = vpack.c.bf16 %v1923, %v1922
      %v1954 = vpack.c.bf16 %v1925, %v1924
      %v1955 = vpack.c.bf16 %v1927, %v1926
      %v1956 = vpack.c.bf16 %v1929, %v1928
      %v1957 = vpack.c.bf16 %v1931, %v1930
      %v1958 = vpack.c.bf16 %v1933, %v1932
      %v1959 = vpack.c.bf16 %v1935, %v1934
      %s1960 = scalar_lea.vmem %s1, 8
      %v1961 = vld [vmem:[%s1960] sm:$0x3]
      %v1963 = vsel %vm454, %v1936, 0
      %v1966 = vsel %vm454, %v1937, 0
      %v1969 = vsel %vm454, %v1938, 0
      %v1972 = vsel %vm454, %v1939, 0
      %v1975 = vsel %vm454, %v1940, 0
      %v1978 = vsel %vm454, %v1941, 0
      %v1981 = vsel %vm454, %v1942, 0
      %v1984 = vsel %vm454, %v1943, 0
      %v1987 = vsel %vm454, %v1944, 0
      %v1990 = vsel %vm454, %v1945, 0
      %v1993 = vsel %vm454, %v1946, 0
      %v1996 = vsel %vm454, %v1947, 0
      %v1999 = vsel %vm454, %v1948, 0
      %v2002 = vsel %vm454, %v1949, 0
      %v2005 = vsel %vm454, %v1950, 0
      %v2008 = vsel %vm454, %v1951, 0
      %v2011 = vsel %vm454, %v1952, 0
      %v2014 = vsel %vm454, %v1953, 0
      %v2017 = vsel %vm454, %v1954, 0
      %v2020 = vsel %vm454, %v1955, 0
      %v2023 = vsel %vm454, %v1956, 0
      %v2026 = vsel %vm454, %v1957, 0
      %v2029 = vsel %vm454, %v1958, 0
      %v2032 = vsel %vm454, %v1959, 0
      %v2035 = vsel %vm527, %v1961, 0
      %2037 = vmatprep.subr.bf16.mxu0 0
      %2038 = vmatpush1.bf16.msra.mxu0 %v2035
      %2039 = vmatprep.subr.bf16.mxu0 0
      %2040 = vmatpush1.bf16.msra.mxu0 0
      %2041 = vmatprep.subr.bf16.mxu0 0
      %2042 = vmatpush1.bf16.msra.mxu0 0
      %2043 = vmatprep.subr.bf16.mxu0 0
      %2044 = vmatpush1.bf16.msra.mxu0 0
      %2045 = vmatprep.subr.bf16.mxu0 0
      %2046 = vmatpush1.bf16.msra.mxu0 0
      %2047 = vmatprep.subr.bf16.mxu0 0
      %2048 = vmatpush1.bf16.msra.mxu0 0
      %2049 = vmatprep.subr.bf16.mxu0 0
      %2050 = vmatpush1.bf16.msra.mxu0 0
      %2051 = vmatprep.subr.bf16.mxu0 0
      %2052 = vmatpush1.bf16.msra.mxu0 0
      %2053 = vmatprep.subr.bf16.mxu0 0
      %2054 = vmatpush1.bf16.msra.mxu0 0
      %2055 = vmatprep.subr.bf16.mxu0 0
      %2056 = vmatpush1.bf16.msra.mxu0 0
      %2057 = vmatprep.subr.bf16.mxu0 0
      %2058 = vmatpush1.bf16.msra.mxu0 0
      %2059 = vmatprep.subr.bf16.mxu0 0
      %2060 = vmatpush1.bf16.msra.mxu0 0
      %2061 = vmatprep.subr.bf16.mxu0 0
      %2062 = vmatpush1.bf16.msra.mxu0 0
      %2063 = vmatprep.subr.bf16.mxu0 0
      %2064 = vmatpush1.bf16.msra.mxu0 0
      %2065 = vmatprep.subr.bf16.mxu0 0
      %2066 = vmatpush1.bf16.msra.mxu0 0
      %2067 = vmatprep.subr.bf16.mxu0 0
      %2068 = vmatpush1.bf16.msra.mxu0 0
      %2069 = vmatprep.mubr.bf16.mxu0 0
      %2070 = vmatmul.mubr.bf16.gmra.mrb[0].mxu0 %v1963
      %v2071 = vpop.f32.mrb[0].mxu0
      %v2072 = vadd.f32 0.0, %v2071
      %v2073 = vpop.f32.mrb[0].mxu0
      %v2074 = vpop.f32.mrb[0].mxu0
      %v2075 = vadd.f32 0.0, %v2074
      %v2076 = vpop.f32.mrb[0].mxu0
      %2077 = vmatprep.mubr.bf16.mxu0 0
      %2078 = vmatmul.mubr.bf16.gmra.mrb[0].mxu0 %v1966
      %v2079 = vpop.f32.mrb[0].mxu0
      %v2080 = vadd.f32 0.0, %v2079
      %v2081 = vpop.f32.mrb[0].mxu0
      %v2082 = vpop.f32.mrb[0].mxu0
      %v2083 = vadd.f32 0.0, %v2082
      %v2084 = vpop.f32.mrb[0].mxu0
      %2085 = vmatprep.mubr.bf16.mxu0 0
      %2086 = vmatmul.mubr.bf16.gmra.mrb[0].mxu0 %v1969
      %v2087 = vpop.f32.mrb[0].mxu0
      %v2088 = vadd.f32 0.0, %v2087
      %v2089 = vpop.f32.mrb[0].mxu0
      %v2090 = vpop.f32.mrb[0].mxu0
      %v2091 = vadd.f32 0.0, %v2090
      %v2092 = vpop.f32.mrb[0].mxu0
      %2093 = vmatprep.mubr.bf16.mxu0 0
      %2094 = vmatmul.mubr.bf16.gmra.mrb[0].mxu0 %v1972
      %v2095 = vpop.f32.mrb[0].mxu0
      %v2096 = vadd.f32 0.0, %v2095
      %v2097 = vpop.f32.mrb[0].mxu0
      %v2098 = vpop.f32.mrb[0].mxu0
      %v2099 = vadd.f32 0.0, %v2098
      %v2100 = vpop.f32.mrb[0].mxu0
      %2101 = vmatprep.mubr.bf16.mxu0 0
      %2102 = vmatmul.mubr.bf16.gmra.mrb[0].mxu0 %v1975
      %v2103 = vpop.f32.mrb[0].mxu0
      %v2104 = vadd.f32 0.0, %v2103
      %v2105 = vpop.f32.mrb[0].mxu0
      %v2106 = vpop.f32.mrb[0].mxu0
      %v2107 = vadd.f32 0.0, %v2106
      %v2108 = vpop.f32.mrb[0].mxu0
      %2109 = vmatprep.mubr.bf16.mxu0 0
      %2110 = vmatmul.mubr.bf16.gmra.mrb[0].mxu0 %v1978
      %v2111 = vpop.f32.mrb[0].mxu0
      %v2112 = vadd.f32 0.0, %v2111
      %v2113 = vpop.f32.mrb[0].mxu0
      %v2114 = vpop.f32.mrb[0].mxu0
      %v2115 = vadd.f32 0.0, %v2114
      %v2116 = vpop.f32.mrb[0].mxu0
      %2117 = vmatprep.mubr.bf16.mxu0 0
      %2118 = vmatmul.mubr.bf16.gmra.mrb[0].mxu0 %v1981
      %v2119 = vpop.f32.mrb[0].mxu0
      %v2120 = vadd.f32 0.0, %v2119
      %v2121 = vpop.f32.mrb[0].mxu0
      %v2122 = vpop.f32.mrb[0].mxu0
      %v2123 = vadd.f32 0.0, %v2122
      %v2124 = vpop.f32.mrb[0].mxu0
      %2125 = vmatprep.mubr.bf16.mxu0 0
      %2126 = vmatmul.mubr.bf16.gmra.mrb[0].mxu0 %v1984
      %v2127 = vpop.f32.mrb[0].mxu0
      %v2128 = vadd.f32 0.0, %v2127
      %v2129 = vpop.f32.mrb[0].mxu0
      %v2130 = vpop.f32.mrb[0].mxu0
      %v2131 = vadd.f32 0.0, %v2130
      %v2132 = vpop.f32.mrb[0].mxu0
      %2133 = vmatprep.mubr.bf16.mxu0 0
      %2134 = vmatmul.mubr.bf16.gmra.mrb[0].mxu0 %v1987
      %v2135 = vpop.f32.mrb[0].mxu0
      %v2136 = vadd.f32 0.0, %v2135
      %v2137 = vpop.f32.mrb[0].mxu0
      %v2138 = vpop.f32.mrb[0].mxu0
      %v2139 = vadd.f32 0.0, %v2138
      %v2140 = vpop.f32.mrb[0].mxu0
      %2141 = vmatprep.mubr.bf16.mxu0 0
      %2142 = vmatmul.mubr.bf16.gmra.mrb[0].mxu0 %v1990
      %v2143 = vpop.f32.mrb[0].mxu0
      %v2144 = vadd.f32 0.0, %v2143
      %v2145 = vpop.f32.mrb[0].mxu0
      %v2146 = vpop.f32.mrb[0].mxu0
      %v2147 = vadd.f32 0.0, %v2146
      %v2148 = vpop.f32.mrb[0].mxu0
      %2149 = vmatprep.mubr.bf16.mxu0 0
      %2150 = vmatmul.mubr.bf16.gmra.mrb[0].mxu0 %v1993
      %v2151 = vpop.f32.mrb[0].mxu0
      %v2152 = vadd.f32 0.0, %v2151
      %v2153 = vpop.f32.mrb[0].mxu0
      %v2154 = vpop.f32.mrb[0].mxu0
      %v2155 = vadd.f32 0.0, %v2154
      %v2156 = vpop.f32.mrb[0].mxu0
      %2157 = vmatprep.mubr.bf16.mxu0 0
      %2158 = vmatmul.mubr.bf16.gmra.mrb[0].mxu0 %v1996
      %v2159 = vpop.f32.mrb[0].mxu0
      %v2160 = vadd.f32 0.0, %v2159
      %v2161 = vpop.f32.mrb[0].mxu0
      %v2162 = vpop.f32.mrb[0].mxu0
      %v2163 = vadd.f32 0.0, %v2162
      %v2164 = vpop.f32.mrb[0].mxu0
      %2165 = vmatprep.mubr.bf16.mxu0 0
      %2166 = vmatmul.mubr.bf16.gmra.mrb[0].mxu0 %v1999
      %v2167 = vpop.f32.mrb[0].mxu0
      %v2168 = vadd.f32 0.0, %v2167
      %v2169 = vpop.f32.mrb[0].mxu0
      %v2170 = vpop.f32.mrb[0].mxu0
      %v2171 = vadd.f32 0.0, %v2170
      %v2172 = vpop.f32.mrb[0].mxu0
      %2173 = vmatprep.mubr.bf16.mxu0 0
      %2174 = vmatmul.mubr.bf16.gmra.mrb[0].mxu0 %v2002
      %v2175 = vpop.f32.mrb[0].mxu0
      %v2176 = vadd.f32 0.0, %v2175
      %v2177 = vpop.f32.mrb[0].mxu0
      %v2178 = vpop.f32.mrb[0].mxu0
      %v2179 = vadd.f32 0.0, %v2178
      %v2180 = vpop.f32.mrb[0].mxu0
      %2181 = vmatprep.mubr.bf16.mxu0 0
      %2182 = vmatmul.mubr.bf16.gmra.mrb[0].mxu0 %v2005
      %v2183 = vpop.f32.mrb[0].mxu0
      %v2184 = vadd.f32 0.0, %v2183
      %v2185 = vpop.f32.mrb[0].mxu0
      %v2186 = vpop.f32.mrb[0].mxu0
      %v2187 = vadd.f32 0.0, %v2186
      %v2188 = vpop.f32.mrb[0].mxu0
      %2189 = vmatprep.mubr.bf16.mxu0 0
      %2190 = vmatmul.mubr.bf16.gmra.mrb[0].mxu0 %v2008
      %v2191 = vpop.f32.mrb[0].mxu0
      %v2192 = vadd.f32 0.0, %v2191
      %v2193 = vpop.f32.mrb[0].mxu0
      %v2194 = vpop.f32.mrb[0].mxu0
      %v2195 = vadd.f32 0.0, %v2194
      %v2196 = vpop.f32.mrb[0].mxu0
      %2197 = vmatprep.mubr.bf16.mxu0 0
      %2198 = vmatmul.mubr.bf16.gmra.mrb[0].mxu0 %v2011
      %v2199 = vpop.f32.mrb[0].mxu0
      %v2200 = vadd.f32 0.0, %v2199
      %v2201 = vpop.f32.mrb[0].mxu0
      %v2202 = vpop.f32.mrb[0].mxu0
      %v2203 = vadd.f32 0.0, %v2202
      %v2204 = vpop.f32.mrb[0].mxu0
      %2205 = vmatprep.mubr.bf16.mxu0 0
      %2206 = vmatmul.mubr.bf16.gmra.mrb[0].mxu0 %v2014
      %v2207 = vpop.f32.mrb[0].mxu0
      %v2208 = vadd.f32 0.0, %v2207
      %v2209 = vpop.f32.mrb[0].mxu0
      %v2210 = vpop.f32.mrb[0].mxu0
      %v2211 = vadd.f32 0.0, %v2210
      %v2212 = vpop.f32.mrb[0].mxu0
      %2213 = vmatprep.mubr.bf16.mxu0 0
      %2214 = vmatmul.mubr.bf16.gmra.mrb[0].mxu0 %v2017
      %v2215 = vpop.f32.mrb[0].mxu0
      %v2216 = vadd.f32 0.0, %v2215
      %v2217 = vpop.f32.mrb[0].mxu0
      %v2218 = vpop.f32.mrb[0].mxu0
      %v2219 = vadd.f32 0.0, %v2218
      %v2220 = vpop.f32.mrb[0].mxu0
      %2221 = vmatprep.mubr.bf16.mxu0 0
      %2222 = vmatmul.mubr.bf16.gmra.mrb[0].mxu0 %v2020
      %v2223 = vpop.f32.mrb[0].mxu0
      %v2224 = vadd.f32 0.0, %v2223
      %v2225 = vpop.f32.mrb[0].mxu0
      %v2226 = vpop.f32.mrb[0].mxu0
      %v2227 = vadd.f32 0.0, %v2226
      %v2228 = vpop.f32.mrb[0].mxu0
      %2229 = vmatprep.mubr.bf16.mxu0 0
      %2230 = vmatmul.mubr.bf16.gmra.mrb[0].mxu0 %v2023
      %v2231 = vpop.f32.mrb[0].mxu0
      %v2232 = vadd.f32 0.0, %v2231
      %v2233 = vpop.f32.mrb[0].mxu0
      %v2234 = vpop.f32.mrb[0].mxu0
      %v2235 = vadd.f32 0.0, %v2234
      %v2236 = vpop.f32.mrb[0].mxu0
      %2237 = vmatprep.mubr.bf16.mxu0 0
      %2238 = vmatmul.mubr.bf16.gmra.mrb[0].mxu0 %v2026
      %v2239 = vpop.f32.mrb[0].mxu0
      %v2240 = vadd.f32 0.0, %v2239
      %v2241 = vpop.f32.mrb[0].mxu0
      %v2242 = vpop.f32.mrb[0].mxu0
      %v2243 = vadd.f32 0.0, %v2242
      %v2244 = vpop.f32.mrb[0].mxu0
      %2245 = vmatprep.mubr.bf16.mxu0 0
      %2246 = vmatmul.mubr.bf16.gmra.mrb[0].mxu0 %v2029
      %v2247 = vpop.f32.mrb[0].mxu0
      %v2248 = vadd.f32 0.0, %v2247
      %v2249 = vpop.f32.mrb[0].mxu0
      %v2250 = vpop.f32.mrb[0].mxu0
      %v2251 = vadd.f32 0.0, %v2250
      %v2252 = vpop.f32.mrb[0].mxu0
      %2253 = vmatprep.mubr.bf16.mxu0 0
      %2254 = vmatmul.mubr.bf16.gmra.mrb[0].mxu0 %v2032
      %v2255 = vpop.f32.mrb[0].mxu0
      %v2256 = vpop.f32.mrb[0].mxu0
      %v2257 = vpop.f32.mrb[0].mxu0
      %v2258 = vpop.f32.mrb[0].mxu0
      %2259 = vdwg.mxu0
      %v2260 = vadd.f32 %v1842, %v2072
      %v2261 = vadd.f32 %v1843, %v2075
      %v2262 = vadd.f32 %v1844, %v2080
      %v2263 = vadd.f32 %v1845, %v2083
      %v2264 = vadd.f32 %v1846, %v2088
      %v2265 = vadd.f32 %v1847, %v2091
      %v2266 = vadd.f32 %v1848, %v2096
      %v2267 = vadd.f32 %v1849, %v2099
      %v2268 = vadd.f32 %v1850, %v2104
      %v2269 = vadd.f32 %v1851, %v2107
      %v2270 = vadd.f32 %v1852, %v2112
      %v2271 = vadd.f32 %v1853, %v2115
      %v2272 = vadd.f32 %v1854, %v2120
      %v2273 = vadd.f32 %v1855, %v2123
      %v2274 = vadd.f32 %v1856, %v2128
      %v2275 = vadd.f32 %v1857, %v2131
      %v2276 = vadd.f32 %v1858, %v2136
      %v2277 = vadd.f32 %v1859, %v2139
      %v2278 = vadd.f32 %v1860, %v2144
      %v2279 = vadd.f32 %v1861, %v2147
      %v2280 = vadd.f32 %v1862, %v2152
      %v2281 = vadd.f32 %v1863, %v2155
      %v2282 = vadd.f32 %v1864, %v2160
      %v2283 = vadd.f32 %v1865, %v2163
      %v2284 = vadd.f32 %v1866, %v2168
      %v2285 = vadd.f32 %v1867, %v2171
      %v2286 = vadd.f32 %v1868, %v2176
      %v2287 = vadd.f32 %v1869, %v2179
      %v2288 = vadd.f32 %v1870, %v2184
      %v2289 = vadd.f32 %v1871, %v2187
      %v2290 = vadd.f32 %v1872, %v2192
      %v2291 = vadd.f32 %v1873, %v2195
      %v2292 = vadd.f32 %v1874, %v2200
      %v2293 = vadd.f32 %v1875, %v2203
      %v2294 = vadd.f32 %v1876, %v2208
      %v2295 = vadd.f32 %v1877, %v2211
      %v2296 = vadd.f32 %v1878, %v2216
      %v2297 = vadd.f32 %v1879, %v2219
      %v2298 = vadd.f32 %v1880, %v2224
      %v2299 = vadd.f32 %v1881, %v2227
      %v2300 = vadd.f32 %v1882, %v2232
      %v2301 = vadd.f32 %v1883, %v2235
      %v2302 = vadd.f32 %v1884, %v2240
      %v2303 = vadd.f32 %v1885, %v2243
      %v2304 = vadd.f32 %v1886, %v2248
      %v2305 = vadd.f32 %v1887, %v2251
      %v2306 = vld [vmem:[%s300 + $0x16] sm:$0xff]
      %v2307 = vld [vmem:[%s300 + $0x1e] sm:$0xff]
      %v2308 = vld [vmem:[%s300 + $0x26] sm:$0xff]
      %v2309 = vld [vmem:[%s300 + $0x2e] sm:$0xff]
      %v2310 = vld [vmem:[%s300 + $0x36] sm:$0xff]
      %v2311 = vld [vmem:[%s300 + $0x3e] sm:$0xff]
      %v2312 = vld [vmem:[%s300 + $0x46] sm:$0xff]
      %v2313 = vld [vmem:[%s300 + $0x4e] sm:$0xff]
      %v2314 = vld [vmem:[%s300 + $0x56] sm:$0xff]
      %v2315 = vld [vmem:[%s300 + $0x5e] sm:$0xff]
      %v2316 = vld [vmem:[%s300 + $0x66] sm:$0xff]
      %v2317 = vld [vmem:[%s300 + $0x6e] sm:$0xff]
      %v2318 = vld [vmem:[%s300 + $0x76] sm:$0xff]
      %v2319 = vld [vmem:[%s300 + $0x7e] sm:$0xff]
      %v2320 = vld [vmem:[%s300 + $0x86] sm:$0xff]
      %v2321 = vld [vmem:[%s300 + $0x8e] sm:$0xff]
      %v2322 = vld [vmem:[%s300 + $0x96] sm:$0xff]
      %v2323 = vld [vmem:[%s300 + $0x9e] sm:$0xff]
      %v2324 = vld [vmem:[%s300 + $0xa6] sm:$0xff]
      %v2325 = vld [vmem:[%s300 + $0xae] sm:$0xff]
      %v2326 = vld [vmem:[%s300 + $0xb6] sm:$0xff]
      %v2327 = vld [vmem:[%s300 + $0xbe] sm:$0xff]
      %v2328 = vld [vmem:[%s300 + $0xc6] sm:$0xff]
      %v2329 = vld [vmem:[%s300 + $0xce] sm:$0xff]
      %v2330 = vld [vmem:[%s300 + $0xd6] sm:$0xff]
      %v2331 = vld [vmem:[%s300 + $0xde] sm:$0xff]
      %v2332 = vld [vmem:[%s300 + $0xe6] sm:$0xff]
      %v2333 = vld [vmem:[%s300 + $0xee] sm:$0xff]
      %v2334 = vld [vmem:[%s300 + $0xf6] sm:$0xff]
      %v2335 = vld [vmem:[%s300 + $0xfe] sm:$0xff]
      %v2336 = vld [vmem:[%s300 + $0x106] sm:$0xff]
      %v2337 = vld [vmem:[%s300 + $0x10e] sm:$0xff]
      %v2338 = vld [vmem:[%s300 + $0x116] sm:$0xff]
      %v2339 = vld [vmem:[%s300 + $0x11e] sm:$0xff]
      %v2340 = vld [vmem:[%s300 + $0x126] sm:$0xff]
      %v2341 = vld [vmem:[%s300 + $0x12e] sm:$0xff]
      %v2342 = vld [vmem:[%s300 + $0x136] sm:$0xff]
      %v2343 = vld [vmem:[%s300 + $0x13e] sm:$0xff]
      %v2344 = vld [vmem:[%s300 + $0x146] sm:$0xff]
      %v2345 = vld [vmem:[%s300 + $0x14e] sm:$0xff]
      %v2346 = vld [vmem:[%s300 + $0x156] sm:$0xff]
      %v2347 = vld [vmem:[%s300 + $0x15e] sm:$0xff]
      %v2348 = vld [vmem:[%s300 + $0x166] sm:$0xff]
      %v2349 = vld [vmem:[%s300 + $0x16e] sm:$0xff]
      %v2350 = vld [vmem:[%s300 + $0x176] sm:$0xff]
      %v2351 = vld [vmem:[%s300 + $0x17e] sm:$0xff]
      %v2352 = vld [vmem:[%s300 + $0x186] sm:$0xff]
      %v2353 = vld [vmem:[%s300 + $0x18e] sm:$0xf]
      %v2354 = vpack.c.bf16 %v2307, %v2306
      %v2355 = vpack.c.bf16 %v2309, %v2308
      %v2356 = vpack.c.bf16 %v2311, %v2310
      %v2357 = vpack.c.bf16 %v2313, %v2312
      %v2358 = vpack.c.bf16 %v2315, %v2314
      %v2359 = vpack.c.bf16 %v2317, %v2316
      %v2360 = vpack.c.bf16 %v2319, %v2318
      %v2361 = vpack.c.bf16 %v2321, %v2320
      %v2362 = vpack.c.bf16 %v2323, %v2322
      %v2363 = vpack.c.bf16 %v2325, %v2324
      %v2364 = vpack.c.bf16 %v2327, %v2326
      %v2365 = vpack.c.bf16 %v2329, %v2328
      %v2366 = vpack.c.bf16 %v2331, %v2330
      %v2367 = vpack.c.bf16 %v2333, %v2332
      %v2368 = vpack.c.bf16 %v2335, %v2334
      %v2369 = vpack.c.bf16 %v2337, %v2336
      %v2370 = vpack.c.bf16 %v2339, %v2338
      %v2371 = vpack.c.bf16 %v2341, %v2340
      %v2372 = vpack.c.bf16 %v2343, %v2342
      %v2373 = vpack.c.bf16 %v2345, %v2344
      %v2374 = vpack.c.bf16 %v2347, %v2346
      %v2375 = vpack.c.bf16 %v2349, %v2348
      %v2376 = vpack.c.bf16 %v2351, %v2350
      %v2377 = vpack.c.bf16 %v2353, %v2352
      %s2378 = scalar_lea.vmem %s1, 10
      %v2379 = vld [vmem:[%s2378] sm:$0x3]
      %v2381 = vsel %vm454, %v2354, 0
      %v2384 = vsel %vm454, %v2355, 0
      %v2387 = vsel %vm454, %v2356, 0
      %v2390 = vsel %vm454, %v2357, 0
      %v2393 = vsel %vm454, %v2358, 0
      %v2396 = vsel %vm454, %v2359, 0
      %v2399 = vsel %vm454, %v2360, 0
      %v2402 = vsel %vm454, %v2361, 0
      %v2405 = vsel %vm454, %v2362, 0
      %v2408 = vsel %vm454, %v2363, 0
      %v2411 = vsel %vm454, %v2364, 0
      %v2414 = vsel %vm454, %v2365, 0
      %v2417 = vsel %vm454, %v2366, 0
      %v2420 = vsel %vm454, %v2367, 0
      %v2423 = vsel %vm454, %v2368, 0
      %v2426 = vsel %vm454, %v2369, 0
      %v2429 = vsel %vm454, %v2370, 0
      %v2432 = vsel %vm454, %v2371, 0
      %v2435 = vsel %vm454, %v2372, 0
      %v2438 = vsel %vm454, %v2373, 0
      %v2441 = vsel %vm454, %v2374, 0
      %v2444 = vsel %vm454, %v2375, 0
      %v2447 = vsel %vm454, %v2376, 0
      %v2450 = vsel %vm454, %v2377, 0
      %v2453 = vsel %vm527, %v2379, 0
      %2455 = vmatprep.subr.bf16.mxu0 0
      %2456 = vmatpush1.bf16.msra.mxu0 %v2453
      %2457 = vmatprep.subr.bf16.mxu0 0
      %2458 = vmatpush1.bf16.msra.mxu0 0
      %2459 = vmatprep.subr.bf16.mxu0 0
      %2460 = vmatpush1.bf16.msra.mxu0 0
      %2461 = vmatprep.subr.bf16.mxu0 0
      %2462 = vmatpush1.bf16.msra.mxu0 0
      %2463 = vmatprep.subr.bf16.mxu0 0
      %2464 = vmatpush1.bf16.msra.mxu0 0
      %2465 = vmatprep.subr.bf16.mxu0 0
      %2466 = vmatpush1.bf16.msra.mxu0 0
      %2467 = vmatprep.subr.bf16.mxu0 0
      %2468 = vmatpush1.bf16.msra.mxu0 0
      %2469 = vmatprep.subr.bf16.mxu0 0
      %2470 = vmatpush1.bf16.msra.mxu0 0
      %2471 = vmatprep.subr.bf16.mxu0 0
      %2472 = vmatpush1.bf16.msra.mxu0 0
      %2473 = vmatprep.subr.bf16.mxu0 0
      %2474 = vmatpush1.bf16.msra.mxu0 0
      %2475 = vmatprep.subr.bf16.mxu0 0
      %2476 = vmatpush1.bf16.msra.mxu0 0
      %2477 = vmatprep.subr.bf16.mxu0 0
      %2478 = vmatpush1.bf16.msra.mxu0 0
      %2479 = vmatprep.subr.bf16.mxu0 0
      %2480 = vmatpush1.bf16.msra.mxu0 0
      %2481 = vmatprep.subr.bf16.mxu0 0
      %2482 = vmatpush1.bf16.msra.mxu0 0
      %2483 = vmatprep.subr.bf16.mxu0 0
      %2484 = vmatpush1.bf16.msra.mxu0 0
      %2485 = vmatprep.subr.bf16.mxu0 0
      %2486 = vmatpush1.bf16.msra.mxu0 0
      %2487 = vmatprep.mubr.bf16.mxu0 0
      %2488 = vmatmul.mubr.bf16.gmra.mrb[0].mxu0 %v2381
      %v2489 = vpop.f32.mrb[0].mxu0
      %v2490 = vadd.f32 0.0, %v2489
      %v2491 = vpop.f32.mrb[0].mxu0
      %v2492 = vpop.f32.mrb[0].mxu0
      %v2493 = vadd.f32 0.0, %v2492
      %v2494 = vpop.f32.mrb[0].mxu0
      %2495 = vmatprep.mubr.bf16.mxu0 0
      %2496 = vmatmul.mubr.bf16.gmra.mrb[0].mxu0 %v2384
      %v2497 = vpop.f32.mrb[0].mxu0
      %v2498 = vadd.f32 0.0, %v2497
      %v2499 = vpop.f32.mrb[0].mxu0
      %v2500 = vpop.f32.mrb[0].mxu0
      %v2501 = vadd.f32 0.0, %v2500
      %v2502 = vpop.f32.mrb[0].mxu0
      %2503 = vmatprep.mubr.bf16.mxu0 0
      %2504 = vmatmul.mubr.bf16.gmra.mrb[0].mxu0 %v2387
      %v2505 = vpop.f32.mrb[0].mxu0
      %v2506 = vadd.f32 0.0, %v2505
      %v2507 = vpop.f32.mrb[0].mxu0
      %v2508 = vpop.f32.mrb[0].mxu0
      %v2509 = vadd.f32 0.0, %v2508
      %v2510 = vpop.f32.mrb[0].mxu0
      %2511 = vmatprep.mubr.bf16.mxu0 0
      %2512 = vmatmul.mubr.bf16.gmra.mrb[0].mxu0 %v2390
      %v2513 = vpop.f32.mrb[0].mxu0
      %v2514 = vadd.f32 0.0, %v2513
      %v2515 = vpop.f32.mrb[0].mxu0
      %v2516 = vpop.f32.mrb[0].mxu0
      %v2517 = vadd.f32 0.0, %v2516
      %v2518 = vpop.f32.mrb[0].mxu0
      %2519 = vmatprep.mubr.bf16.mxu0 0
      %2520 = vmatmul.mubr.bf16.gmra.mrb[0].mxu0 %v2393
      %v2521 = vpop.f32.mrb[0].mxu0
      %v2522 = vadd.f32 0.0, %v2521
      %v2523 = vpop.f32.mrb[0].mxu0
      %v2524 = vpop.f32.mrb[0].mxu0
      %v2525 = vadd.f32 0.0, %v2524
      %v2526 = vpop.f32.mrb[0].mxu0
      %2527 = vmatprep.mubr.bf16.mxu0 0
      %2528 = vmatmul.mubr.bf16.gmra.mrb[0].mxu0 %v2396
      %v2529 = vpop.f32.mrb[0].mxu0
      %v2530 = vadd.f32 0.0, %v2529
      %v2531 = vpop.f32.mrb[0].mxu0
      %v2532 = vpop.f32.mrb[0].mxu0
      %v2533 = vadd.f32 0.0, %v2532
      %v2534 = vpop.f32.mrb[0].mxu0
      %2535 = vmatprep.mubr.bf16.mxu0 0
      %2536 = vmatmul.mubr.bf16.gmra.mrb[0].mxu0 %v2399
      %v2537 = vpop.f32.mrb[0].mxu0
      %v2538 = vadd.f32 0.0, %v2537
      %v2539 = vpop.f32.mrb[0].mxu0
      %v2540 = vpop.f32.mrb[0].mxu0
      %v2541 = vadd.f32 0.0, %v2540
      %v2542 = vpop.f32.mrb[0].mxu0
      %2543 = vmatprep.mubr.bf16.mxu0 0
      %2544 = vmatmul.mubr.bf16.gmra.mrb[0].mxu0 %v2402
      %v2545 = vpop.f32.mrb[0].mxu0
      %v2546 = vadd.f32 0.0, %v2545
      %v2547 = vpop.f32.mrb[0].mxu0
      %v2548 = vpop.f32.mrb[0].mxu0
      %v2549 = vadd.f32 0.0, %v2548
      %v2550 = vpop.f32.mrb[0].mxu0
      %2551 = vmatprep.mubr.bf16.mxu0 0
      %2552 = vmatmul.mubr.bf16.gmra.mrb[0].mxu0 %v2405
      %v2553 = vpop.f32.mrb[0].mxu0
      %v2554 = vadd.f32 0.0, %v2553
      %v2555 = vpop.f32.mrb[0].mxu0
      %v2556 = vpop.f32.mrb[0].mxu0
      %v2557 = vadd.f32 0.0, %v2556
      %v2558 = vpop.f32.mrb[0].mxu0
      %2559 = vmatprep.mubr.bf16.mxu0 0
      %2560 = vmatmul.mubr.bf16.gmra.mrb[0].mxu0 %v2408
      %v2561 = vpop.f32.mrb[0].mxu0
      %v2562 = vadd.f32 0.0, %v2561
      %v2563 = vpop.f32.mrb[0].mxu0
      %v2564 = vpop.f32.mrb[0].mxu0
      %v2565 = vadd.f32 0.0, %v2564
      %v2566 = vpop.f32.mrb[0].mxu0
      %2567 = vmatprep.mubr.bf16.mxu0 0
      %2568 = vmatmul.mubr.bf16.gmra.mrb[0].mxu0 %v2411
      %v2569 = vpop.f32.mrb[0].mxu0
      %v2570 = vadd.f32 0.0, %v2569
      %v2571 = vpop.f32.mrb[0].mxu0
      %v2572 = vpop.f32.mrb[0].mxu0
      %v2573 = vadd.f32 0.0, %v2572
      %v2574 = vpop.f32.mrb[0].mxu0
      %2575 = vmatprep.mubr.bf16.mxu0 0
      %2576 = vmatmul.mubr.bf16.gmra.mrb[0].mxu0 %v2414
      %v2577 = vpop.f32.mrb[0].mxu0
      %v2578 = vadd.f32 0.0, %v2577
      %v2579 = vpop.f32.mrb[0].mxu0
      %v2580 = vpop.f32.mrb[0].mxu0
      %v2581 = vadd.f32 0.0, %v2580
      %v2582 = vpop.f32.mrb[0].mxu0
      %2583 = vmatprep.mubr.bf16.mxu0 0
      %2584 = vmatmul.mubr.bf16.gmra.mrb[0].mxu0 %v2417
      %v2585 = vpop.f32.mrb[0].mxu0
      %v2586 = vadd.f32 0.0, %v2585
      %v2587 = vpop.f32.mrb[0].mxu0
      %v2588 = vpop.f32.mrb[0].mxu0
      %v2589 = vadd.f32 0.0, %v2588
      %v2590 = vpop.f32.mrb[0].mxu0
      %2591 = vmatprep.mubr.bf16.mxu0 0
      %2592 = vmatmul.mubr.bf16.gmra.mrb[0].mxu0 %v2420
      %v2593 = vpop.f32.mrb[0].mxu0
      %v2594 = vadd.f32 0.0, %v2593
      %v2595 = vpop.f32.mrb[0].mxu0
      %v2596 = vpop.f32.mrb[0].mxu0
      %v2597 = vadd.f32 0.0, %v2596
      %v2598 = vpop.f32.mrb[0].mxu0
      %2599 = vmatprep.mubr.bf16.mxu0 0
      %2600 = vmatmul.mubr.bf16.gmra.mrb[0].mxu0 %v2423
      %v2601 = vpop.f32.mrb[0].mxu0
      %v2602 = vadd.f32 0.0, %v2601
      %v2603 = vpop.f32.mrb[0].mxu0
      %v2604 = vpop.f32.mrb[0].mxu0
      %v2605 = vadd.f32 0.0, %v2604
      %v2606 = vpop.f32.mrb[0].mxu0
      %2607 = vmatprep.mubr.bf16.mxu0 0
      %2608 = vmatmul.mubr.bf16.gmra.mrb[0].mxu0 %v2426
      %v2609 = vpop.f32.mrb[0].mxu0
      %v2610 = vadd.f32 0.0, %v2609
      %v2611 = vpop.f32.mrb[0].mxu0
      %v2612 = vpop.f32.mrb[0].mxu0
      %v2613 = vadd.f32 0.0, %v2612
      %v2614 = vpop.f32.mrb[0].mxu0
      %2615 = vmatprep.mubr.bf16.mxu0 0
      %2616 = vmatmul.mubr.bf16.gmra.mrb[0].mxu0 %v2429
      %v2617 = vpop.f32.mrb[0].mxu0
      %v2618 = vadd.f32 0.0, %v2617
      %v2619 = vpop.f32.mrb[0].mxu0
      %v2620 = vpop.f32.mrb[0].mxu0
      %v2621 = vadd.f32 0.0, %v2620
      %v2622 = vpop.f32.mrb[0].mxu0
      %2623 = vmatprep.mubr.bf16.mxu0 0
      %2624 = vmatmul.mubr.bf16.gmra.mrb[0].mxu0 %v2432
      %v2625 = vpop.f32.mrb[0].mxu0
      %v2626 = vadd.f32 0.0, %v2625
      %v2627 = vpop.f32.mrb[0].mxu0
      %v2628 = vpop.f32.mrb[0].mxu0
      %v2629 = vadd.f32 0.0, %v2628
      %v2630 = vpop.f32.mrb[0].mxu0
      %2631 = vmatprep.mubr.bf16.mxu0 0
      %2632 = vmatmul.mubr.bf16.gmra.mrb[0].mxu0 %v2435
      %v2633 = vpop.f32.mrb[0].mxu0
      %v2634 = vadd.f32 0.0, %v2633
      %v2635 = vpop.f32.mrb[0].mxu0
      %v2636 = vpop.f32.mrb[0].mxu0
      %v2637 = vadd.f32 0.0, %v2636
      %v2638 = vpop.f32.mrb[0].mxu0
      %2639 = vmatprep.mubr.bf16.mxu0 0
      %2640 = vmatmul.mubr.bf16.gmra.mrb[0].mxu0 %v2438
      %v2641 = vpop.f32.mrb[0].mxu0
      %v2642 = vadd.f32 0.0, %v2641
      %v2643 = vpop.f32.mrb[0].mxu0
      %v2644 = vpop.f32.mrb[0].mxu0
      %v2645 = vadd.f32 0.0, %v2644
      %v2646 = vpop.f32.mrb[0].mxu0
      %2647 = vmatprep.mubr.bf16.mxu0 0
      %2648 = vmatmul.mubr.bf16.gmra.mrb[0].mxu0 %v2441
      %v2649 = vpop.f32.mrb[0].mxu0
      %v2650 = vadd.f32 0.0, %v2649
      %v2651 = vpop.f32.mrb[0].mxu0
      %v2652 = vpop.f32.mrb[0].mxu0
      %v2653 = vadd.f32 0.0, %v2652
      %v2654 = vpop.f32.mrb[0].mxu0
      %2655 = vmatprep.mubr.bf16.mxu0 0
      %2656 = vmatmul.mubr.bf16.gmra.mrb[0].mxu0 %v2444
      %v2657 = vpop.f32.mrb[0].mxu0
      %v2658 = vadd.f32 0.0, %v2657
      %v2659 = vpop.f32.mrb[0].mxu0
      %v2660 = vpop.f32.mrb[0].mxu0
      %v2661 = vadd.f32 0.0, %v2660
      %v2662 = vpop.f32.mrb[0].mxu0
      %2663 = vmatprep.mubr.bf16.mxu0 0
      %2664 = vmatmul.mubr.bf16.gmra.mrb[0].mxu0 %v2447
      %v2665 = vpop.f32.mrb[0].mxu0
      %v2666 = vadd.f32 0.0, %v2665
      %v2667 = vpop.f32.mrb[0].mxu0
      %v2668 = vpop.f32.mrb[0].mxu0
      %v2669 = vadd.f32 0.0, %v2668
      %v2670 = vpop.f32.mrb[0].mxu0
      %2671 = vmatprep.mubr.bf16.mxu0 0
      %2672 = vmatmul.mubr.bf16.gmra.mrb[0].mxu0 %v2450
      %v2673 = vpop.f32.mrb[0].mxu0
      %v2674 = vpop.f32.mrb[0].mxu0
      %v2675 = vpop.f32.mrb[0].mxu0
      %v2676 = vpop.f32.mrb[0].mxu0
      %2677 = vdwg.mxu0
      %v2678 = vadd.f32 %v2260, %v2490
      %v2679 = vadd.f32 %v2261, %v2493
      %v2680 = vadd.f32 %v2262, %v2498
      %v2681 = vadd.f32 %v2263, %v2501
      %v2682 = vadd.f32 %v2264, %v2506
      %v2683 = vadd.f32 %v2265, %v2509
      %v2684 = vadd.f32 %v2266, %v2514
      %v2685 = vadd.f32 %v2267, %v2517
      %v2686 = vadd.f32 %v2268, %v2522
      %v2687 = vadd.f32 %v2269, %v2525
      %v2688 = vadd.f32 %v2270, %v2530
      %v2689 = vadd.f32 %v2271, %v2533
      %v2690 = vadd.f32 %v2272, %v2538
      %v2691 = vadd.f32 %v2273, %v2541
      %v2692 = vadd.f32 %v2274, %v2546
      %v2693 = vadd.f32 %v2275, %v2549
      %v2694 = vadd.f32 %v2276, %v2554
      %v2695 = vadd.f32 %v2277, %v2557
      %v2696 = vadd.f32 %v2278, %v2562
      %v2697 = vadd.f32 %v2279, %v2565
      %v2698 = vadd.f32 %v2280, %v2570
      %v2699 = vadd.f32 %v2281, %v2573
      %v2700 = vadd.f32 %v2282, %v2578
      %v2701 = vadd.f32 %v2283, %v2581
      %v2702 = vadd.f32 %v2284, %v2586
      %v2703 = vadd.f32 %v2285, %v2589
      %v2704 = vadd.f32 %v2286, %v2594
      %v2705 = vadd.f32 %v2287, %v2597
      %v2706 = vadd.f32 %v2288, %v2602
      %v2707 = vadd.f32 %v2289, %v2605
      %v2708 = vadd.f32 %v2290, %v2610
      %v2709 = vadd.f32 %v2291, %v2613
      %v2710 = vadd.f32 %v2292, %v2618
      %v2711 = vadd.f32 %v2293, %v2621
      %v2712 = vadd.f32 %v2294, %v2626
      %v2713 = vadd.f32 %v2295, %v2629
      %v2714 = vadd.f32 %v2296, %v2634
      %v2715 = vadd.f32 %v2297, %v2637
      %v2716 = vadd.f32 %v2298, %v2642
      %v2717 = vadd.f32 %v2299, %v2645
      %v2718 = vadd.f32 %v2300, %v2650
      %v2719 = vadd.f32 %v2301, %v2653
      %v2720 = vadd.f32 %v2302, %v2658
      %v2721 = vadd.f32 %v2303, %v2661
      %v2722 = vadd.f32 %v2304, %v2666
      %v2723 = vadd.f32 %v2305, %v2669
      %v2724 = vld [vmem:[%s300 + $0x28] sm:$0xff]
      %v2725 = vld [vmem:[%s300 + $0x30] sm:$0xff]
      %v2726 = vld [vmem:[%s300 + $0x38] sm:$0xff]
      %v2727 = vld [vmem:[%s300 + $0x40] sm:$0xff]
      %v2728 = vld [vmem:[%s300 + $0x48] sm:$0xff]
      %v2729 = vld [vmem:[%s300 + $0x50] sm:$0xff]
      %v2730 = vld [vmem:[%s300 + $0x58] sm:$0xff]
      %v2731 = vld [vmem:[%s300 + $0x60] sm:$0xff]
      %v2732 = vld [vmem:[%s300 + $0x68] sm:$0xff]
      %v2733 = vld [vmem:[%s300 + $0x70] sm:$0xff]
      %v2734 = vld [vmem:[%s300 + $0x78] sm:$0xff]
      %v2735 = vld [vmem:[%s300 + $0x80] sm:$0xff]
      %v2736 = vld [vmem:[%s300 + $0x88] sm:$0xff]
      %v2737 = vld [vmem:[%s300 + $0x90] sm:$0xff]
      %v2738 = vld [vmem:[%s300 + $0x98] sm:$0xff]
      %v2739 = vld [vmem:[%s300 + $0xa0] sm:$0xff]
      %v2740 = vld [vmem:[%s300 + $0xa8] sm:$0xff]
      %v2741 = vld [vmem:[%s300 + $0xb0] sm:$0xff]
      %v2742 = vld [vmem:[%s300 + $0xb8] sm:$0xff]
      %v2743 = vld [vmem:[%s300 + $0xc0] sm:$0xff]
      %v2744 = vld [vmem:[%s300 + $0xc8] sm:$0xff]
      %v2745 = vld [vmem:[%s300 + $0xd0] sm:$0xff]
      %v2746 = vld [vmem:[%s300 + $0xd8] sm:$0xff]
      %v2747 = vld [vmem:[%s300 + $0xe0] sm:$0xff]
      %v2748 = vld [vmem:[%s300 + $0xe8] sm:$0xff]
      %v2749 = vld [vmem:[%s300 + $0xf0] sm:$0xff]
      %v2750 = vld [vmem:[%s300 + $0xf8] sm:$0xff]
      %v2751 = vld [vmem:[%s300 + $0x100] sm:$0xff]
      %v2752 = vld [vmem:[%s300 + $0x108] sm:$0xff]
      %v2753 = vld [vmem:[%s300 + $0x110] sm:$0xff]
      %v2754 = vld [vmem:[%s300 + $0x118] sm:$0xff]
      %v2755 = vld [vmem:[%s300 + $0x120] sm:$0xff]
      %v2756 = vld [vmem:[%s300 + $0x128] sm:$0xff]
      %v2757 = vld [vmem:[%s300 + $0x130] sm:$0xff]
      %v2758 = vld [vmem:[%s300 + $0x138] sm:$0xff]
      %v2759 = vld [vmem:[%s300 + $0x140] sm:$0xff]
      %v2760 = vld [vmem:[%s300 + $0x148] sm:$0xff]
      %v2761 = vld [vmem:[%s300 + $0x150] sm:$0xff]
      %v2762 = vld [vmem:[%s300 + $0x158] sm:$0xff]
      %v2763 = vld [vmem:[%s300 + $0x160] sm:$0xff]
      %v2764 = vld [vmem:[%s300 + $0x168] sm:$0xff]
      %v2765 = vld [vmem:[%s300 + $0x170] sm:$0xff]
      %v2766 = vld [vmem:[%s300 + $0x178] sm:$0xff]
      %v2767 = vld [vmem:[%s300 + $0x180] sm:$0xff]
      %v2768 = vld [vmem:[%s300 + $0x188] sm:$0xff]
      %v2769 = vld [vmem:[%s300 + $0x190] sm:$0xff]
      %v2770 = vld [vmem:[%s300 + $0x198] sm:$0xff]
      %v2771 = vld [vmem:[%s300 + $0x1a0] sm:$0xf]
      %v2772 = vpack.c.bf16 %v2725, %v2724
      %v2773 = vpack.c.bf16 %v2727, %v2726
      %v2774 = vpack.c.bf16 %v2729, %v2728
      %v2775 = vpack.c.bf16 %v2731, %v2730
      %v2776 = vpack.c.bf16 %v2733, %v2732
      %v2777 = vpack.c.bf16 %v2735, %v2734
      %v2778 = vpack.c.bf16 %v2737, %v2736
      %v2779 = vpack.c.bf16 %v2739, %v2738
      %v2780 = vpack.c.bf16 %v2741, %v2740
      %v2781 = vpack.c.bf16 %v2743, %v2742
      %v2782 = vpack.c.bf16 %v2745, %v2744
      %v2783 = vpack.c.bf16 %v2747, %v2746
      %v2784 = vpack.c.bf16 %v2749, %v2748
      %v2785 = vpack.c.bf16 %v2751, %v2750
      %v2786 = vpack.c.bf16 %v2753, %v2752
      %v2787 = vpack.c.bf16 %v2755, %v2754
      %v2788 = vpack.c.bf16 %v2757, %v2756
      %v2789 = vpack.c.bf16 %v2759, %v2758
      %v2790 = vpack.c.bf16 %v2761, %v2760
      %v2791 = vpack.c.bf16 %v2763, %v2762
      %v2792 = vpack.c.bf16 %v2765, %v2764
      %v2793 = vpack.c.bf16 %v2767, %v2766
      %v2794 = vpack.c.bf16 %v2769, %v2768
      %v2795 = vpack.c.bf16 %v2771, %v2770
      %s2796 = scalar_lea.vmem %s1, 12
      %v2797 = vld [vmem:[%s2796] sm:$0x3]
      %v2799 = vsel %vm454, %v2772, 0
      %v2802 = vsel %vm454, %v2773, 0
      %v2805 = vsel %vm454, %v2774, 0
      %v2808 = vsel %vm454, %v2775, 0
      %v2811 = vsel %vm454, %v2776, 0
      %v2814 = vsel %vm454, %v2777, 0
      %v2817 = vsel %vm454, %v2778, 0
      %v2820 = vsel %vm454, %v2779, 0
      %v2823 = vsel %vm454, %v2780, 0
      %v2826 = vsel %vm454, %v2781, 0
      %v2829 = vsel %vm454, %v2782, 0
      %v2832 = vsel %vm454, %v2783, 0
      %v2835 = vsel %vm454, %v2784, 0
      %v2838 = vsel %vm454, %v2785, 0
      %v2841 = vsel %vm454, %v2786, 0
      %v2844 = vsel %vm454, %v2787, 0
      %v2847 = vsel %vm454, %v2788, 0
      %v2850 = vsel %vm454, %v2789, 0
      %v2853 = vsel %vm454, %v2790, 0
      %v2856 = vsel %vm454, %v2791, 0
      %v2859 = vsel %vm454, %v2792, 0
      %v2862 = vsel %vm454, %v2793, 0
      %v2865 = vsel %vm454, %v2794, 0
      %v2868 = vsel %vm454, %v2795, 0
      %v2871 = vsel %vm527, %v2797, 0
      %2873 = vmatprep.subr.bf16.mxu0 0
      %2874 = vmatpush1.bf16.msra.mxu0 %v2871
      %2875 = vmatprep.subr.bf16.mxu0 0
      %2876 = vmatpush1.bf16.msra.mxu0 0
      %2877 = vmatprep.subr.bf16.mxu0 0
      %2878 = vmatpush1.bf16.msra.mxu0 0
      %2879 = vmatprep.subr.bf16.mxu0 0
      %2880 = vmatpush1.bf16.msra.mxu0 0
      %2881 = vmatprep.subr.bf16.mxu0 0
      %2882 = vmatpush1.bf16.msra.mxu0 0
      %2883 = vmatprep.subr.bf16.mxu0 0
      %2884 = vmatpush1.bf16.msra.mxu0 0
      %2885 = vmatprep.subr.bf16.mxu0 0
      %2886 = vmatpush1.bf16.msra.mxu0 0
      %2887 = vmatprep.subr.bf16.mxu0 0
      %2888 = vmatpush1.bf16.msra.mxu0 0
      %2889 = vmatprep.subr.bf16.mxu0 0
      %2890 = vmatpush1.bf16.msra.mxu0 0
      %2891 = vmatprep.subr.bf16.mxu0 0
      %2892 = vmatpush1.bf16.msra.mxu0 0
      %2893 = vmatprep.subr.bf16.mxu0 0
      %2894 = vmatpush1.bf16.msra.mxu0 0
      %2895 = vmatprep.subr.bf16.mxu0 0
      %2896 = vmatpush1.bf16.msra.mxu0 0
      %2897 = vmatprep.subr.bf16.mxu0 0
      %2898 = vmatpush1.bf16.msra.mxu0 0
      %2899 = vmatprep.subr.bf16.mxu0 0
      %2900 = vmatpush1.bf16.msra.mxu0 0
      %2901 = vmatprep.subr.bf16.mxu0 0
      %2902 = vmatpush1.bf16.msra.mxu0 0
      %2903 = vmatprep.subr.bf16.mxu0 0
      %2904 = vmatpush1.bf16.msra.mxu0 0
      %2905 = vmatprep.mubr.bf16.mxu0 0
      %2906 = vmatmul.mubr.bf16.gmra.mrb[0].mxu0 %v2799
      %v2907 = vpop.f32.mrb[0].mxu0
      %v2908 = vadd.f32 0.0, %v2907
      %v2909 = vpop.f32.mrb[0].mxu0
      %v2910 = vpop.f32.mrb[0].mxu0
      %v2911 = vadd.f32 0.0, %v2910
      %v2912 = vpop.f32.mrb[0].mxu0
      %2913 = vmatprep.mubr.bf16.mxu0 0
      %2914 = vmatmul.mubr.bf16.gmra.mrb[0].mxu0 %v2802
      %v2915 = vpop.f32.mrb[0].mxu0
      %v2916 = vadd.f32 0.0, %v2915
      %v2917 = vpop.f32.mrb[0].mxu0
      %v2918 = vpop.f32.mrb[0].mxu0
      %v2919 = vadd.f32 0.0, %v2918
      %v2920 = vpop.f32.mrb[0].mxu0
      %2921 = vmatprep.mubr.bf16.mxu0 0
      %2922 = vmatmul.mubr.bf16.gmra.mrb[0].mxu0 %v2805
      %v2923 = vpop.f32.mrb[0].mxu0
      %v2924 = vadd.f32 0.0, %v2923
      %v2925 = vpop.f32.mrb[0].mxu0
      %v2926 = vpop.f32.mrb[0].mxu0
      %v2927 = vadd.f32 0.0, %v2926
      %v2928 = vpop.f32.mrb[0].mxu0
      %2929 = vmatprep.mubr.bf16.mxu0 0
      %2930 = vmatmul.mubr.bf16.gmra.mrb[0].mxu0 %v2808
      %v2931 = vpop.f32.mrb[0].mxu0
      %v2932 = vadd.f32 0.0, %v2931
      %v2933 = vpop.f32.mrb[0].mxu0
      %v2934 = vpop.f32.mrb[0].mxu0
      %v2935 = vadd.f32 0.0, %v2934
      %v2936 = vpop.f32.mrb[0].mxu0
      %2937 = vmatprep.mubr.bf16.mxu0 0
      %2938 = vmatmul.mubr.bf16.gmra.mrb[0].mxu0 %v2811
      %v2939 = vpop.f32.mrb[0].mxu0
      %v2940 = vadd.f32 0.0, %v2939
      %v2941 = vpop.f32.mrb[0].mxu0
      %v2942 = vpop.f32.mrb[0].mxu0
      %v2943 = vadd.f32 0.0, %v2942
      %v2944 = vpop.f32.mrb[0].mxu0
      %2945 = vmatprep.mubr.bf16.mxu0 0
      %2946 = vmatmul.mubr.bf16.gmra.mrb[0].mxu0 %v2814
      %v2947 = vpop.f32.mrb[0].mxu0
      %v2948 = vadd.f32 0.0, %v2947
      %v2949 = vpop.f32.mrb[0].mxu0
      %v2950 = vpop.f32.mrb[0].mxu0
      %v2951 = vadd.f32 0.0, %v2950
      %v2952 = vpop.f32.mrb[0].mxu0
      %2953 = vmatprep.mubr.bf16.mxu0 0
      %2954 = vmatmul.mubr.bf16.gmra.mrb[0].mxu0 %v2817
      %v2955 = vpop.f32.mrb[0].mxu0
      %v2956 = vadd.f32 0.0, %v2955
      %v2957 = vpop.f32.mrb[0].mxu0
      %v2958 = vpop.f32.mrb[0].mxu0
      %v2959 = vadd.f32 0.0, %v2958
      %v2960 = vpop.f32.mrb[0].mxu0
      %2961 = vmatprep.mubr.bf16.mxu0 0
      %2962 = vmatmul.mubr.bf16.gmra.mrb[0].mxu0 %v2820
      %v2963 = vpop.f32.mrb[0].mxu0
      %v2964 = vadd.f32 0.0, %v2963
      %v2965 = vpop.f32.mrb[0].mxu0
      %v2966 = vpop.f32.mrb[0].mxu0
      %v2967 = vadd.f32 0.0, %v2966
      %v2968 = vpop.f32.mrb[0].mxu0
      %2969 = vmatprep.mubr.bf16.mxu0 0
      %2970 = vmatmul.mubr.bf16.gmra.mrb[0].mxu0 %v2823
      %v2971 = vpop.f32.mrb[0].mxu0
      %v2972 = vadd.f32 0.0, %v2971
      %v2973 = vpop.f32.mrb[0].mxu0
      %v2974 = vpop.f32.mrb[0].mxu0
      %v2975 = vadd.f32 0.0, %v2974
      %v2976 = vpop.f32.mrb[0].mxu0
      %2977 = vmatprep.mubr.bf16.mxu0 0
      %2978 = vmatmul.mubr.bf16.gmra.mrb[0].mxu0 %v2826
      %v2979 = vpop.f32.mrb[0].mxu0
      %v2980 = vadd.f32 0.0, %v2979
      %v2981 = vpop.f32.mrb[0].mxu0
      %v2982 = vpop.f32.mrb[0].mxu0
      %v2983 = vadd.f32 0.0, %v2982
      %v2984 = vpop.f32.mrb[0].mxu0
      %2985 = vmatprep.mubr.bf16.mxu0 0
      %2986 = vmatmul.mubr.bf16.gmra.mrb[0].mxu0 %v2829
      %v2987 = vpop.f32.mrb[0].mxu0
      %v2988 = vadd.f32 0.0, %v2987
      %v2989 = vpop.f32.mrb[0].mxu0
      %v2990 = vpop.f32.mrb[0].mxu0
      %v2991 = vadd.f32 0.0, %v2990
      %v2992 = vpop.f32.mrb[0].mxu0
      %2993 = vmatprep.mubr.bf16.mxu0 0
      %2994 = vmatmul.mubr.bf16.gmra.mrb[0].mxu0 %v2832
      %v2995 = vpop.f32.mrb[0].mxu0
      %v2996 = vadd.f32 0.0, %v2995
      %v2997 = vpop.f32.mrb[0].mxu0
      %v2998 = vpop.f32.mrb[0].mxu0
      %v2999 = vadd.f32 0.0, %v2998
      %v3000 = vpop.f32.mrb[0].mxu0
      %3001 = vmatprep.mubr.bf16.mxu0 0
      %3002 = vmatmul.mubr.bf16.gmra.mrb[0].mxu0 %v2835
      %v3003 = vpop.f32.mrb[0].mxu0
      %v3004 = vadd.f32 0.0, %v3003
      %v3005 = vpop.f32.mrb[0].mxu0
      %v3006 = vpop.f32.mrb[0].mxu0
      %v3007 = vadd.f32 0.0, %v3006
      %v3008 = vpop.f32.mrb[0].mxu0
      %3009 = vmatprep.mubr.bf16.mxu0 0
      %3010 = vmatmul.mubr.bf16.gmra.mrb[0].mxu0 %v2838
      %v3011 = vpop.f32.mrb[0].mxu0
      %v3012 = vadd.f32 0.0, %v3011
      %v3013 = vpop.f32.mrb[0].mxu0
      %v3014 = vpop.f32.mrb[0].mxu0
      %v3015 = vadd.f32 0.0, %v3014
      %v3016 = vpop.f32.mrb[0].mxu0
      %3017 = vmatprep.mubr.bf16.mxu0 0
      %3018 = vmatmul.mubr.bf16.gmra.mrb[0].mxu0 %v2841
      %v3019 = vpop.f32.mrb[0].mxu0
      %v3020 = vadd.f32 0.0, %v3019
      %v3021 = vpop.f32.mrb[0].mxu0
      %v3022 = vpop.f32.mrb[0].mxu0
      %v3023 = vadd.f32 0.0, %v3022
      %v3024 = vpop.f32.mrb[0].mxu0
      %3025 = vmatprep.mubr.bf16.mxu0 0
      %3026 = vmatmul.mubr.bf16.gmra.mrb[0].mxu0 %v2844
      %v3027 = vpop.f32.mrb[0].mxu0
      %v3028 = vadd.f32 0.0, %v3027
      %v3029 = vpop.f32.mrb[0].mxu0
      %v3030 = vpop.f32.mrb[0].mxu0
      %v3031 = vadd.f32 0.0, %v3030
      %v3032 = vpop.f32.mrb[0].mxu0
      %3033 = vmatprep.mubr.bf16.mxu0 0
      %3034 = vmatmul.mubr.bf16.gmra.mrb[0].mxu0 %v2847
      %v3035 = vpop.f32.mrb[0].mxu0
      %v3036 = vadd.f32 0.0, %v3035
      %v3037 = vpop.f32.mrb[0].mxu0
      %v3038 = vpop.f32.mrb[0].mxu0
      %v3039 = vadd.f32 0.0, %v3038
      %v3040 = vpop.f32.mrb[0].mxu0
      %3041 = vmatprep.mubr.bf16.mxu0 0
      %3042 = vmatmul.mubr.bf16.gmra.mrb[0].mxu0 %v2850
      %v3043 = vpop.f32.mrb[0].mxu0
      %v3044 = vadd.f32 0.0, %v3043
      %v3045 = vpop.f32.mrb[0].mxu0
      %v3046 = vpop.f32.mrb[0].mxu0
      %v3047 = vadd.f32 0.0, %v3046
      %v3048 = vpop.f32.mrb[0].mxu0
      %3049 = vmatprep.mubr.bf16.mxu0 0
      %3050 = vmatmul.mubr.bf16.gmra.mrb[0].mxu0 %v2853
      %v3051 = vpop.f32.mrb[0].mxu0
      %v3052 = vadd.f32 0.0, %v3051
      %v3053 = vpop.f32.mrb[0].mxu0
      %v3054 = vpop.f32.mrb[0].mxu0
      %v3055 = vadd.f32 0.0, %v3054
      %v3056 = vpop.f32.mrb[0].mxu0
      %3057 = vmatprep.mubr.bf16.mxu0 0
      %3058 = vmatmul.mubr.bf16.gmra.mrb[0].mxu0 %v2856
      %v3059 = vpop.f32.mrb[0].mxu0
      %v3060 = vadd.f32 0.0, %v3059
      %v3061 = vpop.f32.mrb[0].mxu0
      %v3062 = vpop.f32.mrb[0].mxu0
      %v3063 = vadd.f32 0.0, %v3062
      %v3064 = vpop.f32.mrb[0].mxu0
      %3065 = vmatprep.mubr.bf16.mxu0 0
      %3066 = vmatmul.mubr.bf16.gmra.mrb[0].mxu0 %v2859
      %v3067 = vpop.f32.mrb[0].mxu0
      %v3068 = vadd.f32 0.0, %v3067
      %v3069 = vpop.f32.mrb[0].mxu0
      %v3070 = vpop.f32.mrb[0].mxu0
      %v3071 = vadd.f32 0.0, %v3070
      %v3072 = vpop.f32.mrb[0].mxu0
      %3073 = vmatprep.mubr.bf16.mxu0 0
      %3074 = vmatmul.mubr.bf16.gmra.mrb[0].mxu0 %v2862
      %v3075 = vpop.f32.mrb[0].mxu0
      %v3076 = vadd.f32 0.0, %v3075
      %v3077 = vpop.f32.mrb[0].mxu0
      %v3078 = vpop.f32.mrb[0].mxu0
      %v3079 = vadd.f32 0.0, %v3078
      %v3080 = vpop.f32.mrb[0].mxu0
      %3081 = vmatprep.mubr.bf16.mxu0 0
      %3082 = vmatmul.mubr.bf16.gmra.mrb[0].mxu0 %v2865
      %v3083 = vpop.f32.mrb[0].mxu0
      %v3084 = vadd.f32 0.0, %v3083
      %v3085 = vpop.f32.mrb[0].mxu0
      %v3086 = vpop.f32.mrb[0].mxu0
      %v3087 = vadd.f32 0.0, %v3086
      %v3088 = vpop.f32.mrb[0].mxu0
      %3089 = vmatprep.mubr.bf16.mxu0 0
      %3090 = vmatmul.mubr.bf16.gmra.mrb[0].mxu0 %v2868
      %v3091 = vpop.f32.mrb[0].mxu0
      %v3092 = vpop.f32.mrb[0].mxu0
      %v3093 = vpop.f32.mrb[0].mxu0
      %v3094 = vpop.f32.mrb[0].mxu0
      %3095 = vdwg.mxu0
      %v3096 = vadd.f32 %v2678, %v2908
      %v3097 = vadd.f32 %v2679, %v2911
      %v3098 = vadd.f32 %v2680, %v2916
      %v3099 = vadd.f32 %v2681, %v2919
      %v3100 = vadd.f32 %v2682, %v2924
      %v3101 = vadd.f32 %v2683, %v2927
      %v3102 = vadd.f32 %v2684, %v2932
      %v3103 = vadd.f32 %v2685, %v2935
      %v3104 = vadd.f32 %v2686, %v2940
      %v3105 = vadd.f32 %v2687, %v2943
      %v3106 = vadd.f32 %v2688, %v2948
      %v3107 = vadd.f32 %v2689, %v2951
      %v3108 = vadd.f32 %v2690, %v2956
      %v3109 = vadd.f32 %v2691, %v2959
      %v3110 = vadd.f32 %v2692, %v2964
      %v3111 = vadd.f32 %v2693, %v2967
      %v3112 = vadd.f32 %v2694, %v2972
      %v3113 = vadd.f32 %v2695, %v2975
      %v3114 = vadd.f32 %v2696, %v2980
      %v3115 = vadd.f32 %v2697, %v2983
      %v3116 = vadd.f32 %v2698, %v2988
      %v3117 = vadd.f32 %v2699, %v2991
      %v3118 = vadd.f32 %v2700, %v2996
      %v3119 = vadd.f32 %v2701, %v2999
      %v3120 = vadd.f32 %v2702, %v3004
      %v3121 = vadd.f32 %v2703, %v3007
      %v3122 = vadd.f32 %v2704, %v3012
      %v3123 = vadd.f32 %v2705, %v3015
      %v3124 = vadd.f32 %v2706, %v3020
      %v3125 = vadd.f32 %v2707, %v3023
      %v3126 = vadd.f32 %v2708, %v3028
      %v3127 = vadd.f32 %v2709, %v3031
      %v3128 = vadd.f32 %v2710, %v3036
      %v3129 = vadd.f32 %v2711, %v3039
      %v3130 = vadd.f32 %v2712, %v3044
      %v3131 = vadd.f32 %v2713, %v3047
      %v3132 = vadd.f32 %v2714, %v3052
      %v3133 = vadd.f32 %v2715, %v3055
      %v3134 = vadd.f32 %v2716, %v3060
      %v3135 = vadd.f32 %v2717, %v3063
      %v3136 = vadd.f32 %v2718, %v3068
      %v3137 = vadd.f32 %v2719, %v3071
      %v3138 = vadd.f32 %v2720, %v3076
      %v3139 = vadd.f32 %v2721, %v3079
      %v3140 = vadd.f32 %v2722, %v3084
      %v3141 = vadd.f32 %v2723, %v3087
      %v3142 = vld [vmem:[%s300 + $0x29] sm:$0xff]
      %v3143 = vld [vmem:[%s300 + $0x31] sm:$0xff]
      %v3144 = vld [vmem:[%s300 + $0x39] sm:$0xff]
      %v3145 = vld [vmem:[%s300 + $0x41] sm:$0xff]
      %v3146 = vld [vmem:[%s300 + $0x49] sm:$0xff]
      %v3147 = vld [vmem:[%s300 + $0x51] sm:$0xff]
      %v3148 = vld [vmem:[%s300 + $0x59] sm:$0xff]
      %v3149 = vld [vmem:[%s300 + $0x61] sm:$0xff]
      %v3150 = vld [vmem:[%s300 + $0x69] sm:$0xff]
      %v3151 = vld [vmem:[%s300 + $0x71] sm:$0xff]
      %v3152 = vld [vmem:[%s300 + $0x79] sm:$0xff]
      %v3153 = vld [vmem:[%s300 + $0x81] sm:$0xff]
      %v3154 = vld [vmem:[%s300 + $0x89] sm:$0xff]
      %v3155 = vld [vmem:[%s300 + $0x91] sm:$0xff]
      %v3156 = vld [vmem:[%s300 + $0x99] sm:$0xff]
      %v3157 = vld [vmem:[%s300 + $0xa1] sm:$0xff]
      %v3158 = vld [vmem:[%s300 + $0xa9] sm:$0xff]
      %v3159 = vld [vmem:[%s300 + $0xb1] sm:$0xff]
      %v3160 = vld [vmem:[%s300 + $0xb9] sm:$0xff]
      %v3161 = vld [vmem:[%s300 + $0xc1] sm:$0xff]
      %v3162 = vld [vmem:[%s300 + $0xc9] sm:$0xff]
      %v3163 = vld [vmem:[%s300 + $0xd1] sm:$0xff]
      %v3164 = vld [vmem:[%s300 + $0xd9] sm:$0xff]
      %v3165 = vld [vmem:[%s300 + $0xe1] sm:$0xff]
      %v3166 = vld [vmem:[%s300 + $0xe9] sm:$0xff]
      %v3167 = vld [vmem:[%s300 + $0xf1] sm:$0xff]
      %v3168 = vld [vmem:[%s300 + $0xf9] sm:$0xff]
      %v3169 = vld [vmem:[%s300 + $0x101] sm:$0xff]
      %v3170 = vld [vmem:[%s300 + $0x109] sm:$0xff]
      %v3171 = vld [vmem:[%s300 + $0x111] sm:$0xff]
      %v3172 = vld [vmem:[%s300 + $0x119] sm:$0xff]
      %v3173 = vld [vmem:[%s300 + $0x121] sm:$0xff]
      %v3174 = vld [vmem:[%s300 + $0x129] sm:$0xff]
      %v3175 = vld [vmem:[%s300 + $0x131] sm:$0xff]
      %v3176 = vld [vmem:[%s300 + $0x139] sm:$0xff]
      %v3177 = vld [vmem:[%s300 + $0x141] sm:$0xff]
      %v3178 = vld [vmem:[%s300 + $0x149] sm:$0xff]
      %v3179 = vld [vmem:[%s300 + $0x151] sm:$0xff]
      %v3180 = vld [vmem:[%s300 + $0x159] sm:$0xff]
      %v3181 = vld [vmem:[%s300 + $0x161] sm:$0xff]
      %v3182 = vld [vmem:[%s300 + $0x169] sm:$0xff]
      %v3183 = vld [vmem:[%s300 + $0x171] sm:$0xff]
      %v3184 = vld [vmem:[%s300 + $0x179] sm:$0xff]
      %v3185 = vld [vmem:[%s300 + $0x181] sm:$0xff]
      %v3186 = vld [vmem:[%s300 + $0x189] sm:$0xff]
      %v3187 = vld [vmem:[%s300 + $0x191] sm:$0xff]
      %v3188 = vld [vmem:[%s300 + $0x199] sm:$0xff]
      %v3189 = vld [vmem:[%s300 + $0x1a1] sm:$0xf]
      %v3190 = vpack.c.bf16 %v3143, %v3142
      %v3191 = vpack.c.bf16 %v3145, %v3144
      %v3192 = vpack.c.bf16 %v3147, %v3146
      %v3193 = vpack.c.bf16 %v3149, %v3148
      %v3194 = vpack.c.bf16 %v3151, %v3150
      %v3195 = vpack.c.bf16 %v3153, %v3152
      %v3196 = vpack.c.bf16 %v3155, %v3154
      %v3197 = vpack.c.bf16 %v3157, %v3156
      %v3198 = vpack.c.bf16 %v3159, %v3158
      %v3199 = vpack.c.bf16 %v3161, %v3160
      %v3200 = vpack.c.bf16 %v3163, %v3162
      %v3201 = vpack.c.bf16 %v3165, %v3164
      %v3202 = vpack.c.bf16 %v3167, %v3166
      %v3203 = vpack.c.bf16 %v3169, %v3168
      %v3204 = vpack.c.bf16 %v3171, %v3170
      %v3205 = vpack.c.bf16 %v3173, %v3172
      %v3206 = vpack.c.bf16 %v3175, %v3174
      %v3207 = vpack.c.bf16 %v3177, %v3176
      %v3208 = vpack.c.bf16 %v3179, %v3178
      %v3209 = vpack.c.bf16 %v3181, %v3180
      %v3210 = vpack.c.bf16 %v3183, %v3182
      %v3211 = vpack.c.bf16 %v3185, %v3184
      %v3212 = vpack.c.bf16 %v3187, %v3186
      %v3213 = vpack.c.bf16 %v3189, %v3188
      %s3214 = scalar_lea.vmem %s1, 14
      %v3215 = vld [vmem:[%s3214] sm:$0x3]
      %v3217 = vsel %vm454, %v3190, 0
      %v3220 = vsel %vm454, %v3191, 0
      %v3223 = vsel %vm454, %v3192, 0
      %v3226 = vsel %vm454, %v3193, 0
      %v3229 = vsel %vm454, %v3194, 0
      %v3232 = vsel %vm454, %v3195, 0
      %v3235 = vsel %vm454, %v3196, 0
      %v3238 = vsel %vm454, %v3197, 0
      %v3241 = vsel %vm454, %v3198, 0
      %v3244 = vsel %vm454, %v3199, 0
      %v3247 = vsel %vm454, %v3200, 0
      %v3250 = vsel %vm454, %v3201, 0
      %v3253 = vsel %vm454, %v3202, 0
      %v3256 = vsel %vm454, %v3203, 0
      %v3259 = vsel %vm454, %v3204, 0
      %v3262 = vsel %vm454, %v3205, 0
      %v3265 = vsel %vm454, %v3206, 0
      %v3268 = vsel %vm454, %v3207, 0
      %v3271 = vsel %vm454, %v3208, 0
      %v3274 = vsel %vm454, %v3209, 0
      %v3277 = vsel %vm454, %v3210, 0
      %v3280 = vsel %vm454, %v3211, 0
      %v3283 = vsel %vm454, %v3212, 0
      %v3286 = vsel %vm454, %v3213, 0
      %v3289 = vsel %vm527, %v3215, 0
      %3291 = vmatprep.subr.bf16.mxu0 0
      %3292 = vmatpush1.bf16.msra.mxu0 %v3289
      %3293 = vmatprep.subr.bf16.mxu0 0
      %3294 = vmatpush1.bf16.msra.mxu0 0
      %3295 = vmatprep.subr.bf16.mxu0 0
      %3296 = vmatpush1.bf16.msra.mxu0 0
      %3297 = vmatprep.subr.bf16.mxu0 0
      %3298 = vmatpush1.bf16.msra.mxu0 0
      %3299 = vmatprep.subr.bf16.mxu0 0
      %3300 = vmatpush1.bf16.msra.mxu0 0
      %3301 = vmatprep.subr.bf16.mxu0 0
      %3302 = vmatpush1.bf16.msra.mxu0 0
      %3303 = vmatprep.subr.bf16.mxu0 0
      %3304 = vmatpush1.bf16.msra.mxu0 0
      %3305 = vmatprep.subr.bf16.mxu0 0
      %3306 = vmatpush1.bf16.msra.mxu0 0
      %3307 = vmatprep.subr.bf16.mxu0 0
      %3308 = vmatpush1.bf16.msra.mxu0 0
      %3309 = vmatprep.subr.bf16.mxu0 0
      %3310 = vmatpush1.bf16.msra.mxu0 0
      %3311 = vmatprep.subr.bf16.mxu0 0
      %3312 = vmatpush1.bf16.msra.mxu0 0
      %3313 = vmatprep.subr.bf16.mxu0 0
      %3314 = vmatpush1.bf16.msra.mxu0 0
      %3315 = vmatprep.subr.bf16.mxu0 0
      %3316 = vmatpush1.bf16.msra.mxu0 0
      %3317 = vmatprep.subr.bf16.mxu0 0
      %3318 = vmatpush1.bf16.msra.mxu0 0
      %3319 = vmatprep.subr.bf16.mxu0 0
      %3320 = vmatpush1.bf16.msra.mxu0 0
      %3321 = vmatprep.subr.bf16.mxu0 0
      %3322 = vmatpush1.bf16.msra.mxu0 0
      %3323 = vmatprep.mubr.bf16.mxu0 0
      %3324 = vmatmul.mubr.bf16.gmra.mrb[0].mxu0 %v3217
      %v3325 = vpop.f32.mrb[0].mxu0
      %v3326 = vadd.f32 0.0, %v3325
      %v3327 = vpop.f32.mrb[0].mxu0
      %v3328 = vpop.f32.mrb[0].mxu0
      %v3329 = vadd.f32 0.0, %v3328
      %v3330 = vpop.f32.mrb[0].mxu0
      %3331 = vmatprep.mubr.bf16.mxu0 0
      %3332 = vmatmul.mubr.bf16.gmra.mrb[0].mxu0 %v3220
      %v3333 = vpop.f32.mrb[0].mxu0
      %v3334 = vadd.f32 0.0, %v3333
      %v3335 = vpop.f32.mrb[0].mxu0
      %v3336 = vpop.f32.mrb[0].mxu0
      %v3337 = vadd.f32 0.0, %v3336
      %v3338 = vpop.f32.mrb[0].mxu0
      %3339 = vmatprep.mubr.bf16.mxu0 0
      %3340 = vmatmul.mubr.bf16.gmra.mrb[0].mxu0 %v3223
      %v3341 = vpop.f32.mrb[0].mxu0
      %v3342 = vadd.f32 0.0, %v3341
      %v3343 = vpop.f32.mrb[0].mxu0
      %v3344 = vpop.f32.mrb[0].mxu0
      %v3345 = vadd.f32 0.0, %v3344
      %v3346 = vpop.f32.mrb[0].mxu0
      %3347 = vmatprep.mubr.bf16.mxu0 0
      %3348 = vmatmul.mubr.bf16.gmra.mrb[0].mxu0 %v3226
      %v3349 = vpop.f32.mrb[0].mxu0
      %v3350 = vadd.f32 0.0, %v3349
      %v3351 = vpop.f32.mrb[0].mxu0
      %v3352 = vpop.f32.mrb[0].mxu0
      %v3353 = vadd.f32 0.0, %v3352
      %v3354 = vpop.f32.mrb[0].mxu0
      %3355 = vmatprep.mubr.bf16.mxu0 0
      %3356 = vmatmul.mubr.bf16.gmra.mrb[0].mxu0 %v3229
      %v3357 = vpop.f32.mrb[0].mxu0
      %v3358 = vadd.f32 0.0, %v3357
      %v3359 = vpop.f32.mrb[0].mxu0
      %v3360 = vpop.f32.mrb[0].mxu0
      %v3361 = vadd.f32 0.0, %v3360
      %v3362 = vpop.f32.mrb[0].mxu0
      %3363 = vmatprep.mubr.bf16.mxu0 0
      %3364 = vmatmul.mubr.bf16.gmra.mrb[0].mxu0 %v3232
      %v3365 = vpop.f32.mrb[0].mxu0
      %v3366 = vadd.f32 0.0, %v3365
      %v3367 = vpop.f32.mrb[0].mxu0
      %v3368 = vpop.f32.mrb[0].mxu0
      %v3369 = vadd.f32 0.0, %v3368
      %v3370 = vpop.f32.mrb[0].mxu0
      %3371 = vmatprep.mubr.bf16.mxu0 0
      %3372 = vmatmul.mubr.bf16.gmra.mrb[0].mxu0 %v3235
      %v3373 = vpop.f32.mrb[0].mxu0
      %v3374 = vadd.f32 0.0, %v3373
      %v3375 = vpop.f32.mrb[0].mxu0
      %v3376 = vpop.f32.mrb[0].mxu0
      %v3377 = vadd.f32 0.0, %v3376
      %v3378 = vpop.f32.mrb[0].mxu0
      %3379 = vmatprep.mubr.bf16.mxu0 0
      %3380 = vmatmul.mubr.bf16.gmra.mrb[0].mxu0 %v3238
      %v3381 = vpop.f32.mrb[0].mxu0
      %v3382 = vadd.f32 0.0, %v3381
      %v3383 = vpop.f32.mrb[0].mxu0
      %v3384 = vpop.f32.mrb[0].mxu0
      %v3385 = vadd.f32 0.0, %v3384
      %v3386 = vpop.f32.mrb[0].mxu0
      %3387 = vmatprep.mubr.bf16.mxu0 0
      %3388 = vmatmul.mubr.bf16.gmra.mrb[0].mxu0 %v3241
      %v3389 = vpop.f32.mrb[0].mxu0
      %v3390 = vadd.f32 0.0, %v3389
      %v3391 = vpop.f32.mrb[0].mxu0
      %v3392 = vpop.f32.mrb[0].mxu0
      %v3393 = vadd.f32 0.0, %v3392
      %v3394 = vpop.f32.mrb[0].mxu0
      %3395 = vmatprep.mubr.bf16.mxu0 0
      %3396 = vmatmul.mubr.bf16.gmra.mrb[0].mxu0 %v3244
      %v3397 = vpop.f32.mrb[0].mxu0
      %v3398 = vadd.f32 0.0, %v3397
      %v3399 = vpop.f32.mrb[0].mxu0
      %v3400 = vpop.f32.mrb[0].mxu0
      %v3401 = vadd.f32 0.0, %v3400
      %v3402 = vpop.f32.mrb[0].mxu0
      %3403 = vmatprep.mubr.bf16.mxu0 0
      %3404 = vmatmul.mubr.bf16.gmra.mrb[0].mxu0 %v3247
      %v3405 = vpop.f32.mrb[0].mxu0
      %v3406 = vadd.f32 0.0, %v3405
      %v3407 = vpop.f32.mrb[0].mxu0
      %v3408 = vpop.f32.mrb[0].mxu0
      %v3409 = vadd.f32 0.0, %v3408
      %v3410 = vpop.f32.mrb[0].mxu0
      %3411 = vmatprep.mubr.bf16.mxu0 0
      %3412 = vmatmul.mubr.bf16.gmra.mrb[0].mxu0 %v3250
      %v3413 = vpop.f32.mrb[0].mxu0
      %v3414 = vadd.f32 0.0, %v3413
      %v3415 = vpop.f32.mrb[0].mxu0
      %v3416 = vpop.f32.mrb[0].mxu0
      %v3417 = vadd.f32 0.0, %v3416
      %v3418 = vpop.f32.mrb[0].mxu0
      %3419 = vmatprep.mubr.bf16.mxu0 0
      %3420 = vmatmul.mubr.bf16.gmra.mrb[0].mxu0 %v3253
      %v3421 = vpop.f32.mrb[0].mxu0
      %v3422 = vadd.f32 0.0, %v3421
      %v3423 = vpop.f32.mrb[0].mxu0
      %v3424 = vpop.f32.mrb[0].mxu0
      %v3425 = vadd.f32 0.0, %v3424
      %v3426 = vpop.f32.mrb[0].mxu0
      %3427 = vmatprep.mubr.bf16.mxu0 0
      %3428 = vmatmul.mubr.bf16.gmra.mrb[0].mxu0 %v3256
      %v3429 = vpop.f32.mrb[0].mxu0
      %v3430 = vadd.f32 0.0, %v3429
      %v3431 = vpop.f32.mrb[0].mxu0
      %v3432 = vpop.f32.mrb[0].mxu0
      %v3433 = vadd.f32 0.0, %v3432
      %v3434 = vpop.f32.mrb[0].mxu0
      %3435 = vmatprep.mubr.bf16.mxu0 0
      %3436 = vmatmul.mubr.bf16.gmra.mrb[0].mxu0 %v3259
      %v3437 = vpop.f32.mrb[0].mxu0
      %v3438 = vadd.f32 0.0, %v3437
      %v3439 = vpop.f32.mrb[0].mxu0
      %v3440 = vpop.f32.mrb[0].mxu0
      %v3441 = vadd.f32 0.0, %v3440
      %v3442 = vpop.f32.mrb[0].mxu0
      %3443 = vmatprep.mubr.bf16.mxu0 0
      %3444 = vmatmul.mubr.bf16.gmra.mrb[0].mxu0 %v3262
      %v3445 = vpop.f32.mrb[0].mxu0
      %v3446 = vadd.f32 0.0, %v3445
      %v3447 = vpop.f32.mrb[0].mxu0
      %v3448 = vpop.f32.mrb[0].mxu0
      %v3449 = vadd.f32 0.0, %v3448
      %v3450 = vpop.f32.mrb[0].mxu0
      %3451 = vmatprep.mubr.bf16.mxu0 0
      %3452 = vmatmul.mubr.bf16.gmra.mrb[0].mxu0 %v3265
      %v3453 = vpop.f32.mrb[0].mxu0
      %v3454 = vadd.f32 0.0, %v3453
      %v3455 = vpop.f32.mrb[0].mxu0
      %v3456 = vpop.f32.mrb[0].mxu0
      %v3457 = vadd.f32 0.0, %v3456
      %v3458 = vpop.f32.mrb[0].mxu0
      %3459 = vmatprep.mubr.bf16.mxu0 0
      %3460 = vmatmul.mubr.bf16.gmra.mrb[0].mxu0 %v3268
      %v3461 = vpop.f32.mrb[0].mxu0
      %v3462 = vadd.f32 0.0, %v3461
      %v3463 = vpop.f32.mrb[0].mxu0
      %v3464 = vpop.f32.mrb[0].mxu0
      %v3465 = vadd.f32 0.0, %v3464
      %v3466 = vpop.f32.mrb[0].mxu0
      %3467 = vmatprep.mubr.bf16.mxu0 0
      %3468 = vmatmul.mubr.bf16.gmra.mrb[0].mxu0 %v3271
      %v3469 = vpop.f32.mrb[0].mxu0
      %v3470 = vadd.f32 0.0, %v3469
      %v3471 = vpop.f32.mrb[0].mxu0
      %v3472 = vpop.f32.mrb[0].mxu0
      %v3473 = vadd.f32 0.0, %v3472
      %v3474 = vpop.f32.mrb[0].mxu0
      %3475 = vmatprep.mubr.bf16.mxu0 0
      %3476 = vmatmul.mubr.bf16.gmra.mrb[0].mxu0 %v3274
      %v3477 = vpop.f32.mrb[0].mxu0
      %v3478 = vadd.f32 0.0, %v3477
      %v3479 = vpop.f32.mrb[0].mxu0
      %v3480 = vpop.f32.mrb[0].mxu0
      %v3481 = vadd.f32 0.0, %v3480
      %v3482 = vpop.f32.mrb[0].mxu0
      %3483 = vmatprep.mubr.bf16.mxu0 0
      %3484 = vmatmul.mubr.bf16.gmra.mrb[0].mxu0 %v3277
      %v3485 = vpop.f32.mrb[0].mxu0
      %v3486 = vadd.f32 0.0, %v3485
      %v3487 = vpop.f32.mrb[0].mxu0
      %v3488 = vpop.f32.mrb[0].mxu0
      %v3489 = vadd.f32 0.0, %v3488
      %v3490 = vpop.f32.mrb[0].mxu0
      %3491 = vmatprep.mubr.bf16.mxu0 0
      %3492 = vmatmul.mubr.bf16.gmra.mrb[0].mxu0 %v3280
      %v3493 = vpop.f32.mrb[0].mxu0
      %v3494 = vadd.f32 0.0, %v3493
      %v3495 = vpop.f32.mrb[0].mxu0
      %v3496 = vpop.f32.mrb[0].mxu0
      %v3497 = vadd.f32 0.0, %v3496
      %v3498 = vpop.f32.mrb[0].mxu0
      %3499 = vmatprep.mubr.bf16.mxu0 0
      %3500 = vmatmul.mubr.bf16.gmra.mrb[0].mxu0 %v3283
      %v3501 = vpop.f32.mrb[0].mxu0
      %v3502 = vadd.f32 0.0, %v3501
      %v3503 = vpop.f32.mrb[0].mxu0
      %v3504 = vpop.f32.mrb[0].mxu0
      %v3505 = vadd.f32 0.0, %v3504
      %v3506 = vpop.f32.mrb[0].mxu0
      %3507 = vmatprep.mubr.bf16.mxu0 0
      %3508 = vmatmul.mubr.bf16.gmra.mrb[0].mxu0 %v3286
      %v3509 = vpop.f32.mrb[0].mxu0
      %v3510 = vpop.f32.mrb[0].mxu0
      %v3511 = vpop.f32.mrb[0].mxu0
      %v3512 = vpop.f32.mrb[0].mxu0
      %3513 = vdwg.mxu0
      %v3514 = vadd.f32 %v3096, %v3326
      %v3515 = vadd.f32 %v3097, %v3329
      %v3516 = vadd.f32 %v3098, %v3334
      %v3517 = vadd.f32 %v3099, %v3337
      %v3518 = vadd.f32 %v3100, %v3342
      %v3519 = vadd.f32 %v3101, %v3345
      %v3520 = vadd.f32 %v3102, %v3350
      %v3521 = vadd.f32 %v3103, %v3353
      %v3522 = vadd.f32 %v3104, %v3358
      %v3523 = vadd.f32 %v3105, %v3361
      %v3524 = vadd.f32 %v3106, %v3366
      %v3525 = vadd.f32 %v3107, %v3369
      %v3526 = vadd.f32 %v3108, %v3374
      %v3527 = vadd.f32 %v3109, %v3377
      %v3528 = vadd.f32 %v3110, %v3382
      %v3529 = vadd.f32 %v3111, %v3385
      %v3530 = vadd.f32 %v3112, %v3390
      %v3531 = vadd.f32 %v3113, %v3393
      %v3532 = vadd.f32 %v3114, %v3398
      %v3533 = vadd.f32 %v3115, %v3401
      %v3534 = vadd.f32 %v3116, %v3406
      %v3535 = vadd.f32 %v3117, %v3409
      %v3536 = vadd.f32 %v3118, %v3414
      %v3537 = vadd.f32 %v3119, %v3417
      %v3538 = vadd.f32 %v3120, %v3422
      %v3539 = vadd.f32 %v3121, %v3425
      %v3540 = vadd.f32 %v3122, %v3430
      %v3541 = vadd.f32 %v3123, %v3433
      %v3542 = vadd.f32 %v3124, %v3438
      %v3543 = vadd.f32 %v3125, %v3441
      %v3544 = vadd.f32 %v3126, %v3446
      %v3545 = vadd.f32 %v3127, %v3449
      %v3546 = vadd.f32 %v3128, %v3454
      %v3547 = vadd.f32 %v3129, %v3457
      %v3548 = vadd.f32 %v3130, %v3462
      %v3549 = vadd.f32 %v3131, %v3465
      %v3550 = vadd.f32 %v3132, %v3470
      %v3551 = vadd.f32 %v3133, %v3473
      %v3552 = vadd.f32 %v3134, %v3478
      %v3553 = vadd.f32 %v3135, %v3481
      %v3554 = vadd.f32 %v3136, %v3486
      %v3555 = vadd.f32 %v3137, %v3489
      %v3556 = vadd.f32 %v3138, %v3494
      %v3557 = vadd.f32 %v3139, %v3497
      %v3558 = vadd.f32 %v3140, %v3502
      %v3559 = vadd.f32 %v3141, %v3505
      %v3560 = vld [vmem:[%s300 + $0x2a] sm:$0xff]
      %v3561 = vld [vmem:[%s300 + $0x32] sm:$0xff]
      %v3562 = vld [vmem:[%s300 + $0x3a] sm:$0xff]
      %v3563 = vld [vmem:[%s300 + $0x42] sm:$0xff]
      %v3564 = vld [vmem:[%s300 + $0x4a] sm:$0xff]
      %v3565 = vld [vmem:[%s300 + $0x52] sm:$0xff]
      %v3566 = vld [vmem:[%s300 + $0x5a] sm:$0xff]
      %v3567 = vld [vmem:[%s300 + $0x62] sm:$0xff]
      %v3568 = vld [vmem:[%s300 + $0x6a] sm:$0xff]
      %v3569 = vld [vmem:[%s300 + $0x72] sm:$0xff]
      %v3570 = vld [vmem:[%s300 + $0x7a] sm:$0xff]
      %v3571 = vld [vmem:[%s300 + $0x82] sm:$0xff]
      %v3572 = vld [vmem:[%s300 + $0x8a] sm:$0xff]
      %v3573 = vld [vmem:[%s300 + $0x92] sm:$0xff]
      %v3574 = vld [vmem:[%s300 + $0x9a] sm:$0xff]
      %v3575 = vld [vmem:[%s300 + $0xa2] sm:$0xff]
      %v3576 = vld [vmem:[%s300 + $0xaa] sm:$0xff]
      %v3577 = vld [vmem:[%s300 + $0xb2] sm:$0xff]
      %v3578 = vld [vmem:[%s300 + $0xba] sm:$0xff]
      %v3579 = vld [vmem:[%s300 + $0xc2] sm:$0xff]
      %v3580 = vld [vmem:[%s300 + $0xca] sm:$0xff]
      %v3581 = vld [vmem:[%s300 + $0xd2] sm:$0xff]
      %v3582 = vld [vmem:[%s300 + $0xda] sm:$0xff]
      %v3583 = vld [vmem:[%s300 + $0xe2] sm:$0xff]
      %v3584 = vld [vmem:[%s300 + $0xea] sm:$0xff]
      %v3585 = vld [vmem:[%s300 + $0xf2] sm:$0xff]
      %v3586 = vld [vmem:[%s300 + $0xfa] sm:$0xff]
      %v3587 = vld [vmem:[%s300 + $0x102] sm:$0xff]
      %v3588 = vld [vmem:[%s300 + $0x10a] sm:$0xff]
      %v3589 = vld [vmem:[%s300 + $0x112] sm:$0xff]
      %v3590 = vld [vmem:[%s300 + $0x11a] sm:$0xff]
      %v3591 = vld [vmem:[%s300 + $0x122] sm:$0xff]
      %v3592 = vld [vmem:[%s300 + $0x12a] sm:$0xff]
      %v3593 = vld [vmem:[%s300 + $0x132] sm:$0xff]
      %v3594 = vld [vmem:[%s300 + $0x13a] sm:$0xff]
      %v3595 = vld [vmem:[%s300 + $0x142] sm:$0xff]
      %v3596 = vld [vmem:[%s300 + $0x14a] sm:$0xff]
      %v3597 = vld [vmem:[%s300 + $0x152] sm:$0xff]
      %v3598 = vld [vmem:[%s300 + $0x15a] sm:$0xff]
      %v3599 = vld [vmem:[%s300 + $0x162] sm:$0xff]
      %v3600 = vld [vmem:[%s300 + $0x16a] sm:$0xff]
      %v3601 = vld [vmem:[%s300 + $0x172] sm:$0xff]
      %v3602 = vld [vmem:[%s300 + $0x17a] sm:$0xff]
      %v3603 = vld [vmem:[%s300 + $0x182] sm:$0xff]
      %v3604 = vld [vmem:[%s300 + $0x18a] sm:$0xff]
      %v3605 = vld [vmem:[%s300 + $0x192] sm:$0xff]
      %v3606 = vld [vmem:[%s300 + $0x19a] sm:$0xff]
      %v3607 = vld [vmem:[%s300 + $0x1a2] sm:$0xf]
      %v3608 = vpack.c.bf16 %v3561, %v3560
      %v3609 = vpack.c.bf16 %v3563, %v3562
      %v3610 = vpack.c.bf16 %v3565, %v3564
      %v3611 = vpack.c.bf16 %v3567, %v3566
      %v3612 = vpack.c.bf16 %v3569, %v3568
      %v3613 = vpack.c.bf16 %v3571, %v3570
      %v3614 = vpack.c.bf16 %v3573, %v3572
      %v3615 = vpack.c.bf16 %v3575, %v3574
      %v3616 = vpack.c.bf16 %v3577, %v3576
      %v3617 = vpack.c.bf16 %v3579, %v3578
      %v3618 = vpack.c.bf16 %v3581, %v3580
      %v3619 = vpack.c.bf16 %v3583, %v3582
      %v3620 = vpack.c.bf16 %v3585, %v3584
      %v3621 = vpack.c.bf16 %v3587, %v3586
      %v3622 = vpack.c.bf16 %v3589, %v3588
      %v3623 = vpack.c.bf16 %v3591, %v3590
      %v3624 = vpack.c.bf16 %v3593, %v3592
      %v3625 = vpack.c.bf16 %v3595, %v3594
      %v3626 = vpack.c.bf16 %v3597, %v3596
      %v3627 = vpack.c.bf16 %v3599, %v3598
      %v3628 = vpack.c.bf16 %v3601, %v3600
      %v3629 = vpack.c.bf16 %v3603, %v3602
      %v3630 = vpack.c.bf16 %v3605, %v3604
      %v3631 = vpack.c.bf16 %v3607, %v3606
      %s3632 = scalar_lea.vmem %s1, 16
      %v3633 = vld [vmem:[%s3632] sm:$0x3]
      %v3635 = vsel %vm454, %v3608, 0
      %v3638 = vsel %vm454, %v3609, 0
      %v3641 = vsel %vm454, %v3610, 0
      %v3644 = vsel %vm454, %v3611, 0
      %v3647 = vsel %vm454, %v3612, 0
      %v3650 = vsel %vm454, %v3613, 0
      %v3653 = vsel %vm454, %v3614, 0
      %v3656 = vsel %vm454, %v3615, 0
      %v3659 = vsel %vm454, %v3616, 0
      %v3662 = vsel %vm454, %v3617, 0
      %v3665 = vsel %vm454, %v3618, 0
      %v3668 = vsel %vm454, %v3619, 0
      %v3671 = vsel %vm454, %v3620, 0
      %v3674 = vsel %vm454, %v3621, 0
      %v3677 = vsel %vm454, %v3622, 0
      %v3680 = vsel %vm454, %v3623, 0
      %v3683 = vsel %vm454, %v3624, 0
      %v3686 = vsel %vm454, %v3625, 0
      %v3689 = vsel %vm454, %v3626, 0
      %v3692 = vsel %vm454, %v3627, 0
      %v3695 = vsel %vm454, %v3628, 0
      %v3698 = vsel %vm454, %v3629, 0
      %v3701 = vsel %vm454, %v3630, 0
      %v3704 = vsel %vm454, %v3631, 0
      %v3707 = vsel %vm527, %v3633, 0
      %3709 = vmatprep.subr.bf16.mxu0 0
      %3710 = vmatpush1.bf16.msra.mxu0 %v3707
      %3711 = vmatprep.subr.bf16.mxu0 0
      %3712 = vmatpush1.bf16.msra.mxu0 0
      %3713 = vmatprep.subr.bf16.mxu0 0
      %3714 = vmatpush1.bf16.msra.mxu0 0
      %3715 = vmatprep.subr.bf16.mxu0 0
      %3716 = vmatpush1.bf16.msra.mxu0 0
      %3717 = vmatprep.subr.bf16.mxu0 0
      %3718 = vmatpush1.bf16.msra.mxu0 0
      %3719 = vmatprep.subr.bf16.mxu0 0
      %3720 = vmatpush1.bf16.msra.mxu0 0
      %3721 = vmatprep.subr.bf16.mxu0 0
      %3722 = vmatpush1.bf16.msra.mxu0 0
      %3723 = vmatprep.subr.bf16.mxu0 0
      %3724 = vmatpush1.bf16.msra.mxu0 0
      %3725 = vmatprep.subr.bf16.mxu0 0
      %3726 = vmatpush1.bf16.msra.mxu0 0
      %3727 = vmatprep.subr.bf16.mxu0 0
      %3728 = vmatpush1.bf16.msra.mxu0 0
      %3729 = vmatprep.subr.bf16.mxu0 0
      %3730 = vmatpush1.bf16.msra.mxu0 0
      %3731 = vmatprep.subr.bf16.mxu0 0
      %3732 = vmatpush1.bf16.msra.mxu0 0
      %3733 = vmatprep.subr.bf16.mxu0 0
      %3734 = vmatpush1.bf16.msra.mxu0 0
      %3735 = vmatprep.subr.bf16.mxu0 0
      %3736 = vmatpush1.bf16.msra.mxu0 0
      %3737 = vmatprep.subr.bf16.mxu0 0
      %3738 = vmatpush1.bf16.msra.mxu0 0
      %3739 = vmatprep.subr.bf16.mxu0 0
      %3740 = vmatpush1.bf16.msra.mxu0 0
      %3741 = vmatprep.mubr.bf16.mxu0 0
      %3742 = vmatmul.mubr.bf16.gmra.mrb[0].mxu0 %v3635
      %v3743 = vpop.f32.mrb[0].mxu0
      %v3744 = vadd.f32 0.0, %v3743
      %v3745 = vpop.f32.mrb[0].mxu0
      %v3746 = vpop.f32.mrb[0].mxu0
      %v3747 = vadd.f32 0.0, %v3746
      %v3748 = vpop.f32.mrb[0].mxu0
      %3749 = vmatprep.mubr.bf16.mxu0 0
      %3750 = vmatmul.mubr.bf16.gmra.mrb[0].mxu0 %v3638
      %v3751 = vpop.f32.mrb[0].mxu0
      %v3752 = vadd.f32 0.0, %v3751
      %v3753 = vpop.f32.mrb[0].mxu0
      %v3754 = vpop.f32.mrb[0].mxu0
      %v3755 = vadd.f32 0.0, %v3754
      %v3756 = vpop.f32.mrb[0].mxu0
      %3757 = vmatprep.mubr.bf16.mxu0 0
      %3758 = vmatmul.mubr.bf16.gmra.mrb[0].mxu0 %v3641
      %v3759 = vpop.f32.mrb[0].mxu0
      %v3760 = vadd.f32 0.0, %v3759
      %v3761 = vpop.f32.mrb[0].mxu0
      %v3762 = vpop.f32.mrb[0].mxu0
      %v3763 = vadd.f32 0.0, %v3762
      %v3764 = vpop.f32.mrb[0].mxu0
      %3765 = vmatprep.mubr.bf16.mxu0 0
      %3766 = vmatmul.mubr.bf16.gmra.mrb[0].mxu0 %v3644
      %v3767 = vpop.f32.mrb[0].mxu0
      %v3768 = vadd.f32 0.0, %v3767
      %v3769 = vpop.f32.mrb[0].mxu0
      %v3770 = vpop.f32.mrb[0].mxu0
      %v3771 = vadd.f32 0.0, %v3770
      %v3772 = vpop.f32.mrb[0].mxu0
      %3773 = vmatprep.mubr.bf16.mxu0 0
      %3774 = vmatmul.mubr.bf16.gmra.mrb[0].mxu0 %v3647
      %v3775 = vpop.f32.mrb[0].mxu0
      %v3776 = vadd.f32 0.0, %v3775
      %v3777 = vpop.f32.mrb[0].mxu0
      %v3778 = vpop.f32.mrb[0].mxu0
      %v3779 = vadd.f32 0.0, %v3778
      %v3780 = vpop.f32.mrb[0].mxu0
      %3781 = vmatprep.mubr.bf16.mxu0 0
      %3782 = vmatmul.mubr.bf16.gmra.mrb[0].mxu0 %v3650
      %v3783 = vpop.f32.mrb[0].mxu0
      %v3784 = vadd.f32 0.0, %v3783
      %v3785 = vpop.f32.mrb[0].mxu0
      %v3786 = vpop.f32.mrb[0].mxu0
      %v3787 = vadd.f32 0.0, %v3786
      %v3788 = vpop.f32.mrb[0].mxu0
      %3789 = vmatprep.mubr.bf16.mxu0 0
      %3790 = vmatmul.mubr.bf16.gmra.mrb[0].mxu0 %v3653
      %v3791 = vpop.f32.mrb[0].mxu0
      %v3792 = vadd.f32 0.0, %v3791
      %v3793 = vpop.f32.mrb[0].mxu0
      %v3794 = vpop.f32.mrb[0].mxu0
      %v3795 = vadd.f32 0.0, %v3794
      %v3796 = vpop.f32.mrb[0].mxu0
      %3797 = vmatprep.mubr.bf16.mxu0 0
      %3798 = vmatmul.mubr.bf16.gmra.mrb[0].mxu0 %v3656
      %v3799 = vpop.f32.mrb[0].mxu0
      %v3800 = vadd.f32 0.0, %v3799
      %v3801 = vpop.f32.mrb[0].mxu0
      %v3802 = vpop.f32.mrb[0].mxu0
      %v3803 = vadd.f32 0.0, %v3802
      %v3804 = vpop.f32.mrb[0].mxu0
      %3805 = vmatprep.mubr.bf16.mxu0 0
      %3806 = vmatmul.mubr.bf16.gmra.mrb[0].mxu0 %v3659
      %v3807 = vpop.f32.mrb[0].mxu0
      %v3808 = vadd.f32 0.0, %v3807
      %v3809 = vpop.f32.mrb[0].mxu0
      %v3810 = vpop.f32.mrb[0].mxu0
      %v3811 = vadd.f32 0.0, %v3810
      %v3812 = vpop.f32.mrb[0].mxu0
      %3813 = vmatprep.mubr.bf16.mxu0 0
      %3814 = vmatmul.mubr.bf16.gmra.mrb[0].mxu0 %v3662
      %v3815 = vpop.f32.mrb[0].mxu0
      %v3816 = vadd.f32 0.0, %v3815
      %v3817 = vpop.f32.mrb[0].mxu0
      %v3818 = vpop.f32.mrb[0].mxu0
      %v3819 = vadd.f32 0.0, %v3818
      %v3820 = vpop.f32.mrb[0].mxu0
      %3821 = vmatprep.mubr.bf16.mxu0 0
      %3822 = vmatmul.mubr.bf16.gmra.mrb[0].mxu0 %v3665
      %v3823 = vpop.f32.mrb[0].mxu0
      %v3824 = vadd.f32 0.0, %v3823
      %v3825 = vpop.f32.mrb[0].mxu0
      %v3826 = vpop.f32.mrb[0].mxu0
      %v3827 = vadd.f32 0.0, %v3826
      %v3828 = vpop.f32.mrb[0].mxu0
      %3829 = vmatprep.mubr.bf16.mxu0 0
      %3830 = vmatmul.mubr.bf16.gmra.mrb[0].mxu0 %v3668
      %v3831 = vpop.f32.mrb[0].mxu0
      %v3832 = vadd.f32 0.0, %v3831
      %v3833 = vpop.f32.mrb[0].mxu0
      %v3834 = vpop.f32.mrb[0].mxu0
      %v3835 = vadd.f32 0.0, %v3834
      %v3836 = vpop.f32.mrb[0].mxu0
      %3837 = vmatprep.mubr.bf16.mxu0 0
      %3838 = vmatmul.mubr.bf16.gmra.mrb[0].mxu0 %v3671
      %v3839 = vpop.f32.mrb[0].mxu0
      %v3840 = vadd.f32 0.0, %v3839
      %v3841 = vpop.f32.mrb[0].mxu0
      %v3842 = vpop.f32.mrb[0].mxu0
      %v3843 = vadd.f32 0.0, %v3842
      %v3844 = vpop.f32.mrb[0].mxu0
      %3845 = vmatprep.mubr.bf16.mxu0 0
      %3846 = vmatmul.mubr.bf16.gmra.mrb[0].mxu0 %v3674
      %v3847 = vpop.f32.mrb[0].mxu0
      %v3848 = vadd.f32 0.0, %v3847
      %v3849 = vpop.f32.mrb[0].mxu0
      %v3850 = vpop.f32.mrb[0].mxu0
      %v3851 = vadd.f32 0.0, %v3850
      %v3852 = vpop.f32.mrb[0].mxu0
      %3853 = vmatprep.mubr.bf16.mxu0 0
      %3854 = vmatmul.mubr.bf16.gmra.mrb[0].mxu0 %v3677
      %v3855 = vpop.f32.mrb[0].mxu0
      %v3856 = vadd.f32 0.0, %v3855
      %v3857 = vpop.f32.mrb[0].mxu0
      %v3858 = vpop.f32.mrb[0].mxu0
      %v3859 = vadd.f32 0.0, %v3858
      %v3860 = vpop.f32.mrb[0].mxu0
      %3861 = vmatprep.mubr.bf16.mxu0 0
      %3862 = vmatmul.mubr.bf16.gmra.mrb[0].mxu0 %v3680
      %v3863 = vpop.f32.mrb[0].mxu0
      %v3864 = vadd.f32 0.0, %v3863
      %v3865 = vpop.f32.mrb[0].mxu0
      %v3866 = vpop.f32.mrb[0].mxu0
      %v3867 = vadd.f32 0.0, %v3866
      %v3868 = vpop.f32.mrb[0].mxu0
      %3869 = vmatprep.mubr.bf16.mxu0 0
      %3870 = vmatmul.mubr.bf16.gmra.mrb[0].mxu0 %v3683
      %v3871 = vpop.f32.mrb[0].mxu0
      %v3872 = vadd.f32 0.0, %v3871
      %v3873 = vpop.f32.mrb[0].mxu0
      %v3874 = vpop.f32.mrb[0].mxu0
      %v3875 = vadd.f32 0.0, %v3874
      %v3876 = vpop.f32.mrb[0].mxu0
      %3877 = vmatprep.mubr.bf16.mxu0 0
      %3878 = vmatmul.mubr.bf16.gmra.mrb[0].mxu0 %v3686
      %v3879 = vpop.f32.mrb[0].mxu0
      %v3880 = vadd.f32 0.0, %v3879
      %v3881 = vpop.f32.mrb[0].mxu0
      %v3882 = vpop.f32.mrb[0].mxu0
      %v3883 = vadd.f32 0.0, %v3882
      %v3884 = vpop.f32.mrb[0].mxu0
      %3885 = vmatprep.mubr.bf16.mxu0 0
      %3886 = vmatmul.mubr.bf16.gmra.mrb[0].mxu0 %v3689
      %v3887 = vpop.f32.mrb[0].mxu0
      %v3888 = vadd.f32 0.0, %v3887
      %v3889 = vpop.f32.mrb[0].mxu0
      %v3890 = vpop.f32.mrb[0].mxu0
      %v3891 = vadd.f32 0.0, %v3890
      %v3892 = vpop.f32.mrb[0].mxu0
      %3893 = vmatprep.mubr.bf16.mxu0 0
      %3894 = vmatmul.mubr.bf16.gmra.mrb[0].mxu0 %v3692
      %v3895 = vpop.f32.mrb[0].mxu0
      %v3896 = vadd.f32 0.0, %v3895
      %v3897 = vpop.f32.mrb[0].mxu0
      %v3898 = vpop.f32.mrb[0].mxu0
      %v3899 = vadd.f32 0.0, %v3898
      %v3900 = vpop.f32.mrb[0].mxu0
      %3901 = vmatprep.mubr.bf16.mxu0 0
      %3902 = vmatmul.mubr.bf16.gmra.mrb[0].mxu0 %v3695
      %v3903 = vpop.f32.mrb[0].mxu0
      %v3904 = vadd.f32 0.0, %v3903
      %v3905 = vpop.f32.mrb[0].mxu0
      %v3906 = vpop.f32.mrb[0].mxu0
      %v3907 = vadd.f32 0.0, %v3906
      %v3908 = vpop.f32.mrb[0].mxu0
      %3909 = vmatprep.mubr.bf16.mxu0 0
      %3910 = vmatmul.mubr.bf16.gmra.mrb[0].mxu0 %v3698
      %v3911 = vpop.f32.mrb[0].mxu0
      %v3912 = vadd.f32 0.0, %v3911
      %v3913 = vpop.f32.mrb[0].mxu0
      %v3914 = vpop.f32.mrb[0].mxu0
      %v3915 = vadd.f32 0.0, %v3914
      %v3916 = vpop.f32.mrb[0].mxu0
      %3917 = vmatprep.mubr.bf16.mxu0 0
      %3918 = vmatmul.mubr.bf16.gmra.mrb[0].mxu0 %v3701
      %v3919 = vpop.f32.mrb[0].mxu0
      %v3920 = vadd.f32 0.0, %v3919
      %v3921 = vpop.f32.mrb[0].mxu0
      %v3922 = vpop.f32.mrb[0].mxu0
      %v3923 = vadd.f32 0.0, %v3922
      %v3924 = vpop.f32.mrb[0].mxu0
      %3925 = vmatprep.mubr.bf16.mxu0 0
      %3926 = vmatmul.mubr.bf16.gmra.mrb[0].mxu0 %v3704
      %v3927 = vpop.f32.mrb[0].mxu0
      %v3928 = vpop.f32.mrb[0].mxu0
      %v3929 = vpop.f32.mrb[0].mxu0
      %v3930 = vpop.f32.mrb[0].mxu0
      %3931 = vdwg.mxu0
      %v3932 = vadd.f32 %v3514, %v3744
      %v3933 = vadd.f32 %v3515, %v3747
      %v3934 = vadd.f32 %v3516, %v3752
      %v3935 = vadd.f32 %v3517, %v3755
      %v3936 = vadd.f32 %v3518, %v3760
      %v3937 = vadd.f32 %v3519, %v3763
      %v3938 = vadd.f32 %v3520, %v3768
      %v3939 = vadd.f32 %v3521, %v3771
      %v3940 = vadd.f32 %v3522, %v3776
      %v3941 = vadd.f32 %v3523, %v3779
      %v3942 = vadd.f32 %v3524, %v3784
      %v3943 = vadd.f32 %v3525, %v3787
      %v3944 = vadd.f32 %v3526, %v3792
      %v3945 = vadd.f32 %v3527, %v3795
      %v3946 = vadd.f32 %v3528, %v3800
      %v3947 = vadd.f32 %v3529, %v3803
      %v3948 = vadd.f32 %v3530, %v3808
      %v3949 = vadd.f32 %v3531, %v3811
      %v3950 = vadd.f32 %v3532, %v3816
      %v3951 = vadd.f32 %v3533, %v3819
      %v3952 = vadd.f32 %v3534, %v3824
      %v3953 = vadd.f32 %v3535, %v3827
      %v3954 = vadd.f32 %v3536, %v3832
      %v3955 = vadd.f32 %v3537, %v3835
      %v3956 = vadd.f32 %v3538, %v3840
      %v3957 = vadd.f32 %v3539, %v3843
      %v3958 = vadd.f32 %v3540, %v3848
      %v3959 = vadd.f32 %v3541, %v3851
      %v3960 = vadd.f32 %v3542, %v3856
      %v3961 = vadd.f32 %v3543, %v3859
      %v3962 = vadd.f32 %v3544, %v3864
      %v3963 = vadd.f32 %v3545, %v3867
      %v3964 = vadd.f32 %v3546, %v3872
      %v3965 = vadd.f32 %v3547, %v3875
      %v3966 = vadd.f32 %v3548, %v3880
      %v3967 = vadd.f32 %v3549, %v3883
      %v3968 = vadd.f32 %v3550, %v3888
      %v3969 = vadd.f32 %v3551, %v3891
      %v3970 = vadd.f32 %v3552, %v3896
      %v3971 = vadd.f32 %v3553, %v3899
      %v3972 = vadd.f32 %v3554, %v3904
      %v3973 = vadd.f32 %v3555, %v3907
      %v3974 = vadd.f32 %v3556, %v3912
      %v3975 = vadd.f32 %v3557, %v3915
      %v3976 = vadd.f32 %v3558, %v3920
      %v3977 = vadd.f32 %v3559, %v3923
      %v3978 = vld [vmem:[%s2] sm:$0x1]
      %v3980 = vlaneseq
      %v3981 = vshrl.u32 %v3980, 7
      %v3982 = vsub.s32 0, %v3981
      %v3983 = vrot.slane %v3978, %v3982
      %v3985 = vadd.f32 %v3932, %v3983
      %v3986 = vadd.f32 %v3933, %v3983
      %v3987 = vadd.f32 %v3934, %v3983
      %v3988 = vadd.f32 %v3935, %v3983
      %v3989 = vadd.f32 %v3936, %v3983
      %v3990 = vadd.f32 %v3937, %v3983
      %v3991 = vadd.f32 %v3938, %v3983
      %v3992 = vadd.f32 %v3939, %v3983
      %v3993 = vadd.f32 %v3940, %v3983
      %v3994 = vadd.f32 %v3941, %v3983
      %v3995 = vadd.f32 %v3942, %v3983
      %v3996 = vadd.f32 %v3943, %v3983
      %v3997 = vadd.f32 %v3944, %v3983
      %v3998 = vadd.f32 %v3945, %v3983
      %v3999 = vadd.f32 %v3946, %v3983
      %v4000 = vadd.f32 %v3947, %v3983
      %v4001 = vadd.f32 %v3948, %v3983
      %v4002 = vadd.f32 %v3949, %v3983
      %v4003 = vadd.f32 %v3950, %v3983
      %v4004 = vadd.f32 %v3951, %v3983
      %v4005 = vadd.f32 %v3952, %v3983
      %v4006 = vadd.f32 %v3953, %v3983
      %v4007 = vadd.f32 %v3954, %v3983
      %v4008 = vadd.f32 %v3955, %v3983
      %v4009 = vadd.f32 %v3956, %v3983
      %v4010 = vadd.f32 %v3957, %v3983
      %v4011 = vadd.f32 %v3958, %v3983
      %v4012 = vadd.f32 %v3959, %v3983
      %v4013 = vadd.f32 %v3960, %v3983
      %v4014 = vadd.f32 %v3961, %v3983
      %v4015 = vadd.f32 %v3962, %v3983
      %v4016 = vadd.f32 %v3963, %v3983
      %v4017 = vadd.f32 %v3964, %v3983
      %v4018 = vadd.f32 %v3965, %v3983
      %v4019 = vadd.f32 %v3966, %v3983
      %v4020 = vadd.f32 %v3967, %v3983
      %v4021 = vadd.f32 %v3968, %v3983
      %v4022 = vadd.f32 %v3969, %v3983
      %v4023 = vadd.f32 %v3970, %v3983
      %v4024 = vadd.f32 %v3971, %v3983
      %v4025 = vadd.f32 %v3972, %v3983
      %v4026 = vadd.f32 %v3973, %v3983
      %v4027 = vadd.f32 %v3974, %v3983
      %v4028 = vadd.f32 %v3975, %v3983
      %v4029 = vadd.f32 %v3976, %v3983
      %v4030 = vadd.f32 %v3977, %v3983
      %vm4031 = vcmp.gt.f32.partialorder %v3985, 0.0
      %vm4032 = vcmp.gt.f32.partialorder %v3986, 0.0
      %vm4033 = vcmp.gt.f32.partialorder %v3987, 0.0
      %vm4034 = vcmp.gt.f32.partialorder %v3988, 0.0
      %vm4035 = vcmp.gt.f32.partialorder %v3989, 0.0
      %vm4036 = vcmp.gt.f32.partialorder %v3990, 0.0
      %vm4037 = vcmp.gt.f32.partialorder %v3991, 0.0
      %vm4038 = vcmp.gt.f32.partialorder %v3992, 0.0
      %vm4039 = vcmp.gt.f32.partialorder %v3993, 0.0
      %vm4040 = vcmp.gt.f32.partialorder %v3994, 0.0
      %vm4041 = vcmp.gt.f32.partialorder %v3995, 0.0
      %vm4042 = vcmp.gt.f32.partialorder %v3996, 0.0
      %vm4043 = vcmp.gt.f32.partialorder %v3997, 0.0
      %vm4044 = vcmp.gt.f32.partialorder %v3998, 0.0
      %vm4045 = vcmp.gt.f32.partialorder %v3999, 0.0
      %vm4046 = vcmp.gt.f32.partialorder %v4000, 0.0
      %vm4047 = vcmp.gt.f32.partialorder %v4001, 0.0
      %vm4048 = vcmp.gt.f32.partialorder %v4002, 0.0
      %vm4049 = vcmp.gt.f32.partialorder %v4003, 0.0
      %vm4050 = vcmp.gt.f32.partialorder %v4004, 0.0
      %vm4051 = vcmp.gt.f32.partialorder %v4005, 0.0
      %vm4052 = vcmp.gt.f32.partialorder %v4006, 0.0
      %vm4053 = vcmp.gt.f32.partialorder %v4007, 0.0
      %vm4054 = vcmp.gt.f32.partialorder %v4008, 0.0
      %vm4055 = vcmp.gt.f32.partialorder %v4009, 0.0
      %vm4056 = vcmp.gt.f32.partialorder %v4010, 0.0
      %vm4057 = vcmp.gt.f32.partialorder %v4011, 0.0
      %vm4058 = vcmp.gt.f32.partialorder %v4012, 0.0
      %vm4059 = vcmp.gt.f32.partialorder %v4013, 0.0
      %vm4060 = vcmp.gt.f32.partialorder %v4014, 0.0
      %vm4061 = vcmp.gt.f32.partialorder %v4015, 0.0
      %vm4062 = vcmp.gt.f32.partialorder %v4016, 0.0
      %vm4063 = vcmp.gt.f32.partialorder %v4017, 0.0
      %vm4064 = vcmp.gt.f32.partialorder %v4018, 0.0
      %vm4065 = vcmp.gt.f32.partialorder %v4019, 0.0
      %vm4066 = vcmp.gt.f32.partialorder %v4020, 0.0
      %vm4067 = vcmp.gt.f32.partialorder %v4021, 0.0
      %vm4068 = vcmp.gt.f32.partialorder %v4022, 0.0
      %vm4069 = vcmp.gt.f32.partialorder %v4023, 0.0
      %vm4070 = vcmp.gt.f32.partialorder %v4024, 0.0
      %vm4071 = vcmp.gt.f32.partialorder %v4025, 0.0
      %vm4072 = vcmp.gt.f32.partialorder %v4026, 0.0
      %vm4073 = vcmp.gt.f32.partialorder %v4027, 0.0
      %vm4074 = vcmp.gt.f32.partialorder %v4028, 0.0
      %vm4075 = vcmp.gt.f32.partialorder %v4029, 0.0
      %vm4076 = vcmp.gt.f32.partialorder %v4030, 0.0
      %v4077 = vmul.f32 %v3985, 0.2
      %v4078 = vmul.f32 %v3986, 0.2
      %v4079 = vmul.f32 %v3987, 0.2
      %v4080 = vmul.f32 %v3988, 0.2
      %v4081 = vmul.f32 %v3989, 0.2
      %v4082 = vmul.f32 %v3990, 0.2
      %v4083 = vmul.f32 %v3991, 0.2
      %v4084 = vmul.f32 %v3992, 0.2
      %v4085 = vmul.f32 %v3993, 0.2
      %v4086 = vmul.f32 %v3994, 0.2
      %v4087 = vmul.f32 %v3995, 0.2
      %v4088 = vmul.f32 %v3996, 0.2
      %v4089 = vmul.f32 %v3997, 0.2
      %v4090 = vmul.f32 %v3998, 0.2
      %v4091 = vmul.f32 %v3999, 0.2
      %v4092 = vmul.f32 %v4000, 0.2
      %v4093 = vmul.f32 %v4001, 0.2
      %v4094 = vmul.f32 %v4002, 0.2
      %v4095 = vmul.f32 %v4003, 0.2
      %v4096 = vmul.f32 %v4004, 0.2
      %v4097 = vmul.f32 %v4005, 0.2
      %v4098 = vmul.f32 %v4006, 0.2
      %v4099 = vmul.f32 %v4007, 0.2
      %v4100 = vmul.f32 %v4008, 0.2
      %v4101 = vmul.f32 %v4009, 0.2
      %v4102 = vmul.f32 %v4010, 0.2
      %v4103 = vmul.f32 %v4011, 0.2
      %v4104 = vmul.f32 %v4012, 0.2
      %v4105 = vmul.f32 %v4013, 0.2
      %v4106 = vmul.f32 %v4014, 0.2
      %v4107 = vmul.f32 %v4015, 0.2
      %v4108 = vmul.f32 %v4016, 0.2
      %v4109 = vmul.f32 %v4017, 0.2
      %v4110 = vmul.f32 %v4018, 0.2
      %v4111 = vmul.f32 %v4019, 0.2
      %v4112 = vmul.f32 %v4020, 0.2
      %v4113 = vmul.f32 %v4021, 0.2
      %v4114 = vmul.f32 %v4022, 0.2
      %v4115 = vmul.f32 %v4023, 0.2
      %v4116 = vmul.f32 %v4024, 0.2
      %v4117 = vmul.f32 %v4025, 0.2
      %v4118 = vmul.f32 %v4026, 0.2
      %v4119 = vmul.f32 %v4027, 0.2
      %v4120 = vmul.f32 %v4028, 0.2
      %v4121 = vmul.f32 %v4029, 0.2
      %v4122 = vmul.f32 %v4030, 0.2
      %v4123 = vsel %vm4031, %v3985, %v4077
      %v4124 = vsel %vm4032, %v3986, %v4078
      %v4125 = vsel %vm4033, %v3987, %v4079
      %v4126 = vsel %vm4034, %v3988, %v4080
      %v4127 = vsel %vm4035, %v3989, %v4081
      %v4128 = vsel %vm4036, %v3990, %v4082
      %v4129 = vsel %vm4037, %v3991, %v4083
      %v4130 = vsel %vm4038, %v3992, %v4084
      %v4131 = vsel %vm4039, %v3993, %v4085
      %v4132 = vsel %vm4040, %v3994, %v4086
      %v4133 = vsel %vm4041, %v3995, %v4087
      %v4134 = vsel %vm4042, %v3996, %v4088
      %v4135 = vsel %vm4043, %v3997, %v4089
      %v4136 = vsel %vm4044, %v3998, %v4090
      %v4137 = vsel %vm4045, %v3999, %v4091
      %v4138 = vsel %vm4046, %v4000, %v4092
      %v4139 = vsel %vm4047, %v4001, %v4093
      %v4140 = vsel %vm4048, %v4002, %v4094
      %v4141 = vsel %vm4049, %v4003, %v4095
      %v4142 = vsel %vm4050, %v4004, %v4096
      %v4143 = vsel %vm4051, %v4005, %v4097
      %v4144 = vsel %vm4052, %v4006, %v4098
      %v4145 = vsel %vm4053, %v4007, %v4099
      %v4146 = vsel %vm4054, %v4008, %v4100
      %v4147 = vsel %vm4055, %v4009, %v4101
      %v4148 = vsel %vm4056, %v4010, %v4102
      %v4149 = vsel %vm4057, %v4011, %v4103
      %v4150 = vsel %vm4058, %v4012, %v4104
      %v4151 = vsel %vm4059, %v4013, %v4105
      %v4152 = vsel %vm4060, %v4014, %v4106
      %v4153 = vsel %vm4061, %v4015, %v4107
      %v4154 = vsel %vm4062, %v4016, %v4108
      %v4155 = vsel %vm4063, %v4017, %v4109
      %v4156 = vsel %vm4064, %v4018, %v4110
      %v4157 = vsel %vm4065, %v4019, %v4111
      %v4158 = vsel %vm4066, %v4020, %v4112
      %v4159 = vsel %vm4067, %v4021, %v4113
      %v4160 = vsel %vm4068, %v4022, %v4114
      %v4161 = vsel %vm4069, %v4023, %v4115
      %v4162 = vsel %vm4070, %v4024, %v4116
      %v4163 = vsel %vm4071, %v4025, %v4117
      %v4164 = vsel %vm4072, %v4026, %v4118
      %v4165 = vsel %vm4073, %v4027, %v4119
      %v4166 = vsel %vm4074, %v4028, %v4120
      %v4167 = vsel %vm4075, %v4029, %v4121
      %v4168 = vsel %vm4076, %v4030, %v4122
      %v4169 = vld [vmem:[%s7] sm:$0xff]
      %v4170 = vld [vmem:[%s7 + $0x8] sm:$0xff]
      %v4171 = vld [vmem:[%s7 + $0x10] sm:$0xff]
      %v4172 = vld [vmem:[%s7 + $0x18] sm:$0xff]
      %v4173 = vld [vmem:[%s7 + $0x20] sm:$0xff]
      %v4174 = vld [vmem:[%s7 + $0x28] sm:$0xff]
      %v4175 = vld [vmem:[%s7 + $0x30] sm:$0xff]
      %v4176 = vld [vmem:[%s7 + $0x38] sm:$0xff]
      %v4177 = vld [vmem:[%s7 + $0x40] sm:$0xff]
      %v4178 = vld [vmem:[%s7 + $0x48] sm:$0xff]
      %v4179 = vld [vmem:[%s7 + $0x50] sm:$0xff]
      %v4180 = vld [vmem:[%s7 + $0x58] sm:$0xff]
      %v4181 = vld [vmem:[%s7 + $0x60] sm:$0xff]
      %v4182 = vld [vmem:[%s7 + $0x68] sm:$0xff]
      %v4183 = vld [vmem:[%s7 + $0x70] sm:$0xff]
      %v4184 = vld [vmem:[%s7 + $0x78] sm:$0xff]
      %v4185 = vld [vmem:[%s7 + $0x80] sm:$0xff]
      %v4186 = vld [vmem:[%s7 + $0x88] sm:$0xff]
      %v4187 = vld [vmem:[%s7 + $0x90] sm:$0xff]
      %v4188 = vld [vmem:[%s7 + $0x98] sm:$0xff]
      %v4189 = vld [vmem:[%s7 + $0xa0] sm:$0xff]
      %v4190 = vld [vmem:[%s7 + $0xa8] sm:$0xff]
      %v4191 = vld [vmem:[%s7 + $0xb0] sm:$0xff]
      %v4192 = vld [vmem:[%s7 + $0xb8] sm:$0xff]
      %v4193 = vld [vmem:[%s7 + $0xc0] sm:$0xff]
      %v4194 = vld [vmem:[%s7 + $0xc8] sm:$0xff]
      %v4195 = vld [vmem:[%s7 + $0xd0] sm:$0xff]
      %v4196 = vld [vmem:[%s7 + $0xd8] sm:$0xff]
      %v4197 = vld [vmem:[%s7 + $0xe0] sm:$0xff]
      %v4198 = vld [vmem:[%s7 + $0xe8] sm:$0xff]
      %v4199 = vld [vmem:[%s7 + $0xf0] sm:$0xff]
      %v4200 = vld [vmem:[%s7 + $0xf8] sm:$0xff]
      %v4201 = vld [vmem:[%s7 + $0x100] sm:$0xff]
      %v4202 = vld [vmem:[%s7 + $0x108] sm:$0xff]
      %v4203 = vld [vmem:[%s7 + $0x110] sm:$0xff]
      %v4204 = vld [vmem:[%s7 + $0x118] sm:$0xff]
      %v4205 = vld [vmem:[%s7 + $0x120] sm:$0xff]
      %v4206 = vld [vmem:[%s7 + $0x128] sm:$0xff]
      %v4207 = vld [vmem:[%s7 + $0x130] sm:$0xff]
      %v4208 = vld [vmem:[%s7 + $0x138] sm:$0xff]
      %v4209 = vld [vmem:[%s7 + $0x140] sm:$0xff]
      %v4210 = vld [vmem:[%s7 + $0x148] sm:$0xff]
      %v4211 = vld [vmem:[%s7 + $0x150] sm:$0xff]
      %v4212 = vld [vmem:[%s7 + $0x158] sm:$0xff]
      %v4213 = vld [vmem:[%s7 + $0x160] sm:$0xff]
      %v4214 = vld [vmem:[%s7 + $0x168] sm:$0xff]
      %4216 = vset.pattern.permute.xlu0 0
      %4217 = vperm.xlu0 %4216, %v4169
      %v4218 = vpop.permute.xlu0 %4217
      %4221 = vset.pattern.permute.xlu0 0
      %4222 = vperm.xlu0 %4221, %v4170
      %v4223 = vpop.permute.xlu0 %4222
      %4226 = vset.pattern.permute.xlu0 0
      %4227 = vperm.xlu0 %4226, %v4171
      %v4228 = vpop.permute.xlu0 %4227
      %4231 = vset.pattern.permute.xlu0 0
      %4232 = vperm.xlu0 %4231, %v4172
      %v4233 = vpop.permute.xlu0 %4232
      %4236 = vset.pattern.permute.xlu0 0
      %4237 = vperm.xlu0 %4236, %v4173
      %v4238 = vpop.permute.xlu0 %4237
      %4241 = vset.pattern.permute.xlu0 0
      %4242 = vperm.xlu0 %4241, %v4174
      %v4243 = vpop.permute.xlu0 %4242
      %4246 = vset.pattern.permute.xlu0 0
      %4247 = vperm.xlu0 %4246, %v4175
      %v4248 = vpop.permute.xlu0 %4247
      %4251 = vset.pattern.permute.xlu0 0
      %4252 = vperm.xlu0 %4251, %v4176
      %v4253 = vpop.permute.xlu0 %4252
      %4256 = vset.pattern.permute.xlu0 0
      %4257 = vperm.xlu0 %4256, %v4177
      %v4258 = vpop.permute.xlu0 %4257
      %4261 = vset.pattern.permute.xlu0 0
      %4262 = vperm.xlu0 %4261, %v4178
      %v4263 = vpop.permute.xlu0 %4262
      %4266 = vset.pattern.permute.xlu0 0
      %4267 = vperm.xlu0 %4266, %v4179
      %v4268 = vpop.permute.xlu0 %4267
      %4271 = vset.pattern.permute.xlu0 0
      %4272 = vperm.xlu0 %4271, %v4180
      %v4273 = vpop.permute.xlu0 %4272
      %4276 = vset.pattern.permute.xlu0 0
      %4277 = vperm.xlu0 %4276, %v4181
      %v4278 = vpop.permute.xlu0 %4277
      %4281 = vset.pattern.permute.xlu0 0
      %4282 = vperm.xlu0 %4281, %v4182
      %v4283 = vpop.permute.xlu0 %4282
      %4286 = vset.pattern.permute.xlu0 0
      %4287 = vperm.xlu0 %4286, %v4183
      %v4288 = vpop.permute.xlu0 %4287
      %4291 = vset.pattern.permute.xlu0 0
      %4292 = vperm.xlu0 %4291, %v4184
      %v4293 = vpop.permute.xlu0 %4292
      %4296 = vset.pattern.permute.xlu0 0
      %4297 = vperm.xlu0 %4296, %v4185
      %v4298 = vpop.permute.xlu0 %4297
      %4301 = vset.pattern.permute.xlu0 0
      %4302 = vperm.xlu0 %4301, %v4186
      %v4303 = vpop.permute.xlu0 %4302
      %4306 = vset.pattern.permute.xlu0 0
      %4307 = vperm.xlu0 %4306, %v4187
      %v4308 = vpop.permute.xlu0 %4307
      %4311 = vset.pattern.permute.xlu0 0
      %4312 = vperm.xlu0 %4311, %v4188
      %v4313 = vpop.permute.xlu0 %4312
      %4316 = vset.pattern.permute.xlu0 0
      %4317 = vperm.xlu0 %4316, %v4189
      %v4318 = vpop.permute.xlu0 %4317
      %4321 = vset.pattern.permute.xlu0 0
      %4322 = vperm.xlu0 %4321, %v4190
      %v4323 = vpop.permute.xlu0 %4322
      %4326 = vset.pattern.permute.xlu0 0
      %4327 = vperm.xlu0 %4326, %v4191
      %v4328 = vpop.permute.xlu0 %4327
      %4331 = vset.pattern.permute.xlu0 0
      %4332 = vperm.xlu0 %4331, %v4192
      %v4333 = vpop.permute.xlu0 %4332
      %4336 = vset.pattern.permute.xlu0 0
      %4337 = vperm.xlu0 %4336, %v4193
      %v4338 = vpop.permute.xlu0 %4337
      %4341 = vset.pattern.permute.xlu0 0
      %4342 = vperm.xlu0 %4341, %v4194
      %v4343 = vpop.permute.xlu0 %4342
      %4346 = vset.pattern.permute.xlu0 0
      %4347 = vperm.xlu0 %4346, %v4195
      %v4348 = vpop.permute.xlu0 %4347
      %4351 = vset.pattern.permute.xlu0 0
      %4352 = vperm.xlu0 %4351, %v4196
      %v4353 = vpop.permute.xlu0 %4352
      %4356 = vset.pattern.permute.xlu0 0
      %4357 = vperm.xlu0 %4356, %v4197
      %v4358 = vpop.permute.xlu0 %4357
      %4361 = vset.pattern.permute.xlu0 0
      %4362 = vperm.xlu0 %4361, %v4198
      %v4363 = vpop.permute.xlu0 %4362
      %4366 = vset.pattern.permute.xlu0 0
      %4367 = vperm.xlu0 %4366, %v4199
      %v4368 = vpop.permute.xlu0 %4367
      %4371 = vset.pattern.permute.xlu0 0
      %4372 = vperm.xlu0 %4371, %v4200
      %v4373 = vpop.permute.xlu0 %4372
      %4376 = vset.pattern.permute.xlu0 0
      %4377 = vperm.xlu0 %4376, %v4201
      %v4378 = vpop.permute.xlu0 %4377
      %4381 = vset.pattern.permute.xlu0 0
      %4382 = vperm.xlu0 %4381, %v4202
      %v4383 = vpop.permute.xlu0 %4382
      %4386 = vset.pattern.permute.xlu0 0
      %4387 = vperm.xlu0 %4386, %v4203
      %v4388 = vpop.permute.xlu0 %4387
      %4391 = vset.pattern.permute.xlu0 0
      %4392 = vperm.xlu0 %4391, %v4204
      %v4393 = vpop.permute.xlu0 %4392
      %4396 = vset.pattern.permute.xlu0 0
      %4397 = vperm.xlu0 %4396, %v4205
      %v4398 = vpop.permute.xlu0 %4397
      %4401 = vset.pattern.permute.xlu0 0
      %4402 = vperm.xlu0 %4401, %v4206
      %v4403 = vpop.permute.xlu0 %4402
      %4406 = vset.pattern.permute.xlu0 0
      %4407 = vperm.xlu0 %4406, %v4207
      %v4408 = vpop.permute.xlu0 %4407
      %4411 = vset.pattern.permute.xlu0 0
      %4412 = vperm.xlu0 %4411, %v4208
      %v4413 = vpop.permute.xlu0 %4412
      %4416 = vset.pattern.permute.xlu0 0
      %4417 = vperm.xlu0 %4416, %v4209
      %v4418 = vpop.permute.xlu0 %4417
      %4421 = vset.pattern.permute.xlu0 0
      %4422 = vperm.xlu0 %4421, %v4210
      %v4423 = vpop.permute.xlu0 %4422
      %4426 = vset.pattern.permute.xlu0 0
      %4427 = vperm.xlu0 %4426, %v4211
      %v4428 = vpop.permute.xlu0 %4427
      %4431 = vset.pattern.permute.xlu0 0
      %4432 = vperm.xlu0 %4431, %v4212
      %v4433 = vpop.permute.xlu0 %4432
      %4436 = vset.pattern.permute.xlu0 0
      %4437 = vperm.xlu0 %4436, %v4213
      %v4438 = vpop.permute.xlu0 %4437
      %4441 = vset.pattern.permute.xlu0 0
      %4442 = vperm.xlu0 %4441, %v4214
      %v4443 = vpop.permute.xlu0 %4442
      %v4445 = vmul.f32 %v4123, %v4218
      %v4446 = vmul.f32 %v4124, %v4223
      %v4447 = vmul.f32 %v4125, %v4228
      %v4448 = vmul.f32 %v4126, %v4233
      %v4449 = vmul.f32 %v4127, %v4238
      %v4450 = vmul.f32 %v4128, %v4243
      %v4451 = vmul.f32 %v4129, %v4248
      %v4452 = vmul.f32 %v4130, %v4253
      %v4453 = vmul.f32 %v4131, %v4258
      %v4454 = vmul.f32 %v4132, %v4263
      %v4455 = vmul.f32 %v4133, %v4268
      %v4456 = vmul.f32 %v4134, %v4273
      %v4457 = vmul.f32 %v4135, %v4278
      %v4458 = vmul.f32 %v4136, %v4283
      %v4459 = vmul.f32 %v4137, %v4288
      %v4460 = vmul.f32 %v4138, %v4293
      %v4461 = vmul.f32 %v4139, %v4298
      %v4462 = vmul.f32 %v4140, %v4303
      %v4463 = vmul.f32 %v4141, %v4308
      %v4464 = vmul.f32 %v4142, %v4313
      %v4465 = vmul.f32 %v4143, %v4318
      %v4466 = vmul.f32 %v4144, %v4323
      %v4467 = vmul.f32 %v4145, %v4328
      %v4468 = vmul.f32 %v4146, %v4333
      %v4469 = vmul.f32 %v4147, %v4338
      %v4470 = vmul.f32 %v4148, %v4343
      %v4471 = vmul.f32 %v4149, %v4348
      %v4472 = vmul.f32 %v4150, %v4353
      %v4473 = vmul.f32 %v4151, %v4358
      %v4474 = vmul.f32 %v4152, %v4363
      %v4475 = vmul.f32 %v4153, %v4368
      %v4476 = vmul.f32 %v4154, %v4373
      %v4477 = vmul.f32 %v4155, %v4378
      %v4478 = vmul.f32 %v4156, %v4383
      %v4479 = vmul.f32 %v4157, %v4388
      %v4480 = vmul.f32 %v4158, %v4393
      %v4481 = vmul.f32 %v4159, %v4398
      %v4482 = vmul.f32 %v4160, %v4403
      %v4483 = vmul.f32 %v4161, %v4408
      %v4484 = vmul.f32 %v4162, %v4413
      %v4485 = vmul.f32 %v4163, %v4418
      %v4486 = vmul.f32 %v4164, %v4423
      %v4487 = vmul.f32 %v4165, %v4428
      %v4488 = vmul.f32 %v4166, %v4433
      %v4489 = vmul.f32 %v4167, %v4438
      %v4490 = vmul.f32 %v4168, %v4443
      %v4491 = vpack.c.bf16 %v4446, %v4445
      %v4492 = vpack.c.bf16 %v4448, %v4447
      %v4493 = vpack.c.bf16 %v4450, %v4449
      %v4494 = vpack.c.bf16 %v4452, %v4451
      %v4495 = vpack.c.bf16 %v4454, %v4453
      %v4496 = vpack.c.bf16 %v4456, %v4455
      %v4497 = vpack.c.bf16 %v4458, %v4457
      %v4498 = vpack.c.bf16 %v4460, %v4459
      %v4499 = vpack.c.bf16 %v4462, %v4461
      %v4500 = vpack.c.bf16 %v4464, %v4463
      %v4501 = vpack.c.bf16 %v4466, %v4465
      %v4502 = vpack.c.bf16 %v4468, %v4467
      %v4503 = vpack.c.bf16 %v4470, %v4469
      %v4504 = vpack.c.bf16 %v4472, %v4471
      %v4505 = vpack.c.bf16 %v4474, %v4473
      %v4506 = vpack.c.bf16 %v4476, %v4475
      %v4507 = vpack.c.bf16 %v4478, %v4477
      %v4508 = vpack.c.bf16 %v4480, %v4479
      %v4509 = vpack.c.bf16 %v4482, %v4481
      %v4510 = vpack.c.bf16 %v4484, %v4483
      %v4511 = vld [vmem:[%s3] sm:$0x3]
      %v4512 = vpack.c.bf16 %v4485, %v4485
      %s4513 = scalar_lea.vmem %s3, 2
      %v4514 = vld [vmem:[%s4513] sm:$0x3]
      %vm4515 = vsmask.f32 7424
      %v4517 = vshrl.u32 %v4491, 16
      %v4519 = vshll.u32 %v4491, 16
      %v4521 = vrot.slane %v4519, 1
      %v4522 = vor.u32 %v4517, %v4521
      %v4524 = vshll.u32 %v4492, 16
      %v4526 = vrot.slane %v4524, 1
      %v4527 = vsel %vm4515, %v4522, %v4526
      %v4528 = vshrl.u32 %v4492, 16
      %v4530 = vor.u32 %v4528, %v4526
      %v4532 = vshll.u32 %v4493, 16
      %v4534 = vrot.slane %v4532, 1
      %v4535 = vsel %vm4515, %v4530, %v4534
      %v4536 = vshrl.u32 %v4493, 16
      %v4538 = vor.u32 %v4536, %v4534
      %v4540 = vshll.u32 %v4494, 16
      %v4542 = vrot.slane %v4540, 1
      %v4543 = vsel %vm4515, %v4538, %v4542
      %v4544 = vshrl.u32 %v4494, 16
      %v4546 = vor.u32 %v4544, %v4542
      %v4548 = vshll.u32 %v4495, 16
      %v4550 = vrot.slane %v4548, 1
      %v4551 = vsel %vm4515, %v4546, %v4550
      %v4552 = vshrl.u32 %v4495, 16
      %v4554 = vor.u32 %v4552, %v4550
      %v4556 = vshll.u32 %v4496, 16
      %v4558 = vrot.slane %v4556, 1
      %v4559 = vsel %vm4515, %v4554, %v4558
      %v4560 = vshrl.u32 %v4496, 16
      %v4562 = vor.u32 %v4560, %v4558
      %v4564 = vshll.u32 %v4497, 16
      %v4566 = vrot.slane %v4564, 1
      %v4567 = vsel %vm4515, %v4562, %v4566
      %v4568 = vshrl.u32 %v4497, 16
      %v4570 = vor.u32 %v4568, %v4566
      %v4572 = vshll.u32 %v4498, 16
      %v4574 = vrot.slane %v4572, 1
      %v4575 = vsel %vm4515, %v4570, %v4574
      %v4576 = vshrl.u32 %v4498, 16
      %v4578 = vor.u32 %v4576, %v4574
      %v4580 = vshll.u32 %v4499, 16
      %v4582 = vrot.slane %v4580, 1
      %v4583 = vsel %vm4515, %v4578, %v4582
      %v4584 = vshrl.u32 %v4499, 16
      %v4586 = vor.u32 %v4584, %v4582
      %v4588 = vshll.u32 %v4500, 16
      %v4590 = vrot.slane %v4588, 1
      %v4591 = vsel %vm4515, %v4586, %v4590
      %v4592 = vshrl.u32 %v4500, 16
      %v4594 = vor.u32 %v4592, %v4590
      %v4596 = vshll.u32 %v4501, 16
      %v4598 = vrot.slane %v4596, 1
      %v4599 = vsel %vm4515, %v4594, %v4598
      %v4600 = vshrl.u32 %v4501, 16
      %v4602 = vor.u32 %v4600, %v4598
      %v4604 = vshll.u32 %v4502, 16
      %v4606 = vrot.slane %v4604, 1
      %v4607 = vsel %vm4515, %v4602, %v4606
      %v4608 = vshrl.u32 %v4502, 16
      %v4610 = vor.u32 %v4608, %v4606
      %v4612 = vshll.u32 %v4503, 16
      %v4614 = vrot.slane %v4612, 1
      %v4615 = vsel %vm4515, %v4610, %v4614
      %v4616 = vshrl.u32 %v4503, 16
      %v4618 = vor.u32 %v4616, %v4614
      %v4620 = vshll.u32 %v4504, 16
      %v4622 = vrot.slane %v4620, 1
      %v4623 = vsel %vm4515, %v4618, %v4622
      %v4624 = vshrl.u32 %v4504, 16
      %v4626 = vor.u32 %v4624, %v4622
      %v4628 = vshll.u32 %v4505, 16
      %v4630 = vrot.slane %v4628, 1
      %v4631 = vsel %vm4515, %v4626, %v4630
      %v4632 = vshrl.u32 %v4505, 16
      %v4634 = vor.u32 %v4632, %v4630
      %v4636 = vshll.u32 %v4506, 16
      %v4638 = vrot.slane %v4636, 1
      %v4639 = vsel %vm4515, %v4634, %v4638
      %v4640 = vshrl.u32 %v4506, 16
      %v4642 = vor.u32 %v4640, %v4638
      %v4644 = vshll.u32 %v4507, 16
      %v4646 = vrot.slane %v4644, 1
      %v4647 = vsel %vm4515, %v4642, %v4646
      %v4648 = vshrl.u32 %v4507, 16
      %v4650 = vor.u32 %v4648, %v4646
      %v4652 = vshll.u32 %v4508, 16
      %v4654 = vrot.slane %v4652, 1
      %v4655 = vsel %vm4515, %v4650, %v4654
      %v4656 = vshrl.u32 %v4508, 16
      %v4658 = vor.u32 %v4656, %v4654
      %v4660 = vshll.u32 %v4509, 16
      %v4662 = vrot.slane %v4660, 1
      %v4663 = vsel %vm4515, %v4658, %v4662
      %v4664 = vshrl.u32 %v4509, 16
      %v4666 = vor.u32 %v4664, %v4662
      %v4668 = vshll.u32 %v4510, 16
      %v4670 = vrot.slane %v4668, 1
      %v4671 = vsel %vm4515, %v4666, %v4670
      %v4672 = vshrl.u32 %v4510, 16
      %v4674 = vor.u32 %v4672, %v4670
      %v4676 = vshll.u32 %v4512, 16
      %v4678 = vrot.slane %v4676, 1
      %v4679 = vsel %vm4515, %v4674, %v4678
      %v4681 = vsel %vm454, %v4527, 0
      %v4684 = vsel %vm454, %v4535, 0
      %v4687 = vsel %vm454, %v4543, 0
      %v4690 = vsel %vm454, %v4551, 0
      %v4693 = vsel %vm454, %v4559, 0
      %v4696 = vsel %vm454, %v4567, 0
      %v4699 = vsel %vm454, %v4575, 0
      %v4702 = vsel %vm454, %v4583, 0
      %v4705 = vsel %vm454, %v4591, 0
      %v4708 = vsel %vm454, %v4599, 0
      %v4711 = vsel %vm454, %v4607, 0
      %v4714 = vsel %vm454, %v4615, 0
      %v4717 = vsel %vm454, %v4623, 0
      %v4720 = vsel %vm454, %v4631, 0
      %v4723 = vsel %vm454, %v4639, 0
      %v4726 = vsel %vm454, %v4647, 0
      %v4729 = vsel %vm454, %v4655, 0
      %v4732 = vsel %vm454, %v4663, 0
      %v4735 = vsel %vm454, %v4671, 0
      %v4738 = vsel %vm454, %v4679, 0
      %v4741 = vsel %vm527, %v4514, 0
      %4743 = vmatprep.subr.bf16.mxu0 0
      %4744 = vmatpush1.bf16.msra.mxu0 %v4741
      %4745 = vmatprep.subr.bf16.mxu0 0
      %4746 = vmatpush1.bf16.msra.mxu0 0
      %4747 = vmatprep.subr.bf16.mxu0 0
      %4748 = vmatpush1.bf16.msra.mxu0 0
      %4749 = vmatprep.subr.bf16.mxu0 0
      %4750 = vmatpush1.bf16.msra.mxu0 0
      %4751 = vmatprep.subr.bf16.mxu0 0
      %4752 = vmatpush1.bf16.msra.mxu0 0
      %4753 = vmatprep.subr.bf16.mxu0 0
      %4754 = vmatpush1.bf16.msra.mxu0 0
      %4755 = vmatprep.subr.bf16.mxu0 0
      %4756 = vmatpush1.bf16.msra.mxu0 0
      %4757 = vmatprep.subr.bf16.mxu0 0
      %4758 = vmatpush1.bf16.msra.mxu0 0
      %4759 = vmatprep.subr.bf16.mxu0 0
      %4760 = vmatpush1.bf16.msra.mxu0 0
      %4761 = vmatprep.subr.bf16.mxu0 0
      %4762 = vmatpush1.bf16.msra.mxu0 0
      %4763 = vmatprep.subr.bf16.mxu0 0
      %4764 = vmatpush1.bf16.msra.mxu0 0
      %4765 = vmatprep.subr.bf16.mxu0 0
      %4766 = vmatpush1.bf16.msra.mxu0 0
      %4767 = vmatprep.subr.bf16.mxu0 0
      %4768 = vmatpush1.bf16.msra.mxu0 0
      %4769 = vmatprep.subr.bf16.mxu0 0
      %4770 = vmatpush1.bf16.msra.mxu0 0
      %4771 = vmatprep.subr.bf16.mxu0 0
      %4772 = vmatpush1.bf16.msra.mxu0 0
      %4773 = vmatprep.subr.bf16.mxu0 0
      %4774 = vmatpush1.bf16.msra.mxu0 0
      %4775 = vmatprep.mubr.bf16.mxu0 0
      %4776 = vmatmul.mubr.bf16.gmra.mrb[0].mxu0 %v4681
      %v4777 = vpop.f32.mrb[0].mxu0
      %v4778 = vadd.f32 0.0, %v4777
      %v4779 = vpop.f32.mrb[0].mxu0
      %v4780 = vpop.f32.mrb[0].mxu0
      %v4781 = vadd.f32 0.0, %v4780
      %v4782 = vpop.f32.mrb[0].mxu0
      %4783 = vmatprep.mubr.bf16.mxu0 0
      %4784 = vmatmul.mubr.bf16.gmra.mrb[0].mxu0 %v4684
      %v4785 = vpop.f32.mrb[0].mxu0
      %v4786 = vadd.f32 0.0, %v4785
      %v4787 = vpop.f32.mrb[0].mxu0
      %v4788 = vpop.f32.mrb[0].mxu0
      %v4789 = vadd.f32 0.0, %v4788
      %v4790 = vpop.f32.mrb[0].mxu0
      %4791 = vmatprep.mubr.bf16.mxu0 0
      %4792 = vmatmul.mubr.bf16.gmra.mrb[0].mxu0 %v4687
      %v4793 = vpop.f32.mrb[0].mxu0
      %v4794 = vadd.f32 0.0, %v4793
      %v4795 = vpop.f32.mrb[0].mxu0
      %v4796 = vpop.f32.mrb[0].mxu0
      %v4797 = vadd.f32 0.0, %v4796
      %v4798 = vpop.f32.mrb[0].mxu0
      %4799 = vmatprep.mubr.bf16.mxu0 0
      %4800 = vmatmul.mubr.bf16.gmra.mrb[0].mxu0 %v4690
      %v4801 = vpop.f32.mrb[0].mxu0
      %v4802 = vadd.f32 0.0, %v4801
      %v4803 = vpop.f32.mrb[0].mxu0
      %v4804 = vpop.f32.mrb[0].mxu0
      %v4805 = vadd.f32 0.0, %v4804
      %v4806 = vpop.f32.mrb[0].mxu0
      %4807 = vmatprep.mubr.bf16.mxu0 0
      %4808 = vmatmul.mubr.bf16.gmra.mrb[0].mxu0 %v4693
      %v4809 = vpop.f32.mrb[0].mxu0
      %v4810 = vadd.f32 0.0, %v4809
      %v4811 = vpop.f32.mrb[0].mxu0
      %v4812 = vpop.f32.mrb[0].mxu0
      %v4813 = vadd.f32 0.0, %v4812
      %v4814 = vpop.f32.mrb[0].mxu0
      %4815 = vmatprep.mubr.bf16.mxu0 0
      %4816 = vmatmul.mubr.bf16.gmra.mrb[0].mxu0 %v4696
      %v4817 = vpop.f32.mrb[0].mxu0
      %v4818 = vadd.f32 0.0, %v4817
      %v4819 = vpop.f32.mrb[0].mxu0
      %v4820 = vpop.f32.mrb[0].mxu0
      %v4821 = vadd.f32 0.0, %v4820
      %v4822 = vpop.f32.mrb[0].mxu0
      %4823 = vmatprep.mubr.bf16.mxu0 0
      %4824 = vmatmul.mubr.bf16.gmra.mrb[0].mxu0 %v4699
      %v4825 = vpop.f32.mrb[0].mxu0
      %v4826 = vadd.f32 0.0, %v4825
      %v4827 = vpop.f32.mrb[0].mxu0
      %v4828 = vpop.f32.mrb[0].mxu0
      %v4829 = vadd.f32 0.0, %v4828
      %v4830 = vpop.f32.mrb[0].mxu0
      %4831 = vmatprep.mubr.bf16.mxu0 0
      %4832 = vmatmul.mubr.bf16.gmra.mrb[0].mxu0 %v4702
      %v4833 = vpop.f32.mrb[0].mxu0
      %v4834 = vadd.f32 0.0, %v4833
      %v4835 = vpop.f32.mrb[0].mxu0
      %v4836 = vpop.f32.mrb[0].mxu0
      %v4837 = vadd.f32 0.0, %v4836
      %v4838 = vpop.f32.mrb[0].mxu0
      %4839 = vmatprep.mubr.bf16.mxu0 0
      %4840 = vmatmul.mubr.bf16.gmra.mrb[0].mxu0 %v4705
      %v4841 = vpop.f32.mrb[0].mxu0
      %v4842 = vadd.f32 0.0, %v4841
      %v4843 = vpop.f32.mrb[0].mxu0
      %v4844 = vpop.f32.mrb[0].mxu0
      %v4845 = vadd.f32 0.0, %v4844
      %v4846 = vpop.f32.mrb[0].mxu0
      %4847 = vmatprep.mubr.bf16.mxu0 0
      %4848 = vmatmul.mubr.bf16.gmra.mrb[0].mxu0 %v4708
      %v4849 = vpop.f32.mrb[0].mxu0
      %v4850 = vadd.f32 0.0, %v4849
      %v4851 = vpop.f32.mrb[0].mxu0
      %v4852 = vpop.f32.mrb[0].mxu0
      %v4853 = vadd.f32 0.0, %v4852
      %v4854 = vpop.f32.mrb[0].mxu0
      %4855 = vmatprep.mubr.bf16.mxu0 0
      %4856 = vmatmul.mubr.bf16.gmra.mrb[0].mxu0 %v4711
      %v4857 = vpop.f32.mrb[0].mxu0
      %v4858 = vadd.f32 0.0, %v4857
      %v4859 = vpop.f32.mrb[0].mxu0
      %v4860 = vpop.f32.mrb[0].mxu0
      %v4861 = vadd.f32 0.0, %v4860
      %v4862 = vpop.f32.mrb[0].mxu0
      %4863 = vmatprep.mubr.bf16.mxu0 0
      %4864 = vmatmul.mubr.bf16.gmra.mrb[0].mxu0 %v4714
      %v4865 = vpop.f32.mrb[0].mxu0
      %v4866 = vadd.f32 0.0, %v4865
      %v4867 = vpop.f32.mrb[0].mxu0
      %v4868 = vpop.f32.mrb[0].mxu0
      %v4869 = vadd.f32 0.0, %v4868
      %v4870 = vpop.f32.mrb[0].mxu0
      %4871 = vmatprep.mubr.bf16.mxu0 0
      %4872 = vmatmul.mubr.bf16.gmra.mrb[0].mxu0 %v4717
      %v4873 = vpop.f32.mrb[0].mxu0
      %v4874 = vadd.f32 0.0, %v4873
      %v4875 = vpop.f32.mrb[0].mxu0
      %v4876 = vpop.f32.mrb[0].mxu0
      %v4877 = vadd.f32 0.0, %v4876
      %v4878 = vpop.f32.mrb[0].mxu0
      %4879 = vmatprep.mubr.bf16.mxu0 0
      %4880 = vmatmul.mubr.bf16.gmra.mrb[0].mxu0 %v4720
      %v4881 = vpop.f32.mrb[0].mxu0
      %v4882 = vadd.f32 0.0, %v4881
      %v4883 = vpop.f32.mrb[0].mxu0
      %v4884 = vpop.f32.mrb[0].mxu0
      %v4885 = vadd.f32 0.0, %v4884
      %v4886 = vpop.f32.mrb[0].mxu0
      %4887 = vmatprep.mubr.bf16.mxu0 0
      %4888 = vmatmul.mubr.bf16.gmra.mrb[0].mxu0 %v4723
      %v4889 = vpop.f32.mrb[0].mxu0
      %v4890 = vadd.f32 0.0, %v4889
      %v4891 = vpop.f32.mrb[0].mxu0
      %v4892 = vpop.f32.mrb[0].mxu0
      %v4893 = vadd.f32 0.0, %v4892
      %v4894 = vpop.f32.mrb[0].mxu0
      %4895 = vmatprep.mubr.bf16.mxu0 0
      %4896 = vmatmul.mubr.bf16.gmra.mrb[0].mxu0 %v4726
      %v4897 = vpop.f32.mrb[0].mxu0
      %v4898 = vadd.f32 0.0, %v4897
      %v4899 = vpop.f32.mrb[0].mxu0
      %v4900 = vpop.f32.mrb[0].mxu0
      %v4901 = vadd.f32 0.0, %v4900
      %v4902 = vpop.f32.mrb[0].mxu0
      %4903 = vmatprep.mubr.bf16.mxu0 0
      %4904 = vmatmul.mubr.bf16.gmra.mrb[0].mxu0 %v4729
      %v4905 = vpop.f32.mrb[0].mxu0
      %v4906 = vadd.f32 0.0, %v4905
      %v4907 = vpop.f32.mrb[0].mxu0
      %v4908 = vpop.f32.mrb[0].mxu0
      %v4909 = vadd.f32 0.0, %v4908
      %v4910 = vpop.f32.mrb[0].mxu0
      %4911 = vmatprep.mubr.bf16.mxu0 0
      %4912 = vmatmul.mubr.bf16.gmra.mrb[0].mxu0 %v4732
      %v4913 = vpop.f32.mrb[0].mxu0
      %v4914 = vadd.f32 0.0, %v4913
      %v4915 = vpop.f32.mrb[0].mxu0
      %v4916 = vpop.f32.mrb[0].mxu0
      %v4917 = vadd.f32 0.0, %v4916
      %v4918 = vpop.f32.mrb[0].mxu0
      %4919 = vmatprep.mubr.bf16.mxu0 0
      %4920 = vmatmul.mubr.bf16.gmra.mrb[0].mxu0 %v4735
      %v4921 = vpop.f32.mrb[0].mxu0
      %v4922 = vadd.f32 0.0, %v4921
      %v4923 = vpop.f32.mrb[0].mxu0
      %v4924 = vpop.f32.mrb[0].mxu0
      %v4925 = vadd.f32 0.0, %v4924
      %v4926 = vpop.f32.mrb[0].mxu0
      %4927 = vmatprep.mubr.bf16.mxu0 0
      %4928 = vmatmul.mubr.bf16.gmra.mrb[0].mxu0 %v4738
      %v4929 = vpop.f32.mrb[0].mxu0
      %v4930 = vadd.f32 0.0, %v4929
      %v4931 = vpop.f32.mrb[0].mxu0
      %v4932 = vpop.f32.mrb[0].mxu0
      %v4933 = vadd.f32 0.0, %v4932
      %v4934 = vpop.f32.mrb[0].mxu0
      %4935 = vdwg.mxu0
      %v4936 = vsel %vm454, %v4491, 0
      %v4938 = vsel %vm454, %v4492, 0
      %v4940 = vsel %vm454, %v4493, 0
      %v4942 = vsel %vm454, %v4494, 0
      %v4944 = vsel %vm454, %v4495, 0
      %v4946 = vsel %vm454, %v4496, 0
      %v4948 = vsel %vm454, %v4497, 0
      %v4950 = vsel %vm454, %v4498, 0
      %v4952 = vsel %vm454, %v4499, 0
      %v4954 = vsel %vm454, %v4500, 0
      %v4956 = vsel %vm454, %v4501, 0
      %v4958 = vsel %vm454, %v4502, 0
      %v4960 = vsel %vm454, %v4503, 0
      %v4962 = vsel %vm454, %v4504, 0
      %v4964 = vsel %vm454, %v4505, 0
      %v4966 = vsel %vm454, %v4506, 0
      %v4968 = vsel %vm454, %v4507, 0
      %v4970 = vsel %vm454, %v4508, 0
      %v4972 = vsel %vm454, %v4509, 0
      %v4974 = vsel %vm454, %v4510, 0
      %v4977 = vsel %vm527, %v4511, 0
      %4979 = vmatprep.subr.bf16.mxu0 0
      %4980 = vmatpush1.bf16.msra.mxu0 %v4977
      %4981 = vmatprep.subr.bf16.mxu0 0
      %4982 = vmatpush1.bf16.msra.mxu0 0
      %4983 = vmatprep.subr.bf16.mxu0 0
      %4984 = vmatpush1.bf16.msra.mxu0 0
      %4985 = vmatprep.subr.bf16.mxu0 0
      %4986 = vmatpush1.bf16.msra.mxu0 0
      %4987 = vmatprep.subr.bf16.mxu0 0
      %4988 = vmatpush1.bf16.msra.mxu0 0
      %4989 = vmatprep.subr.bf16.mxu0 0
      %4990 = vmatpush1.bf16.msra.mxu0 0
      %4991 = vmatprep.subr.bf16.mxu0 0
      %4992 = vmatpush1.bf16.msra.mxu0 0
      %4993 = vmatprep.subr.bf16.mxu0 0
      %4994 = vmatpush1.bf16.msra.mxu0 0
      %4995 = vmatprep.subr.bf16.mxu0 0
      %4996 = vmatpush1.bf16.msra.mxu0 0
      %4997 = vmatprep.subr.bf16.mxu0 0
      %4998 = vmatpush1.bf16.msra.mxu0 0
      %4999 = vmatprep.subr.bf16.mxu0 0
      %5000 = vmatpush1.bf16.msra.mxu0 0
      %5001 = vmatprep.subr.bf16.mxu0 0
      %5002 = vmatpush1.bf16.msra.mxu0 0
      %5003 = vmatprep.subr.bf16.mxu0 0
      %5004 = vmatpush1.bf16.msra.mxu0 0
      %5005 = vmatprep.subr.bf16.mxu0 0
      %5006 = vmatpush1.bf16.msra.mxu0 0
      %5007 = vmatprep.subr.bf16.mxu0 0
      %5008 = vmatpush1.bf16.msra.mxu0 0
      %5009 = vmatprep.subr.bf16.mxu0 0
      %5010 = vmatpush1.bf16.msra.mxu0 0
      %5011 = vmatprep.mubr.bf16.mxu0 0
      %5012 = vmatmul.mubr.bf16.gmra.mrb[0].mxu0 %v4936
      %v5013 = vpop.f32.mrb[0].mxu0
      %v5014 = vadd.f32 %v4778, %v5013
      %v5015 = vpop.f32.mrb[0].mxu0
      %v5016 = vpop.f32.mrb[0].mxu0
      %v5017 = vadd.f32 %v4781, %v5016
      %v5018 = vpop.f32.mrb[0].mxu0
      %5019 = vmatprep.mubr.bf16.mxu0 0
      %5020 = vmatmul.mubr.bf16.gmra.mrb[0].mxu0 %v4938
      %v5021 = vpop.f32.mrb[0].mxu0
      %v5022 = vadd.f32 %v4786, %v5021
      %v5023 = vpop.f32.mrb[0].mxu0
      %v5024 = vpop.f32.mrb[0].mxu0
      %v5025 = vadd.f32 %v4789, %v5024
      %v5026 = vpop.f32.mrb[0].mxu0
      %5027 = vmatprep.mubr.bf16.mxu0 0
      %5028 = vmatmul.mubr.bf16.gmra.mrb[0].mxu0 %v4940
      %v5029 = vpop.f32.mrb[0].mxu0
      %v5030 = vadd.f32 %v4794, %v5029
      %v5031 = vpop.f32.mrb[0].mxu0
      %v5032 = vpop.f32.mrb[0].mxu0
      %v5033 = vadd.f32 %v4797, %v5032
      %v5034 = vpop.f32.mrb[0].mxu0
      %5035 = vmatprep.mubr.bf16.mxu0 0
      %5036 = vmatmul.mubr.bf16.gmra.mrb[0].mxu0 %v4942
      %v5037 = vpop.f32.mrb[0].mxu0
      %v5038 = vadd.f32 %v4802, %v5037
      %v5039 = vpop.f32.mrb[0].mxu0
      %v5040 = vpop.f32.mrb[0].mxu0
      %v5041 = vadd.f32 %v4805, %v5040
      %v5042 = vpop.f32.mrb[0].mxu0
      %5043 = vmatprep.mubr.bf16.mxu0 0
      %5044 = vmatmul.mubr.bf16.gmra.mrb[0].mxu0 %v4944
      %v5045 = vpop.f32.mrb[0].mxu0
      %v5046 = vadd.f32 %v4810, %v5045
      %v5047 = vpop.f32.mrb[0].mxu0
      %v5048 = vpop.f32.mrb[0].mxu0
      %v5049 = vadd.f32 %v4813, %v5048
      %v5050 = vpop.f32.mrb[0].mxu0
      %5051 = vmatprep.mubr.bf16.mxu0 0
      %5052 = vmatmul.mubr.bf16.gmra.mrb[0].mxu0 %v4946
      %v5053 = vpop.f32.mrb[0].mxu0
      %v5054 = vadd.f32 %v4818, %v5053
      %v5055 = vpop.f32.mrb[0].mxu0
      %v5056 = vpop.f32.mrb[0].mxu0
      %v5057 = vadd.f32 %v4821, %v5056
      %v5058 = vpop.f32.mrb[0].mxu0
      %5059 = vmatprep.mubr.bf16.mxu0 0
      %5060 = vmatmul.mubr.bf16.gmra.mrb[0].mxu0 %v4948
      %v5061 = vpop.f32.mrb[0].mxu0
      %v5062 = vadd.f32 %v4826, %v5061
      %v5063 = vpop.f32.mrb[0].mxu0
      %v5064 = vpop.f32.mrb[0].mxu0
      %v5065 = vadd.f32 %v4829, %v5064
      %v5066 = vpop.f32.mrb[0].mxu0
      %5067 = vmatprep.mubr.bf16.mxu0 0
      %5068 = vmatmul.mubr.bf16.gmra.mrb[0].mxu0 %v4950
      %v5069 = vpop.f32.mrb[0].mxu0
      %v5070 = vadd.f32 %v4834, %v5069
      %v5071 = vpop.f32.mrb[0].mxu0
      %v5072 = vpop.f32.mrb[0].mxu0
      %v5073 = vadd.f32 %v4837, %v5072
      %v5074 = vpop.f32.mrb[0].mxu0
      %5075 = vmatprep.mubr.bf16.mxu0 0
      %5076 = vmatmul.mubr.bf16.gmra.mrb[0].mxu0 %v4952
      %v5077 = vpop.f32.mrb[0].mxu0
      %v5078 = vadd.f32 %v4842, %v5077
      %v5079 = vpop.f32.mrb[0].mxu0
      %v5080 = vpop.f32.mrb[0].mxu0
      %v5081 = vadd.f32 %v4845, %v5080
      %v5082 = vpop.f32.mrb[0].mxu0
      %5083 = vmatprep.mubr.bf16.mxu0 0
      %5084 = vmatmul.mubr.bf16.gmra.mrb[0].mxu0 %v4954
      %v5085 = vpop.f32.mrb[0].mxu0
      %v5086 = vadd.f32 %v4850, %v5085
      %v5087 = vpop.f32.mrb[0].mxu0
      %v5088 = vpop.f32.mrb[0].mxu0
      %v5089 = vadd.f32 %v4853, %v5088
      %v5090 = vpop.f32.mrb[0].mxu0
      %5091 = vmatprep.mubr.bf16.mxu0 0
      %5092 = vmatmul.mubr.bf16.gmra.mrb[0].mxu0 %v4956
      %v5093 = vpop.f32.mrb[0].mxu0
      %v5094 = vadd.f32 %v4858, %v5093
      %v5095 = vpop.f32.mrb[0].mxu0
      %v5096 = vpop.f32.mrb[0].mxu0
      %v5097 = vadd.f32 %v4861, %v5096
      %v5098 = vpop.f32.mrb[0].mxu0
      %5099 = vmatprep.mubr.bf16.mxu0 0
      %5100 = vmatmul.mubr.bf16.gmra.mrb[0].mxu0 %v4958
      %v5101 = vpop.f32.mrb[0].mxu0
      %v5102 = vadd.f32 %v4866, %v5101
      %v5103 = vpop.f32.mrb[0].mxu0
      %v5104 = vpop.f32.mrb[0].mxu0
      %v5105 = vadd.f32 %v4869, %v5104
      %v5106 = vpop.f32.mrb[0].mxu0
      %5107 = vmatprep.mubr.bf16.mxu0 0
      %5108 = vmatmul.mubr.bf16.gmra.mrb[0].mxu0 %v4960
      %v5109 = vpop.f32.mrb[0].mxu0
      %v5110 = vadd.f32 %v4874, %v5109
      %v5111 = vpop.f32.mrb[0].mxu0
      %v5112 = vpop.f32.mrb[0].mxu0
      %v5113 = vadd.f32 %v4877, %v5112
      %v5114 = vpop.f32.mrb[0].mxu0
      %5115 = vmatprep.mubr.bf16.mxu0 0
      %5116 = vmatmul.mubr.bf16.gmra.mrb[0].mxu0 %v4962
      %v5117 = vpop.f32.mrb[0].mxu0
      %v5118 = vadd.f32 %v4882, %v5117
      %v5119 = vpop.f32.mrb[0].mxu0
      %v5120 = vpop.f32.mrb[0].mxu0
      %v5121 = vadd.f32 %v4885, %v5120
      %v5122 = vpop.f32.mrb[0].mxu0
      %5123 = vmatprep.mubr.bf16.mxu0 0
      %5124 = vmatmul.mubr.bf16.gmra.mrb[0].mxu0 %v4964
      %v5125 = vpop.f32.mrb[0].mxu0
      %v5126 = vadd.f32 %v4890, %v5125
      %v5127 = vpop.f32.mrb[0].mxu0
      %v5128 = vpop.f32.mrb[0].mxu0
      %v5129 = vadd.f32 %v4893, %v5128
      %v5130 = vpop.f32.mrb[0].mxu0
      %5131 = vmatprep.mubr.bf16.mxu0 0
      %5132 = vmatmul.mubr.bf16.gmra.mrb[0].mxu0 %v4966
      %v5133 = vpop.f32.mrb[0].mxu0
      %v5134 = vadd.f32 %v4898, %v5133
      %v5135 = vpop.f32.mrb[0].mxu0
      %v5136 = vpop.f32.mrb[0].mxu0
      %v5137 = vadd.f32 %v4901, %v5136
      %v5138 = vpop.f32.mrb[0].mxu0
      %5139 = vmatprep.mubr.bf16.mxu0 0
      %5140 = vmatmul.mubr.bf16.gmra.mrb[0].mxu0 %v4968
      %v5141 = vpop.f32.mrb[0].mxu0
      %v5142 = vadd.f32 %v4906, %v5141
      %v5143 = vpop.f32.mrb[0].mxu0
      %v5144 = vpop.f32.mrb[0].mxu0
      %v5145 = vadd.f32 %v4909, %v5144
      %v5146 = vpop.f32.mrb[0].mxu0
      %5147 = vmatprep.mubr.bf16.mxu0 0
      %5148 = vmatmul.mubr.bf16.gmra.mrb[0].mxu0 %v4970
      %v5149 = vpop.f32.mrb[0].mxu0
      %v5150 = vadd.f32 %v4914, %v5149
      %v5151 = vpop.f32.mrb[0].mxu0
      %v5152 = vpop.f32.mrb[0].mxu0
      %v5153 = vadd.f32 %v4917, %v5152
      %v5154 = vpop.f32.mrb[0].mxu0
      %5155 = vmatprep.mubr.bf16.mxu0 0
      %5156 = vmatmul.mubr.bf16.gmra.mrb[0].mxu0 %v4972
      %v5157 = vpop.f32.mrb[0].mxu0
      %v5158 = vadd.f32 %v4922, %v5157
      %v5159 = vpop.f32.mrb[0].mxu0
      %v5160 = vpop.f32.mrb[0].mxu0
      %v5161 = vadd.f32 %v4925, %v5160
      %v5162 = vpop.f32.mrb[0].mxu0
      %5163 = vmatprep.mubr.bf16.mxu0 0
      %5164 = vmatmul.mubr.bf16.gmra.mrb[0].mxu0 %v4974
      %v5165 = vpop.f32.mrb[0].mxu0
      %v5166 = vadd.f32 %v4930, %v5165
      %v5167 = vpop.f32.mrb[0].mxu0
      %v5168 = vpop.f32.mrb[0].mxu0
      %v5169 = vadd.f32 %v4933, %v5168
      %v5170 = vpop.f32.mrb[0].mxu0
      %5171 = vdwg.mxu0
      %s5172 = scalar_lea.vmem %s3, 4
      %v5173 = vld [vmem:[%s5172] sm:$0x3]
      %vm5195 = vcmask 1046528
      %v5196 = vrot.slane %v4491, 1
      %v5197 = vrot.slane %v4492, 1
      %v5198 = vsel %vm5195, %v5196, %v5197
      %v5199 = vrot.slane %v4493, 1
      %v5200 = vsel %vm5195, %v5197, %v5199
      %v5201 = vrot.slane %v4494, 1
      %v5202 = vsel %vm5195, %v5199, %v5201
      %v5203 = vrot.slane %v4495, 1
      %v5204 = vsel %vm5195, %v5201, %v5203
      %v5205 = vrot.slane %v4496, 1
      %v5206 = vsel %vm5195, %v5203, %v5205
      %v5207 = vrot.slane %v4497, 1
      %v5208 = vsel %vm5195, %v5205, %v5207
      %v5209 = vrot.slane %v4498, 1
      %v5210 = vsel %vm5195, %v5207, %v5209
      %v5211 = vrot.slane %v4499, 1
      %v5212 = vsel %vm5195, %v5209, %v5211
      %v5213 = vrot.slane %v4500, 1
      %v5214 = vsel %vm5195, %v5211, %v5213
      %v5215 = vrot.slane %v4501, 1
      %v5216 = vsel %vm5195, %v5213, %v5215
      %v5217 = vrot.slane %v4502, 1
      %v5218 = vsel %vm5195, %v5215, %v5217
      %v5219 = vrot.slane %v4503, 1
      %v5220 = vsel %vm5195, %v5217, %v5219
      %v5221 = vrot.slane %v4504, 1
      %v5222 = vsel %vm5195, %v5219, %v5221
      %v5223 = vrot.slane %v4505, 1
      %v5224 = vsel %vm5195, %v5221, %v5223
      %v5225 = vrot.slane %v4506, 1
      %v5226 = vsel %vm5195, %v5223, %v5225
      %v5227 = vrot.slane %v4507, 1
      %v5228 = vsel %vm5195, %v5225, %v5227
      %v5229 = vrot.slane %v4508, 1
      %v5230 = vsel %vm5195, %v5227, %v5229
      %v5231 = vrot.slane %v4509, 1
      %v5232 = vsel %vm5195, %v5229, %v5231
      %v5233 = vrot.slane %v4510, 1
      %v5234 = vsel %vm5195, %v5231, %v5233
      %v5235 = vrot.slane %v4512, 1
      %v5236 = vsel %vm5195, %v5233, %v5235
      %v5238 = vsel %vm454, %v5198, 0
      %v5241 = vsel %vm454, %v5200, 0
      %v5244 = vsel %vm454, %v5202, 0
      %v5247 = vsel %vm454, %v5204, 0
      %v5250 = vsel %vm454, %v5206, 0
      %v5253 = vsel %vm454, %v5208, 0
      %v5256 = vsel %vm454, %v5210, 0
      %v5259 = vsel %vm454, %v5212, 0
      %v5262 = vsel %vm454, %v5214, 0
      %v5265 = vsel %vm454, %v5216, 0
      %v5268 = vsel %vm454, %v5218, 0
      %v5271 = vsel %vm454, %v5220, 0
      %v5274 = vsel %vm454, %v5222, 0
      %v5277 = vsel %vm454, %v5224, 0
      %v5280 = vsel %vm454, %v5226, 0
      %v5283 = vsel %vm454, %v5228, 0
      %v5286 = vsel %vm454, %v5230, 0
      %v5289 = vsel %vm454, %v5232, 0
      %v5292 = vsel %vm454, %v5234, 0
      %v5295 = vsel %vm454, %v5236, 0
      %v5298 = vsel %vm527, %v5173, 0
      %5300 = vmatprep.subr.bf16.mxu0 0
      %5301 = vmatpush1.bf16.msra.mxu0 %v5298
      %5302 = vmatprep.subr.bf16.mxu0 0
      %5303 = vmatpush1.bf16.msra.mxu0 0
      %5304 = vmatprep.subr.bf16.mxu0 0
      %5305 = vmatpush1.bf16.msra.mxu0 0
      %5306 = vmatprep.subr.bf16.mxu0 0
      %5307 = vmatpush1.bf16.msra.mxu0 0
      %5308 = vmatprep.subr.bf16.mxu0 0
      %5309 = vmatpush1.bf16.msra.mxu0 0
      %5310 = vmatprep.subr.bf16.mxu0 0
      %5311 = vmatpush1.bf16.msra.mxu0 0
      %5312 = vmatprep.subr.bf16.mxu0 0
      %5313 = vmatpush1.bf16.msra.mxu0 0
      %5314 = vmatprep.subr.bf16.mxu0 0
      %5315 = vmatpush1.bf16.msra.mxu0 0
      %5316 = vmatprep.subr.bf16.mxu0 0
      %5317 = vmatpush1.bf16.msra.mxu0 0
      %5318 = vmatprep.subr.bf16.mxu0 0
      %5319 = vmatpush1.bf16.msra.mxu0 0
      %5320 = vmatprep.subr.bf16.mxu0 0
      %5321 = vmatpush1.bf16.msra.mxu0 0
      %5322 = vmatprep.subr.bf16.mxu0 0
      %5323 = vmatpush1.bf16.msra.mxu0 0
      %5324 = vmatprep.subr.bf16.mxu0 0
      %5325 = vmatpush1.bf16.msra.mxu0 0
      %5326 = vmatprep.subr.bf16.mxu0 0
      %5327 = vmatpush1.bf16.msra.mxu0 0
      %5328 = vmatprep.subr.bf16.mxu0 0
      %5329 = vmatpush1.bf16.msra.mxu0 0
      %5330 = vmatprep.subr.bf16.mxu0 0
      %5331 = vmatpush1.bf16.msra.mxu0 0
      %5332 = vmatprep.mubr.bf16.mxu0 0
      %5333 = vmatmul.mubr.bf16.gmra.mrb[0].mxu0 %v5238
      %v5334 = vpop.f32.mrb[0].mxu0
      %v5335 = vadd.f32 0.0, %v5334
      %v5336 = vpop.f32.mrb[0].mxu0
      %v5337 = vpop.f32.mrb[0].mxu0
      %v5338 = vadd.f32 0.0, %v5337
      %v5339 = vpop.f32.mrb[0].mxu0
      %5340 = vmatprep.mubr.bf16.mxu0 0
      %5341 = vmatmul.mubr.bf16.gmra.mrb[0].mxu0 %v5241
      %v5342 = vpop.f32.mrb[0].mxu0
      %v5343 = vadd.f32 0.0, %v5342
      %v5344 = vpop.f32.mrb[0].mxu0
      %v5345 = vpop.f32.mrb[0].mxu0
      %v5346 = vadd.f32 0.0, %v5345
      %v5347 = vpop.f32.mrb[0].mxu0
      %5348 = vmatprep.mubr.bf16.mxu0 0
      %5349 = vmatmul.mubr.bf16.gmra.mrb[0].mxu0 %v5244
      %v5350 = vpop.f32.mrb[0].mxu0
      %v5351 = vadd.f32 0.0, %v5350
      %v5352 = vpop.f32.mrb[0].mxu0
      %v5353 = vpop.f32.mrb[0].mxu0
      %v5354 = vadd.f32 0.0, %v5353
      %v5355 = vpop.f32.mrb[0].mxu0
      %5356 = vmatprep.mubr.bf16.mxu0 0
      %5357 = vmatmul.mubr.bf16.gmra.mrb[0].mxu0 %v5247
      %v5358 = vpop.f32.mrb[0].mxu0
      %v5359 = vadd.f32 0.0, %v5358
      %v5360 = vpop.f32.mrb[0].mxu0
      %v5361 = vpop.f32.mrb[0].mxu0
      %v5362 = vadd.f32 0.0, %v5361
      %v5363 = vpop.f32.mrb[0].mxu0
      %5364 = vmatprep.mubr.bf16.mxu0 0
      %5365 = vmatmul.mubr.bf16.gmra.mrb[0].mxu0 %v5250
      %v5366 = vpop.f32.mrb[0].mxu0
      %v5367 = vadd.f32 0.0, %v5366
      %v5368 = vpop.f32.mrb[0].mxu0
      %v5369 = vpop.f32.mrb[0].mxu0
      %v5370 = vadd.f32 0.0, %v5369
      %v5371 = vpop.f32.mrb[0].mxu0
      %5372 = vmatprep.mubr.bf16.mxu0 0
      %5373 = vmatmul.mubr.bf16.gmra.mrb[0].mxu0 %v5253
      %v5374 = vpop.f32.mrb[0].mxu0
      %v5375 = vadd.f32 0.0, %v5374
      %v5376 = vpop.f32.mrb[0].mxu0
      %v5377 = vpop.f32.mrb[0].mxu0
      %v5378 = vadd.f32 0.0, %v5377
      %v5379 = vpop.f32.mrb[0].mxu0
      %5380 = vmatprep.mubr.bf16.mxu0 0
      %5381 = vmatmul.mubr.bf16.gmra.mrb[0].mxu0 %v5256
      %v5382 = vpop.f32.mrb[0].mxu0
      %v5383 = vadd.f32 0.0, %v5382
      %v5384 = vpop.f32.mrb[0].mxu0
      %v5385 = vpop.f32.mrb[0].mxu0
      %v5386 = vadd.f32 0.0, %v5385
      %v5387 = vpop.f32.mrb[0].mxu0
      %5388 = vmatprep.mubr.bf16.mxu0 0
      %5389 = vmatmul.mubr.bf16.gmra.mrb[0].mxu0 %v5259
      %v5390 = vpop.f32.mrb[0].mxu0
      %v5391 = vadd.f32 0.0, %v5390
      %v5392 = vpop.f32.mrb[0].mxu0
      %v5393 = vpop.f32.mrb[0].mxu0
      %v5394 = vadd.f32 0.0, %v5393
      %v5395 = vpop.f32.mrb[0].mxu0
      %5396 = vmatprep.mubr.bf16.mxu0 0
      %5397 = vmatmul.mubr.bf16.gmra.mrb[0].mxu0 %v5262
      %v5398 = vpop.f32.mrb[0].mxu0
      %v5399 = vadd.f32 0.0, %v5398
      %v5400 = vpop.f32.mrb[0].mxu0
      %v5401 = vpop.f32.mrb[0].mxu0
      %v5402 = vadd.f32 0.0, %v5401
      %v5403 = vpop.f32.mrb[0].mxu0
      %5404 = vmatprep.mubr.bf16.mxu0 0
      %5405 = vmatmul.mubr.bf16.gmra.mrb[0].mxu0 %v5265
      %v5406 = vpop.f32.mrb[0].mxu0
      %v5407 = vadd.f32 0.0, %v5406
      %v5408 = vpop.f32.mrb[0].mxu0
      %v5409 = vpop.f32.mrb[0].mxu0
      %v5410 = vadd.f32 0.0, %v5409
      %v5411 = vpop.f32.mrb[0].mxu0
      %5412 = vmatprep.mubr.bf16.mxu0 0
      %5413 = vmatmul.mubr.bf16.gmra.mrb[0].mxu0 %v5268
      %v5414 = vpop.f32.mrb[0].mxu0
      %v5415 = vadd.f32 0.0, %v5414
      %v5416 = vpop.f32.mrb[0].mxu0
      %v5417 = vpop.f32.mrb[0].mxu0
      %v5418 = vadd.f32 0.0, %v5417
      %v5419 = vpop.f32.mrb[0].mxu0
      %5420 = vmatprep.mubr.bf16.mxu0 0
      %5421 = vmatmul.mubr.bf16.gmra.mrb[0].mxu0 %v5271
      %v5422 = vpop.f32.mrb[0].mxu0
      %v5423 = vadd.f32 0.0, %v5422
      %v5424 = vpop.f32.mrb[0].mxu0
      %v5425 = vpop.f32.mrb[0].mxu0
      %v5426 = vadd.f32 0.0, %v5425
      %v5427 = vpop.f32.mrb[0].mxu0
      %5428 = vmatprep.mubr.bf16.mxu0 0
      %5429 = vmatmul.mubr.bf16.gmra.mrb[0].mxu0 %v5274
      %v5430 = vpop.f32.mrb[0].mxu0
      %v5431 = vadd.f32 0.0, %v5430
      %v5432 = vpop.f32.mrb[0].mxu0
      %v5433 = vpop.f32.mrb[0].mxu0
      %v5434 = vadd.f32 0.0, %v5433
      %v5435 = vpop.f32.mrb[0].mxu0
      %5436 = vmatprep.mubr.bf16.mxu0 0
      %5437 = vmatmul.mubr.bf16.gmra.mrb[0].mxu0 %v5277
      %v5438 = vpop.f32.mrb[0].mxu0
      %v5439 = vadd.f32 0.0, %v5438
      %v5440 = vpop.f32.mrb[0].mxu0
      %v5441 = vpop.f32.mrb[0].mxu0
      %v5442 = vadd.f32 0.0, %v5441
      %v5443 = vpop.f32.mrb[0].mxu0
      %5444 = vmatprep.mubr.bf16.mxu0 0
      %5445 = vmatmul.mubr.bf16.gmra.mrb[0].mxu0 %v5280
      %v5446 = vpop.f32.mrb[0].mxu0
      %v5447 = vadd.f32 0.0, %v5446
      %v5448 = vpop.f32.mrb[0].mxu0
      %v5449 = vpop.f32.mrb[0].mxu0
      %v5450 = vadd.f32 0.0, %v5449
      %v5451 = vpop.f32.mrb[0].mxu0
      %5452 = vmatprep.mubr.bf16.mxu0 0
      %5453 = vmatmul.mubr.bf16.gmra.mrb[0].mxu0 %v5283
      %v5454 = vpop.f32.mrb[0].mxu0
      %v5455 = vadd.f32 0.0, %v5454
      %v5456 = vpop.f32.mrb[0].mxu0
      %v5457 = vpop.f32.mrb[0].mxu0
      %v5458 = vadd.f32 0.0, %v5457
      %v5459 = vpop.f32.mrb[0].mxu0
      %5460 = vmatprep.mubr.bf16.mxu0 0
      %5461 = vmatmul.mubr.bf16.gmra.mrb[0].mxu0 %v5286
      %v5462 = vpop.f32.mrb[0].mxu0
      %v5463 = vadd.f32 0.0, %v5462
      %v5464 = vpop.f32.mrb[0].mxu0
      %v5465 = vpop.f32.mrb[0].mxu0
      %v5466 = vadd.f32 0.0, %v5465
      %v5467 = vpop.f32.mrb[0].mxu0
      %5468 = vmatprep.mubr.bf16.mxu0 0
      %5469 = vmatmul.mubr.bf16.gmra.mrb[0].mxu0 %v5289
      %v5470 = vpop.f32.mrb[0].mxu0
      %v5471 = vadd.f32 0.0, %v5470
      %v5472 = vpop.f32.mrb[0].mxu0
      %v5473 = vpop.f32.mrb[0].mxu0
      %v5474 = vadd.f32 0.0, %v5473
      %v5475 = vpop.f32.mrb[0].mxu0
      %5476 = vmatprep.mubr.bf16.mxu0 0
      %5477 = vmatmul.mubr.bf16.gmra.mrb[0].mxu0 %v5292
      %v5478 = vpop.f32.mrb[0].mxu0
      %v5479 = vadd.f32 0.0, %v5478
      %v5480 = vpop.f32.mrb[0].mxu0
      %v5481 = vpop.f32.mrb[0].mxu0
      %v5482 = vadd.f32 0.0, %v5481
      %v5483 = vpop.f32.mrb[0].mxu0
      %5484 = vmatprep.mubr.bf16.mxu0 0
      %5485 = vmatmul.mubr.bf16.gmra.mrb[0].mxu0 %v5295
      %v5486 = vpop.f32.mrb[0].mxu0
      %v5487 = vadd.f32 0.0, %v5486
      %v5488 = vpop.f32.mrb[0].mxu0
      %v5489 = vpop.f32.mrb[0].mxu0
      %v5490 = vadd.f32 0.0, %v5489
      %v5491 = vpop.f32.mrb[0].mxu0
      %5492 = vdwg.mxu0
      %v5493 = vadd.f32 %v5014, %v5335
      %v5494 = vadd.f32 %v5017, %v5338
      %v5495 = vadd.f32 %v5022, %v5343
      %v5496 = vadd.f32 %v5025, %v5346
      %v5497 = vadd.f32 %v5030, %v5351
      %v5498 = vadd.f32 %v5033, %v5354
      %v5499 = vadd.f32 %v5038, %v5359
      %v5500 = vadd.f32 %v5041, %v5362
      %v5501 = vadd.f32 %v5046, %v5367
      %v5502 = vadd.f32 %v5049, %v5370
      %v5503 = vadd.f32 %v5054, %v5375
      %v5504 = vadd.f32 %v5057, %v5378
      %v5505 = vadd.f32 %v5062, %v5383
      %v5506 = vadd.f32 %v5065, %v5386
      %v5507 = vadd.f32 %v5070, %v5391
      %v5508 = vadd.f32 %v5073, %v5394
      %v5509 = vadd.f32 %v5078, %v5399
      %v5510 = vadd.f32 %v5081, %v5402
      %v5511 = vadd.f32 %v5086, %v5407
      %v5512 = vadd.f32 %v5089, %v5410
      %v5513 = vadd.f32 %v5094, %v5415
      %v5514 = vadd.f32 %v5097, %v5418
      %v5515 = vadd.f32 %v5102, %v5423
      %v5516 = vadd.f32 %v5105, %v5426
      %v5517 = vadd.f32 %v5110, %v5431
      %v5518 = vadd.f32 %v5113, %v5434
      %v5519 = vadd.f32 %v5118, %v5439
      %v5520 = vadd.f32 %v5121, %v5442
      %v5521 = vadd.f32 %v5126, %v5447
      %v5522 = vadd.f32 %v5129, %v5450
      %v5523 = vadd.f32 %v5134, %v5455
      %v5524 = vadd.f32 %v5137, %v5458
      %v5525 = vadd.f32 %v5142, %v5463
      %v5526 = vadd.f32 %v5145, %v5466
      %v5527 = vadd.f32 %v5150, %v5471
      %v5528 = vadd.f32 %v5153, %v5474
      %v5529 = vadd.f32 %v5158, %v5479
      %v5530 = vadd.f32 %v5161, %v5482
      %v5531 = vadd.f32 %v5166, %v5487
      %v5532 = vadd.f32 %v5169, %v5490
      %v5533 = vpack.c.bf16 %v4486, %v4485
      %v5534 = vpack.c.bf16 %v4487, %v4487
      %s5535 = scalar_lea.vmem %s3, 6
      %v5536 = vld [vmem:[%s5535] sm:$0x3]
      %vm5539 = vcmask 1045504
      %v5540 = vrot.slane %v4492, 2
      %v5541 = vrot.slane %v4493, 2
      %v5542 = vsel %vm5539, %v5540, %v5541
      %v5543 = vrot.slane %v4494, 2
      %v5544 = vsel %vm5539, %v5541, %v5543
      %v5545 = vrot.slane %v4495, 2
      %v5546 = vsel %vm5539, %v5543, %v5545
      %v5547 = vrot.slane %v4496, 2
      %v5548 = vsel %vm5539, %v5545, %v5547
      %v5549 = vrot.slane %v4497, 2
      %v5550 = vsel %vm5539, %v5547, %v5549
      %v5551 = vrot.slane %v4498, 2
      %v5552 = vsel %vm5539, %v5549, %v5551
      %v5553 = vrot.slane %v4499, 2
      %v5554 = vsel %vm5539, %v5551, %v5553
      %v5555 = vrot.slane %v4500, 2
      %v5556 = vsel %vm5539, %v5553, %v5555
      %v5557 = vrot.slane %v4501, 2
      %v5558 = vsel %vm5539, %v5555, %v5557
      %v5559 = vrot.slane %v4502, 2
      %v5560 = vsel %vm5539, %v5557, %v5559
      %v5561 = vrot.slane %v4503, 2
      %v5562 = vsel %vm5539, %v5559, %v5561
      %v5563 = vrot.slane %v4504, 2
      %v5564 = vsel %vm5539, %v5561, %v5563
      %v5565 = vrot.slane %v4505, 2
      %v5566 = vsel %vm5539, %v5563, %v5565
      %v5567 = vrot.slane %v4506, 2
      %v5568 = vsel %vm5539, %v5565, %v5567
      %v5569 = vrot.slane %v4507, 2
      %v5570 = vsel %vm5539, %v5567, %v5569
      %v5571 = vrot.slane %v4508, 2
      %v5572 = vsel %vm5539, %v5569, %v5571
      %v5573 = vrot.slane %v4509, 2
      %v5574 = vsel %vm5539, %v5571, %v5573
      %v5575 = vrot.slane %v4510, 2
      %v5576 = vsel %vm5539, %v5573, %v5575
      %v5577 = vrot.slane %v5533, 2
      %v5578 = vsel %vm5539, %v5575, %v5577
      %v5579 = vrot.slane %v5534, 2
      %v5580 = vsel %vm5539, %v5577, %v5579
      %v5582 = vsel %vm454, %v5542, 0
      %v5585 = vsel %vm454, %v5544, 0
      %v5588 = vsel %vm454, %v5546, 0
      %v5591 = vsel %vm454, %v5548, 0
      %v5594 = vsel %vm454, %v5550, 0
      %v5597 = vsel %vm454, %v5552, 0
      %v5600 = vsel %vm454, %v5554, 0
      %v5603 = vsel %vm454, %v5556, 0
      %v5606 = vsel %vm454, %v5558, 0
      %v5609 = vsel %vm454, %v5560, 0
      %v5612 = vsel %vm454, %v5562, 0
      %v5615 = vsel %vm454, %v5564, 0
      %v5618 = vsel %vm454, %v5566, 0
      %v5621 = vsel %vm454, %v5568, 0
      %v5624 = vsel %vm454, %v5570, 0
      %v5627 = vsel %vm454, %v5572, 0
      %v5630 = vsel %vm454, %v5574, 0
      %v5633 = vsel %vm454, %v5576, 0
      %v5636 = vsel %vm454, %v5578, 0
      %v5639 = vsel %vm454, %v5580, 0
      %v5642 = vsel %vm527, %v5536, 0
      %5644 = vmatprep.subr.bf16.mxu0 0
      %5645 = vmatpush1.bf16.msra.mxu0 %v5642
      %5646 = vmatprep.subr.bf16.mxu0 0
      %5647 = vmatpush1.bf16.msra.mxu0 0
      %5648 = vmatprep.subr.bf16.mxu0 0
      %5649 = vmatpush1.bf16.msra.mxu0 0
      %5650 = vmatprep.subr.bf16.mxu0 0
      %5651 = vmatpush1.bf16.msra.mxu0 0
      %5652 = vmatprep.subr.bf16.mxu0 0
      %5653 = vmatpush1.bf16.msra.mxu0 0
      %5654 = vmatprep.subr.bf16.mxu0 0
      %5655 = vmatpush1.bf16.msra.mxu0 0
      %5656 = vmatprep.subr.bf16.mxu0 0
      %5657 = vmatpush1.bf16.msra.mxu0 0
      %5658 = vmatprep.subr.bf16.mxu0 0
      %5659 = vmatpush1.bf16.msra.mxu0 0
      %5660 = vmatprep.subr.bf16.mxu0 0
      %5661 = vmatpush1.bf16.msra.mxu0 0
      %5662 = vmatprep.subr.bf16.mxu0 0
      %5663 = vmatpush1.bf16.msra.mxu0 0
      %5664 = vmatprep.subr.bf16.mxu0 0
      %5665 = vmatpush1.bf16.msra.mxu0 0
      %5666 = vmatprep.subr.bf16.mxu0 0
      %5667 = vmatpush1.bf16.msra.mxu0 0
      %5668 = vmatprep.subr.bf16.mxu0 0
      %5669 = vmatpush1.bf16.msra.mxu0 0
      %5670 = vmatprep.subr.bf16.mxu0 0
      %5671 = vmatpush1.bf16.msra.mxu0 0
      %5672 = vmatprep.subr.bf16.mxu0 0
      %5673 = vmatpush1.bf16.msra.mxu0 0
      %5674 = vmatprep.subr.bf16.mxu0 0
      %5675 = vmatpush1.bf16.msra.mxu0 0
      %5676 = vmatprep.mubr.bf16.mxu0 0
      %5677 = vmatmul.mubr.bf16.gmra.mrb[0].mxu0 %v5582
      %v5678 = vpop.f32.mrb[0].mxu0
      %v5679 = vadd.f32 0.0, %v5678
      %v5680 = vpop.f32.mrb[0].mxu0
      %v5681 = vpop.f32.mrb[0].mxu0
      %v5682 = vadd.f32 0.0, %v5681
      %v5683 = vpop.f32.mrb[0].mxu0
      %5684 = vmatprep.mubr.bf16.mxu0 0
      %5685 = vmatmul.mubr.bf16.gmra.mrb[0].mxu0 %v5585
      %v5686 = vpop.f32.mrb[0].mxu0
      %v5687 = vadd.f32 0.0, %v5686
      %v5688 = vpop.f32.mrb[0].mxu0
      %v5689 = vpop.f32.mrb[0].mxu0
      %v5690 = vadd.f32 0.0, %v5689
      %v5691 = vpop.f32.mrb[0].mxu0
      %5692 = vmatprep.mubr.bf16.mxu0 0
      %5693 = vmatmul.mubr.bf16.gmra.mrb[0].mxu0 %v5588
      %v5694 = vpop.f32.mrb[0].mxu0
      %v5695 = vadd.f32 0.0, %v5694
      %v5696 = vpop.f32.mrb[0].mxu0
      %v5697 = vpop.f32.mrb[0].mxu0
      %v5698 = vadd.f32 0.0, %v5697
      %v5699 = vpop.f32.mrb[0].mxu0
      %5700 = vmatprep.mubr.bf16.mxu0 0
      %5701 = vmatmul.mubr.bf16.gmra.mrb[0].mxu0 %v5591
      %v5702 = vpop.f32.mrb[0].mxu0
      %v5703 = vadd.f32 0.0, %v5702
      %v5704 = vpop.f32.mrb[0].mxu0
      %v5705 = vpop.f32.mrb[0].mxu0
      %v5706 = vadd.f32 0.0, %v5705
      %v5707 = vpop.f32.mrb[0].mxu0
      %5708 = vmatprep.mubr.bf16.mxu0 0
      %5709 = vmatmul.mubr.bf16.gmra.mrb[0].mxu0 %v5594
      %v5710 = vpop.f32.mrb[0].mxu0
      %v5711 = vadd.f32 0.0, %v5710
      %v5712 = vpop.f32.mrb[0].mxu0
      %v5713 = vpop.f32.mrb[0].mxu0
      %v5714 = vadd.f32 0.0, %v5713
      %v5715 = vpop.f32.mrb[0].mxu0
      %5716 = vmatprep.mubr.bf16.mxu0 0
      %5717 = vmatmul.mubr.bf16.gmra.mrb[0].mxu0 %v5597
      %v5718 = vpop.f32.mrb[0].mxu0
      %v5719 = vadd.f32 0.0, %v5718
      %v5720 = vpop.f32.mrb[0].mxu0
      %v5721 = vpop.f32.mrb[0].mxu0
      %v5722 = vadd.f32 0.0, %v5721
      %v5723 = vpop.f32.mrb[0].mxu0
      %5724 = vmatprep.mubr.bf16.mxu0 0
      %5725 = vmatmul.mubr.bf16.gmra.mrb[0].mxu0 %v5600
      %v5726 = vpop.f32.mrb[0].mxu0
      %v5727 = vadd.f32 0.0, %v5726
      %v5728 = vpop.f32.mrb[0].mxu0
      %v5729 = vpop.f32.mrb[0].mxu0
      %v5730 = vadd.f32 0.0, %v5729
      %v5731 = vpop.f32.mrb[0].mxu0
      %5732 = vmatprep.mubr.bf16.mxu0 0
      %5733 = vmatmul.mubr.bf16.gmra.mrb[0].mxu0 %v5603
      %v5734 = vpop.f32.mrb[0].mxu0
      %v5735 = vadd.f32 0.0, %v5734
      %v5736 = vpop.f32.mrb[0].mxu0
      %v5737 = vpop.f32.mrb[0].mxu0
      %v5738 = vadd.f32 0.0, %v5737
      %v5739 = vpop.f32.mrb[0].mxu0
      %5740 = vmatprep.mubr.bf16.mxu0 0
      %5741 = vmatmul.mubr.bf16.gmra.mrb[0].mxu0 %v5606
      %v5742 = vpop.f32.mrb[0].mxu0
      %v5743 = vadd.f32 0.0, %v5742
      %v5744 = vpop.f32.mrb[0].mxu0
      %v5745 = vpop.f32.mrb[0].mxu0
      %v5746 = vadd.f32 0.0, %v5745
      %v5747 = vpop.f32.mrb[0].mxu0
      %5748 = vmatprep.mubr.bf16.mxu0 0
      %5749 = vmatmul.mubr.bf16.gmra.mrb[0].mxu0 %v5609
      %v5750 = vpop.f32.mrb[0].mxu0
      %v5751 = vadd.f32 0.0, %v5750
      %v5752 = vpop.f32.mrb[0].mxu0
      %v5753 = vpop.f32.mrb[0].mxu0
      %v5754 = vadd.f32 0.0, %v5753
      %v5755 = vpop.f32.mrb[0].mxu0
      %5756 = vmatprep.mubr.bf16.mxu0 0
      %5757 = vmatmul.mubr.bf16.gmra.mrb[0].mxu0 %v5612
      %v5758 = vpop.f32.mrb[0].mxu0
      %v5759 = vadd.f32 0.0, %v5758
      %v5760 = vpop.f32.mrb[0].mxu0
      %v5761 = vpop.f32.mrb[0].mxu0
      %v5762 = vadd.f32 0.0, %v5761
      %v5763 = vpop.f32.mrb[0].mxu0
      %5764 = vmatprep.mubr.bf16.mxu0 0
      %5765 = vmatmul.mubr.bf16.gmra.mrb[0].mxu0 %v5615
      %v5766 = vpop.f32.mrb[0].mxu0
      %v5767 = vadd.f32 0.0, %v5766
      %v5768 = vpop.f32.mrb[0].mxu0
      %v5769 = vpop.f32.mrb[0].mxu0
      %v5770 = vadd.f32 0.0, %v5769
      %v5771 = vpop.f32.mrb[0].mxu0
      %5772 = vmatprep.mubr.bf16.mxu0 0
      %5773 = vmatmul.mubr.bf16.gmra.mrb[0].mxu0 %v5618
      %v5774 = vpop.f32.mrb[0].mxu0
      %v5775 = vadd.f32 0.0, %v5774
      %v5776 = vpop.f32.mrb[0].mxu0
      %v5777 = vpop.f32.mrb[0].mxu0
      %v5778 = vadd.f32 0.0, %v5777
      %v5779 = vpop.f32.mrb[0].mxu0
      %5780 = vmatprep.mubr.bf16.mxu0 0
      %5781 = vmatmul.mubr.bf16.gmra.mrb[0].mxu0 %v5621
      %v5782 = vpop.f32.mrb[0].mxu0
      %v5783 = vadd.f32 0.0, %v5782
      %v5784 = vpop.f32.mrb[0].mxu0
      %v5785 = vpop.f32.mrb[0].mxu0
      %v5786 = vadd.f32 0.0, %v5785
      %v5787 = vpop.f32.mrb[0].mxu0
      %5788 = vmatprep.mubr.bf16.mxu0 0
      %5789 = vmatmul.mubr.bf16.gmra.mrb[0].mxu0 %v5624
      %v5790 = vpop.f32.mrb[0].mxu0
      %v5791 = vadd.f32 0.0, %v5790
      %v5792 = vpop.f32.mrb[0].mxu0
      %v5793 = vpop.f32.mrb[0].mxu0
      %v5794 = vadd.f32 0.0, %v5793
      %v5795 = vpop.f32.mrb[0].mxu0
      %5796 = vmatprep.mubr.bf16.mxu0 0
      %5797 = vmatmul.mubr.bf16.gmra.mrb[0].mxu0 %v5627
      %v5798 = vpop.f32.mrb[0].mxu0
      %v5799 = vadd.f32 0.0, %v5798
      %v5800 = vpop.f32.mrb[0].mxu0
      %v5801 = vpop.f32.mrb[0].mxu0
      %v5802 = vadd.f32 0.0, %v5801
      %v5803 = vpop.f32.mrb[0].mxu0
      %5804 = vmatprep.mubr.bf16.mxu0 0
      %5805 = vmatmul.mubr.bf16.gmra.mrb[0].mxu0 %v5630
      %v5806 = vpop.f32.mrb[0].mxu0
      %v5807 = vadd.f32 0.0, %v5806
      %v5808 = vpop.f32.mrb[0].mxu0
      %v5809 = vpop.f32.mrb[0].mxu0
      %v5810 = vadd.f32 0.0, %v5809
      %v5811 = vpop.f32.mrb[0].mxu0
      %5812 = vmatprep.mubr.bf16.mxu0 0
      %5813 = vmatmul.mubr.bf16.gmra.mrb[0].mxu0 %v5633
      %v5814 = vpop.f32.mrb[0].mxu0
      %v5815 = vadd.f32 0.0, %v5814
      %v5816 = vpop.f32.mrb[0].mxu0
      %v5817 = vpop.f32.mrb[0].mxu0
      %v5818 = vadd.f32 0.0, %v5817
      %v5819 = vpop.f32.mrb[0].mxu0
      %5820 = vmatprep.mubr.bf16.mxu0 0
      %5821 = vmatmul.mubr.bf16.gmra.mrb[0].mxu0 %v5636
      %v5822 = vpop.f32.mrb[0].mxu0
      %v5823 = vadd.f32 0.0, %v5822
      %v5824 = vpop.f32.mrb[0].mxu0
      %v5825 = vpop.f32.mrb[0].mxu0
      %v5826 = vadd.f32 0.0, %v5825
      %v5827 = vpop.f32.mrb[0].mxu0
      %5828 = vmatprep.mubr.bf16.mxu0 0
      %5829 = vmatmul.mubr.bf16.gmra.mrb[0].mxu0 %v5639
      %v5830 = vpop.f32.mrb[0].mxu0
      %v5831 = vadd.f32 0.0, %v5830
      %v5832 = vpop.f32.mrb[0].mxu0
      %v5833 = vpop.f32.mrb[0].mxu0
      %v5834 = vadd.f32 0.0, %v5833
      %v5835 = vpop.f32.mrb[0].mxu0
      %5836 = vdwg.mxu0
      %v5837 = vadd.f32 %v5493, %v5679
      %v5838 = vadd.f32 %v5494, %v5682
      %v5839 = vadd.f32 %v5495, %v5687
      %v5840 = vadd.f32 %v5496, %v5690
      %v5841 = vadd.f32 %v5497, %v5695
      %v5842 = vadd.f32 %v5498, %v5698
      %v5843 = vadd.f32 %v5499, %v5703
      %v5844 = vadd.f32 %v5500, %v5706
      %v5845 = vadd.f32 %v5501, %v5711
      %v5846 = vadd.f32 %v5502, %v5714
      %v5847 = vadd.f32 %v5503, %v5719
      %v5848 = vadd.f32 %v5504, %v5722
      %v5849 = vadd.f32 %v5505, %v5727
      %v5850 = vadd.f32 %v5506, %v5730
      %v5851 = vadd.f32 %v5507, %v5735
      %v5852 = vadd.f32 %v5508, %v5738
      %v5853 = vadd.f32 %v5509, %v5743
      %v5854 = vadd.f32 %v5510, %v5746
      %v5855 = vadd.f32 %v5511, %v5751
      %v5856 = vadd.f32 %v5512, %v5754
      %v5857 = vadd.f32 %v5513, %v5759
      %v5858 = vadd.f32 %v5514, %v5762
      %v5859 = vadd.f32 %v5515, %v5767
      %v5860 = vadd.f32 %v5516, %v5770
      %v5861 = vadd.f32 %v5517, %v5775
      %v5862 = vadd.f32 %v5518, %v5778
      %v5863 = vadd.f32 %v5519, %v5783
      %v5864 = vadd.f32 %v5520, %v5786
      %v5865 = vadd.f32 %v5521, %v5791
      %v5866 = vadd.f32 %v5522, %v5794
      %v5867 = vadd.f32 %v5523, %v5799
      %v5868 = vadd.f32 %v5524, %v5802
      %v5869 = vadd.f32 %v5525, %v5807
      %v5870 = vadd.f32 %v5526, %v5810
      %v5871 = vadd.f32 %v5527, %v5815
      %v5872 = vadd.f32 %v5528, %v5818
      %v5873 = vadd.f32 %v5529, %v5823
      %v5874 = vadd.f32 %v5530, %v5826
      %v5875 = vadd.f32 %v5531, %v5831
      %v5876 = vadd.f32 %v5532, %v5834
      %s5877 = scalar_lea.vmem %s3, 8
      %v5878 = vld [vmem:[%s5877] sm:$0x3]
      %vm5879 = vsmask.f32 5376
      %v5880 = vrot.slane %v4528, 2
      %v5881 = vrot.slane %v4524, 3
      %v5882 = vor.u32 %v5880, %v5881
      %v5883 = vrot.slane %v4536, 2
      %v5884 = vrot.slane %v4532, 3
      %v5885 = vor.u32 %v5883, %v5884
      %v5886 = vsel %vm5879, %v5882, %v5885
      %v5887 = vrot.slane %v4544, 2
      %v5888 = vrot.slane %v4540, 3
      %v5889 = vor.u32 %v5887, %v5888
      %v5890 = vsel %vm5879, %v5885, %v5889
      %v5891 = vrot.slane %v4552, 2
      %v5892 = vrot.slane %v4548, 3
      %v5893 = vor.u32 %v5891, %v5892
      %v5894 = vsel %vm5879, %v5889, %v5893
      %v5895 = vrot.slane %v4560, 2
      %v5896 = vrot.slane %v4556, 3
      %v5897 = vor.u32 %v5895, %v5896
      %v5898 = vsel %vm5879, %v5893, %v5897
      %v5899 = vrot.slane %v4568, 2
      %v5900 = vrot.slane %v4564, 3
      %v5901 = vor.u32 %v5899, %v5900
      %v5902 = vsel %vm5879, %v5897, %v5901
      %v5903 = vrot.slane %v4576, 2
      %v5904 = vrot.slane %v4572, 3
      %v5905 = vor.u32 %v5903, %v5904
      %v5906 = vsel %vm5879, %v5901, %v5905
      %v5907 = vrot.slane %v4584, 2
      %v5908 = vrot.slane %v4580, 3
      %v5909 = vor.u32 %v5907, %v5908
      %v5910 = vsel %vm5879, %v5905, %v5909
      %v5911 = vrot.slane %v4592, 2
      %v5912 = vrot.slane %v4588, 3
      %v5913 = vor.u32 %v5911, %v5912
      %v5914 = vsel %vm5879, %v5909, %v5913
      %v5915 = vrot.slane %v4600, 2
      %v5916 = vrot.slane %v4596, 3
      %v5917 = vor.u32 %v5915, %v5916
      %v5918 = vsel %vm5879, %v5913, %v5917
      %v5919 = vrot.slane %v4608, 2
      %v5920 = vrot.slane %v4604, 3
      %v5921 = vor.u32 %v5919, %v5920
      %v5922 = vsel %vm5879, %v5917, %v5921
      %v5923 = vrot.slane %v4616, 2
      %v5924 = vrot.slane %v4612, 3
      %v5925 = vor.u32 %v5923, %v5924
      %v5926 = vsel %vm5879, %v5921, %v5925
      %v5927 = vrot.slane %v4624, 2
      %v5928 = vrot.slane %v4620, 3
      %v5929 = vor.u32 %v5927, %v5928
      %v5930 = vsel %vm5879, %v5925, %v5929
      %v5931 = vrot.slane %v4632, 2
      %v5932 = vrot.slane %v4628, 3
      %v5933 = vor.u32 %v5931, %v5932
      %v5934 = vsel %vm5879, %v5929, %v5933
      %v5935 = vrot.slane %v4640, 2
      %v5936 = vrot.slane %v4636, 3
      %v5937 = vor.u32 %v5935, %v5936
      %v5938 = vsel %vm5879, %v5933, %v5937
      %v5939 = vrot.slane %v4648, 2
      %v5940 = vrot.slane %v4644, 3
      %v5941 = vor.u32 %v5939, %v5940
      %v5942 = vsel %vm5879, %v5937, %v5941
      %v5943 = vrot.slane %v4656, 2
      %v5944 = vrot.slane %v4652, 3
      %v5945 = vor.u32 %v5943, %v5944
      %v5946 = vsel %vm5879, %v5941, %v5945
      %v5947 = vrot.slane %v4664, 2
      %v5948 = vrot.slane %v4660, 3
      %v5949 = vor.u32 %v5947, %v5948
      %v5950 = vsel %vm5879, %v5945, %v5949
      %v5951 = vrot.slane %v4672, 2
      %v5952 = vrot.slane %v4668, 3
      %v5953 = vor.u32 %v5951, %v5952
      %v5954 = vsel %vm5879, %v5949, %v5953
      %v5956 = vshrl.u32 %v5533, 16
      %v5958 = vrot.slane %v5956, 2
      %v5959 = vshll.u32 %v5533, 16
      %v5961 = vrot.slane %v5959, 3
      %v5962 = vor.u32 %v5958, %v5961
      %v5963 = vsel %vm5879, %v5953, %v5962
      %v5965 = vshrl.u32 %v5534, 16
      %v5967 = vrot.slane %v5965, 2
      %v5968 = vshll.u32 %v5534, 16
      %v5970 = vrot.slane %v5968, 3
      %v5971 = vor.u32 %v5967, %v5970
      %v5972 = vsel %vm5879, %v5962, %v5971
      %v5974 = vsel %vm454, %v5886, 0
      %v5977 = vsel %vm454, %v5890, 0
      %v5980 = vsel %vm454, %v5894, 0
      %v5983 = vsel %vm454, %v5898, 0
      %v5986 = vsel %vm454, %v5902, 0
      %v5989 = vsel %vm454, %v5906, 0
      %v5992 = vsel %vm454, %v5910, 0
      %v5995 = vsel %vm454, %v5914, 0
      %v5998 = vsel %vm454, %v5918, 0
      %v6001 = vsel %vm454, %v5922, 0
      %v6004 = vsel %vm454, %v5926, 0
      %v6007 = vsel %vm454, %v5930, 0
      %v6010 = vsel %vm454, %v5934, 0
      %v6013 = vsel %vm454, %v5938, 0
      %v6016 = vsel %vm454, %v5942, 0
      %v6019 = vsel %vm454, %v5946, 0
      %v6022 = vsel %vm454, %v5950, 0
      %v6025 = vsel %vm454, %v5954, 0
      %v6028 = vsel %vm454, %v5963, 0
      %v6031 = vsel %vm454, %v5972, 0
      %v6034 = vsel %vm527, %v5878, 0
      %6036 = vmatprep.subr.bf16.mxu0 0
      %6037 = vmatpush1.bf16.msra.mxu0 %v6034
      %6038 = vmatprep.subr.bf16.mxu0 0
      %6039 = vmatpush1.bf16.msra.mxu0 0
      %6040 = vmatprep.subr.bf16.mxu0 0
      %6041 = vmatpush1.bf16.msra.mxu0 0
      %6042 = vmatprep.subr.bf16.mxu0 0
      %6043 = vmatpush1.bf16.msra.mxu0 0
      %6044 = vmatprep.subr.bf16.mxu0 0
      %6045 = vmatpush1.bf16.msra.mxu0 0
      %6046 = vmatprep.subr.bf16.mxu0 0
      %6047 = vmatpush1.bf16.msra.mxu0 0
      %6048 = vmatprep.subr.bf16.mxu0 0
      %6049 = vmatpush1.bf16.msra.mxu0 0
      %6050 = vmatprep.subr.bf16.mxu0 0
      %6051 = vmatpush1.bf16.msra.mxu0 0
      %6052 = vmatprep.subr.bf16.mxu0 0
      %6053 = vmatpush1.bf16.msra.mxu0 0
      %6054 = vmatprep.subr.bf16.mxu0 0
      %6055 = vmatpush1.bf16.msra.mxu0 0
      %6056 = vmatprep.subr.bf16.mxu0 0
      %6057 = vmatpush1.bf16.msra.mxu0 0
      %6058 = vmatprep.subr.bf16.mxu0 0
      %6059 = vmatpush1.bf16.msra.mxu0 0
      %6060 = vmatprep.subr.bf16.mxu0 0
      %6061 = vmatpush1.bf16.msra.mxu0 0
      %6062 = vmatprep.subr.bf16.mxu0 0
      %6063 = vmatpush1.bf16.msra.mxu0 0
      %6064 = vmatprep.subr.bf16.mxu0 0
      %6065 = vmatpush1.bf16.msra.mxu0 0
      %6066 = vmatprep.subr.bf16.mxu0 0
      %6067 = vmatpush1.bf16.msra.mxu0 0
      %6068 = vmatprep.mubr.bf16.mxu0 0
      %6069 = vmatmul.mubr.bf16.gmra.mrb[0].mxu0 %v5974
      %v6070 = vpop.f32.mrb[0].mxu0
      %v6071 = vadd.f32 0.0, %v6070
      %v6072 = vpop.f32.mrb[0].mxu0
      %v6073 = vpop.f32.mrb[0].mxu0
      %v6074 = vadd.f32 0.0, %v6073
      %v6075 = vpop.f32.mrb[0].mxu0
      %6076 = vmatprep.mubr.bf16.mxu0 0
      %6077 = vmatmul.mubr.bf16.gmra.mrb[0].mxu0 %v5977
      %v6078 = vpop.f32.mrb[0].mxu0
      %v6079 = vadd.f32 0.0, %v6078
      %v6080 = vpop.f32.mrb[0].mxu0
      %v6081 = vpop.f32.mrb[0].mxu0
      %v6082 = vadd.f32 0.0, %v6081
      %v6083 = vpop.f32.mrb[0].mxu0
      %6084 = vmatprep.mubr.bf16.mxu0 0
      %6085 = vmatmul.mubr.bf16.gmra.mrb[0].mxu0 %v5980
      %v6086 = vpop.f32.mrb[0].mxu0
      %v6087 = vadd.f32 0.0, %v6086
      %v6088 = vpop.f32.mrb[0].mxu0
      %v6089 = vpop.f32.mrb[0].mxu0
      %v6090 = vadd.f32 0.0, %v6089
      %v6091 = vpop.f32.mrb[0].mxu0
      %6092 = vmatprep.mubr.bf16.mxu0 0
      %6093 = vmatmul.mubr.bf16.gmra.mrb[0].mxu0 %v5983
      %v6094 = vpop.f32.mrb[0].mxu0
      %v6095 = vadd.f32 0.0, %v6094
      %v6096 = vpop.f32.mrb[0].mxu0
      %v6097 = vpop.f32.mrb[0].mxu0
      %v6098 = vadd.f32 0.0, %v6097
      %v6099 = vpop.f32.mrb[0].mxu0
      %6100 = vmatprep.mubr.bf16.mxu0 0
      %6101 = vmatmul.mubr.bf16.gmra.mrb[0].mxu0 %v5986
      %v6102 = vpop.f32.mrb[0].mxu0
      %v6103 = vadd.f32 0.0, %v6102
      %v6104 = vpop.f32.mrb[0].mxu0
      %v6105 = vpop.f32.mrb[0].mxu0
      %v6106 = vadd.f32 0.0, %v6105
      %v6107 = vpop.f32.mrb[0].mxu0
      %6108 = vmatprep.mubr.bf16.mxu0 0
      %6109 = vmatmul.mubr.bf16.gmra.mrb[0].mxu0 %v5989
      %v6110 = vpop.f32.mrb[0].mxu0
      %v6111 = vadd.f32 0.0, %v6110
      %v6112 = vpop.f32.mrb[0].mxu0
      %v6113 = vpop.f32.mrb[0].mxu0
      %v6114 = vadd.f32 0.0, %v6113
      %v6115 = vpop.f32.mrb[0].mxu0
      %6116 = vmatprep.mubr.bf16.mxu0 0
      %6117 = vmatmul.mubr.bf16.gmra.mrb[0].mxu0 %v5992
      %v6118 = vpop.f32.mrb[0].mxu0
      %v6119 = vadd.f32 0.0, %v6118
      %v6120 = vpop.f32.mrb[0].mxu0
      %v6121 = vpop.f32.mrb[0].mxu0
      %v6122 = vadd.f32 0.0, %v6121
      %v6123 = vpop.f32.mrb[0].mxu0
      %6124 = vmatprep.mubr.bf16.mxu0 0
      %6125 = vmatmul.mubr.bf16.gmra.mrb[0].mxu0 %v5995
      %v6126 = vpop.f32.mrb[0].mxu0
      %v6127 = vadd.f32 0.0, %v6126
      %v6128 = vpop.f32.mrb[0].mxu0
      %v6129 = vpop.f32.mrb[0].mxu0
      %v6130 = vadd.f32 0.0, %v6129
      %v6131 = vpop.f32.mrb[0].mxu0
      %6132 = vmatprep.mubr.bf16.mxu0 0
      %6133 = vmatmul.mubr.bf16.gmra.mrb[0].mxu0 %v5998
      %v6134 = vpop.f32.mrb[0].mxu0
      %v6135 = vadd.f32 0.0, %v6134
      %v6136 = vpop.f32.mrb[0].mxu0
      %v6137 = vpop.f32.mrb[0].mxu0
      %v6138 = vadd.f32 0.0, %v6137
      %v6139 = vpop.f32.mrb[0].mxu0
      %6140 = vmatprep.mubr.bf16.mxu0 0
      %6141 = vmatmul.mubr.bf16.gmra.mrb[0].mxu0 %v6001
      %v6142 = vpop.f32.mrb[0].mxu0
      %v6143 = vadd.f32 0.0, %v6142
      %v6144 = vpop.f32.mrb[0].mxu0
      %v6145 = vpop.f32.mrb[0].mxu0
      %v6146 = vadd.f32 0.0, %v6145
      %v6147 = vpop.f32.mrb[0].mxu0
      %6148 = vmatprep.mubr.bf16.mxu0 0
      %6149 = vmatmul.mubr.bf16.gmra.mrb[0].mxu0 %v6004
      %v6150 = vpop.f32.mrb[0].mxu0
      %v6151 = vadd.f32 0.0, %v6150
      %v6152 = vpop.f32.mrb[0].mxu0
      %v6153 = vpop.f32.mrb[0].mxu0
      %v6154 = vadd.f32 0.0, %v6153
      %v6155 = vpop.f32.mrb[0].mxu0
      %6156 = vmatprep.mubr.bf16.mxu0 0
      %6157 = vmatmul.mubr.bf16.gmra.mrb[0].mxu0 %v6007
      %v6158 = vpop.f32.mrb[0].mxu0
      %v6159 = vadd.f32 0.0, %v6158
      %v6160 = vpop.f32.mrb[0].mxu0
      %v6161 = vpop.f32.mrb[0].mxu0
      %v6162 = vadd.f32 0.0, %v6161
      %v6163 = vpop.f32.mrb[0].mxu0
      %6164 = vmatprep.mubr.bf16.mxu0 0
      %6165 = vmatmul.mubr.bf16.gmra.mrb[0].mxu0 %v6010
      %v6166 = vpop.f32.mrb[0].mxu0
      %v6167 = vadd.f32 0.0, %v6166
      %v6168 = vpop.f32.mrb[0].mxu0
      %v6169 = vpop.f32.mrb[0].mxu0
      %v6170 = vadd.f32 0.0, %v6169
      %v6171 = vpop.f32.mrb[0].mxu0
      %6172 = vmatprep.mubr.bf16.mxu0 0
      %6173 = vmatmul.mubr.bf16.gmra.mrb[0].mxu0 %v6013
      %v6174 = vpop.f32.mrb[0].mxu0
      %v6175 = vadd.f32 0.0, %v6174
      %v6176 = vpop.f32.mrb[0].mxu0
      %v6177 = vpop.f32.mrb[0].mxu0
      %v6178 = vadd.f32 0.0, %v6177
      %v6179 = vpop.f32.mrb[0].mxu0
      %6180 = vmatprep.mubr.bf16.mxu0 0
      %6181 = vmatmul.mubr.bf16.gmra.mrb[0].mxu0 %v6016
      %v6182 = vpop.f32.mrb[0].mxu0
      %v6183 = vadd.f32 0.0, %v6182
      %v6184 = vpop.f32.mrb[0].mxu0
      %v6185 = vpop.f32.mrb[0].mxu0
      %v6186 = vadd.f32 0.0, %v6185
      %v6187 = vpop.f32.mrb[0].mxu0
      %6188 = vmatprep.mubr.bf16.mxu0 0
      %6189 = vmatmul.mubr.bf16.gmra.mrb[0].mxu0 %v6019
      %v6190 = vpop.f32.mrb[0].mxu0
      %v6191 = vadd.f32 0.0, %v6190
      %v6192 = vpop.f32.mrb[0].mxu0
      %v6193 = vpop.f32.mrb[0].mxu0
      %v6194 = vadd.f32 0.0, %v6193
      %v6195 = vpop.f32.mrb[0].mxu0
      %6196 = vmatprep.mubr.bf16.mxu0 0
      %6197 = vmatmul.mubr.bf16.gmra.mrb[0].mxu0 %v6022
      %v6198 = vpop.f32.mrb[0].mxu0
      %v6199 = vadd.f32 0.0, %v6198
      %v6200 = vpop.f32.mrb[0].mxu0
      %v6201 = vpop.f32.mrb[0].mxu0
      %v6202 = vadd.f32 0.0, %v6201
      %v6203 = vpop.f32.mrb[0].mxu0
      %6204 = vmatprep.mubr.bf16.mxu0 0
      %6205 = vmatmul.mubr.bf16.gmra.mrb[0].mxu0 %v6025
      %v6206 = vpop.f32.mrb[0].mxu0
      %v6207 = vadd.f32 0.0, %v6206
      %v6208 = vpop.f32.mrb[0].mxu0
      %v6209 = vpop.f32.mrb[0].mxu0
      %v6210 = vadd.f32 0.0, %v6209
      %v6211 = vpop.f32.mrb[0].mxu0
      %6212 = vmatprep.mubr.bf16.mxu0 0
      %6213 = vmatmul.mubr.bf16.gmra.mrb[0].mxu0 %v6028
      %v6214 = vpop.f32.mrb[0].mxu0
      %v6215 = vadd.f32 0.0, %v6214
      %v6216 = vpop.f32.mrb[0].mxu0
      %v6217 = vpop.f32.mrb[0].mxu0
      %v6218 = vadd.f32 0.0, %v6217
      %v6219 = vpop.f32.mrb[0].mxu0
      %6220 = vmatprep.mubr.bf16.mxu0 0
      %6221 = vmatmul.mubr.bf16.gmra.mrb[0].mxu0 %v6031
      %v6222 = vpop.f32.mrb[0].mxu0
      %v6223 = vadd.f32 0.0, %v6222
      %v6224 = vpop.f32.mrb[0].mxu0
      %v6225 = vpop.f32.mrb[0].mxu0
      %v6226 = vadd.f32 0.0, %v6225
      %v6227 = vpop.f32.mrb[0].mxu0
      %6228 = vdwg.mxu0
      %v6229 = vadd.f32 %v5837, %v6071
      %v6230 = vadd.f32 %v5838, %v6074
      %v6231 = vadd.f32 %v5839, %v6079
      %v6232 = vadd.f32 %v5840, %v6082
      %v6233 = vadd.f32 %v5841, %v6087
      %v6234 = vadd.f32 %v5842, %v6090
      %v6235 = vadd.f32 %v5843, %v6095
      %v6236 = vadd.f32 %v5844, %v6098
      %v6237 = vadd.f32 %v5845, %v6103
      %v6238 = vadd.f32 %v5846, %v6106
      %v6239 = vadd.f32 %v5847, %v6111
      %v6240 = vadd.f32 %v5848, %v6114
      %v6241 = vadd.f32 %v5849, %v6119
      %v6242 = vadd.f32 %v5850, %v6122
      %v6243 = vadd.f32 %v5851, %v6127
      %v6244 = vadd.f32 %v5852, %v6130
      %v6245 = vadd.f32 %v5853, %v6135
      %v6246 = vadd.f32 %v5854, %v6138
      %v6247 = vadd.f32 %v5855, %v6143
      %v6248 = vadd.f32 %v5856, %v6146
      %v6249 = vadd.f32 %v5857, %v6151
      %v6250 = vadd.f32 %v5858, %v6154
      %v6251 = vadd.f32 %v5859, %v6159
      %v6252 = vadd.f32 %v5860, %v6162
      %v6253 = vadd.f32 %v5861, %v6167
      %v6254 = vadd.f32 %v5862, %v6170
      %v6255 = vadd.f32 %v5863, %v6175
      %v6256 = vadd.f32 %v5864, %v6178
      %v6257 = vadd.f32 %v5865, %v6183
      %v6258 = vadd.f32 %v5866, %v6186
      %v6259 = vadd.f32 %v5867, %v6191
      %v6260 = vadd.f32 %v5868, %v6194
      %v6261 = vadd.f32 %v5869, %v6199
      %v6262 = vadd.f32 %v5870, %v6202
      %v6263 = vadd.f32 %v5871, %v6207
      %v6264 = vadd.f32 %v5872, %v6210
      %v6265 = vadd.f32 %v5873, %v6215
      %v6266 = vadd.f32 %v5874, %v6218
      %v6267 = vadd.f32 %v5875, %v6223
      %v6268 = vadd.f32 %v5876, %v6226
      %s6269 = scalar_lea.vmem %s3, 10
      %v6270 = vld [vmem:[%s6269] sm:$0x3]
      %vm6271 = vcmask 1044480
      %v6272 = vrot.slane %v4492, 3
      %v6273 = vrot.slane %v4493, 3
      %v6274 = vsel %vm6271, %v6272, %v6273
      %v6275 = vrot.slane %v4494, 3
      %v6276 = vsel %vm6271, %v6273, %v6275
      %v6277 = vrot.slane %v4495, 3
      %v6278 = vsel %vm6271, %v6275, %v6277
      %v6279 = vrot.slane %v4496, 3
      %v6280 = vsel %vm6271, %v6277, %v6279
      %v6281 = vrot.slane %v4497, 3
      %v6282 = vsel %vm6271, %v6279, %v6281
      %v6283 = vrot.slane %v4498, 3
      %v6284 = vsel %vm6271, %v6281, %v6283
      %v6285 = vrot.slane %v4499, 3
      %v6286 = vsel %vm6271, %v6283, %v6285
      %v6287 = vrot.slane %v4500, 3
      %v6288 = vsel %vm6271, %v6285, %v6287
      %v6289 = vrot.slane %v4501, 3
      %v6290 = vsel %vm6271, %v6287, %v6289
      %v6291 = vrot.slane %v4502, 3
      %v6292 = vsel %vm6271, %v6289, %v6291
      %v6293 = vrot.slane %v4503, 3
      %v6294 = vsel %vm6271, %v6291, %v6293
      %v6295 = vrot.slane %v4504, 3
      %v6296 = vsel %vm6271, %v6293, %v6295
      %v6297 = vrot.slane %v4505, 3
      %v6298 = vsel %vm6271, %v6295, %v6297
      %v6299 = vrot.slane %v4506, 3
      %v6300 = vsel %vm6271, %v6297, %v6299
      %v6301 = vrot.slane %v4507, 3
      %v6302 = vsel %vm6271, %v6299, %v6301
      %v6303 = vrot.slane %v4508, 3
      %v6304 = vsel %vm6271, %v6301, %v6303
      %v6305 = vrot.slane %v4509, 3
      %v6306 = vsel %vm6271, %v6303, %v6305
      %v6307 = vrot.slane %v4510, 3
      %v6308 = vsel %vm6271, %v6305, %v6307
      %v6309 = vrot.slane %v5533, 3
      %v6310 = vsel %vm6271, %v6307, %v6309
      %v6311 = vrot.slane %v5534, 3
      %v6312 = vsel %vm6271, %v6309, %v6311
      %v6314 = vsel %vm454, %v6274, 0
      %v6317 = vsel %vm454, %v6276, 0
      %v6320 = vsel %vm454, %v6278, 0
      %v6323 = vsel %vm454, %v6280, 0
      %v6326 = vsel %vm454, %v6282, 0
      %v6329 = vsel %vm454, %v6284, 0
      %v6332 = vsel %vm454, %v6286, 0
      %v6335 = vsel %vm454, %v6288, 0
      %v6338 = vsel %vm454, %v6290, 0
      %v6341 = vsel %vm454, %v6292, 0
      %v6344 = vsel %vm454, %v6294, 0
      %v6347 = vsel %vm454, %v6296, 0
      %v6350 = vsel %vm454, %v6298, 0
      %v6353 = vsel %vm454, %v6300, 0
      %v6356 = vsel %vm454, %v6302, 0
      %v6359 = vsel %vm454, %v6304, 0
      %v6362 = vsel %vm454, %v6306, 0
      %v6365 = vsel %vm454, %v6308, 0
      %v6368 = vsel %vm454, %v6310, 0
      %v6371 = vsel %vm454, %v6312, 0
      %v6374 = vsel %vm527, %v6270, 0
      %6376 = vmatprep.subr.bf16.mxu0 0
      %6377 = vmatpush1.bf16.msra.mxu0 %v6374
      %6378 = vmatprep.subr.bf16.mxu0 0
      %6379 = vmatpush1.bf16.msra.mxu0 0
      %6380 = vmatprep.subr.bf16.mxu0 0
      %6381 = vmatpush1.bf16.msra.mxu0 0
      %6382 = vmatprep.subr.bf16.mxu0 0
      %6383 = vmatpush1.bf16.msra.mxu0 0
      %6384 = vmatprep.subr.bf16.mxu0 0
      %6385 = vmatpush1.bf16.msra.mxu0 0
      %6386 = vmatprep.subr.bf16.mxu0 0
      %6387 = vmatpush1.bf16.msra.mxu0 0
      %6388 = vmatprep.subr.bf16.mxu0 0
      %6389 = vmatpush1.bf16.msra.mxu0 0
      %6390 = vmatprep.subr.bf16.mxu0 0
      %6391 = vmatpush1.bf16.msra.mxu0 0
      %6392 = vmatprep.subr.bf16.mxu0 0
      %6393 = vmatpush1.bf16.msra.mxu0 0
      %6394 = vmatprep.subr.bf16.mxu0 0
      %6395 = vmatpush1.bf16.msra.mxu0 0
      %6396 = vmatprep.subr.bf16.mxu0 0
      %6397 = vmatpush1.bf16.msra.mxu0 0
      %6398 = vmatprep.subr.bf16.mxu0 0
      %6399 = vmatpush1.bf16.msra.mxu0 0
      %6400 = vmatprep.subr.bf16.mxu0 0
      %6401 = vmatpush1.bf16.msra.mxu0 0
      %6402 = vmatprep.subr.bf16.mxu0 0
      %6403 = vmatpush1.bf16.msra.mxu0 0
      %6404 = vmatprep.subr.bf16.mxu0 0
      %6405 = vmatpush1.bf16.msra.mxu0 0
      %6406 = vmatprep.subr.bf16.mxu0 0
      %6407 = vmatpush1.bf16.msra.mxu0 0
      %6408 = vmatprep.mubr.bf16.mxu0 0
      %6409 = vmatmul.mubr.bf16.gmra.mrb[0].mxu0 %v6314
      %v6410 = vpop.f32.mrb[0].mxu0
      %v6411 = vadd.f32 0.0, %v6410
      %v6412 = vpop.f32.mrb[0].mxu0
      %v6413 = vpop.f32.mrb[0].mxu0
      %v6414 = vadd.f32 0.0, %v6413
      %v6415 = vpop.f32.mrb[0].mxu0
      %6416 = vmatprep.mubr.bf16.mxu0 0
      %6417 = vmatmul.mubr.bf16.gmra.mrb[0].mxu0 %v6317
      %v6418 = vpop.f32.mrb[0].mxu0
      %v6419 = vadd.f32 0.0, %v6418
      %v6420 = vpop.f32.mrb[0].mxu0
      %v6421 = vpop.f32.mrb[0].mxu0
      %v6422 = vadd.f32 0.0, %v6421
      %v6423 = vpop.f32.mrb[0].mxu0
      %6424 = vmatprep.mubr.bf16.mxu0 0
      %6425 = vmatmul.mubr.bf16.gmra.mrb[0].mxu0 %v6320
      %v6426 = vpop.f32.mrb[0].mxu0
      %v6427 = vadd.f32 0.0, %v6426
      %v6428 = vpop.f32.mrb[0].mxu0
      %v6429 = vpop.f32.mrb[0].mxu0
      %v6430 = vadd.f32 0.0, %v6429
      %v6431 = vpop.f32.mrb[0].mxu0
      %6432 = vmatprep.mubr.bf16.mxu0 0
      %6433 = vmatmul.mubr.bf16.gmra.mrb[0].mxu0 %v6323
      %v6434 = vpop.f32.mrb[0].mxu0
      %v6435 = vadd.f32 0.0, %v6434
      %v6436 = vpop.f32.mrb[0].mxu0
      %v6437 = vpop.f32.mrb[0].mxu0
      %v6438 = vadd.f32 0.0, %v6437
      %v6439 = vpop.f32.mrb[0].mxu0
      %6440 = vmatprep.mubr.bf16.mxu0 0
      %6441 = vmatmul.mubr.bf16.gmra.mrb[0].mxu0 %v6326
      %v6442 = vpop.f32.mrb[0].mxu0
      %v6443 = vadd.f32 0.0, %v6442
      %v6444 = vpop.f32.mrb[0].mxu0
      %v6445 = vpop.f32.mrb[0].mxu0
      %v6446 = vadd.f32 0.0, %v6445
      %v6447 = vpop.f32.mrb[0].mxu0
      %6448 = vmatprep.mubr.bf16.mxu0 0
      %6449 = vmatmul.mubr.bf16.gmra.mrb[0].mxu0 %v6329
      %v6450 = vpop.f32.mrb[0].mxu0
      %v6451 = vadd.f32 0.0, %v6450
      %v6452 = vpop.f32.mrb[0].mxu0
      %v6453 = vpop.f32.mrb[0].mxu0
      %v6454 = vadd.f32 0.0, %v6453
      %v6455 = vpop.f32.mrb[0].mxu0
      %6456 = vmatprep.mubr.bf16.mxu0 0
      %6457 = vmatmul.mubr.bf16.gmra.mrb[0].mxu0 %v6332
      %v6458 = vpop.f32.mrb[0].mxu0
      %v6459 = vadd.f32 0.0, %v6458
      %v6460 = vpop.f32.mrb[0].mxu0
      %v6461 = vpop.f32.mrb[0].mxu0
      %v6462 = vadd.f32 0.0, %v6461
      %v6463 = vpop.f32.mrb[0].mxu0
      %6464 = vmatprep.mubr.bf16.mxu0 0
      %6465 = vmatmul.mubr.bf16.gmra.mrb[0].mxu0 %v6335
      %v6466 = vpop.f32.mrb[0].mxu0
      %v6467 = vadd.f32 0.0, %v6466
      %v6468 = vpop.f32.mrb[0].mxu0
      %v6469 = vpop.f32.mrb[0].mxu0
      %v6470 = vadd.f32 0.0, %v6469
      %v6471 = vpop.f32.mrb[0].mxu0
      %6472 = vmatprep.mubr.bf16.mxu0 0
      %6473 = vmatmul.mubr.bf16.gmra.mrb[0].mxu0 %v6338
      %v6474 = vpop.f32.mrb[0].mxu0
      %v6475 = vadd.f32 0.0, %v6474
      %v6476 = vpop.f32.mrb[0].mxu0
      %v6477 = vpop.f32.mrb[0].mxu0
      %v6478 = vadd.f32 0.0, %v6477
      %v6479 = vpop.f32.mrb[0].mxu0
      %6480 = vmatprep.mubr.bf16.mxu0 0
      %6481 = vmatmul.mubr.bf16.gmra.mrb[0].mxu0 %v6341
      %v6482 = vpop.f32.mrb[0].mxu0
      %v6483 = vadd.f32 0.0, %v6482
      %v6484 = vpop.f32.mrb[0].mxu0
      %v6485 = vpop.f32.mrb[0].mxu0
      %v6486 = vadd.f32 0.0, %v6485
      %v6487 = vpop.f32.mrb[0].mxu0
      %6488 = vmatprep.mubr.bf16.mxu0 0
      %6489 = vmatmul.mubr.bf16.gmra.mrb[0].mxu0 %v6344
      %v6490 = vpop.f32.mrb[0].mxu0
      %v6491 = vadd.f32 0.0, %v6490
      %v6492 = vpop.f32.mrb[0].mxu0
      %v6493 = vpop.f32.mrb[0].mxu0
      %v6494 = vadd.f32 0.0, %v6493
      %v6495 = vpop.f32.mrb[0].mxu0
      %6496 = vmatprep.mubr.bf16.mxu0 0
      %6497 = vmatmul.mubr.bf16.gmra.mrb[0].mxu0 %v6347
      %v6498 = vpop.f32.mrb[0].mxu0
      %v6499 = vadd.f32 0.0, %v6498
      %v6500 = vpop.f32.mrb[0].mxu0
      %v6501 = vpop.f32.mrb[0].mxu0
      %v6502 = vadd.f32 0.0, %v6501
      %v6503 = vpop.f32.mrb[0].mxu0
      %6504 = vmatprep.mubr.bf16.mxu0 0
      %6505 = vmatmul.mubr.bf16.gmra.mrb[0].mxu0 %v6350
      %v6506 = vpop.f32.mrb[0].mxu0
      %v6507 = vadd.f32 0.0, %v6506
      %v6508 = vpop.f32.mrb[0].mxu0
      %v6509 = vpop.f32.mrb[0].mxu0
      %v6510 = vadd.f32 0.0, %v6509
      %v6511 = vpop.f32.mrb[0].mxu0
      %6512 = vmatprep.mubr.bf16.mxu0 0
      %6513 = vmatmul.mubr.bf16.gmra.mrb[0].mxu0 %v6353
      %v6514 = vpop.f32.mrb[0].mxu0
      %v6515 = vadd.f32 0.0, %v6514
      %v6516 = vpop.f32.mrb[0].mxu0
      %v6517 = vpop.f32.mrb[0].mxu0
      %v6518 = vadd.f32 0.0, %v6517
      %v6519 = vpop.f32.mrb[0].mxu0
      %6520 = vmatprep.mubr.bf16.mxu0 0
      %6521 = vmatmul.mubr.bf16.gmra.mrb[0].mxu0 %v6356
      %v6522 = vpop.f32.mrb[0].mxu0
      %v6523 = vadd.f32 0.0, %v6522
      %v6524 = vpop.f32.mrb[0].mxu0
      %v6525 = vpop.f32.mrb[0].mxu0
      %v6526 = vadd.f32 0.0, %v6525
      %v6527 = vpop.f32.mrb[0].mxu0
      %6528 = vmatprep.mubr.bf16.mxu0 0
      %6529 = vmatmul.mubr.bf16.gmra.mrb[0].mxu0 %v6359
      %v6530 = vpop.f32.mrb[0].mxu0
      %v6531 = vadd.f32 0.0, %v6530
      %v6532 = vpop.f32.mrb[0].mxu0
      %v6533 = vpop.f32.mrb[0].mxu0
      %v6534 = vadd.f32 0.0, %v6533
      %v6535 = vpop.f32.mrb[0].mxu0
      %6536 = vmatprep.mubr.bf16.mxu0 0
      %6537 = vmatmul.mubr.bf16.gmra.mrb[0].mxu0 %v6362
      %v6538 = vpop.f32.mrb[0].mxu0
      %v6539 = vadd.f32 0.0, %v6538
      %v6540 = vpop.f32.mrb[0].mxu0
      %v6541 = vpop.f32.mrb[0].mxu0
      %v6542 = vadd.f32 0.0, %v6541
      %v6543 = vpop.f32.mrb[0].mxu0
      %6544 = vmatprep.mubr.bf16.mxu0 0
      %6545 = vmatmul.mubr.bf16.gmra.mrb[0].mxu0 %v6365
      %v6546 = vpop.f32.mrb[0].mxu0
      %v6547 = vadd.f32 0.0, %v6546
      %v6548 = vpop.f32.mrb[0].mxu0
      %v6549 = vpop.f32.mrb[0].mxu0
      %v6550 = vadd.f32 0.0, %v6549
      %v6551 = vpop.f32.mrb[0].mxu0
      %6552 = vmatprep.mubr.bf16.mxu0 0
      %6553 = vmatmul.mubr.bf16.gmra.mrb[0].mxu0 %v6368
      %v6554 = vpop.f32.mrb[0].mxu0
      %v6555 = vadd.f32 0.0, %v6554
      %v6556 = vpop.f32.mrb[0].mxu0
      %v6557 = vpop.f32.mrb[0].mxu0
      %v6558 = vadd.f32 0.0, %v6557
      %v6559 = vpop.f32.mrb[0].mxu0
      %6560 = vmatprep.mubr.bf16.mxu0 0
      %6561 = vmatmul.mubr.bf16.gmra.mrb[0].mxu0 %v6371
      %v6562 = vpop.f32.mrb[0].mxu0
      %v6563 = vadd.f32 0.0, %v6562
      %v6564 = vpop.f32.mrb[0].mxu0
      %v6565 = vpop.f32.mrb[0].mxu0
      %v6566 = vadd.f32 0.0, %v6565
      %v6567 = vpop.f32.mrb[0].mxu0
      %6568 = vdwg.mxu0
      %v6569 = vadd.f32 %v6229, %v6411
      %v6570 = vadd.f32 %v6230, %v6414
      %v6571 = vadd.f32 %v6231, %v6419
      %v6572 = vadd.f32 %v6232, %v6422
      %v6573 = vadd.f32 %v6233, %v6427
      %v6574 = vadd.f32 %v6234, %v6430
      %v6575 = vadd.f32 %v6235, %v6435
      %v6576 = vadd.f32 %v6236, %v6438
      %v6577 = vadd.f32 %v6237, %v6443
      %v6578 = vadd.f32 %v6238, %v6446
      %v6579 = vadd.f32 %v6239, %v6451
      %v6580 = vadd.f32 %v6240, %v6454
      %v6581 = vadd.f32 %v6241, %v6459
      %v6582 = vadd.f32 %v6242, %v6462
      %v6583 = vadd.f32 %v6243, %v6467
      %v6584 = vadd.f32 %v6244, %v6470
      %v6585 = vadd.f32 %v6245, %v6475
      %v6586 = vadd.f32 %v6246, %v6478
      %v6587 = vadd.f32 %v6247, %v6483
      %v6588 = vadd.f32 %v6248, %v6486
      %v6589 = vadd.f32 %v6249, %v6491
      %v6590 = vadd.f32 %v6250, %v6494
      %v6591 = vadd.f32 %v6251, %v6499
      %v6592 = vadd.f32 %v6252, %v6502
      %v6593 = vadd.f32 %v6253, %v6507
      %v6594 = vadd.f32 %v6254, %v6510
      %v6595 = vadd.f32 %v6255, %v6515
      %v6596 = vadd.f32 %v6256, %v6518
      %v6597 = vadd.f32 %v6257, %v6523
      %v6598 = vadd.f32 %v6258, %v6526
      %v6599 = vadd.f32 %v6259, %v6531
      %v6600 = vadd.f32 %v6260, %v6534
      %v6601 = vadd.f32 %v6261, %v6539
      %v6602 = vadd.f32 %v6262, %v6542
      %v6603 = vadd.f32 %v6263, %v6547
      %v6604 = vadd.f32 %v6264, %v6550
      %v6605 = vadd.f32 %v6265, %v6555
      %v6606 = vadd.f32 %v6266, %v6558
      %v6607 = vadd.f32 %v6267, %v6563
      %v6608 = vadd.f32 %v6268, %v6566
      %v6609 = vpack.c.bf16 %v4451, %v4450
      %v6610 = vpack.c.bf16 %v4453, %v4452
      %v6611 = vpack.c.bf16 %v4455, %v4454
      %v6612 = vpack.c.bf16 %v4457, %v4456
      %v6613 = vpack.c.bf16 %v4459, %v4458
      %v6614 = vpack.c.bf16 %v4461, %v4460
      %v6615 = vpack.c.bf16 %v4463, %v4462
      %v6616 = vpack.c.bf16 %v4465, %v4464
      %v6617 = vpack.c.bf16 %v4467, %v4466
      %v6618 = vpack.c.bf16 %v4469, %v4468
      %v6619 = vpack.c.bf16 %v4471, %v4470
      %v6620 = vpack.c.bf16 %v4473, %v4472
      %v6621 = vpack.c.bf16 %v4475, %v4474
      %v6622 = vpack.c.bf16 %v4477, %v4476
      %v6623 = vpack.c.bf16 %v4479, %v4478
      %v6624 = vpack.c.bf16 %v4481, %v4480
      %v6625 = vpack.c.bf16 %v4483, %v4482
      %v6626 = vpack.c.bf16 %v4485, %v4484
      %v6627 = vpack.c.bf16 %v4487, %v4486
      %v6628 = vpack.c.bf16 %v4489, %v4488
      %s6629 = scalar_lea.vmem %s3, 12
      %v6630 = vld [vmem:[%s6629] sm:$0x3]
      %v6632 = vsel %vm454, %v6609, 0
      %v6635 = vsel %vm454, %v6610, 0
      %v6638 = vsel %vm454, %v6611, 0
      %v6641 = vsel %vm454, %v6612, 0
      %v6644 = vsel %vm454, %v6613, 0
      %v6647 = vsel %vm454, %v6614, 0
      %v6650 = vsel %vm454, %v6615, 0
      %v6653 = vsel %vm454, %v6616, 0
      %v6656 = vsel %vm454, %v6617, 0
      %v6659 = vsel %vm454, %v6618, 0
      %v6662 = vsel %vm454, %v6619, 0
      %v6665 = vsel %vm454, %v6620, 0
      %v6668 = vsel %vm454, %v6621, 0
      %v6671 = vsel %vm454, %v6622, 0
      %v6674 = vsel %vm454, %v6623, 0
      %v6677 = vsel %vm454, %v6624, 0
      %v6680 = vsel %vm454, %v6625, 0
      %v6683 = vsel %vm454, %v6626, 0
      %v6686 = vsel %vm454, %v6627, 0
      %v6689 = vsel %vm454, %v6628, 0
      %v6692 = vsel %vm527, %v6630, 0
      %6694 = vmatprep.subr.bf16.mxu0 0
      %6695 = vmatpush1.bf16.msra.mxu0 %v6692
      %6696 = vmatprep.subr.bf16.mxu0 0
      %6697 = vmatpush1.bf16.msra.mxu0 0
      %6698 = vmatprep.subr.bf16.mxu0 0
      %6699 = vmatpush1.bf16.msra.mxu0 0
      %6700 = vmatprep.subr.bf16.mxu0 0
      %6701 = vmatpush1.bf16.msra.mxu0 0
      %6702 = vmatprep.subr.bf16.mxu0 0
      %6703 = vmatpush1.bf16.msra.mxu0 0
      %6704 = vmatprep.subr.bf16.mxu0 0
      %6705 = vmatpush1.bf16.msra.mxu0 0
      %6706 = vmatprep.subr.bf16.mxu0 0
      %6707 = vmatpush1.bf16.msra.mxu0 0
      %6708 = vmatprep.subr.bf16.mxu0 0
      %6709 = vmatpush1.bf16.msra.mxu0 0
      %6710 = vmatprep.subr.bf16.mxu0 0
      %6711 = vmatpush1.bf16.msra.mxu0 0
      %6712 = vmatprep.subr.bf16.mxu0 0
      %6713 = vmatpush1.bf16.msra.mxu0 0
      %6714 = vmatprep.subr.bf16.mxu0 0
      %6715 = vmatpush1.bf16.msra.mxu0 0
      %6716 = vmatprep.subr.bf16.mxu0 0
      %6717 = vmatpush1.bf16.msra.mxu0 0
      %6718 = vmatprep.subr.bf16.mxu0 0
      %6719 = vmatpush1.bf16.msra.mxu0 0
      %6720 = vmatprep.subr.bf16.mxu0 0
      %6721 = vmatpush1.bf16.msra.mxu0 0
      %6722 = vmatprep.subr.bf16.mxu0 0
      %6723 = vmatpush1.bf16.msra.mxu0 0
      %6724 = vmatprep.subr.bf16.mxu0 0
      %6725 = vmatpush1.bf16.msra.mxu0 0
      %6726 = vmatprep.mubr.bf16.mxu0 0
      %6727 = vmatmul.mubr.bf16.gmra.mrb[0].mxu0 %v6632
      %v6728 = vpop.f32.mrb[0].mxu0
      %v6729 = vadd.f32 0.0, %v6728
      %v6730 = vpop.f32.mrb[0].mxu0
      %v6731 = vpop.f32.mrb[0].mxu0
      %v6732 = vadd.f32 0.0, %v6731
      %v6733 = vpop.f32.mrb[0].mxu0
      %6734 = vmatprep.mubr.bf16.mxu0 0
      %6735 = vmatmul.mubr.bf16.gmra.mrb[0].mxu0 %v6635
      %v6736 = vpop.f32.mrb[0].mxu0
      %v6737 = vadd.f32 0.0, %v6736
      %v6738 = vpop.f32.mrb[0].mxu0
      %v6739 = vpop.f32.mrb[0].mxu0
      %v6740 = vadd.f32 0.0, %v6739
      %v6741 = vpop.f32.mrb[0].mxu0
      %6742 = vmatprep.mubr.bf16.mxu0 0
      %6743 = vmatmul.mubr.bf16.gmra.mrb[0].mxu0 %v6638
      %v6744 = vpop.f32.mrb[0].mxu0
      %v6745 = vadd.f32 0.0, %v6744
      %v6746 = vpop.f32.mrb[0].mxu0
      %v6747 = vpop.f32.mrb[0].mxu0
      %v6748 = vadd.f32 0.0, %v6747
      %v6749 = vpop.f32.mrb[0].mxu0
      %6750 = vmatprep.mubr.bf16.mxu0 0
      %6751 = vmatmul.mubr.bf16.gmra.mrb[0].mxu0 %v6641
      %v6752 = vpop.f32.mrb[0].mxu0
      %v6753 = vadd.f32 0.0, %v6752
      %v6754 = vpop.f32.mrb[0].mxu0
      %v6755 = vpop.f32.mrb[0].mxu0
      %v6756 = vadd.f32 0.0, %v6755
      %v6757 = vpop.f32.mrb[0].mxu0
      %6758 = vmatprep.mubr.bf16.mxu0 0
      %6759 = vmatmul.mubr.bf16.gmra.mrb[0].mxu0 %v6644
      %v6760 = vpop.f32.mrb[0].mxu0
      %v6761 = vadd.f32 0.0, %v6760
      %v6762 = vpop.f32.mrb[0].mxu0
      %v6763 = vpop.f32.mrb[0].mxu0
      %v6764 = vadd.f32 0.0, %v6763
      %v6765 = vpop.f32.mrb[0].mxu0
      %6766 = vmatprep.mubr.bf16.mxu0 0
      %6767 = vmatmul.mubr.bf16.gmra.mrb[0].mxu0 %v6647
      %v6768 = vpop.f32.mrb[0].mxu0
      %v6769 = vadd.f32 0.0, %v6768
      %v6770 = vpop.f32.mrb[0].mxu0
      %v6771 = vpop.f32.mrb[0].mxu0
      %v6772 = vadd.f32 0.0, %v6771
      %v6773 = vpop.f32.mrb[0].mxu0
      %6774 = vmatprep.mubr.bf16.mxu0 0
      %6775 = vmatmul.mubr.bf16.gmra.mrb[0].mxu0 %v6650
      %v6776 = vpop.f32.mrb[0].mxu0
      %v6777 = vadd.f32 0.0, %v6776
      %v6778 = vpop.f32.mrb[0].mxu0
      %v6779 = vpop.f32.mrb[0].mxu0
      %v6780 = vadd.f32 0.0, %v6779
      %v6781 = vpop.f32.mrb[0].mxu0
      %6782 = vmatprep.mubr.bf16.mxu0 0
      %6783 = vmatmul.mubr.bf16.gmra.mrb[0].mxu0 %v6653
      %v6784 = vpop.f32.mrb[0].mxu0
      %v6785 = vadd.f32 0.0, %v6784
      %v6786 = vpop.f32.mrb[0].mxu0
      %v6787 = vpop.f32.mrb[0].mxu0
      %v6788 = vadd.f32 0.0, %v6787
      %v6789 = vpop.f32.mrb[0].mxu0
      %6790 = vmatprep.mubr.bf16.mxu0 0
      %6791 = vmatmul.mubr.bf16.gmra.mrb[0].mxu0 %v6656
      %v6792 = vpop.f32.mrb[0].mxu0
      %v6793 = vadd.f32 0.0, %v6792
      %v6794 = vpop.f32.mrb[0].mxu0
      %v6795 = vpop.f32.mrb[0].mxu0
      %v6796 = vadd.f32 0.0, %v6795
      %v6797 = vpop.f32.mrb[0].mxu0
      %6798 = vmatprep.mubr.bf16.mxu0 0
      %6799 = vmatmul.mubr.bf16.gmra.mrb[0].mxu0 %v6659
      %v6800 = vpop.f32.mrb[0].mxu0
      %v6801 = vadd.f32 0.0, %v6800
      %v6802 = vpop.f32.mrb[0].mxu0
      %v6803 = vpop.f32.mrb[0].mxu0
      %v6804 = vadd.f32 0.0, %v6803
      %v6805 = vpop.f32.mrb[0].mxu0
      %6806 = vmatprep.mubr.bf16.mxu0 0
      %6807 = vmatmul.mubr.bf16.gmra.mrb[0].mxu0 %v6662
      %v6808 = vpop.f32.mrb[0].mxu0
      %v6809 = vadd.f32 0.0, %v6808
      %v6810 = vpop.f32.mrb[0].mxu0
      %v6811 = vpop.f32.mrb[0].mxu0
      %v6812 = vadd.f32 0.0, %v6811
      %v6813 = vpop.f32.mrb[0].mxu0
      %6814 = vmatprep.mubr.bf16.mxu0 0
      %6815 = vmatmul.mubr.bf16.gmra.mrb[0].mxu0 %v6665
      %v6816 = vpop.f32.mrb[0].mxu0
      %v6817 = vadd.f32 0.0, %v6816
      %v6818 = vpop.f32.mrb[0].mxu0
      %v6819 = vpop.f32.mrb[0].mxu0
      %v6820 = vadd.f32 0.0, %v6819
      %v6821 = vpop.f32.mrb[0].mxu0
      %6822 = vmatprep.mubr.bf16.mxu0 0
      %6823 = vmatmul.mubr.bf16.gmra.mrb[0].mxu0 %v6668
      %v6824 = vpop.f32.mrb[0].mxu0
      %v6825 = vadd.f32 0.0, %v6824
      %v6826 = vpop.f32.mrb[0].mxu0
      %v6827 = vpop.f32.mrb[0].mxu0
      %v6828 = vadd.f32 0.0, %v6827
      %v6829 = vpop.f32.mrb[0].mxu0
      %6830 = vmatprep.mubr.bf16.mxu0 0
      %6831 = vmatmul.mubr.bf16.gmra.mrb[0].mxu0 %v6671
      %v6832 = vpop.f32.mrb[0].mxu0
      %v6833 = vadd.f32 0.0, %v6832
      %v6834 = vpop.f32.mrb[0].mxu0
      %v6835 = vpop.f32.mrb[0].mxu0
      %v6836 = vadd.f32 0.0, %v6835
      %v6837 = vpop.f32.mrb[0].mxu0
      %6838 = vmatprep.mubr.bf16.mxu0 0
      %6839 = vmatmul.mubr.bf16.gmra.mrb[0].mxu0 %v6674
      %v6840 = vpop.f32.mrb[0].mxu0
      %v6841 = vadd.f32 0.0, %v6840
      %v6842 = vpop.f32.mrb[0].mxu0
      %v6843 = vpop.f32.mrb[0].mxu0
      %v6844 = vadd.f32 0.0, %v6843
      %v6845 = vpop.f32.mrb[0].mxu0
      %6846 = vmatprep.mubr.bf16.mxu0 0
      %6847 = vmatmul.mubr.bf16.gmra.mrb[0].mxu0 %v6677
      %v6848 = vpop.f32.mrb[0].mxu0
      %v6849 = vadd.f32 0.0, %v6848
      %v6850 = vpop.f32.mrb[0].mxu0
      %v6851 = vpop.f32.mrb[0].mxu0
      %v6852 = vadd.f32 0.0, %v6851
      %v6853 = vpop.f32.mrb[0].mxu0
      %6854 = vmatprep.mubr.bf16.mxu0 0
      %6855 = vmatmul.mubr.bf16.gmra.mrb[0].mxu0 %v6680
      %v6856 = vpop.f32.mrb[0].mxu0
      %v6857 = vadd.f32 0.0, %v6856
      %v6858 = vpop.f32.mrb[0].mxu0
      %v6859 = vpop.f32.mrb[0].mxu0
      %v6860 = vadd.f32 0.0, %v6859
      %v6861 = vpop.f32.mrb[0].mxu0
      %6862 = vmatprep.mubr.bf16.mxu0 0
      %6863 = vmatmul.mubr.bf16.gmra.mrb[0].mxu0 %v6683
      %v6864 = vpop.f32.mrb[0].mxu0
      %v6865 = vadd.f32 0.0, %v6864
      %v6866 = vpop.f32.mrb[0].mxu0
      %v6867 = vpop.f32.mrb[0].mxu0
      %v6868 = vadd.f32 0.0, %v6867
      %v6869 = vpop.f32.mrb[0].mxu0
      %6870 = vmatprep.mubr.bf16.mxu0 0
      %6871 = vmatmul.mubr.bf16.gmra.mrb[0].mxu0 %v6686
      %v6872 = vpop.f32.mrb[0].mxu0
      %v6873 = vadd.f32 0.0, %v6872
      %v6874 = vpop.f32.mrb[0].mxu0
      %v6875 = vpop.f32.mrb[0].mxu0
      %v6876 = vadd.f32 0.0, %v6875
      %v6877 = vpop.f32.mrb[0].mxu0
      %6878 = vmatprep.mubr.bf16.mxu0 0
      %6879 = vmatmul.mubr.bf16.gmra.mrb[0].mxu0 %v6689
      %v6880 = vpop.f32.mrb[0].mxu0
      %v6881 = vadd.f32 0.0, %v6880
      %v6882 = vpop.f32.mrb[0].mxu0
      %v6883 = vpop.f32.mrb[0].mxu0
      %v6884 = vadd.f32 0.0, %v6883
      %v6885 = vpop.f32.mrb[0].mxu0
      %6886 = vdwg.mxu0
      %v6887 = vadd.f32 %v6569, %v6729
      %v6888 = vadd.f32 %v6570, %v6732
      %v6889 = vadd.f32 %v6571, %v6737
      %v6890 = vadd.f32 %v6572, %v6740
      %v6891 = vadd.f32 %v6573, %v6745
      %v6892 = vadd.f32 %v6574, %v6748
      %v6893 = vadd.f32 %v6575, %v6753
      %v6894 = vadd.f32 %v6576, %v6756
      %v6895 = vadd.f32 %v6577, %v6761
      %v6896 = vadd.f32 %v6578, %v6764
      %v6897 = vadd.f32 %v6579, %v6769
      %v6898 = vadd.f32 %v6580, %v6772
      %v6899 = vadd.f32 %v6581, %v6777
      %v6900 = vadd.f32 %v6582, %v6780
      %v6901 = vadd.f32 %v6583, %v6785
      %v6902 = vadd.f32 %v6584, %v6788
      %v6903 = vadd.f32 %v6585, %v6793
      %v6904 = vadd.f32 %v6586, %v6796
      %v6905 = vadd.f32 %v6587, %v6801
      %v6906 = vadd.f32 %v6588, %v6804
      %v6907 = vadd.f32 %v6589, %v6809
      %v6908 = vadd.f32 %v6590, %v6812
      %v6909 = vadd.f32 %v6591, %v6817
      %v6910 = vadd.f32 %v6592, %v6820
      %v6911 = vadd.f32 %v6593, %v6825
      %v6912 = vadd.f32 %v6594, %v6828
      %v6913 = vadd.f32 %v6595, %v6833
      %v6914 = vadd.f32 %v6596, %v6836
      %v6915 = vadd.f32 %v6597, %v6841
      %v6916 = vadd.f32 %v6598, %v6844
      %v6917 = vadd.f32 %v6599, %v6849
      %v6918 = vadd.f32 %v6600, %v6852
      %v6919 = vadd.f32 %v6601, %v6857
      %v6920 = vadd.f32 %v6602, %v6860
      %v6921 = vadd.f32 %v6603, %v6865
      %v6922 = vadd.f32 %v6604, %v6868
      %v6923 = vadd.f32 %v6605, %v6873
      %v6924 = vadd.f32 %v6606, %v6876
      %v6925 = vadd.f32 %v6607, %v6881
      %v6926 = vadd.f32 %v6608, %v6884
      %v6927 = vpack.c.bf16 %v4490, %v4490
      %s6928 = scalar_lea.vmem %s3, 14
      %v6929 = vld [vmem:[%s6928] sm:$0x3]
      %v6930 = vshrl.u32 %v6609, 16
      %v6932 = vshll.u32 %v6609, 16
      %v6934 = vrot.slane %v6932, 1
      %v6935 = vor.u32 %v6930, %v6934
      %v6936 = vshll.u32 %v6610, 16
      %v6938 = vrot.slane %v6936, 1
      %v6939 = vsel %vm4515, %v6935, %v6938
      %v6940 = vshrl.u32 %v6610, 16
      %v6942 = vor.u32 %v6940, %v6938
      %v6943 = vshll.u32 %v6611, 16
      %v6945 = vrot.slane %v6943, 1
      %v6946 = vsel %vm4515, %v6942, %v6945
      %v6947 = vshrl.u32 %v6611, 16
      %v6949 = vor.u32 %v6947, %v6945
      %v6950 = vshll.u32 %v6612, 16
      %v6952 = vrot.slane %v6950, 1
      %v6953 = vsel %vm4515, %v6949, %v6952
      %v6954 = vshrl.u32 %v6612, 16
      %v6956 = vor.u32 %v6954, %v6952
      %v6957 = vshll.u32 %v6613, 16
      %v6959 = vrot.slane %v6957, 1
      %v6960 = vsel %vm4515, %v6956, %v6959
      %v6961 = vshrl.u32 %v6613, 16
      %v6963 = vor.u32 %v6961, %v6959
      %v6964 = vshll.u32 %v6614, 16
      %v6966 = vrot.slane %v6964, 1
      %v6967 = vsel %vm4515, %v6963, %v6966
      %v6968 = vshrl.u32 %v6614, 16
      %v6970 = vor.u32 %v6968, %v6966
      %v6971 = vshll.u32 %v6615, 16
      %v6973 = vrot.slane %v6971, 1
      %v6974 = vsel %vm4515, %v6970, %v6973
      %v6975 = vshrl.u32 %v6615, 16
      %v6977 = vor.u32 %v6975, %v6973
      %v6978 = vshll.u32 %v6616, 16
      %v6980 = vrot.slane %v6978, 1
      %v6981 = vsel %vm4515, %v6977, %v6980
      %v6982 = vshrl.u32 %v6616, 16
      %v6984 = vor.u32 %v6982, %v6980
      %v6985 = vshll.u32 %v6617, 16
      %v6987 = vrot.slane %v6985, 1
      %v6988 = vsel %vm4515, %v6984, %v6987
      %v6989 = vshrl.u32 %v6617, 16
      %v6991 = vor.u32 %v6989, %v6987
      %v6992 = vshll.u32 %v6618, 16
      %v6994 = vrot.slane %v6992, 1
      %v6995 = vsel %vm4515, %v6991, %v6994
      %v6996 = vshrl.u32 %v6618, 16
      %v6998 = vor.u32 %v6996, %v6994
      %v6999 = vshll.u32 %v6619, 16
      %v7001 = vrot.slane %v6999, 1
      %v7002 = vsel %vm4515, %v6998, %v7001
      %v7003 = vshrl.u32 %v6619, 16
      %v7005 = vor.u32 %v7003, %v7001
      %v7006 = vshll.u32 %v6620, 16
      %v7008 = vrot.slane %v7006, 1
      %v7009 = vsel %vm4515, %v7005, %v7008
      %v7010 = vshrl.u32 %v6620, 16
      %v7012 = vor.u32 %v7010, %v7008
      %v7013 = vshll.u32 %v6621, 16
      %v7015 = vrot.slane %v7013, 1
      %v7016 = vsel %vm4515, %v7012, %v7015
      %v7017 = vshrl.u32 %v6621, 16
      %v7019 = vor.u32 %v7017, %v7015
      %v7020 = vshll.u32 %v6622, 16
      %v7022 = vrot.slane %v7020, 1
      %v7023 = vsel %vm4515, %v7019, %v7022
      %v7024 = vshrl.u32 %v6622, 16
      %v7026 = vor.u32 %v7024, %v7022
      %v7027 = vshll.u32 %v6623, 16
      %v7029 = vrot.slane %v7027, 1
      %v7030 = vsel %vm4515, %v7026, %v7029
      %v7031 = vshrl.u32 %v6623, 16
      %v7033 = vor.u32 %v7031, %v7029
      %v7034 = vshll.u32 %v6624, 16
      %v7036 = vrot.slane %v7034, 1
      %v7037 = vsel %vm4515, %v7033, %v7036
      %v7038 = vshrl.u32 %v6624, 16
      %v7040 = vor.u32 %v7038, %v7036
      %v7041 = vshll.u32 %v6625, 16
      %v7043 = vrot.slane %v7041, 1
      %v7044 = vsel %vm4515, %v7040, %v7043
      %v7045 = vshrl.u32 %v6625, 16
      %v7047 = vor.u32 %v7045, %v7043
      %v7048 = vshll.u32 %v6626, 16
      %v7050 = vrot.slane %v7048, 1
      %v7051 = vsel %vm4515, %v7047, %v7050
      %v7052 = vshrl.u32 %v6626, 16
      %v7054 = vor.u32 %v7052, %v7050
      %v7055 = vshll.u32 %v6627, 16
      %v7057 = vrot.slane %v7055, 1
      %v7058 = vsel %vm4515, %v7054, %v7057
      %v7059 = vshrl.u32 %v6627, 16
      %v7061 = vor.u32 %v7059, %v7057
      %v7062 = vshll.u32 %v6628, 16
      %v7064 = vrot.slane %v7062, 1
      %v7065 = vsel %vm4515, %v7061, %v7064
      %v7066 = vshrl.u32 %v6628, 16
      %v7068 = vor.u32 %v7066, %v7064
      %v7070 = vshll.u32 %v6927, 16
      %v7072 = vrot.slane %v7070, 1
      %v7073 = vsel %vm4515, %v7068, %v7072
      %v7075 = vsel %vm454, %v6939, 0
      %v7078 = vsel %vm454, %v6946, 0
      %v7081 = vsel %vm454, %v6953, 0
      %v7084 = vsel %vm454, %v6960, 0
      %v7087 = vsel %vm454, %v6967, 0
      %v7090 = vsel %vm454, %v6974, 0
      %v7093 = vsel %vm454, %v6981, 0
      %v7096 = vsel %vm454, %v6988, 0
      %v7099 = vsel %vm454, %v6995, 0
      %v7102 = vsel %vm454, %v7002, 0
      %v7105 = vsel %vm454, %v7009, 0
      %v7108 = vsel %vm454, %v7016, 0
      %v7111 = vsel %vm454, %v7023, 0
      %v7114 = vsel %vm454, %v7030, 0
      %v7117 = vsel %vm454, %v7037, 0
      %v7120 = vsel %vm454, %v7044, 0
      %v7123 = vsel %vm454, %v7051, 0
      %v7126 = vsel %vm454, %v7058, 0
      %v7129 = vsel %vm454, %v7065, 0
      %v7132 = vsel %vm454, %v7073, 0
      %v7135 = vsel %vm527, %v6929, 0
      %7137 = vmatprep.subr.bf16.mxu0 0
      %7138 = vmatpush1.bf16.msra.mxu0 %v7135
      %7139 = vmatprep.subr.bf16.mxu0 0
      %7140 = vmatpush1.bf16.msra.mxu0 0
      %7141 = vmatprep.subr.bf16.mxu0 0
      %7142 = vmatpush1.bf16.msra.mxu0 0
      %7143 = vmatprep.subr.bf16.mxu0 0
      %7144 = vmatpush1.bf16.msra.mxu0 0
      %7145 = vmatprep.subr.bf16.mxu0 0
      %7146 = vmatpush1.bf16.msra.mxu0 0
      %7147 = vmatprep.subr.bf16.mxu0 0
      %7148 = vmatpush1.bf16.msra.mxu0 0
      %7149 = vmatprep.subr.bf16.mxu0 0
      %7150 = vmatpush1.bf16.msra.mxu0 0
      %7151 = vmatprep.subr.bf16.mxu0 0
      %7152 = vmatpush1.bf16.msra.mxu0 0
      %7153 = vmatprep.subr.bf16.mxu0 0
      %7154 = vmatpush1.bf16.msra.mxu0 0
      %7155 = vmatprep.subr.bf16.mxu0 0
      %7156 = vmatpush1.bf16.msra.mxu0 0
      %7157 = vmatprep.subr.bf16.mxu0 0
      %7158 = vmatpush1.bf16.msra.mxu0 0
      %7159 = vmatprep.subr.bf16.mxu0 0
      %7160 = vmatpush1.bf16.msra.mxu0 0
      %7161 = vmatprep.subr.bf16.mxu0 0
      %7162 = vmatpush1.bf16.msra.mxu0 0
      %7163 = vmatprep.subr.bf16.mxu0 0
      %7164 = vmatpush1.bf16.msra.mxu0 0
      %7165 = vmatprep.subr.bf16.mxu0 0
      %7166 = vmatpush1.bf16.msra.mxu0 0
      %7167 = vmatprep.subr.bf16.mxu0 0
      %7168 = vmatpush1.bf16.msra.mxu0 0
      %7169 = vmatprep.mubr.bf16.mxu0 0
      %7170 = vmatmul.mubr.bf16.gmra.mrb[0].mxu0 %v7075
      %v7171 = vpop.f32.mrb[0].mxu0
      %v7172 = vadd.f32 0.0, %v7171
      %v7173 = vpop.f32.mrb[0].mxu0
      %v7174 = vpop.f32.mrb[0].mxu0
      %v7175 = vadd.f32 0.0, %v7174
      %v7176 = vpop.f32.mrb[0].mxu0
      %7177 = vmatprep.mubr.bf16.mxu0 0
      %7178 = vmatmul.mubr.bf16.gmra.mrb[0].mxu0 %v7078
      %v7179 = vpop.f32.mrb[0].mxu0
      %v7180 = vadd.f32 0.0, %v7179
      %v7181 = vpop.f32.mrb[0].mxu0
      %v7182 = vpop.f32.mrb[0].mxu0
      %v7183 = vadd.f32 0.0, %v7182
      %v7184 = vpop.f32.mrb[0].mxu0
      %7185 = vmatprep.mubr.bf16.mxu0 0
      %7186 = vmatmul.mubr.bf16.gmra.mrb[0].mxu0 %v7081
      %v7187 = vpop.f32.mrb[0].mxu0
      %v7188 = vadd.f32 0.0, %v7187
      %v7189 = vpop.f32.mrb[0].mxu0
      %v7190 = vpop.f32.mrb[0].mxu0
      %v7191 = vadd.f32 0.0, %v7190
      %v7192 = vpop.f32.mrb[0].mxu0
      %7193 = vmatprep.mubr.bf16.mxu0 0
      %7194 = vmatmul.mubr.bf16.gmra.mrb[0].mxu0 %v7084
      %v7195 = vpop.f32.mrb[0].mxu0
      %v7196 = vadd.f32 0.0, %v7195
      %v7197 = vpop.f32.mrb[0].mxu0
      %v7198 = vpop.f32.mrb[0].mxu0
      %v7199 = vadd.f32 0.0, %v7198
      %v7200 = vpop.f32.mrb[0].mxu0
      %7201 = vmatprep.mubr.bf16.mxu0 0
      %7202 = vmatmul.mubr.bf16.gmra.mrb[0].mxu0 %v7087
      %v7203 = vpop.f32.mrb[0].mxu0
      %v7204 = vadd.f32 0.0, %v7203
      %v7205 = vpop.f32.mrb[0].mxu0
      %v7206 = vpop.f32.mrb[0].mxu0
      %v7207 = vadd.f32 0.0, %v7206
      %v7208 = vpop.f32.mrb[0].mxu0
      %7209 = vmatprep.mubr.bf16.mxu0 0
      %7210 = vmatmul.mubr.bf16.gmra.mrb[0].mxu0 %v7090
      %v7211 = vpop.f32.mrb[0].mxu0
      %v7212 = vadd.f32 0.0, %v7211
      %v7213 = vpop.f32.mrb[0].mxu0
      %v7214 = vpop.f32.mrb[0].mxu0
      %v7215 = vadd.f32 0.0, %v7214
      %v7216 = vpop.f32.mrb[0].mxu0
      %7217 = vmatprep.mubr.bf16.mxu0 0
      %7218 = vmatmul.mubr.bf16.gmra.mrb[0].mxu0 %v7093
      %v7219 = vpop.f32.mrb[0].mxu0
      %v7220 = vadd.f32 0.0, %v7219
      %v7221 = vpop.f32.mrb[0].mxu0
      %v7222 = vpop.f32.mrb[0].mxu0
      %v7223 = vadd.f32 0.0, %v7222
      %v7224 = vpop.f32.mrb[0].mxu0
      %7225 = vmatprep.mubr.bf16.mxu0 0
      %7226 = vmatmul.mubr.bf16.gmra.mrb[0].mxu0 %v7096
      %v7227 = vpop.f32.mrb[0].mxu0
      %v7228 = vadd.f32 0.0, %v7227
      %v7229 = vpop.f32.mrb[0].mxu0
      %v7230 = vpop.f32.mrb[0].mxu0
      %v7231 = vadd.f32 0.0, %v7230
      %v7232 = vpop.f32.mrb[0].mxu0
      %7233 = vmatprep.mubr.bf16.mxu0 0
      %7234 = vmatmul.mubr.bf16.gmra.mrb[0].mxu0 %v7099
      %v7235 = vpop.f32.mrb[0].mxu0
      %v7236 = vadd.f32 0.0, %v7235
      %v7237 = vpop.f32.mrb[0].mxu0
      %v7238 = vpop.f32.mrb[0].mxu0
      %v7239 = vadd.f32 0.0, %v7238
      %v7240 = vpop.f32.mrb[0].mxu0
      %7241 = vmatprep.mubr.bf16.mxu0 0
      %7242 = vmatmul.mubr.bf16.gmra.mrb[0].mxu0 %v7102
      %v7243 = vpop.f32.mrb[0].mxu0
      %v7244 = vadd.f32 0.0, %v7243
      %v7245 = vpop.f32.mrb[0].mxu0
      %v7246 = vpop.f32.mrb[0].mxu0
      %v7247 = vadd.f32 0.0, %v7246
      %v7248 = vpop.f32.mrb[0].mxu0
      %7249 = vmatprep.mubr.bf16.mxu0 0
      %7250 = vmatmul.mubr.bf16.gmra.mrb[0].mxu0 %v7105
      %v7251 = vpop.f32.mrb[0].mxu0
      %v7252 = vadd.f32 0.0, %v7251
      %v7253 = vpop.f32.mrb[0].mxu0
      %v7254 = vpop.f32.mrb[0].mxu0
      %v7255 = vadd.f32 0.0, %v7254
      %v7256 = vpop.f32.mrb[0].mxu0
      %7257 = vmatprep.mubr.bf16.mxu0 0
      %7258 = vmatmul.mubr.bf16.gmra.mrb[0].mxu0 %v7108
      %v7259 = vpop.f32.mrb[0].mxu0
      %v7260 = vadd.f32 0.0, %v7259
      %v7261 = vpop.f32.mrb[0].mxu0
      %v7262 = vpop.f32.mrb[0].mxu0
      %v7263 = vadd.f32 0.0, %v7262
      %v7264 = vpop.f32.mrb[0].mxu0
      %7265 = vmatprep.mubr.bf16.mxu0 0
      %7266 = vmatmul.mubr.bf16.gmra.mrb[0].mxu0 %v7111
      %v7267 = vpop.f32.mrb[0].mxu0
      %v7268 = vadd.f32 0.0, %v7267
      %v7269 = vpop.f32.mrb[0].mxu0
      %v7270 = vpop.f32.mrb[0].mxu0
      %v7271 = vadd.f32 0.0, %v7270
      %v7272 = vpop.f32.mrb[0].mxu0
      %7273 = vmatprep.mubr.bf16.mxu0 0
      %7274 = vmatmul.mubr.bf16.gmra.mrb[0].mxu0 %v7114
      %v7275 = vpop.f32.mrb[0].mxu0
      %v7276 = vadd.f32 0.0, %v7275
      %v7277 = vpop.f32.mrb[0].mxu0
      %v7278 = vpop.f32.mrb[0].mxu0
      %v7279 = vadd.f32 0.0, %v7278
      %v7280 = vpop.f32.mrb[0].mxu0
      %7281 = vmatprep.mubr.bf16.mxu0 0
      %7282 = vmatmul.mubr.bf16.gmra.mrb[0].mxu0 %v7117
      %v7283 = vpop.f32.mrb[0].mxu0
      %v7284 = vadd.f32 0.0, %v7283
      %v7285 = vpop.f32.mrb[0].mxu0
      %v7286 = vpop.f32.mrb[0].mxu0
      %v7287 = vadd.f32 0.0, %v7286
      %v7288 = vpop.f32.mrb[0].mxu0
      %7289 = vmatprep.mubr.bf16.mxu0 0
      %7290 = vmatmul.mubr.bf16.gmra.mrb[0].mxu0 %v7120
      %v7291 = vpop.f32.mrb[0].mxu0
      %v7292 = vadd.f32 0.0, %v7291
      %v7293 = vpop.f32.mrb[0].mxu0
      %v7294 = vpop.f32.mrb[0].mxu0
      %v7295 = vadd.f32 0.0, %v7294
      %v7296 = vpop.f32.mrb[0].mxu0
      %7297 = vmatprep.mubr.bf16.mxu0 0
      %7298 = vmatmul.mubr.bf16.gmra.mrb[0].mxu0 %v7123
      %v7299 = vpop.f32.mrb[0].mxu0
      %v7300 = vadd.f32 0.0, %v7299
      %v7301 = vpop.f32.mrb[0].mxu0
      %v7302 = vpop.f32.mrb[0].mxu0
      %v7303 = vadd.f32 0.0, %v7302
      %v7304 = vpop.f32.mrb[0].mxu0
      %7305 = vmatprep.mubr.bf16.mxu0 0
      %7306 = vmatmul.mubr.bf16.gmra.mrb[0].mxu0 %v7126
      %v7307 = vpop.f32.mrb[0].mxu0
      %v7308 = vadd.f32 0.0, %v7307
      %v7309 = vpop.f32.mrb[0].mxu0
      %v7310 = vpop.f32.mrb[0].mxu0
      %v7311 = vadd.f32 0.0, %v7310
      %v7312 = vpop.f32.mrb[0].mxu0
      %7313 = vmatprep.mubr.bf16.mxu0 0
      %7314 = vmatmul.mubr.bf16.gmra.mrb[0].mxu0 %v7129
      %v7315 = vpop.f32.mrb[0].mxu0
      %v7316 = vadd.f32 0.0, %v7315
      %v7317 = vpop.f32.mrb[0].mxu0
      %v7318 = vpop.f32.mrb[0].mxu0
      %v7319 = vadd.f32 0.0, %v7318
      %v7320 = vpop.f32.mrb[0].mxu0
      %7321 = vmatprep.mubr.bf16.mxu0 0
      %7322 = vmatmul.mubr.bf16.gmra.mrb[0].mxu0 %v7132
      %v7323 = vpop.f32.mrb[0].mxu0
      %v7324 = vadd.f32 0.0, %v7323
      %v7325 = vpop.f32.mrb[0].mxu0
      %v7326 = vpop.f32.mrb[0].mxu0
      %v7327 = vadd.f32 0.0, %v7326
      %v7328 = vpop.f32.mrb[0].mxu0
      %7329 = vdwg.mxu0
      %v7330 = vadd.f32 %v6887, %v7172
      %v7331 = vadd.f32 %v6888, %v7175
      %v7332 = vadd.f32 %v6889, %v7180
      %v7333 = vadd.f32 %v6890, %v7183
      %v7334 = vadd.f32 %v6891, %v7188
      %v7335 = vadd.f32 %v6892, %v7191
      %v7336 = vadd.f32 %v6893, %v7196
      %v7337 = vadd.f32 %v6894, %v7199
      %v7338 = vadd.f32 %v6895, %v7204
      %v7339 = vadd.f32 %v6896, %v7207
      %v7340 = vadd.f32 %v6897, %v7212
      %v7341 = vadd.f32 %v6898, %v7215
      %v7342 = vadd.f32 %v6899, %v7220
      %v7343 = vadd.f32 %v6900, %v7223
      %v7344 = vadd.f32 %v6901, %v7228
      %v7345 = vadd.f32 %v6902, %v7231
      %v7346 = vadd.f32 %v6903, %v7236
      %v7347 = vadd.f32 %v6904, %v7239
      %v7348 = vadd.f32 %v6905, %v7244
      %v7349 = vadd.f32 %v6906, %v7247
      %v7350 = vadd.f32 %v6907, %v7252
      %v7351 = vadd.f32 %v6908, %v7255
      %v7352 = vadd.f32 %v6909, %v7260
      %v7353 = vadd.f32 %v6910, %v7263
      %v7354 = vadd.f32 %v6911, %v7268
      %v7355 = vadd.f32 %v6912, %v7271
      %v7356 = vadd.f32 %v6913, %v7276
      %v7357 = vadd.f32 %v6914, %v7279
      %v7358 = vadd.f32 %v6915, %v7284
      %v7359 = vadd.f32 %v6916, %v7287
      %v7360 = vadd.f32 %v6917, %v7292
      %v7361 = vadd.f32 %v6918, %v7295
      %v7362 = vadd.f32 %v6919, %v7300
      %v7363 = vadd.f32 %v6920, %v7303
      %v7364 = vadd.f32 %v6921, %v7308
      %v7365 = vadd.f32 %v6922, %v7311
      %v7366 = vadd.f32 %v6923, %v7316
      %v7367 = vadd.f32 %v6924, %v7319
      %v7368 = vadd.f32 %v6925, %v7324
      %v7369 = vadd.f32 %v6926, %v7327
      %s7370 = scalar_lea.vmem %s3, 16
      %v7371 = vld [vmem:[%s7370] sm:$0x3]
      %v7393 = vrot.slane %v6609, 1
      %v7394 = vrot.slane %v6610, 1
      %v7395 = vsel %vm5195, %v7393, %v7394
      %v7396 = vrot.slane %v6611, 1
      %v7397 = vsel %vm5195, %v7394, %v7396
      %v7398 = vrot.slane %v6612, 1
      %v7399 = vsel %vm5195, %v7396, %v7398
      %v7400 = vrot.slane %v6613, 1
      %v7401 = vsel %vm5195, %v7398, %v7400
      %v7402 = vrot.slane %v6614, 1
      %v7403 = vsel %vm5195, %v7400, %v7402
      %v7404 = vrot.slane %v6615, 1
      %v7405 = vsel %vm5195, %v7402, %v7404
      %v7406 = vrot.slane %v6616, 1
      %v7407 = vsel %vm5195, %v7404, %v7406
      %v7408 = vrot.slane %v6617, 1
      %v7409 = vsel %vm5195, %v7406, %v7408
      %v7410 = vrot.slane %v6618, 1
      %v7411 = vsel %vm5195, %v7408, %v7410
      %v7412 = vrot.slane %v6619, 1
      %v7413 = vsel %vm5195, %v7410, %v7412
      %v7414 = vrot.slane %v6620, 1
      %v7415 = vsel %vm5195, %v7412, %v7414
      %v7416 = vrot.slane %v6621, 1
      %v7417 = vsel %vm5195, %v7414, %v7416
      %v7418 = vrot.slane %v6622, 1
      %v7419 = vsel %vm5195, %v7416, %v7418
      %v7420 = vrot.slane %v6623, 1
      %v7421 = vsel %vm5195, %v7418, %v7420
      %v7422 = vrot.slane %v6624, 1
      %v7423 = vsel %vm5195, %v7420, %v7422
      %v7424 = vrot.slane %v6625, 1
      %v7425 = vsel %vm5195, %v7422, %v7424
      %v7426 = vrot.slane %v6626, 1
      %v7427 = vsel %vm5195, %v7424, %v7426
      %v7428 = vrot.slane %v6627, 1
      %v7429 = vsel %vm5195, %v7426, %v7428
      %v7430 = vrot.slane %v6628, 1
      %v7431 = vsel %vm5195, %v7428, %v7430
      %v7432 = vrot.slane %v6927, 1
      %v7433 = vsel %vm5195, %v7430, %v7432
      %v7435 = vsel %vm454, %v7395, 0
      %v7438 = vsel %vm454, %v7397, 0
      %v7441 = vsel %vm454, %v7399, 0
      %v7444 = vsel %vm454, %v7401, 0
      %v7447 = vsel %vm454, %v7403, 0
      %v7450 = vsel %vm454, %v7405, 0
      %v7453 = vsel %vm454, %v7407, 0
      %v7456 = vsel %vm454, %v7409, 0
      %v7459 = vsel %vm454, %v7411, 0
      %v7462 = vsel %vm454, %v7413, 0
      %v7465 = vsel %vm454, %v7415, 0
      %v7468 = vsel %vm454, %v7417, 0
      %v7471 = vsel %vm454, %v7419, 0
      %v7474 = vsel %vm454, %v7421, 0
      %v7477 = vsel %vm454, %v7423, 0
      %v7480 = vsel %vm454, %v7425, 0
      %v7483 = vsel %vm454, %v7427, 0
      %v7486 = vsel %vm454, %v7429, 0
      %v7489 = vsel %vm454, %v7431, 0
      %v7492 = vsel %vm454, %v7433, 0
      %v7495 = vsel %vm527, %v7371, 0
      %7497 = vmatprep.subr.bf16.mxu0 0
      %7498 = vmatpush1.bf16.msra.mxu0 %v7495
      %7499 = vmatprep.subr.bf16.mxu0 0
      %7500 = vmatpush1.bf16.msra.mxu0 0
      %7501 = vmatprep.subr.bf16.mxu0 0
      %7502 = vmatpush1.bf16.msra.mxu0 0
      %7503 = vmatprep.subr.bf16.mxu0 0
      %7504 = vmatpush1.bf16.msra.mxu0 0
      %7505 = vmatprep.subr.bf16.mxu0 0
      %7506 = vmatpush1.bf16.msra.mxu0 0
      %7507 = vmatprep.subr.bf16.mxu0 0
      %7508 = vmatpush1.bf16.msra.mxu0 0
      %7509 = vmatprep.subr.bf16.mxu0 0
      %7510 = vmatpush1.bf16.msra.mxu0 0
      %7511 = vmatprep.subr.bf16.mxu0 0
      %7512 = vmatpush1.bf16.msra.mxu0 0
      %7513 = vmatprep.subr.bf16.mxu0 0
      %7514 = vmatpush1.bf16.msra.mxu0 0
      %7515 = vmatprep.subr.bf16.mxu0 0
      %7516 = vmatpush1.bf16.msra.mxu0 0
      %7517 = vmatprep.subr.bf16.mxu0 0
      %7518 = vmatpush1.bf16.msra.mxu0 0
      %7519 = vmatprep.subr.bf16.mxu0 0
      %7520 = vmatpush1.bf16.msra.mxu0 0
      %7521 = vmatprep.subr.bf16.mxu0 0
      %7522 = vmatpush1.bf16.msra.mxu0 0
      %7523 = vmatprep.subr.bf16.mxu0 0
      %7524 = vmatpush1.bf16.msra.mxu0 0
      %7525 = vmatprep.subr.bf16.mxu0 0
      %7526 = vmatpush1.bf16.msra.mxu0 0
      %7527 = vmatprep.subr.bf16.mxu0 0
      %7528 = vmatpush1.bf16.msra.mxu0 0
      %7529 = vmatprep.mubr.bf16.mxu0 0
      %7530 = vmatmul.mubr.bf16.gmra.mrb[0].mxu0 %v7435
      %v7531 = vpop.f32.mrb[0].mxu0
      %v7532 = vadd.f32 0.0, %v7531
      %v7533 = vpop.f32.mrb[0].mxu0
      %v7534 = vpop.f32.mrb[0].mxu0
      %v7535 = vadd.f32 0.0, %v7534
      %v7536 = vpop.f32.mrb[0].mxu0
      %7537 = vmatprep.mubr.bf16.mxu0 0
      %7538 = vmatmul.mubr.bf16.gmra.mrb[0].mxu0 %v7438
      %v7539 = vpop.f32.mrb[0].mxu0
      %v7540 = vadd.f32 0.0, %v7539
      %v7541 = vpop.f32.mrb[0].mxu0
      %v7542 = vpop.f32.mrb[0].mxu0
      %v7543 = vadd.f32 0.0, %v7542
      %v7544 = vpop.f32.mrb[0].mxu0
      %7545 = vmatprep.mubr.bf16.mxu0 0
      %7546 = vmatmul.mubr.bf16.gmra.mrb[0].mxu0 %v7441
      %v7547 = vpop.f32.mrb[0].mxu0
      %v7548 = vadd.f32 0.0, %v7547
      %v7549 = vpop.f32.mrb[0].mxu0
      %v7550 = vpop.f32.mrb[0].mxu0
      %v7551 = vadd.f32 0.0, %v7550
      %v7552 = vpop.f32.mrb[0].mxu0
      %7553 = vmatprep.mubr.bf16.mxu0 0
      %7554 = vmatmul.mubr.bf16.gmra.mrb[0].mxu0 %v7444
      %v7555 = vpop.f32.mrb[0].mxu0
      %v7556 = vadd.f32 0.0, %v7555
      %v7557 = vpop.f32.mrb[0].mxu0
      %v7558 = vpop.f32.mrb[0].mxu0
      %v7559 = vadd.f32 0.0, %v7558
      %v7560 = vpop.f32.mrb[0].mxu0
      %7561 = vmatprep.mubr.bf16.mxu0 0
      %7562 = vmatmul.mubr.bf16.gmra.mrb[0].mxu0 %v7447
      %v7563 = vpop.f32.mrb[0].mxu0
      %v7564 = vadd.f32 0.0, %v7563
      %v7565 = vpop.f32.mrb[0].mxu0
      %v7566 = vpop.f32.mrb[0].mxu0
      %v7567 = vadd.f32 0.0, %v7566
      %v7568 = vpop.f32.mrb[0].mxu0
      %7569 = vmatprep.mubr.bf16.mxu0 0
      %7570 = vmatmul.mubr.bf16.gmra.mrb[0].mxu0 %v7450
      %v7571 = vpop.f32.mrb[0].mxu0
      %v7572 = vadd.f32 0.0, %v7571
      %v7573 = vpop.f32.mrb[0].mxu0
      %v7574 = vpop.f32.mrb[0].mxu0
      %v7575 = vadd.f32 0.0, %v7574
      %v7576 = vpop.f32.mrb[0].mxu0
      %7577 = vmatprep.mubr.bf16.mxu0 0
      %7578 = vmatmul.mubr.bf16.gmra.mrb[0].mxu0 %v7453
      %v7579 = vpop.f32.mrb[0].mxu0
      %v7580 = vadd.f32 0.0, %v7579
      %v7581 = vpop.f32.mrb[0].mxu0
      %v7582 = vpop.f32.mrb[0].mxu0
      %v7583 = vadd.f32 0.0, %v7582
      %v7584 = vpop.f32.mrb[0].mxu0
      %7585 = vmatprep.mubr.bf16.mxu0 0
      %7586 = vmatmul.mubr.bf16.gmra.mrb[0].mxu0 %v7456
      %v7587 = vpop.f32.mrb[0].mxu0
      %v7588 = vadd.f32 0.0, %v7587
      %v7589 = vpop.f32.mrb[0].mxu0
      %v7590 = vpop.f32.mrb[0].mxu0
      %v7591 = vadd.f32 0.0, %v7590
      %v7592 = vpop.f32.mrb[0].mxu0
      %7593 = vmatprep.mubr.bf16.mxu0 0
      %7594 = vmatmul.mubr.bf16.gmra.mrb[0].mxu0 %v7459
      %v7595 = vpop.f32.mrb[0].mxu0
      %v7596 = vadd.f32 0.0, %v7595
      %v7597 = vpop.f32.mrb[0].mxu0
      %v7598 = vpop.f32.mrb[0].mxu0
      %v7599 = vadd.f32 0.0, %v7598
      %v7600 = vpop.f32.mrb[0].mxu0
      %7601 = vmatprep.mubr.bf16.mxu0 0
      %7602 = vmatmul.mubr.bf16.gmra.mrb[0].mxu0 %v7462
      %v7603 = vpop.f32.mrb[0].mxu0
      %v7604 = vadd.f32 0.0, %v7603
      %v7605 = vpop.f32.mrb[0].mxu0
      %v7606 = vpop.f32.mrb[0].mxu0
      %v7607 = vadd.f32 0.0, %v7606
      %v7608 = vpop.f32.mrb[0].mxu0
      %7609 = vmatprep.mubr.bf16.mxu0 0
      %7610 = vmatmul.mubr.bf16.gmra.mrb[0].mxu0 %v7465
      %v7611 = vpop.f32.mrb[0].mxu0
      %v7612 = vadd.f32 0.0, %v7611
      %v7613 = vpop.f32.mrb[0].mxu0
      %v7614 = vpop.f32.mrb[0].mxu0
      %v7615 = vadd.f32 0.0, %v7614
      %v7616 = vpop.f32.mrb[0].mxu0
      %7617 = vmatprep.mubr.bf16.mxu0 0
      %7618 = vmatmul.mubr.bf16.gmra.mrb[0].mxu0 %v7468
      %v7619 = vpop.f32.mrb[0].mxu0
      %v7620 = vadd.f32 0.0, %v7619
      %v7621 = vpop.f32.mrb[0].mxu0
      %v7622 = vpop.f32.mrb[0].mxu0
      %v7623 = vadd.f32 0.0, %v7622
      %v7624 = vpop.f32.mrb[0].mxu0
      %7625 = vmatprep.mubr.bf16.mxu0 0
      %7626 = vmatmul.mubr.bf16.gmra.mrb[0].mxu0 %v7471
      %v7627 = vpop.f32.mrb[0].mxu0
      %v7628 = vadd.f32 0.0, %v7627
      %v7629 = vpop.f32.mrb[0].mxu0
      %v7630 = vpop.f32.mrb[0].mxu0
      %v7631 = vadd.f32 0.0, %v7630
      %v7632 = vpop.f32.mrb[0].mxu0
      %7633 = vmatprep.mubr.bf16.mxu0 0
      %7634 = vmatmul.mubr.bf16.gmra.mrb[0].mxu0 %v7474
      %v7635 = vpop.f32.mrb[0].mxu0
      %v7636 = vadd.f32 0.0, %v7635
      %v7637 = vpop.f32.mrb[0].mxu0
      %v7638 = vpop.f32.mrb[0].mxu0
      %v7639 = vadd.f32 0.0, %v7638
      %v7640 = vpop.f32.mrb[0].mxu0
      %7641 = vmatprep.mubr.bf16.mxu0 0
      %7642 = vmatmul.mubr.bf16.gmra.mrb[0].mxu0 %v7477
      %v7643 = vpop.f32.mrb[0].mxu0
      %v7644 = vadd.f32 0.0, %v7643
      %v7645 = vpop.f32.mrb[0].mxu0
      %v7646 = vpop.f32.mrb[0].mxu0
      %v7647 = vadd.f32 0.0, %v7646
      %v7648 = vpop.f32.mrb[0].mxu0
      %7649 = vmatprep.mubr.bf16.mxu0 0
      %7650 = vmatmul.mubr.bf16.gmra.mrb[0].mxu0 %v7480
      %v7651 = vpop.f32.mrb[0].mxu0
      %v7652 = vadd.f32 0.0, %v7651
      %v7653 = vpop.f32.mrb[0].mxu0
      %v7654 = vpop.f32.mrb[0].mxu0
      %v7655 = vadd.f32 0.0, %v7654
      %v7656 = vpop.f32.mrb[0].mxu0
      %7657 = vmatprep.mubr.bf16.mxu0 0
      %7658 = vmatmul.mubr.bf16.gmra.mrb[0].mxu0 %v7483
      %v7659 = vpop.f32.mrb[0].mxu0
      %v7660 = vadd.f32 0.0, %v7659
      %v7661 = vpop.f32.mrb[0].mxu0
      %v7662 = vpop.f32.mrb[0].mxu0
      %v7663 = vadd.f32 0.0, %v7662
      %v7664 = vpop.f32.mrb[0].mxu0
      %7665 = vmatprep.mubr.bf16.mxu0 0
      %7666 = vmatmul.mubr.bf16.gmra.mrb[0].mxu0 %v7486
      %v7667 = vpop.f32.mrb[0].mxu0
      %v7668 = vadd.f32 0.0, %v7667
      %v7669 = vpop.f32.mrb[0].mxu0
      %v7670 = vpop.f32.mrb[0].mxu0
      %v7671 = vadd.f32 0.0, %v7670
      %v7672 = vpop.f32.mrb[0].mxu0
      %7673 = vmatprep.mubr.bf16.mxu0 0
      %7674 = vmatmul.mubr.bf16.gmra.mrb[0].mxu0 %v7489
      %v7675 = vpop.f32.mrb[0].mxu0
      %v7676 = vadd.f32 0.0, %v7675
      %v7677 = vpop.f32.mrb[0].mxu0
      %v7678 = vpop.f32.mrb[0].mxu0
      %v7679 = vadd.f32 0.0, %v7678
      %v7680 = vpop.f32.mrb[0].mxu0
      %7681 = vmatprep.mubr.bf16.mxu0 0
      %7682 = vmatmul.mubr.bf16.gmra.mrb[0].mxu0 %v7492
      %v7683 = vpop.f32.mrb[0].mxu0
      %v7684 = vadd.f32 0.0, %v7683
      %v7685 = vpop.f32.mrb[0].mxu0
      %v7686 = vpop.f32.mrb[0].mxu0
      %v7687 = vadd.f32 0.0, %v7686
      %v7688 = vpop.f32.mrb[0].mxu0
      %7689 = vdwg.mxu0
      %v7690 = vadd.f32 %v7330, %v7532
      %v7691 = vadd.f32 %v7331, %v7535
      %v7692 = vadd.f32 %v7332, %v7540
      %v7693 = vadd.f32 %v7333, %v7543
      %v7694 = vadd.f32 %v7334, %v7548
      %v7695 = vadd.f32 %v7335, %v7551
      %v7696 = vadd.f32 %v7336, %v7556
      %v7697 = vadd.f32 %v7337, %v7559
      %v7698 = vadd.f32 %v7338, %v7564
      %v7699 = vadd.f32 %v7339, %v7567
      %v7700 = vadd.f32 %v7340, %v7572
      %v7701 = vadd.f32 %v7341, %v7575
      %v7702 = vadd.f32 %v7342, %v7580
      %v7703 = vadd.f32 %v7343, %v7583
      %v7704 = vadd.f32 %v7344, %v7588
      %v7705 = vadd.f32 %v7345, %v7591
      %v7706 = vadd.f32 %v7346, %v7596
      %v7707 = vadd.f32 %v7347, %v7599
      %v7708 = vadd.f32 %v7348, %v7604
      %v7709 = vadd.f32 %v7349, %v7607
      %v7710 = vadd.f32 %v7350, %v7612
      %v7711 = vadd.f32 %v7351, %v7615
      %v7712 = vadd.f32 %v7352, %v7620
      %v7713 = vadd.f32 %v7353, %v7623
      %v7714 = vadd.f32 %v7354, %v7628
      %v7715 = vadd.f32 %v7355, %v7631
      %v7716 = vadd.f32 %v7356, %v7636
      %v7717 = vadd.f32 %v7357, %v7639
      %v7718 = vadd.f32 %v7358, %v7644
      %v7719 = vadd.f32 %v7359, %v7647
      %v7720 = vadd.f32 %v7360, %v7652
      %v7721 = vadd.f32 %v7361, %v7655
      %v7722 = vadd.f32 %v7362, %v7660
      %v7723 = vadd.f32 %v7363, %v7663
      %v7724 = vadd.f32 %v7364, %v7668
      %v7725 = vadd.f32 %v7365, %v7671
      %v7726 = vadd.f32 %v7366, %v7676
      %v7727 = vadd.f32 %v7367, %v7679
      %v7728 = vadd.f32 %v7368, %v7684
      %v7729 = vadd.f32 %v7369, %v7687
      %v7730 = vld [vmem:[%s4] sm:$0x1]
      %v7732 = vlaneseq
      %v7733 = vshrl.u32 %v7732, 7
      %v7734 = vsub.s32 0, %v7733
      %v7735 = vrot.slane %v7730, %v7734
      %v7737 = vadd.f32 %v7690, %v7735
      %v7738 = vadd.f32 %v7691, %v7735
      %v7739 = vadd.f32 %v7692, %v7735
      %v7740 = vadd.f32 %v7693, %v7735
      %v7741 = vadd.f32 %v7694, %v7735
      %v7742 = vadd.f32 %v7695, %v7735
      %v7743 = vadd.f32 %v7696, %v7735
      %v7744 = vadd.f32 %v7697, %v7735
      %v7745 = vadd.f32 %v7698, %v7735
      %v7746 = vadd.f32 %v7699, %v7735
      %v7747 = vadd.f32 %v7700, %v7735
      %v7748 = vadd.f32 %v7701, %v7735
      %v7749 = vadd.f32 %v7702, %v7735
      %v7750 = vadd.f32 %v7703, %v7735
      %v7751 = vadd.f32 %v7704, %v7735
      %v7752 = vadd.f32 %v7705, %v7735
      %v7753 = vadd.f32 %v7706, %v7735
      %v7754 = vadd.f32 %v7707, %v7735
      %v7755 = vadd.f32 %v7708, %v7735
      %v7756 = vadd.f32 %v7709, %v7735
      %v7757 = vadd.f32 %v7710, %v7735
      %v7758 = vadd.f32 %v7711, %v7735
      %v7759 = vadd.f32 %v7712, %v7735
      %v7760 = vadd.f32 %v7713, %v7735
      %v7761 = vadd.f32 %v7714, %v7735
      %v7762 = vadd.f32 %v7715, %v7735
      %v7763 = vadd.f32 %v7716, %v7735
      %v7764 = vadd.f32 %v7717, %v7735
      %v7765 = vadd.f32 %v7718, %v7735
      %v7766 = vadd.f32 %v7719, %v7735
      %v7767 = vadd.f32 %v7720, %v7735
      %v7768 = vadd.f32 %v7721, %v7735
      %v7769 = vadd.f32 %v7722, %v7735
      %v7770 = vadd.f32 %v7723, %v7735
      %v7771 = vadd.f32 %v7724, %v7735
      %v7772 = vadd.f32 %v7725, %v7735
      %v7773 = vadd.f32 %v7726, %v7735
      %v7774 = vadd.f32 %v7727, %v7735
      %v7775 = vadd.f32 %v7728, %v7735
      %v7776 = vadd.f32 %v7729, %v7735
      %vm7777 = vcmp.gt.f32.partialorder %v7737, 0.0
      %vm7778 = vcmp.gt.f32.partialorder %v7738, 0.0
      %vm7779 = vcmp.gt.f32.partialorder %v7739, 0.0
      %vm7780 = vcmp.gt.f32.partialorder %v7740, 0.0
      %vm7781 = vcmp.gt.f32.partialorder %v7741, 0.0
      %vm7782 = vcmp.gt.f32.partialorder %v7742, 0.0
      %vm7783 = vcmp.gt.f32.partialorder %v7743, 0.0
      %vm7784 = vcmp.gt.f32.partialorder %v7744, 0.0
      %vm7785 = vcmp.gt.f32.partialorder %v7745, 0.0
      %vm7786 = vcmp.gt.f32.partialorder %v7746, 0.0
      %vm7787 = vcmp.gt.f32.partialorder %v7747, 0.0
      %vm7788 = vcmp.gt.f32.partialorder %v7748, 0.0
      %vm7789 = vcmp.gt.f32.partialorder %v7749, 0.0
      %vm7790 = vcmp.gt.f32.partialorder %v7750, 0.0
      %vm7791 = vcmp.gt.f32.partialorder %v7751, 0.0
      %vm7792 = vcmp.gt.f32.partialorder %v7752, 0.0
      %vm7793 = vcmp.gt.f32.partialorder %v7753, 0.0
      %vm7794 = vcmp.gt.f32.partialorder %v7754, 0.0
      %vm7795 = vcmp.gt.f32.partialorder %v7755, 0.0
      %vm7796 = vcmp.gt.f32.partialorder %v7756, 0.0
      %vm7797 = vcmp.gt.f32.partialorder %v7757, 0.0
      %vm7798 = vcmp.gt.f32.partialorder %v7758, 0.0
      %vm7799 = vcmp.gt.f32.partialorder %v7759, 0.0
      %vm7800 = vcmp.gt.f32.partialorder %v7760, 0.0
      %vm7801 = vcmp.gt.f32.partialorder %v7761, 0.0
      %vm7802 = vcmp.gt.f32.partialorder %v7762, 0.0
      %vm7803 = vcmp.gt.f32.partialorder %v7763, 0.0
      %vm7804 = vcmp.gt.f32.partialorder %v7764, 0.0
      %vm7805 = vcmp.gt.f32.partialorder %v7765, 0.0
      %vm7806 = vcmp.gt.f32.partialorder %v7766, 0.0
      %vm7807 = vcmp.gt.f32.partialorder %v7767, 0.0
      %vm7808 = vcmp.gt.f32.partialorder %v7768, 0.0
      %vm7809 = vcmp.gt.f32.partialorder %v7769, 0.0
      %vm7810 = vcmp.gt.f32.partialorder %v7770, 0.0
      %vm7811 = vcmp.gt.f32.partialorder %v7771, 0.0
      %vm7812 = vcmp.gt.f32.partialorder %v7772, 0.0
      %vm7813 = vcmp.gt.f32.partialorder %v7773, 0.0
      %vm7814 = vcmp.gt.f32.partialorder %v7774, 0.0
      %vm7815 = vcmp.gt.f32.partialorder %v7775, 0.0
      %vm7816 = vcmp.gt.f32.partialorder %v7776, 0.0
      %v7817 = vmul.f32 %v7737, 0.2
      %v7818 = vmul.f32 %v7738, 0.2
      %v7819 = vmul.f32 %v7739, 0.2
      %v7820 = vmul.f32 %v7740, 0.2
      %v7821 = vmul.f32 %v7741, 0.2
      %v7822 = vmul.f32 %v7742, 0.2
      %v7823 = vmul.f32 %v7743, 0.2
      %v7824 = vmul.f32 %v7744, 0.2
      %v7825 = vmul.f32 %v7745, 0.2
      %v7826 = vmul.f32 %v7746, 0.2
      %v7827 = vmul.f32 %v7747, 0.2
      %v7828 = vmul.f32 %v7748, 0.2
      %v7829 = vmul.f32 %v7749, 0.2
      %v7830 = vmul.f32 %v7750, 0.2
      %v7831 = vmul.f32 %v7751, 0.2
      %v7832 = vmul.f32 %v7752, 0.2
      %v7833 = vmul.f32 %v7753, 0.2
      %v7834 = vmul.f32 %v7754, 0.2
      %v7835 = vmul.f32 %v7755, 0.2
      %v7836 = vmul.f32 %v7756, 0.2
      %v7837 = vmul.f32 %v7757, 0.2
      %v7838 = vmul.f32 %v7758, 0.2
      %v7839 = vmul.f32 %v7759, 0.2
      %v7840 = vmul.f32 %v7760, 0.2
      %v7841 = vmul.f32 %v7761, 0.2
      %v7842 = vmul.f32 %v7762, 0.2
      %v7843 = vmul.f32 %v7763, 0.2
      %v7844 = vmul.f32 %v7764, 0.2
      %v7845 = vmul.f32 %v7765, 0.2
      %v7846 = vmul.f32 %v7766, 0.2
      %v7847 = vmul.f32 %v7767, 0.2
      %v7848 = vmul.f32 %v7768, 0.2
      %v7849 = vmul.f32 %v7769, 0.2
      %v7850 = vmul.f32 %v7770, 0.2
      %v7851 = vmul.f32 %v7771, 0.2
      %v7852 = vmul.f32 %v7772, 0.2
      %v7853 = vmul.f32 %v7773, 0.2
      %v7854 = vmul.f32 %v7774, 0.2
      %v7855 = vmul.f32 %v7775, 0.2
      %v7856 = vmul.f32 %v7776, 0.2
      %v7857 = vsel %vm7777, %v7737, %v7817
      %v7858 = vsel %vm7778, %v7738, %v7818
      %v7859 = vsel %vm7779, %v7739, %v7819
      %v7860 = vsel %vm7780, %v7740, %v7820
      %v7861 = vsel %vm7781, %v7741, %v7821
      %v7862 = vsel %vm7782, %v7742, %v7822
      %v7863 = vsel %vm7783, %v7743, %v7823
      %v7864 = vsel %vm7784, %v7744, %v7824
      %v7865 = vsel %vm7785, %v7745, %v7825
      %v7866 = vsel %vm7786, %v7746, %v7826
      %v7867 = vsel %vm7787, %v7747, %v7827
      %v7868 = vsel %vm7788, %v7748, %v7828
      %v7869 = vsel %vm7789, %v7749, %v7829
      %v7870 = vsel %vm7790, %v7750, %v7830
      %v7871 = vsel %vm7791, %v7751, %v7831
      %v7872 = vsel %vm7792, %v7752, %v7832
      %v7873 = vsel %vm7793, %v7753, %v7833
      %v7874 = vsel %vm7794, %v7754, %v7834
      %v7875 = vsel %vm7795, %v7755, %v7835
      %v7876 = vsel %vm7796, %v7756, %v7836
      %v7877 = vsel %vm7797, %v7757, %v7837
      %v7878 = vsel %vm7798, %v7758, %v7838
      %v7879 = vsel %vm7799, %v7759, %v7839
      %v7880 = vsel %vm7800, %v7760, %v7840
      %v7881 = vsel %vm7801, %v7761, %v7841
      %v7882 = vsel %vm7802, %v7762, %v7842
      %v7883 = vsel %vm7803, %v7763, %v7843
      %v7884 = vsel %vm7804, %v7764, %v7844
      %v7885 = vsel %vm7805, %v7765, %v7845
      %v7886 = vsel %vm7806, %v7766, %v7846
      %v7887 = vsel %vm7807, %v7767, %v7847
      %v7888 = vsel %vm7808, %v7768, %v7848
      %v7889 = vsel %vm7809, %v7769, %v7849
      %v7890 = vsel %vm7810, %v7770, %v7850
      %v7891 = vsel %vm7811, %v7771, %v7851
      %v7892 = vsel %vm7812, %v7772, %v7852
      %v7893 = vsel %vm7813, %v7773, %v7853
      %v7894 = vsel %vm7814, %v7774, %v7854
      %v7895 = vsel %vm7815, %v7775, %v7855
      %v7896 = vsel %vm7816, %v7776, %v7856
      %v7897 = vld [vmem:[%s300 + $0x2a] sm:$0xff]
      %v7898 = vld [vmem:[%s300 + $0x32] sm:$0xff]
      %v7899 = vld [vmem:[%s300 + $0x3a] sm:$0xff]
      %v7900 = vld [vmem:[%s300 + $0x42] sm:$0xff]
      %v7901 = vld [vmem:[%s300 + $0x4a] sm:$0xff]
      %v7902 = vld [vmem:[%s300 + $0x52] sm:$0xff]
      %v7903 = vld [vmem:[%s300 + $0x5a] sm:$0xff]
      %v7904 = vld [vmem:[%s300 + $0x62] sm:$0xff]
      %v7905 = vld [vmem:[%s300 + $0x6a] sm:$0xff]
      %v7906 = vld [vmem:[%s300 + $0x72] sm:$0xff]
      %v7907 = vld [vmem:[%s300 + $0x7a] sm:$0xff]
      %v7908 = vld [vmem:[%s300 + $0x82] sm:$0xff]
      %v7909 = vld [vmem:[%s300 + $0x8a] sm:$0xff]
      %v7910 = vld [vmem:[%s300 + $0x92] sm:$0xff]
      %v7911 = vld [vmem:[%s300 + $0x9a] sm:$0xff]
      %v7912 = vld [vmem:[%s300 + $0xa2] sm:$0xff]
      %v7913 = vld [vmem:[%s300 + $0xaa] sm:$0xff]
      %v7914 = vld [vmem:[%s300 + $0xb2] sm:$0xff]
      %v7915 = vld [vmem:[%s300 + $0xba] sm:$0xff]
      %v7916 = vld [vmem:[%s300 + $0xc2] sm:$0xff]
      %v7917 = vld [vmem:[%s300 + $0xca] sm:$0xff]
      %v7918 = vld [vmem:[%s300 + $0xd2] sm:$0xff]
      %v7919 = vld [vmem:[%s300 + $0xda] sm:$0xff]
      %v7920 = vld [vmem:[%s300 + $0xe2] sm:$0xff]
      %v7921 = vld [vmem:[%s300 + $0xea] sm:$0xff]
      %v7922 = vld [vmem:[%s300 + $0xf2] sm:$0xff]
      %v7923 = vld [vmem:[%s300 + $0xfa] sm:$0xff]
      %v7924 = vld [vmem:[%s300 + $0x102] sm:$0xff]
      %v7925 = vld [vmem:[%s300 + $0x10a] sm:$0xff]
      %v7926 = vld [vmem:[%s300 + $0x112] sm:$0xff]
      %v7927 = vld [vmem:[%s300 + $0x11a] sm:$0xff]
      %v7928 = vld [vmem:[%s300 + $0x122] sm:$0xff]
      %v7929 = vld [vmem:[%s300 + $0x12a] sm:$0xff]
      %v7930 = vld [vmem:[%s300 + $0x132] sm:$0xff]
      %v7931 = vld [vmem:[%s300 + $0x13a] sm:$0xff]
      %v7932 = vld [vmem:[%s300 + $0x142] sm:$0xff]
      %v7933 = vld [vmem:[%s300 + $0x14a] sm:$0xff]
      %v7934 = vld [vmem:[%s300 + $0x152] sm:$0xff]
      %v7935 = vld [vmem:[%s300 + $0x15a] sm:$0xff]
      %v7936 = vld [vmem:[%s300 + $0x162] sm:$0xff]
      %v7937 = vpack.c.bf16 %v7898, %v7897
      %v7938 = vpack.c.bf16 %v7900, %v7899
      %v7939 = vpack.c.bf16 %v7902, %v7901
      %v7940 = vpack.c.bf16 %v7904, %v7903
      %v7941 = vpack.c.bf16 %v7906, %v7905
      %v7942 = vpack.c.bf16 %v7908, %v7907
      %v7943 = vpack.c.bf16 %v7910, %v7909
      %v7944 = vpack.c.bf16 %v7912, %v7911
      %v7945 = vpack.c.bf16 %v7914, %v7913
      %v7946 = vpack.c.bf16 %v7916, %v7915
      %v7947 = vpack.c.bf16 %v7918, %v7917
      %v7948 = vpack.c.bf16 %v7920, %v7919
      %v7949 = vpack.c.bf16 %v7922, %v7921
      %v7950 = vpack.c.bf16 %v7924, %v7923
      %v7951 = vpack.c.bf16 %v7926, %v7925
      %v7952 = vpack.c.bf16 %v7928, %v7927
      %v7953 = vpack.c.bf16 %v7930, %v7929
      %v7954 = vpack.c.bf16 %v7932, %v7931
      %v7955 = vpack.c.bf16 %v7934, %v7933
      %v7956 = vpack.c.bf16 %v7936, %v7935
      %v7957 = vld [vmem:[%s5] sm:$0x3]
      %v7959 = vsel %vm454, %v7937, 0
      %v7962 = vsel %vm454, %v7938, 0
      %v7965 = vsel %vm454, %v7939, 0
      %v7968 = vsel %vm454, %v7940, 0
      %v7971 = vsel %vm454, %v7941, 0
      %v7974 = vsel %vm454, %v7942, 0
      %v7977 = vsel %vm454, %v7943, 0
      %v7980 = vsel %vm454, %v7944, 0
      %v7983 = vsel %vm454, %v7945, 0
      %v7986 = vsel %vm454, %v7946, 0
      %v7989 = vsel %vm454, %v7947, 0
      %v7992 = vsel %vm454, %v7948, 0
      %v7995 = vsel %vm454, %v7949, 0
      %v7998 = vsel %vm454, %v7950, 0
      %v8001 = vsel %vm454, %v7951, 0
      %v8004 = vsel %vm454, %v7952, 0
      %v8007 = vsel %vm454, %v7953, 0
      %v8010 = vsel %vm454, %v7954, 0
      %v8013 = vsel %vm454, %v7955, 0
      %v8016 = vsel %vm454, %v7956, 0
      %v8019 = vsel %vm527, %v7957, 0
      %8021 = vmatprep.subr.bf16.mxu0 0
      %8022 = vmatpush1.bf16.msra.mxu0 %v8019
      %8023 = vmatprep.subr.bf16.mxu0 0
      %8024 = vmatpush1.bf16.msra.mxu0 0
      %8025 = vmatprep.subr.bf16.mxu0 0
      %8026 = vmatpush1.bf16.msra.mxu0 0
      %8027 = vmatprep.subr.bf16.mxu0 0
      %8028 = vmatpush1.bf16.msra.mxu0 0
      %8029 = vmatprep.subr.bf16.mxu0 0
      %8030 = vmatpush1.bf16.msra.mxu0 0
      %8031 = vmatprep.subr.bf16.mxu0 0
      %8032 = vmatpush1.bf16.msra.mxu0 0
      %8033 = vmatprep.subr.bf16.mxu0 0
      %8034 = vmatpush1.bf16.msra.mxu0 0
      %8035 = vmatprep.subr.bf16.mxu0 0
      %8036 = vmatpush1.bf16.msra.mxu0 0
      %8037 = vmatprep.subr.bf16.mxu0 0
      %8038 = vmatpush1.bf16.msra.mxu0 0
      %8039 = vmatprep.subr.bf16.mxu0 0
      %8040 = vmatpush1.bf16.msra.mxu0 0
      %8041 = vmatprep.subr.bf16.mxu0 0
      %8042 = vmatpush1.bf16.msra.mxu0 0
      %8043 = vmatprep.subr.bf16.mxu0 0
      %8044 = vmatpush1.bf16.msra.mxu0 0
      %8045 = vmatprep.subr.bf16.mxu0 0
      %8046 = vmatpush1.bf16.msra.mxu0 0
      %8047 = vmatprep.subr.bf16.mxu0 0
      %8048 = vmatpush1.bf16.msra.mxu0 0
      %8049 = vmatprep.subr.bf16.mxu0 0
      %8050 = vmatpush1.bf16.msra.mxu0 0
      %8051 = vmatprep.subr.bf16.mxu0 0
      %8052 = vmatpush1.bf16.msra.mxu0 0
      %8053 = vmatprep.mubr.bf16.mxu0 0
      %8054 = vmatmul.mubr.bf16.gmra.mrb[0].mxu0 %v7959
      %v8055 = vpop.f32.mrb[0].mxu0
      %v8056 = vadd.f32 0.0, %v8055
      %v8057 = vpop.f32.mrb[0].mxu0
      %v8058 = vpop.f32.mrb[0].mxu0
      %v8059 = vadd.f32 0.0, %v8058
      %v8060 = vpop.f32.mrb[0].mxu0
      %8061 = vmatprep.mubr.bf16.mxu0 0
      %8062 = vmatmul.mubr.bf16.gmra.mrb[0].mxu0 %v7962
      %v8063 = vpop.f32.mrb[0].mxu0
      %v8064 = vadd.f32 0.0, %v8063
      %v8065 = vpop.f32.mrb[0].mxu0
      %v8066 = vpop.f32.mrb[0].mxu0
      %v8067 = vadd.f32 0.0, %v8066
      %v8068 = vpop.f32.mrb[0].mxu0
      %8069 = vmatprep.mubr.bf16.mxu0 0
      %8070 = vmatmul.mubr.bf16.gmra.mrb[0].mxu0 %v7965
      %v8071 = vpop.f32.mrb[0].mxu0
      %v8072 = vadd.f32 0.0, %v8071
      %v8073 = vpop.f32.mrb[0].mxu0
      %v8074 = vpop.f32.mrb[0].mxu0
      %v8075 = vadd.f32 0.0, %v8074
      %v8076 = vpop.f32.mrb[0].mxu0
      %8077 = vmatprep.mubr.bf16.mxu0 0
      %8078 = vmatmul.mubr.bf16.gmra.mrb[0].mxu0 %v7968
      %v8079 = vpop.f32.mrb[0].mxu0
      %v8080 = vadd.f32 0.0, %v8079
      %v8081 = vpop.f32.mrb[0].mxu0
      %v8082 = vpop.f32.mrb[0].mxu0
      %v8083 = vadd.f32 0.0, %v8082
      %v8084 = vpop.f32.mrb[0].mxu0
      %8085 = vmatprep.mubr.bf16.mxu0 0
      %8086 = vmatmul.mubr.bf16.gmra.mrb[0].mxu0 %v7971
      %v8087 = vpop.f32.mrb[0].mxu0
      %v8088 = vadd.f32 0.0, %v8087
      %v8089 = vpop.f32.mrb[0].mxu0
      %v8090 = vpop.f32.mrb[0].mxu0
      %v8091 = vadd.f32 0.0, %v8090
      %v8092 = vpop.f32.mrb[0].mxu0
      %8093 = vmatprep.mubr.bf16.mxu0 0
      %8094 = vmatmul.mubr.bf16.gmra.mrb[0].mxu0 %v7974
      %v8095 = vpop.f32.mrb[0].mxu0
      %v8096 = vadd.f32 0.0, %v8095
      %v8097 = vpop.f32.mrb[0].mxu0
      %v8098 = vpop.f32.mrb[0].mxu0
      %v8099 = vadd.f32 0.0, %v8098
      %v8100 = vpop.f32.mrb[0].mxu0
      %8101 = vmatprep.mubr.bf16.mxu0 0
      %8102 = vmatmul.mubr.bf16.gmra.mrb[0].mxu0 %v7977
      %v8103 = vpop.f32.mrb[0].mxu0
      %v8104 = vadd.f32 0.0, %v8103
      %v8105 = vpop.f32.mrb[0].mxu0
      %v8106 = vpop.f32.mrb[0].mxu0
      %v8107 = vadd.f32 0.0, %v8106
      %v8108 = vpop.f32.mrb[0].mxu0
      %8109 = vmatprep.mubr.bf16.mxu0 0
      %8110 = vmatmul.mubr.bf16.gmra.mrb[0].mxu0 %v7980
      %v8111 = vpop.f32.mrb[0].mxu0
      %v8112 = vadd.f32 0.0, %v8111
      %v8113 = vpop.f32.mrb[0].mxu0
      %v8114 = vpop.f32.mrb[0].mxu0
      %v8115 = vadd.f32 0.0, %v8114
      %v8116 = vpop.f32.mrb[0].mxu0
      %8117 = vmatprep.mubr.bf16.mxu0 0
      %8118 = vmatmul.mubr.bf16.gmra.mrb[0].mxu0 %v7983
      %v8119 = vpop.f32.mrb[0].mxu0
      %v8120 = vadd.f32 0.0, %v8119
      %v8121 = vpop.f32.mrb[0].mxu0
      %v8122 = vpop.f32.mrb[0].mxu0
      %v8123 = vadd.f32 0.0, %v8122
      %v8124 = vpop.f32.mrb[0].mxu0
      %8125 = vmatprep.mubr.bf16.mxu0 0
      %8126 = vmatmul.mubr.bf16.gmra.mrb[0].mxu0 %v7986
      %v8127 = vpop.f32.mrb[0].mxu0
      %v8128 = vadd.f32 0.0, %v8127
      %v8129 = vpop.f32.mrb[0].mxu0
      %v8130 = vpop.f32.mrb[0].mxu0
      %v8131 = vadd.f32 0.0, %v8130
      %v8132 = vpop.f32.mrb[0].mxu0
      %8133 = vmatprep.mubr.bf16.mxu0 0
      %8134 = vmatmul.mubr.bf16.gmra.mrb[0].mxu0 %v7989
      %v8135 = vpop.f32.mrb[0].mxu0
      %v8136 = vadd.f32 0.0, %v8135
      %v8137 = vpop.f32.mrb[0].mxu0
      %v8138 = vpop.f32.mrb[0].mxu0
      %v8139 = vadd.f32 0.0, %v8138
      %v8140 = vpop.f32.mrb[0].mxu0
      %8141 = vmatprep.mubr.bf16.mxu0 0
      %8142 = vmatmul.mubr.bf16.gmra.mrb[0].mxu0 %v7992
      %v8143 = vpop.f32.mrb[0].mxu0
      %v8144 = vadd.f32 0.0, %v8143
      %v8145 = vpop.f32.mrb[0].mxu0
      %v8146 = vpop.f32.mrb[0].mxu0
      %v8147 = vadd.f32 0.0, %v8146
      %v8148 = vpop.f32.mrb[0].mxu0
      %8149 = vmatprep.mubr.bf16.mxu0 0
      %8150 = vmatmul.mubr.bf16.gmra.mrb[0].mxu0 %v7995
      %v8151 = vpop.f32.mrb[0].mxu0
      %v8152 = vadd.f32 0.0, %v8151
      %v8153 = vpop.f32.mrb[0].mxu0
      %v8154 = vpop.f32.mrb[0].mxu0
      %v8155 = vadd.f32 0.0, %v8154
      %v8156 = vpop.f32.mrb[0].mxu0
      %8157 = vmatprep.mubr.bf16.mxu0 0
      %8158 = vmatmul.mubr.bf16.gmra.mrb[0].mxu0 %v7998
      %v8159 = vpop.f32.mrb[0].mxu0
      %v8160 = vadd.f32 0.0, %v8159
      %v8161 = vpop.f32.mrb[0].mxu0
      %v8162 = vpop.f32.mrb[0].mxu0
      %v8163 = vadd.f32 0.0, %v8162
      %v8164 = vpop.f32.mrb[0].mxu0
      %8165 = vmatprep.mubr.bf16.mxu0 0
      %8166 = vmatmul.mubr.bf16.gmra.mrb[0].mxu0 %v8001
      %v8167 = vpop.f32.mrb[0].mxu0
      %v8168 = vadd.f32 0.0, %v8167
      %v8169 = vpop.f32.mrb[0].mxu0
      %v8170 = vpop.f32.mrb[0].mxu0
      %v8171 = vadd.f32 0.0, %v8170
      %v8172 = vpop.f32.mrb[0].mxu0
      %8173 = vmatprep.mubr.bf16.mxu0 0
      %8174 = vmatmul.mubr.bf16.gmra.mrb[0].mxu0 %v8004
      %v8175 = vpop.f32.mrb[0].mxu0
      %v8176 = vadd.f32 0.0, %v8175
      %v8177 = vpop.f32.mrb[0].mxu0
      %v8178 = vpop.f32.mrb[0].mxu0
      %v8179 = vadd.f32 0.0, %v8178
      %v8180 = vpop.f32.mrb[0].mxu0
      %8181 = vmatprep.mubr.bf16.mxu0 0
      %8182 = vmatmul.mubr.bf16.gmra.mrb[0].mxu0 %v8007
      %v8183 = vpop.f32.mrb[0].mxu0
      %v8184 = vadd.f32 0.0, %v8183
      %v8185 = vpop.f32.mrb[0].mxu0
      %v8186 = vpop.f32.mrb[0].mxu0
      %v8187 = vadd.f32 0.0, %v8186
      %v8188 = vpop.f32.mrb[0].mxu0
      %8189 = vmatprep.mubr.bf16.mxu0 0
      %8190 = vmatmul.mubr.bf16.gmra.mrb[0].mxu0 %v8010
      %v8191 = vpop.f32.mrb[0].mxu0
      %v8192 = vadd.f32 0.0, %v8191
      %v8193 = vpop.f32.mrb[0].mxu0
      %v8194 = vpop.f32.mrb[0].mxu0
      %v8195 = vadd.f32 0.0, %v8194
      %v8196 = vpop.f32.mrb[0].mxu0
      %8197 = vmatprep.mubr.bf16.mxu0 0
      %8198 = vmatmul.mubr.bf16.gmra.mrb[0].mxu0 %v8013
      %v8199 = vpop.f32.mrb[0].mxu0
      %v8200 = vadd.f32 0.0, %v8199
      %v8201 = vpop.f32.mrb[0].mxu0
      %v8202 = vpop.f32.mrb[0].mxu0
      %v8203 = vadd.f32 0.0, %v8202
      %v8204 = vpop.f32.mrb[0].mxu0
      %8205 = vmatprep.mubr.bf16.mxu0 0
      %8206 = vmatmul.mubr.bf16.gmra.mrb[0].mxu0 %v8016
      %v8207 = vpop.f32.mrb[0].mxu0
      %v8208 = vadd.f32 0.0, %v8207
      %v8209 = vpop.f32.mrb[0].mxu0
      %v8210 = vpop.f32.mrb[0].mxu0
      %v8211 = vadd.f32 0.0, %v8210
      %v8212 = vpop.f32.mrb[0].mxu0
      %8213 = vdwg.mxu0
      %v8214 = vadd.f32 %v7857, %v8056
      %v8215 = vadd.f32 %v7858, %v8059
      %v8216 = vadd.f32 %v7859, %v8064
      %v8217 = vadd.f32 %v7860, %v8067
      %v8218 = vadd.f32 %v7861, %v8072
      %v8219 = vadd.f32 %v7862, %v8075
      %v8220 = vadd.f32 %v7863, %v8080
      %v8221 = vadd.f32 %v7864, %v8083
      %v8222 = vadd.f32 %v7865, %v8088
      %v8223 = vadd.f32 %v7866, %v8091
      %v8224 = vadd.f32 %v7867, %v8096
      %v8225 = vadd.f32 %v7868, %v8099
      %v8226 = vadd.f32 %v7869, %v8104
      %v8227 = vadd.f32 %v7870, %v8107
      %v8228 = vadd.f32 %v7871, %v8112
      %v8229 = vadd.f32 %v7872, %v8115
      %v8230 = vadd.f32 %v7873, %v8120
      %v8231 = vadd.f32 %v7874, %v8123
      %v8232 = vadd.f32 %v7875, %v8128
      %v8233 = vadd.f32 %v7876, %v8131
      %v8234 = vadd.f32 %v7877, %v8136
      %v8235 = vadd.f32 %v7878, %v8139
      %v8236 = vadd.f32 %v7879, %v8144
      %v8237 = vadd.f32 %v7880, %v8147
      %v8238 = vadd.f32 %v7881, %v8152
      %v8239 = vadd.f32 %v7882, %v8155
      %v8240 = vadd.f32 %v7883, %v8160
      %v8241 = vadd.f32 %v7884, %v8163
      %v8242 = vadd.f32 %v7885, %v8168
      %v8243 = vadd.f32 %v7886, %v8171
      %v8244 = vadd.f32 %v7887, %v8176
      %v8245 = vadd.f32 %v7888, %v8179
      %v8246 = vadd.f32 %v7889, %v8184
      %v8247 = vadd.f32 %v7890, %v8187
      %v8248 = vadd.f32 %v7891, %v8192
      %v8249 = vadd.f32 %v7892, %v8195
      %v8250 = vadd.f32 %v7893, %v8200
      %v8251 = vadd.f32 %v7894, %v8203
      %v8252 = vadd.f32 %v7895, %v8208
      %v8253 = vadd.f32 %v7896, %v8211
      %v8254 = vld [vmem:[%s6] sm:$0x1]
      %v8256 = vlaneseq
      %v8257 = vshrl.u32 %v8256, 7
      %v8258 = vsub.s32 0, %v8257
      %v8259 = vrot.slane %v8254, %v8258
      %v8261 = vadd.f32 %v8214, %v8259
      %v8262 = vadd.f32 %v8215, %v8259
      %v8263 = vadd.f32 %v8216, %v8259
      %v8264 = vadd.f32 %v8217, %v8259
      %v8265 = vadd.f32 %v8218, %v8259
      %v8266 = vadd.f32 %v8219, %v8259
      %v8267 = vadd.f32 %v8220, %v8259
      %v8268 = vadd.f32 %v8221, %v8259
      %v8269 = vadd.f32 %v8222, %v8259
      %v8270 = vadd.f32 %v8223, %v8259
      %v8271 = vadd.f32 %v8224, %v8259
      %v8272 = vadd.f32 %v8225, %v8259
      %v8273 = vadd.f32 %v8226, %v8259
      %v8274 = vadd.f32 %v8227, %v8259
      %v8275 = vadd.f32 %v8228, %v8259
      %v8276 = vadd.f32 %v8229, %v8259
      %v8277 = vadd.f32 %v8230, %v8259
      %v8278 = vadd.f32 %v8231, %v8259
      %v8279 = vadd.f32 %v8232, %v8259
      %v8280 = vadd.f32 %v8233, %v8259
      %v8281 = vadd.f32 %v8234, %v8259
      %v8282 = vadd.f32 %v8235, %v8259
      %v8283 = vadd.f32 %v8236, %v8259
      %v8284 = vadd.f32 %v8237, %v8259
      %v8285 = vadd.f32 %v8238, %v8259
      %v8286 = vadd.f32 %v8239, %v8259
      %v8287 = vadd.f32 %v8240, %v8259
      %v8288 = vadd.f32 %v8241, %v8259
      %v8289 = vadd.f32 %v8242, %v8259
      %v8290 = vadd.f32 %v8243, %v8259
      %v8291 = vadd.f32 %v8244, %v8259
      %v8292 = vadd.f32 %v8245, %v8259
      %v8293 = vadd.f32 %v8246, %v8259
      %v8294 = vadd.f32 %v8247, %v8259
      %v8295 = vadd.f32 %v8248, %v8259
      %v8296 = vadd.f32 %v8249, %v8259
      %v8297 = vadd.f32 %v8250, %v8259
      %v8298 = vadd.f32 %v8251, %v8259
      %v8299 = vadd.f32 %v8252, %v8259
      %v8300 = vadd.f32 %v8253, %v8259
      %8301 = vst.msk [vmem:[%s305] sm:$0xff] %vm454, %v8261
      %8302 = vst.msk [vmem:[%s305 + $0x8] sm:$0xff] %vm454, %v8262
      %8303 = vst.msk [vmem:[%s305 + $0x10] sm:$0xff] %vm454, %v8263
      %8304 = vst.msk [vmem:[%s305 + $0x18] sm:$0xff] %vm454, %v8264
      %8305 = vst.msk [vmem:[%s305 + $0x20] sm:$0xff] %vm454, %v8265
      %8306 = vst.msk [vmem:[%s305 + $0x28] sm:$0xff] %vm454, %v8266
      %8307 = vst.msk [vmem:[%s305 + $0x30] sm:$0xff] %vm454, %v8267
      %8308 = vst.msk [vmem:[%s305 + $0x38] sm:$0xff] %vm454, %v8268
      %8309 = vst.msk [vmem:[%s305 + $0x40] sm:$0xff] %vm454, %v8269
      %8310 = vst.msk [vmem:[%s305 + $0x48] sm:$0xff] %vm454, %v8270
      %8311 = vst.msk [vmem:[%s305 + $0x50] sm:$0xff] %vm454, %v8271
      %8312 = vst.msk [vmem:[%s305 + $0x58] sm:$0xff] %vm454, %v8272
      %8313 = vst.msk [vmem:[%s305 + $0x60] sm:$0xff] %vm454, %v8273
      %8314 = vst.msk [vmem:[%s305 + $0x68] sm:$0xff] %vm454, %v8274
      %8315 = vst.msk [vmem:[%s305 + $0x70] sm:$0xff] %vm454, %v8275
      %8316 = vst.msk [vmem:[%s305 + $0x78] sm:$0xff] %vm454, %v8276
      %8317 = vst.msk [vmem:[%s305 + $0x80] sm:$0xff] %vm454, %v8277
      %8318 = vst.msk [vmem:[%s305 + $0x88] sm:$0xff] %vm454, %v8278
      %8319 = vst.msk [vmem:[%s305 + $0x90] sm:$0xff] %vm454, %v8279
      %8320 = vst.msk [vmem:[%s305 + $0x98] sm:$0xff] %vm454, %v8280
      %8321 = vst.msk [vmem:[%s305 + $0xa0] sm:$0xff] %vm454, %v8281
      %8322 = vst.msk [vmem:[%s305 + $0xa8] sm:$0xff] %vm454, %v8282
      %8323 = vst.msk [vmem:[%s305 + $0xb0] sm:$0xff] %vm454, %v8283
      %8324 = vst.msk [vmem:[%s305 + $0xb8] sm:$0xff] %vm454, %v8284
      %8325 = vst.msk [vmem:[%s305 + $0xc0] sm:$0xff] %vm454, %v8285
      %8326 = vst.msk [vmem:[%s305 + $0xc8] sm:$0xff] %vm454, %v8286
      %8327 = vst.msk [vmem:[%s305 + $0xd0] sm:$0xff] %vm454, %v8287
      %8328 = vst.msk [vmem:[%s305 + $0xd8] sm:$0xff] %vm454, %v8288
      %8329 = vst.msk [vmem:[%s305 + $0xe0] sm:$0xff] %vm454, %v8289
      %8330 = vst.msk [vmem:[%s305 + $0xe8] sm:$0xff] %vm454, %v8290
      %8331 = vst.msk [vmem:[%s305 + $0xf0] sm:$0xff] %vm454, %v8291
      %8332 = vst.msk [vmem:[%s305 + $0xf8] sm:$0xff] %vm454, %v8292
      %8333 = vst.msk [vmem:[%s305 + $0x100] sm:$0xff] %vm454, %v8293
      %8334 = vst.msk [vmem:[%s305 + $0x108] sm:$0xff] %vm454, %v8294
      %8335 = vst.msk [vmem:[%s305 + $0x110] sm:$0xff] %vm454, %v8295
      %8336 = vst.msk [vmem:[%s305 + $0x118] sm:$0xff] %vm454, %v8296
      %8337 = vst.msk [vmem:[%s305 + $0x120] sm:$0xff] %vm454, %v8297
      %8338 = vst.msk [vmem:[%s305 + $0x128] sm:$0xff] %vm454, %v8298
      %8339 = vst.msk [vmem:[%s305 + $0x130] sm:$0xff] %vm454, %v8299
      %8340 = vst.msk [vmem:[%s305 + $0x138] sm:$0xff] %vm454, %v8300
      %p8341 = scmp.lt.s32.totalorder %s19, 1
      %s8342 = scalar_select %p8341, %s19, 1
      %s8343 = smul.addr %s8342, 40
      %s8344 = smul.addr %s8343, 8
      %s8345 = scalar_lea.vmem %s8, %s8344
      // Predicated region
      $region53: #{_resblock_forward.1} parent=51 // pred_check
        %p8346 = pneg %p210
      $region54: #{_resblock_forward.1} parent=51 // pred_check_branch
        %8348 = sbr.rel (%p8346) target = $region56
      $region55: #{_resblock_forward.1} parent=51 // pred_region
        _
      $region56: #{_resblock_forward.1} parent=51 // pred_fallthru
        _
    $region52: #{_resblock_forward.1} parent=5 // pred_fallthru
      _
    %p8349 = scmp.le.s32.totalorder 2, %s14
    // Predicated region
    $region57: #{_resblock_forward.1} parent=5 // pred_check
      %p8350 = pneg %p8349
    $region58: #{_resblock_forward.1} parent=5 // pred_check_branch
      %8352 = sbr.rel (%p8350) target = $region60
    $region59: #{_resblock_forward.1} parent=5 // pred_region
      %s8353 = ssub.s32 %s14, 2
      // Predicated region
      $region61: #{_resblock_forward.1} parent=59 // pred_check
        %p8354 = pneg %p216
      $region62: #{_resblock_forward.1} parent=59 // pred_check_branch
        %8356 = sbr.rel (%p8354) target = $region64
      $region63: #{_resblock_forward.1} parent=59 // pred_region
        %p8357 = scmp.lt.s32.totalorder %s20, 1
        %s8358 = scalar_select %p8357, %s20, 1
        %s8359 = smul.addr %s8358, 40
        %s8360 = smul.addr %s8359, 8
        %s8361 = scalar_lea.vmem %s8, %s8360
      $region64: #{_resblock_forward.1} parent=59 // pred_fallthru
        _
    $region60: #{_resblock_forward.1} parent=5 // pred_fallthru
      _
  $region6: #{_resblock_forward.1} parent=0 // loop_footer
    %s18 = sadd.s32 1, %s14
  $region7: #{_resblock_forward.1} parent=0 // loop_footer_branch
    %13 = sbr.rel target = $region3
  $region8: #{_resblock_forward.1} parent=0 // loop_exit
    _

</llo_original>
